<compile_context>
chip_gen: v7x
topology: tpu7x:2x2x1
jax: 0.10.0
libtpu: 0.0.40
codegen_flags: <defaults>
</compile_context>

<pallas_src>
import numpy as np
import jax
import jax.numpy as jnp
from jax import lax
from jax.experimental import pallas as pl
from jax.experimental.pallas import tpu as pltpu

BN_EPS = 1e-3
LEAKY_SLOPE = 0.1
VMEM_LIMIT = 48 * 1024 * 1024   # under v7x's 64 MiB physical VMEM on all gens
LANES = 128


# ------------------------------ small helpers --------------------------------

def _round_up(x, m):
    return ((x + m - 1) // m) * m


def _mxu_width():
    # v5e MXUs are 128 wide; v6e/v7x are 256 wide.  Best-effort detection.
    try:
        kind = jax.devices()[0].device_kind.lower()
        if "v5 lite" in kind or "v5e" in kind or "v5litepod" in kind:
            return 128
    except Exception:
        pass
    return 256


def _pick_co_tile(cout):
    for t in (_mxu_width(), 256, 128):
        if cout % t == 0:
            return t
    return cout


def _pick_row_tile(h):
    # TH rows per grid step (even, divides H); 8-32 amortizes step overhead.
    for t in (32, 16, 8, 4, 2):
        if h % t == 0:
            return t
    return h


def _pad_hw(x):
    return jnp.pad(x, ((0, 0), (1, 1), (1, 1), (0, 0)))


def _fold_w(w):
    # (3, 3, Cin, Cout) HWIO -> (dx, 3*Cin, Cout); K index = dy*Cin + ci, matching
    # the in-kernel dy-concatenation of the three halo rows along the lane axis.
    kh, kw, cin, cout = w.shape
    return jnp.transpose(w, (1, 0, 2, 3)).reshape(kw, kh * cin, cout).astype(jnp.bfloat16)


def _pad_cout(w, scale, bias, cpad):
    p = cpad - w.shape[-1]
    if p:
        w = jnp.pad(w, ((0, 0), (0, 0), (0, 0), (0, p)))
        scale = jnp.pad(scale, ((0, p),))
        bias = jnp.pad(bias, ((0, p),))
    return w, scale, bias


def _pad_cin(w, cpad):
    p = cpad - w.shape[2]
    return jnp.pad(w, ((0, 0), (0, 0), (0, p), (0, 0))) if p else w


# ------------------------------ Pallas kernels --------------------------------

def _conv_rows(x_halo, w_fold_ref, th, width):
    # x_halo: (TH+2, W+2, Cin) bf16; w_fold_ref: (3, 3*Cin, co_t) bf16.
    # dy folded into K: one lane-concat + 3 dots with K = 3*Cin.
    x_cat = jnp.concatenate(
        [x_halo[0:th], x_halo[1:th + 1], x_halo[2:th + 2]], axis=-1)   # (TH, W+2, 3*Cin)
    k = x_cat.shape[-1]
    co_t = w_fold_ref.shape[-1]
    acc = jnp.zeros((th * width, co_t), jnp.float32)
    for dx in range(3):
        lhs = x_cat[:, dx:dx + width, :].reshape(th * width, k)
        acc = acc + jnp.dot(lhs, w_fold_ref[dx], preferred_element_type=jnp.float32)
    return acc


def _epilogue(acc, scale_ref, bias_ref, o_ref):
    th, width, co_t = o_ref.shape[1], o_ref.shape[2], o_ref.shape[3]
    y = acc * scale_ref[...] + bias_ref[...]          # f32 folded-BN epilogue
    y = jnp.where(y > 0, y, LEAKY_SLOPE * y)          # LeakyReLU(0.1)
    o_ref[0] = y.reshape(th, width, co_t).astype(o_ref.dtype)


def _conv3x3_bn_lrelu_kernel(x_ref, w_ref, scale_ref, bias_ref, o_ref):
    # x_ref: (1, H+2, W+2, Cin) whole padded image, resident across c/h axes.
    th, width = o_ref.shape[1], o_ref.shape[2]
    r0 = pl.multiple_of(pl.program_id(2) * th, th)
    x_halo = x_ref[0, pl.ds(r0, th + 2)]              # (TH+2, W+2, Cin)
    acc = _conv_rows(x_halo, w_ref, th, width)
    _epilogue(acc, scale_ref, bias_ref, o_ref)


def _upconcat_conv3x3_bn_lrelu_kernel(dp_ref, up_ref, wd_ref, wu_ref,
                                      scale_ref, bias_ref, o_ref):
    # First conv with upsample+concat fused: contraction split into the `down`
    # part and the nearest-row-duplicated `up` part (rows duplicated in-kernel).
    th, width = o_ref.shape[1], o_ref.shape[2]
    th2 = th // 2
    r0 = pl.multiple_of(pl.program_id(2) * th, th)
    d_halo = dp_ref[0, pl.ds(r0, th + 2)]                               # (TH+2, W+2, Cd)
    u_half = up_ref[0, pl.ds(pl.multiple_of(pl.program_id(2) * th2, th2), th2 + 2)]
    # Nearest-neighbor row duplication (leading axis) of the half-res halo:
    # full-res padded row j maps to half-res padded row (j+1)//2.
    u_halo = jnp.repeat(u_half, 2, axis=0)[1:th + 3]                    # (TH+2, W+2, Cu)
    acc = _conv_rows(d_halo, wd_ref, th, width)
    acc = acc + _conv_rows(u_halo, wu_ref, th, width)
    _epilogue(acc, scale_ref, bias_ref, o_ref)


# ------------------------------ kernel wrappers --------------------------------

def _call_conv(kernel, operands, in_specs, N, H, W, Cout, co_t, TH, out_dtype):
    grid = (N, Cout // co_t, H // TH)
    return pl.pallas_call(
        kernel,
        out_shape=jax.ShapeDtypeStruct((N, H, W, Cout), out_dtype),
        grid=grid,
        in_specs=in_specs,
        out_specs=pl.BlockSpec((1, TH, W, co_t), lambda n, c, h: (n, h, 0, c)),
        compiler_params=pltpu.CompilerParams(
            dimension_semantics=("parallel", "parallel", "parallel"),
            vmem_limit_bytes=VMEM_LIMIT),
    )(*operands)


def conv3x3_bn_lrelu(x, w, scale, bias, out_dtype=jnp.bfloat16):
    # x: (N, H, W, Cin); w: (3, 3, Cin, Cout) HWIO; scale/bias: (Cout,)
    N, H, W, Cin = x.shape
    assert w.shape[:3] == (3, 3, Cin)
    Cout = w.shape[-1]
    co_t = _pick_co_tile(Cout)
    TH = _pick_row_tile(H)
    assert Cout % co_t == 0 and H % TH == 0

    xp = _pad_hw(x.astype(jnp.bfloat16))               # (N, H+2, W+2, Cin) bf16
    wf = _fold_w(w)                                    # (3, 3*Cin, Cout) bf16
    sc = scale.reshape(1, Cout).astype(jnp.float32)
    bi = bias.reshape(1, Cout).astype(jnp.float32)
    Hp, Wp = H + 2, W + 2

    in_specs = [
        pl.BlockSpec((1, Hp, Wp, Cin), lambda n, c, h: (n, 0, 0, 0)),   # resident / n
        pl.BlockSpec((3, 3 * Cin, co_t), lambda n, c, h: (0, 0, c)),
        pl.BlockSpec((1, co_t), lambda n, c, h: (0, c)),
        pl.BlockSpec((1, co_t), lambda n, c, h: (0, c)),
    ]
    return _call_conv(_conv3x3_bn_lrelu_kernel, (xp, wf, sc, bi),
                      in_specs, N, H, W, Cout, co_t, TH, out_dtype)


def upsample_concat_conv3x3_bn_lrelu(down, up, w, scale, bias,
                                     out_dtype=jnp.bfloat16):
    # down: (N, H, W, Cd); up: (N, H/2, W/2, Cu); w: (3, 3, Cd+Cu, Cout)
    N, H, W, Cd = down.shape
    Nu, Hu, Wu, Cu = up.shape
    assert Nu == N and H == 2 * Hu and W == 2 * Wu
    Cin = Cd + Cu
    assert w.shape[:3] == (3, 3, Cin)
    Cout = w.shape[-1]
    co_t = _pick_co_tile(Cout)
    TH = _pick_row_tile(H)
    assert Cout % co_t == 0 and H % TH == 0 and TH % 2 == 0

    dp = _pad_hw(down.astype(jnp.bfloat16))            # (N, H+2, W+2, Cd)
    # Column nearest-duplication of `up` in bf16 (rows are duplicated in-kernel).
    up_wide = jnp.repeat(up.astype(jnp.bfloat16), 2, axis=2)   # (N, Hu, W, Cu)
    upp = _pad_hw(up_wide)                             # (N, Hu+2, W+2, Cu)

    wdf = _fold_w(w[:, :, :Cd, :])                     # torch.cat([down, up]) order
    wuf = _fold_w(w[:, :, Cd:, :])
    sc = scale.reshape(1, Cout).astype(jnp.float32)
    bi = bias.reshape(1, Cout).astype(jnp.float32)
    Hp, Wp, Hup = H + 2, W + 2, Hu + 2

    in_specs = [
        pl.BlockSpec((1, Hp, Wp, Cd), lambda n, c, h: (n, 0, 0, 0)),
        pl.BlockSpec((1, Hup, Wp, Cu), lambda n, c, h: (n, 0, 0, 0)),
        pl.BlockSpec((3, 3 * Cd, co_t), lambda n, c, h: (0, 0, c)),
        pl.BlockSpec((3, 3 * Cu, co_t), lambda n, c, h: (0, 0, c)),
        pl.BlockSpec((1, co_t), lambda n, c, h: (0, c)),
        pl.BlockSpec((1, co_t), lambda n, c, h: (0, c)),
    ]
    return _call_conv(_upconcat_conv3x3_bn_lrelu_kernel,
                      (dp, upp, wdf, wuf, sc, bi),
                      in_specs, N, H, W, Cout, co_t, TH, out_dtype)


# ------------------------------- parameters ----------------------------------

def _make_conv_bn(key, cin, cout):
    kw, kg, kb, km, kv = jax.random.split(key, 5)
    w = jax.random.normal(kw, (3, 3, cin, cout), jnp.float32) * np.sqrt(2.0 / (9 * cin))
    gamma = 1.0 + 0.1 * jax.random.normal(kg, (cout,), jnp.float32)
    beta = 0.1 * jax.random.normal(kb, (cout,), jnp.float32)
    rmean = 0.1 * jax.random.normal(km, (cout,), jnp.float32)
    rvar = 1.0 + 0.1 * jax.random.uniform(kv, (cout,), jnp.float32)
    scale = gamma / jnp.sqrt(rvar + BN_EPS)            # folded eval-mode BatchNorm
    bias = beta - rmean * scale
    return {"w": w, "scale": scale, "bias": bias}


def init_params(key, c_down, c_up, out_channel):
    k1, k2, k3 = jax.random.split(key, 3)
    cin = c_down + c_up
    return {"conv1": _make_conv_bn(k1, cin, out_channel),
            "conv2": _make_conv_bn(k2, out_channel, out_channel),
            "conv3": _make_conv_bn(k3, out_channel, out_channel)}


# ------------------------------ model forward --------------------------------

def upsample_layer_forward(params, down_nchw, up_nchw):
    # bf16-first NCHW -> NHWC (halves the layout-shim HBM traffic).
    down = jnp.transpose(down_nchw.astype(jnp.bfloat16), (0, 2, 3, 1))
    up = jnp.transpose(up_nchw.astype(jnp.bfloat16), (0, 2, 3, 1))
    c1, c2, c3 = params["conv1"], params["conv2"], params["conv3"]

    cout = c1["w"].shape[-1]
    cpad = _round_up(cout, LANES)   # lane-dense intermediate stores/loads
    w1, s1, b1 = _pad_cout(c1["w"], c1["scale"], c1["bias"], cpad)
    w2, s2, b2 = _pad_cout(_pad_cin(c2["w"], cpad), c2["scale"], c2["bias"], cpad)
    w3 = _pad_cin(c3["w"], cpad)    # final conv keeps the true out_channel

    x = upsample_concat_conv3x3_bn_lrelu(down, up, w1, s1, b1, out_dtype=jnp.bfloat16)
    x = conv3x3_bn_lrelu(x, w2, s2, b2, out_dtype=jnp.bfloat16)
    x = conv3x3_bn_lrelu(x, w3, c3["scale"], c3["bias"], out_dtype=jnp.float32)
    return jnp.transpose(x, (0, 3, 1, 2))              # NHWC -> NCHW, f32


# ---------------------------- pure-JAX reference -----------------------------

def _ref_conv_bn_lrelu(x, w, scale, bias, out_dtype):
    y = lax.conv_general_dilated(
        x.astype(jnp.bfloat16), w.astype(jnp.bfloat16),
        window_strides=(1, 1), padding="SAME",
        dimension_numbers=("NHWC", "HWIO", "NHWC"),
        preferred_element_type=jnp.float32)
    y = y * scale + bias
    y = jnp.where(y > 0, y, LEAKY_SLOPE * y)
    return y.astype(out_dtype)


def ref_forward(params, down_nchw, up_nchw):
    down = jnp.transpose(down_nchw, (0, 2, 3, 1))
    up = jnp.transpose(up_nchw, (0, 2, 3, 1))
    up2x = jnp.repeat(jnp.repeat(up, 2, axis=1), 2, axis=2)
    x = jnp.concatenate([down, up2x], axis=-1)         # torch.cat([down, up], dim=1)
    c1, c2, c3 = params["conv1"], params["conv2"], params["conv3"]
    x = _ref_conv_bn_lrelu(x, c1["w"], c1["scale"], c1["bias"], jnp.bfloat16)
    x = _ref_conv_bn_lrelu(x, c2["w"], c2["scale"], c2["bias"], jnp.bfloat16)
    x = _ref_conv_bn_lrelu(x, c3["w"], c3["scale"], c3["bias"], jnp.float32)
    return jnp.transpose(x, (0, 3, 1, 2))


# ----------------------------------- main -------------------------------------

if __name__ == "__main__":
    N, H, W = 2, 16, 16
    C_DOWN, C_UP, C_OUT = 32, 64, 32                   # in_channel = 96, out = 32

    key = jax.random.PRNGKey(0)
    kp, kd, ku = jax.random.split(key, 3)
    params = init_params(kp, C_DOWN, C_UP, C_OUT)
    down = jax.random.normal(kd, (N, C_DOWN, H, W), jnp.float32)       # NCHW
    up = jax.random.normal(ku, (N, C_UP, H // 2, W // 2), jnp.float32) # NCHW

    out = jax.block_until_ready(jax.jit(upsample_layer_forward)(params, down, up))
    assert out.shape == (N, C_OUT, H, W)

    ref = jax.block_until_ready(jax.jit(ref_forward)(params, down, up))
    np.testing.assert_allclose(np.asarray(out), np.asarray(ref), atol=5e-2, rtol=5e-2)

    print("KERNEL_OK")
</pallas_src>

<mosaic_0001>
module attributes {stable_mosaic.version = 11 : i64} {
  func.func @_upconcat_conv3x3_bn_lrelu_kernel(%arg0: i32, %arg1: i32, %arg2: i32, %arg3: memref<1x18x18x32xbf16, #tpu.memory_space<vmem>>, %arg4: memref<1x10x18x64xbf16, #tpu.memory_space<vmem>>, %arg5: memref<3x96x128xbf16, #tpu.memory_space<vmem>>, %arg6: memref<3x192x128xbf16, #tpu.memory_space<vmem>>, %arg7: memref<1x128xf32, #tpu.memory_space<vmem>>, %arg8: memref<1x128xf32, #tpu.memory_space<vmem>>, %arg9: memref<1x16x16x128xbf16, #tpu.memory_space<vmem>>) attributes {dimension_semantics = [#tpu.dimension_semantics<parallel>, #tpu.dimension_semantics<parallel>, #tpu.dimension_semantics<parallel>], iteration_bounds = array<i64: 2, 1, 1>, scalar_prefetch = 0 : i64, scratch_operands = 0 : i64, tpu.core_type = #tpu.core_type<tc>, window_params = [{transform_indices = @transform_0, window_bounds = array<i64: 1, 18, 18, 32>}, {transform_indices = @transform_1, window_bounds = array<i64: 1, 10, 18, 64>}, {transform_indices = @transform_2, window_bounds = array<i64: 3, 96, 128>}, {transform_indices = @transform_3, window_bounds = array<i64: 3, 192, 128>}, {transform_indices = @transform_4, window_bounds = array<i64: 1, 128>}, {transform_indices = @transform_5, window_bounds = array<i64: 1, 128>}, {transform_indices = @transform_6, window_bounds = array<i64: 1, 16, 16, 128>}]} {
    %c16_i32 = arith.constant 16 : i32
    %0 = arith.muli %arg2, %c16_i32 : i32
    %1 = tpu.assume_multiple %0, 16 : i32
    %c0 = arith.constant 0 : index
    %2 = arith.index_cast %1 : i32 to index
    %c0_0 = arith.constant 0 : index
    %c0_1 = arith.constant 0 : index
    %3 = vector.load %arg3[%c0, %2, %c0_0, %c0_1] : memref<1x18x18x32xbf16, #tpu.memory_space<vmem>>, vector<1x18x18x32xbf16>
    %4 = vector.shape_cast %3 : vector<1x18x18x32xbf16> to vector<18x18x32xbf16>
    %c8_i32 = arith.constant 8 : i32
    %5 = arith.muli %arg2, %c8_i32 : i32
    %6 = tpu.assume_multiple %5, 8 : i32
    %c0_2 = arith.constant 0 : index
    %7 = arith.index_cast %6 : i32 to index
    %c0_3 = arith.constant 0 : index
    %c0_4 = arith.constant 0 : index
    %8 = vector.load %arg4[%c0_2, %7, %c0_3, %c0_4] : memref<1x10x18x64xbf16, #tpu.memory_space<vmem>>, vector<1x10x18x64xbf16>
    %9 = vector.shape_cast %8 : vector<1x10x18x64xbf16> to vector<10x18x64xbf16>
    %10 = vector.shape_cast %9 : vector<10x18x64xbf16> to vector<10x1x18x64xbf16>
    %11 = vector.broadcast %10 : vector<10x1x18x64xbf16> to vector<10x2x18x64xbf16>
    %12 = vector.shape_cast %11 : vector<10x2x18x64xbf16> to vector<20x18x64xbf16>
    %13 = vector.extract_strided_slice %12 {offsets = [1, 0, 0], sizes = [18, 18, 64], strides = [1, 1, 1]} : vector<20x18x64xbf16> to vector<18x18x64xbf16>
    %14 = vector.extract_strided_slice %4 {offsets = [0, 0, 0], sizes = [16, 18, 32], strides = [1, 1, 1]} : vector<18x18x32xbf16> to vector<16x18x32xbf16>
    %15 = vector.extract_strided_slice %4 {offsets = [1, 0, 0], sizes = [16, 18, 32], strides = [1, 1, 1]} : vector<18x18x32xbf16> to vector<16x18x32xbf16>
    %16 = vector.extract_strided_slice %4 {offsets = [2, 0, 0], sizes = [16, 18, 32], strides = [1, 1, 1]} : vector<18x18x32xbf16> to vector<16x18x32xbf16>
    %17 = tpu.concatenate %14, %15, %16 in 2 : vector<16x18x32xbf16>, vector<16x18x32xbf16>, vector<16x18x32xbf16> -> vector<16x18x96xbf16>
    %cst = arith.constant 0.000000e+00 : f32
    %18 = vector.broadcast %cst : f32 to vector<256x128xf32>
    %19 = vector.extract_strided_slice %17 {offsets = [0, 0, 0], sizes = [16, 16, 96], strides = [1, 1, 1]} : vector<16x18x96xbf16> to vector<16x16x96xbf16>
    %20 = vector.shape_cast %19 : vector<16x16x96xbf16> to vector<256x96xbf16>
    %c0_5 = arith.constant 0 : index
    %c0_6 = arith.constant 0 : index
    %c0_7 = arith.constant 0 : index
    %21 = vector.load %arg5[%c0_5, %c0_6, %c0_7] : memref<3x96x128xbf16, #tpu.memory_space<vmem>>, vector<1x96x128xbf16>
    %22 = vector.shape_cast %21 : vector<1x96x128xbf16> to vector<96x128xbf16>
    %cst_8 = arith.constant dense<0.000000e+00> : vector<256x128xf32>
    %23 = tpu.matmul %20, %22, %cst_8 {dimension_numbers = #tpu.dot_dimension_numbers<[1], [0], [0], [1], [0, 0, 1, 1], [], []>} : vector<256x96xbf16>, vector<96x128xbf16>, vector<256x128xf32> -> vector<256x128xf32>
    %24 = arith.addf %18, %23 : vector<256x128xf32>
    %25 = vector.extract_strided_slice %17 {offsets = [0, 1, 0], sizes = [16, 16, 96], strides = [1, 1, 1]} : vector<16x18x96xbf16> to vector<16x16x96xbf16>
    %26 = vector.shape_cast %25 : vector<16x16x96xbf16> to vector<256x96xbf16>
    %c1 = arith.constant 1 : index
    %c0_9 = arith.constant 0 : index
    %c0_10 = arith.constant 0 : index
    %27 = vector.load %arg5[%c1, %c0_9, %c0_10] : memref<3x96x128xbf16, #tpu.memory_space<vmem>>, vector<1x96x128xbf16>
    %28 = vector.shape_cast %27 : vector<1x96x128xbf16> to vector<96x128xbf16>
    %cst_11 = arith.constant dense<0.000000e+00> : vector<256x128xf32>
    %29 = tpu.matmul %26, %28, %cst_11 {dimension_numbers = #tpu.dot_dimension_numbers<[1], [0], [0], [1], [0, 0, 1, 1], [], []>} : vector<256x96xbf16>, vector<96x128xbf16>, vector<256x128xf32> -> vector<256x128xf32>
    %30 = arith.addf %24, %29 : vector<256x128xf32>
    %31 = vector.extract_strided_slice %17 {offsets = [0, 2, 0], sizes = [16, 16, 96], strides = [1, 1, 1]} : vector<16x18x96xbf16> to vector<16x16x96xbf16>
    %32 = vector.shape_cast %31 : vector<16x16x96xbf16> to vector<256x96xbf16>
    %c2 = arith.constant 2 : index
    %c0_12 = arith.constant 0 : index
    %c0_13 = arith.constant 0 : index
    %33 = vector.load %arg5[%c2, %c0_12, %c0_13] : memref<3x96x128xbf16, #tpu.memory_space<vmem>>, vector<1x96x128xbf16>
    %34 = vector.shape_cast %33 : vector<1x96x128xbf16> to vector<96x128xbf16>
    %cst_14 = arith.constant dense<0.000000e+00> : vector<256x128xf32>
    %35 = tpu.matmul %32, %34, %cst_14 {dimension_numbers = #tpu.dot_dimension_numbers<[1], [0], [0], [1], [0, 0, 1, 1], [], []>} : vector<256x96xbf16>, vector<96x128xbf16>, vector<256x128xf32> -> vector<256x128xf32>
    %36 = arith.addf %30, %35 : vector<256x128xf32>
    %37 = vector.extract_strided_slice %13 {offsets = [0, 0, 0], sizes = [16, 18, 64], strides = [1, 1, 1]} : vector<18x18x64xbf16> to vector<16x18x64xbf16>
    %38 = vector.extract_strided_slice %13 {offsets = [1, 0, 0], sizes = [16, 18, 64], strides = [1, 1, 1]} : vector<18x18x64xbf16> to vector<16x18x64xbf16>
    %39 = vector.extract_strided_slice %13 {offsets = [2, 0, 0], sizes = [16, 18, 64], strides = [1, 1, 1]} : vector<18x18x64xbf16> to vector<16x18x64xbf16>
    %40 = tpu.concatenate %37, %38, %39 in 2 : vector<16x18x64xbf16>, vector<16x18x64xbf16>, vector<16x18x64xbf16> -> vector<16x18x192xbf16>
    %cst_15 = arith.constant 0.000000e+00 : f32
    %41 = vector.broadcast %cst_15 : f32 to vector<256x128xf32>
    %42 = vector.extract_strided_slice %40 {offsets = [0, 0, 0], sizes = [16, 16, 192], strides = [1, 1, 1]} : vector<16x18x192xbf16> to vector<16x16x192xbf16>
    %43 = vector.shape_cast %42 : vector<16x16x192xbf16> to vector<256x192xbf16>
    %c0_16 = arith.constant 0 : index
    %c0_17 = arith.constant 0 : index
    %c0_18 = arith.constant 0 : index
    %44 = vector.load %arg6[%c0_16, %c0_17, %c0_18] : memref<3x192x128xbf16, #tpu.memory_space<vmem>>, vector<1x192x128xbf16>
    %45 = vector.shape_cast %44 : vector<1x192x128xbf16> to vector<192x128xbf16>
    %cst_19 = arith.constant dense<0.000000e+00> : vector<256x128xf32>
    %46 = tpu.matmul %43, %45, %cst_19 {dimension_numbers = #tpu.dot_dimension_numbers<[1], [0], [0], [1], [0, 0, 1, 1], [], []>} : vector<256x192xbf16>, vector<192x128xbf16>, vector<256x128xf32> -> vector<256x128xf32>
    %47 = arith.addf %41, %46 : vector<256x128xf32>
    %48 = vector.extract_strided_slice %40 {offsets = [0, 1, 0], sizes = [16, 16, 192], strides = [1, 1, 1]} : vector<16x18x192xbf16> to vector<16x16x192xbf16>
    %49 = vector.shape_cast %48 : vector<16x16x192xbf16> to vector<256x192xbf16>
    %c1_20 = arith.constant 1 : index
    %c0_21 = arith.constant 0 : index
    %c0_22 = arith.constant 0 : index
    %50 = vector.load %arg6[%c1_20, %c0_21, %c0_22] : memref<3x192x128xbf16, #tpu.memory_space<vmem>>, vector<1x192x128xbf16>
    %51 = vector.shape_cast %50 : vector<1x192x128xbf16> to vector<192x128xbf16>
    %cst_23 = arith.constant dense<0.000000e+00> : vector<256x128xf32>
    %52 = tpu.matmul %49, %51, %cst_23 {dimension_numbers = #tpu.dot_dimension_numbers<[1], [0], [0], [1], [0, 0, 1, 1], [], []>} : vector<256x192xbf16>, vector<192x128xbf16>, vector<256x128xf32> -> vector<256x128xf32>
    %53 = arith.addf %47, %52 : vector<256x128xf32>
    %54 = vector.extract_strided_slice %40 {offsets = [0, 2, 0], sizes = [16, 16, 192], strides = [1, 1, 1]} : vector<16x18x192xbf16> to vector<16x16x192xbf16>
    %55 = vector.shape_cast %54 : vector<16x16x192xbf16> to vector<256x192xbf16>
    %c2_24 = arith.constant 2 : index
    %c0_25 = arith.constant 0 : index
    %c0_26 = arith.constant 0 : index
    %56 = vector.load %arg6[%c2_24, %c0_25, %c0_26] : memref<3x192x128xbf16, #tpu.memory_space<vmem>>, vector<1x192x128xbf16>
    %57 = vector.shape_cast %56 : vector<1x192x128xbf16> to vector<192x128xbf16>
    %cst_27 = arith.constant dense<0.000000e+00> : vector<256x128xf32>
    %58 = tpu.matmul %55, %57, %cst_27 {dimension_numbers = #tpu.dot_dimension_numbers<[1], [0], [0], [1], [0, 0, 1, 1], [], []>} : vector<256x192xbf16>, vector<192x128xbf16>, vector<256x128xf32> -> vector<256x128xf32>
    %59 = arith.addf %53, %58 : vector<256x128xf32>
    %60 = arith.addf %36, %59 : vector<256x128xf32>
    %c0_28 = arith.constant 0 : index
    %c0_29 = arith.constant 0 : index
    %61 = vector.load %arg7[%c0_28, %c0_29] : memref<1x128xf32, #tpu.memory_space<vmem>>, vector<1x128xf32>
    %62 = vector.broadcast %61 : vector<1x128xf32> to vector<256x128xf32>
    %63 = arith.mulf %60, %62 : vector<256x128xf32>
    %c0_30 = arith.constant 0 : index
    %c0_31 = arith.constant 0 : index
    %64 = vector.load %arg8[%c0_30, %c0_31] : memref<1x128xf32, #tpu.memory_space<vmem>>, vector<1x128xf32>
    %65 = vector.broadcast %64 : vector<1x128xf32> to vector<256x128xf32>
    %66 = arith.addf %63, %65 : vector<256x128xf32>
    %cst_32 = arith.constant 0.000000e+00 : f32
    %67 = vector.broadcast %cst_32 : f32 to vector<256x128xf32>
    %68 = arith.cmpf ogt, %66, %67 : vector<256x128xf32>
    %cst_33 = arith.constant 1.000000e-01 : f32
    %69 = vector.broadcast %cst_33 : f32 to vector<256x128xf32>
    %70 = arith.mulf %69, %66 : vector<256x128xf32>
    %71 = arith.select %68, %66, %70 : vector<256x128xi1>, vector<256x128xf32>
    %72 = vector.shape_cast %71 : vector<256x128xf32> to vector<16x16x128xf32>
    %73 = arith.truncf %72 : vector<16x16x128xf32> to vector<16x16x128xbf16>
    %c0_34 = arith.constant 0 : index
    %c0_35 = arith.constant 0 : index
    %c0_36 = arith.constant 0 : index
    %c0_37 = arith.constant 0 : index
    %74 = vector.load %arg9[%c0_34, %c0_35, %c0_36, %c0_37] : memref<1x16x16x128xbf16, #tpu.memory_space<vmem>>, vector<1x16x16x128xbf16>
    %75 = vector.shape_cast %74 : vector<1x16x16x128xbf16> to vector<16x16x128xbf16>
    %76 = vector.shape_cast %73 : vector<16x16x128xbf16> to vector<1x16x16x128xbf16>
    tpu.vector_store %arg9[%c0_34, %c0_35, %c0_36, %c0_37], %76 {strides = array<i32>} : memref<1x16x16x128xbf16, #tpu.memory_space<vmem>>, vector<1x16x16x128xbf16>,
    return
  }
  func.func @transform_0(%arg0: i32, %arg1: i32, %arg2: i32) -> (i32, i32, i32, i32) {
    %c0_i32 = arith.constant 0 : i32
    %c0_i32_0 = arith.constant 0 : i32
    %c0_i32_1 = arith.constant 0 : i32
    %c0_i32_2 = arith.constant 0 : i32
    return %arg0, %c0_i32, %c0_i32_0, %c0_i32_1 : i32, i32, i32, i32
  }
  func.func @transform_1(%arg0: i32, %arg1: i32, %arg2: i32) -> (i32, i32, i32, i32) {
    %c0_i32 = arith.constant 0 : i32
    %c0_i32_0 = arith.constant 0 : i32
    %c0_i32_1 = arith.constant 0 : i32
    %c0_i32_2 = arith.constant 0 : i32
    return %arg0, %c0_i32, %c0_i32_0, %c0_i32_1 : i32, i32, i32, i32
  }
  func.func @transform_2(%arg0: i32, %arg1: i32, %arg2: i32) -> (i32, i32, i32) {
    %c0_i32 = arith.constant 0 : i32
    %c0_i32_0 = arith.constant 0 : i32
    %c0_i32_1 = arith.constant 0 : i32
    return %c0_i32, %c0_i32_0, %arg1 : i32, i32, i32
  }
  func.func @transform_3(%arg0: i32, %arg1: i32, %arg2: i32) -> (i32, i32, i32) {
    %c0_i32 = arith.constant 0 : i32
    %c0_i32_0 = arith.constant 0 : i32
    %c0_i32_1 = arith.constant 0 : i32
    return %c0_i32, %c0_i32_0, %arg1 : i32, i32, i32
  }
  func.func @transform_4(%arg0: i32, %arg1: i32, %arg2: i32) -> (i32, i32) {
    %c0_i32 = arith.constant 0 : i32
    %c0_i32_0 = arith.constant 0 : i32
    return %c0_i32, %arg1 : i32, i32
  }
  func.func @transform_5(%arg0: i32, %arg1: i32, %arg2: i32) -> (i32, i32) {
    %c0_i32 = arith.constant 0 : i32
    %c0_i32_0 = arith.constant 0 : i32
    return %c0_i32, %arg1 : i32, i32
  }
  func.func @transform_6(%arg0: i32, %arg1: i32, %arg2: i32) -> (i32, i32, i32, i32) {
    %c0_i32 = arith.constant 0 : i32
    %c0_i32_0 = arith.constant 0 : i32
    return %arg0, %arg2, %c0_i32, %arg1 : i32, i32, i32, i32
  }
}

module attributes {stable_mosaic.version = 11 : i64} {
  func.func @_conv3x3_bn_lrelu_kernel(%arg0: i32, %arg1: i32, %arg2: i32, %arg3: memref<1x18x18x128xbf16, #tpu.memory_space<vmem>>, %arg4: memref<3x384x128xbf16, #tpu.memory_space<vmem>>, %arg5: memref<1x128xf32, #tpu.memory_space<vmem>>, %arg6: memref<1x128xf32, #tpu.memory_space<vmem>>, %arg7: memref<1x16x16x128xbf16, #tpu.memory_space<vmem>>) attributes {dimension_semantics = [#tpu.dimension_semantics<parallel>, #tpu.dimension_semantics<parallel>, #tpu.dimension_semantics<parallel>], iteration_bounds = array<i64: 2, 1, 1>, scalar_prefetch = 0 : i64, scratch_operands = 0 : i64, tpu.core_type = #tpu.core_type<tc>, window_params = [{transform_indices = @transform_0, window_bounds = array<i64: 1, 18, 18, 128>}, {transform_indices = @transform_1, window_bounds = array<i64: 3, 384, 128>}, {transform_indices = @transform_2, window_bounds = array<i64: 1, 128>}, {transform_indices = @transform_3, window_bounds = array<i64: 1, 128>}, {transform_indices = @transform_4, window_bounds = array<i64: 1, 16, 16, 128>}]} {
    %c16_i32 = arith.constant 16 : i32
    %0 = arith.muli %arg2, %c16_i32 : i32
    %1 = tpu.assume_multiple %0, 16 : i32
    %c0 = arith.constant 0 : index
    %2 = arith.index_cast %1 : i32 to index
    %c0_0 = arith.constant 0 : index
    %c0_1 = arith.constant 0 : index
    %3 = vector.load %arg3[%c0, %2, %c0_0, %c0_1] : memref<1x18x18x128xbf16, #tpu.memory_space<vmem>>, vector<1x18x18x128xbf16>
    %4 = vector.shape_cast %3 : vector<1x18x18x128xbf16> to vector<18x18x128xbf16>
    %5 = vector.extract_strided_slice %4 {offsets = [0, 0, 0], sizes = [16, 18, 128], strides = [1, 1, 1]} : vector<18x18x128xbf16> to vector<16x18x128xbf16>
    %6 = vector.extract_strided_slice %4 {offsets = [1, 0, 0], sizes = [16, 18, 128], strides = [1, 1, 1]} : vector<18x18x128xbf16> to vector<16x18x128xbf16>
    %7 = vector.extract_strided_slice %4 {offsets = [2, 0, 0], sizes = [16, 18, 128], strides = [1, 1, 1]} : vector<18x18x128xbf16> to vector<16x18x128xbf16>
    %8 = tpu.concatenate %5, %6, %7 in 2 : vector<16x18x128xbf16>, vector<16x18x128xbf16>, vector<16x18x128xbf16> -> vector<16x18x384xbf16>
    %cst = arith.constant 0.000000e+00 : f32
    %9 = vector.broadcast %cst : f32 to vector<256x128xf32>
    %10 = vector.extract_strided_slice %8 {offsets = [0, 0, 0], sizes = [16, 16, 384], strides = [1, 1, 1]} : vector<16x18x384xbf16> to vector<16x16x384xbf16>
    %11 = vector.shape_cast %10 : vector<16x16x384xbf16> to vector<256x384xbf16>
    %c0_2 = arith.constant 0 : index
    %c0_3 = arith.constant 0 : index
    %c0_4 = arith.constant 0 : index
    %12 = vector.load %arg4[%c0_2, %c0_3, %c0_4] : memref<3x384x128xbf16, #tpu.memory_space<vmem>>, vector<1x384x128xbf16>
    %13 = vector.shape_cast %12 : vector<1x384x128xbf16> to vector<384x128xbf16>
    %cst_5 = arith.constant dense<0.000000e+00> : vector<256x128xf32>
    %14 = tpu.matmul %11, %13, %cst_5 {dimension_numbers = #tpu.dot_dimension_numbers<[1], [0], [0], [1], [0, 0, 1, 1], [], []>} : vector<256x384xbf16>, vector<384x128xbf16>, vector<256x128xf32> -> vector<256x128xf32>
    %15 = arith.addf %9, %14 : vector<256x128xf32>
    %16 = vector.extract_strided_slice %8 {offsets = [0, 1, 0], sizes = [16, 16, 384], strides = [1, 1, 1]} : vector<16x18x384xbf16> to vector<16x16x384xbf16>
    %17 = vector.shape_cast %16 : vector<16x16x384xbf16> to vector<256x384xbf16>
    %c1 = arith.constant 1 : index
    %c0_6 = arith.constant 0 : index
    %c0_7 = arith.constant 0 : index
    %18 = vector.load %arg4[%c1, %c0_6, %c0_7] : memref<3x384x128xbf16, #tpu.memory_space<vmem>>, vector<1x384x128xbf16>
    %19 = vector.shape_cast %18 : vector<1x384x128xbf16> to vector<384x128xbf16>
    %cst_8 = arith.constant dense<0.000000e+00> : vector<256x128xf32>
    %20 = tpu.matmul %17, %19, %cst_8 {dimension_numbers = #tpu.dot_dimension_numbers<[1], [0], [0], [1], [0, 0, 1, 1], [], []>} : vector<256x384xbf16>, vector<384x128xbf16>, vector<256x128xf32> -> vector<256x128xf32>
    %21 = arith.addf %15, %20 : vector<256x128xf32>
    %22 = vector.extract_strided_slice %8 {offsets = [0, 2, 0], sizes = [16, 16, 384], strides = [1, 1, 1]} : vector<16x18x384xbf16> to vector<16x16x384xbf16>
    %23 = vector.shape_cast %22 : vector<16x16x384xbf16> to vector<256x384xbf16>
    %c2 = arith.constant 2 : index
    %c0_9 = arith.constant 0 : index
    %c0_10 = arith.constant 0 : index
    %24 = vector.load %arg4[%c2, %c0_9, %c0_10] : memref<3x384x128xbf16, #tpu.memory_space<vmem>>, vector<1x384x128xbf16>
    %25 = vector.shape_cast %24 : vector<1x384x128xbf16> to vector<384x128xbf16>
    %cst_11 = arith.constant dense<0.000000e+00> : vector<256x128xf32>
    %26 = tpu.matmul %23, %25, %cst_11 {dimension_numbers = #tpu.dot_dimension_numbers<[1], [0], [0], [1], [0, 0, 1, 1], [], []>} : vector<256x384xbf16>, vector<384x128xbf16>, vector<256x128xf32> -> vector<256x128xf32>
    %27 = arith.addf %21, %26 : vector<256x128xf32>
    %c0_12 = arith.constant 0 : index
    %c0_13 = arith.constant 0 : index
    %28 = vector.load %arg5[%c0_12, %c0_13] : memref<1x128xf32, #tpu.memory_space<vmem>>, vector<1x128xf32>
    %29 = vector.broadcast %28 : vector<1x128xf32> to vector<256x128xf32>
    %30 = arith.mulf %27, %29 : vector<256x128xf32>
    %c0_14 = arith.constant 0 : index
    %c0_15 = arith.constant 0 : index
    %31 = vector.load %arg6[%c0_14, %c0_15] : memref<1x128xf32, #tpu.memory_space<vmem>>, vector<1x128xf32>
    %32 = vector.broadcast %31 : vector<1x128xf32> to vector<256x128xf32>
    %33 = arith.addf %30, %32 : vector<256x128xf32>
    %cst_16 = arith.constant 0.000000e+00 : f32
    %34 = vector.broadcast %cst_16 : f32 to vector<256x128xf32>
    %35 = arith.cmpf ogt, %33, %34 : vector<256x128xf32>
    %cst_17 = arith.constant 1.000000e-01 : f32
    %36 = vector.broadcast %cst_17 : f32 to vector<256x128xf32>
    %37 = arith.mulf %36, %33 : vector<256x128xf32>
    %38 = arith.select %35, %33, %37 : vector<256x128xi1>, vector<256x128xf32>
    %39 = vector.shape_cast %38 : vector<256x128xf32> to vector<16x16x128xf32>
    %40 = arith.truncf %39 : vector<16x16x128xf32> to vector<16x16x128xbf16>
    %c0_18 = arith.constant 0 : index
    %c0_19 = arith.constant 0 : index
    %c0_20 = arith.constant 0 : index
    %c0_21 = arith.constant 0 : index
    %41 = vector.load %arg7[%c0_18, %c0_19, %c0_20, %c0_21] : memref<1x16x16x128xbf16, #tpu.memory_space<vmem>>, vector<1x16x16x128xbf16>
    %42 = vector.shape_cast %41 : vector<1x16x16x128xbf16> to vector<16x16x128xbf16>
    %43 = vector.shape_cast %40 : vector<16x16x128xbf16> to vector<1x16x16x128xbf16>
    tpu.vector_store %arg7[%c0_18, %c0_19, %c0_20, %c0_21], %43 {strides = array<i32>} : memref<1x16x16x128xbf16, #tpu.memory_space<vmem>>, vector<1x16x16x128xbf16>,
    return
  }
  func.func @transform_0(%arg0: i32, %arg1: i32, %arg2: i32) -> (i32, i32, i32, i32) {
    %c0_i32 = arith.constant 0 : i32
    %c0_i32_0 = arith.constant 0 : i32
    %c0_i32_1 = arith.constant 0 : i32
    %c0_i32_2 = arith.constant 0 : i32
    return %arg0, %c0_i32, %c0_i32_0, %c0_i32_1 : i32, i32, i32, i32
  }
  func.func @transform_1(%arg0: i32, %arg1: i32, %arg2: i32) -> (i32, i32, i32) {
    %c0_i32 = arith.constant 0 : i32
    %c0_i32_0 = arith.constant 0 : i32
    %c0_i32_1 = arith.constant 0 : i32
    return %c0_i32, %c0_i32_0, %arg1 : i32, i32, i32
  }
  func.func @transform_2(%arg0: i32, %arg1: i32, %arg2: i32) -> (i32, i32) {
    %c0_i32 = arith.constant 0 : i32
    %c0_i32_0 = arith.constant 0 : i32
    return %c0_i32, %arg1 : i32, i32
  }
  func.func @transform_3(%arg0: i32, %arg1: i32, %arg2: i32) -> (i32, i32) {
    %c0_i32 = arith.constant 0 : i32
    %c0_i32_0 = arith.constant 0 : i32
    return %c0_i32, %arg1 : i32, i32
  }
  func.func @transform_4(%arg0: i32, %arg1: i32, %arg2: i32) -> (i32, i32, i32, i32) {
    %c0_i32 = arith.constant 0 : i32
    %c0_i32_0 = arith.constant 0 : i32
    return %arg0, %arg2, %c0_i32, %arg1 : i32, i32, i32, i32
  }
}

module attributes {stable_mosaic.version = 11 : i64} {
  func.func @_conv3x3_bn_lrelu_kernel(%arg0: i32, %arg1: i32, %arg2: i32, %arg3: memref<1x18x18x128xbf16, #tpu.memory_space<vmem>>, %arg4: memref<3x384x32xbf16, #tpu.memory_space<vmem>>, %arg5: memref<1x32xf32, #tpu.memory_space<vmem>>, %arg6: memref<1x32xf32, #tpu.memory_space<vmem>>, %arg7: memref<1x16x16x32xf32, #tpu.memory_space<vmem>>) attributes {dimension_semantics = [#tpu.dimension_semantics<parallel>, #tpu.dimension_semantics<parallel>, #tpu.dimension_semantics<parallel>], iteration_bounds = array<i64: 2, 1, 1>, scalar_prefetch = 0 : i64, scratch_operands = 0 : i64, tpu.core_type = #tpu.core_type<tc>, window_params = [{transform_indices = @transform_0, window_bounds = array<i64: 1, 18, 18, 128>}, {transform_indices = @transform_1, window_bounds = array<i64: 3, 384, 32>}, {transform_indices = @transform_2, window_bounds = array<i64: 1, 32>}, {transform_indices = @transform_3, window_bounds = array<i64: 1, 32>}, {transform_indices = @transform_4, window_bounds = array<i64: 1, 16, 16, 32>}]} {
    %c16_i32 = arith.constant 16 : i32
    %0 = arith.muli %arg2, %c16_i32 : i32
    %1 = tpu.assume_multiple %0, 16 : i32
    %c0 = arith.constant 0 : index
    %2 = arith.index_cast %1 : i32 to index
    %c0_0 = arith.constant 0 : index
    %c0_1 = arith.constant 0 : index
    %3 = vector.load %arg3[%c0, %2, %c0_0, %c0_1] : memref<1x18x18x128xbf16, #tpu.memory_space<vmem>>, vector<1x18x18x128xbf16>
    %4 = vector.shape_cast %3 : vector<1x18x18x128xbf16> to vector<18x18x128xbf16>
    %5 = vector.extract_strided_slice %4 {offsets = [0, 0, 0], sizes = [16, 18, 128], strides = [1, 1, 1]} : vector<18x18x128xbf16> to vector<16x18x128xbf16>
    %6 = vector.extract_strided_slice %4 {offsets = [1, 0, 0], sizes = [16, 18, 128], strides = [1, 1, 1]} : vector<18x18x128xbf16> to vector<16x18x128xbf16>
    %7 = vector.extract_strided_slice %4 {offsets = [2, 0, 0], sizes = [16, 18, 128], strides = [1, 1, 1]} : vector<18x18x128xbf16> to vector<16x18x128xbf16>
    %8 = tpu.concatenate %5, %6, %7 in 2 : vector<16x18x128xbf16>, vector<16x18x128xbf16>, vector<16x18x128xbf16> -> vector<16x18x384xbf16>
    %cst = arith.constant 0.000000e+00 : f32
    %9 = vector.broadcast %cst : f32 to vector<256x32xf32>
    %10 = vector.extract_strided_slice %8 {offsets = [0, 0, 0], sizes = [16, 16, 384], strides = [1, 1, 1]} : vector<16x18x384xbf16> to vector<16x16x384xbf16>
    %11 = vector.shape_cast %10 : vector<16x16x384xbf16> to vector<256x384xbf16>
    %c0_2 = arith.constant 0 : index
    %c0_3 = arith.constant 0 : index
    %c0_4 = arith.constant 0 : index
    %12 = vector.load %arg4[%c0_2, %c0_3, %c0_4] : memref<3x384x32xbf16, #tpu.memory_space<vmem>>, vector<1x384x32xbf16>
    %13 = vector.shape_cast %12 : vector<1x384x32xbf16> to vector<384x32xbf16>
    %cst_5 = arith.constant dense<0.000000e+00> : vector<256x32xf32>
    %14 = tpu.matmul %11, %13, %cst_5 {dimension_numbers = #tpu.dot_dimension_numbers<[1], [0], [0], [1], [0, 0, 1, 1], [], []>} : vector<256x384xbf16>, vector<384x32xbf16>, vector<256x32xf32> -> vector<256x32xf32>
    %15 = arith.addf %9, %14 : vector<256x32xf32>
    %16 = vector.extract_strided_slice %8 {offsets = [0, 1, 0], sizes = [16, 16, 384], strides = [1, 1, 1]} : vector<16x18x384xbf16> to vector<16x16x384xbf16>
    %17 = vector.shape_cast %16 : vector<16x16x384xbf16> to vector<256x384xbf16>
    %c1 = arith.constant 1 : index
    %c0_6 = arith.constant 0 : index
    %c0_7 = arith.constant 0 : index
    %18 = vector.load %arg4[%c1, %c0_6, %c0_7] : memref<3x384x32xbf16, #tpu.memory_space<vmem>>, vector<1x384x32xbf16>
    %19 = vector.shape_cast %18 : vector<1x384x32xbf16> to vector<384x32xbf16>
    %cst_8 = arith.constant dense<0.000000e+00> : vector<256x32xf32>
    %20 = tpu.matmul %17, %19, %cst_8 {dimension_numbers = #tpu.dot_dimension_numbers<[1], [0], [0], [1], [0, 0, 1, 1], [], []>} : vector<256x384xbf16>, vector<384x32xbf16>, vector<256x32xf32> -> vector<256x32xf32>
    %21 = arith.addf %15, %20 : vector<256x32xf32>
    %22 = vector.extract_strided_slice %8 {offsets = [0, 2, 0], sizes = [16, 16, 384], strides = [1, 1, 1]} : vector<16x18x384xbf16> to vector<16x16x384xbf16>
    %23 = vector.shape_cast %22 : vector<16x16x384xbf16> to vector<256x384xbf16>
    %c2 = arith.constant 2 : index
    %c0_9 = arith.constant 0 : index
    %c0_10 = arith.constant 0 : index
    %24 = vector.load %arg4[%c2, %c0_9, %c0_10] : memref<3x384x32xbf16, #tpu.memory_space<vmem>>, vector<1x384x32xbf16>
    %25 = vector.shape_cast %24 : vector<1x384x32xbf16> to vector<384x32xbf16>
    %cst_11 = arith.constant dense<0.000000e+00> : vector<256x32xf32>
    %26 = tpu.matmul %23, %25, %cst_11 {dimension_numbers = #tpu.dot_dimension_numbers<[1], [0], [0], [1], [0, 0, 1, 1], [], []>} : vector<256x384xbf16>, vector<384x32xbf16>, vector<256x32xf32> -> vector<256x32xf32>
    %27 = arith.addf %21, %26 : vector<256x32xf32>
    %c0_12 = arith.constant 0 : index
    %c0_13 = arith.constant 0 : index
    %28 = vector.load %arg5[%c0_12, %c0_13] : memref<1x32xf32, #tpu.memory_space<vmem>>, vector<1x32xf32>
    %29 = vector.broadcast %28 : vector<1x32xf32> to vector<256x32xf32>
    %30 = arith.mulf %27, %29 : vector<256x32xf32>
    %c0_14 = arith.constant 0 : index
    %c0_15 = arith.constant 0 : index
    %31 = vector.load %arg6[%c0_14, %c0_15] : memref<1x32xf32, #tpu.memory_space<vmem>>, vector<1x32xf32>
    %32 = vector.broadcast %31 : vector<1x32xf32> to vector<256x32xf32>
    %33 = arith.addf %30, %32 : vector<256x32xf32>
    %cst_16 = arith.constant 0.000000e+00 : f32
    %34 = vector.broadcast %cst_16 : f32 to vector<256x32xf32>
    %35 = arith.cmpf ogt, %33, %34 : vector<256x32xf32>
    %cst_17 = arith.constant 1.000000e-01 : f32
    %36 = vector.broadcast %cst_17 : f32 to vector<256x32xf32>
    %37 = arith.mulf %36, %33 : vector<256x32xf32>
    %38 = arith.select %35, %33, %37 : vector<256x32xi1>, vector<256x32xf32>
    %39 = vector.shape_cast %38 : vector<256x32xf32> to vector<16x16x32xf32>
    %c0_18 = arith.constant 0 : index
    %c0_19 = arith.constant 0 : index
    %c0_20 = arith.constant 0 : index
    %c0_21 = arith.constant 0 : index
    %40 = vector.load %arg7[%c0_18, %c0_19, %c0_20, %c0_21] : memref<1x16x16x32xf32, #tpu.memory_space<vmem>>, vector<1x16x16x32xf32>
    %41 = vector.shape_cast %40 : vector<1x16x16x32xf32> to vector<16x16x32xf32>
    %42 = vector.shape_cast %39 : vector<16x16x32xf32> to vector<1x16x16x32xf32>
    tpu.vector_store %arg7[%c0_18, %c0_19, %c0_20, %c0_21], %42 {strides = array<i32>} : memref<1x16x16x32xf32, #tpu.memory_space<vmem>>, vector<1x16x16x32xf32>,
    return
  }
  func.func @transform_0(%arg0: i32, %arg1: i32, %arg2: i32) -> (i32, i32, i32, i32) {
    %c0_i32 = arith.constant 0 : i32
    %c0_i32_0 = arith.constant 0 : i32
    %c0_i32_1 = arith.constant 0 : i32
    %c0_i32_2 = arith.constant 0 : i32
    return %arg0, %c0_i32, %c0_i32_0, %c0_i32_1 : i32, i32, i32, i32
  }
  func.func @transform_1(%arg0: i32, %arg1: i32, %arg2: i32) -> (i32, i32, i32) {
    %c0_i32 = arith.constant 0 : i32
    %c0_i32_0 = arith.constant 0 : i32
    %c0_i32_1 = arith.constant 0 : i32
    return %c0_i32, %c0_i32_0, %arg1 : i32, i32, i32
  }
  func.func @transform_2(%arg0: i32, %arg1: i32, %arg2: i32) -> (i32, i32) {
    %c0_i32 = arith.constant 0 : i32
    %c0_i32_0 = arith.constant 0 : i32
    return %c0_i32, %arg1 : i32, i32
  }
  func.func @transform_3(%arg0: i32, %arg1: i32, %arg2: i32) -> (i32, i32) {
    %c0_i32 = arith.constant 0 : i32
    %c0_i32_0 = arith.constant 0 : i32
    return %c0_i32, %arg1 : i32, i32
  }
  func.func @transform_4(%arg0: i32, %arg1: i32, %arg2: i32) -> (i32, i32, i32, i32) {
    %c0_i32 = arith.constant 0 : i32
    %c0_i32_0 = arith.constant 0 : i32
    return %arg0, %arg2, %c0_i32, %arg1 : i32, i32, i32, i32
  }
}

</mosaic_0001>

<llo_original>
// kernel: upsample_layer_forward.4
$region0: #{upsample_layer_forward.4}
  #allocation0 [shape = 'u32[]', space=smem, size = 0x4, offset = 0x4, fixed_abs, tag = 'smem constant byte address 0x4 - core index']
  #allocation1 [shape = 'u32[144,128]{1,0:T(1,128)}', space=vmem, size = 0x12000, scoped, tag = 'internal scratch']
  %s0 = inlined_call_operand.vmem [shape: bf16[2,18,18,128], index: 0, kind: input, shape index: {}]
  %s1 = inlined_call_operand.vmem [shape: bf16[3,384,128], index: 1, kind: input, shape index: {}]
  %s2 = inlined_call_operand.vmem [shape: f32[1,128], index: 2, kind: input, shape index: {}]
  %s3 = inlined_call_operand.vmem [shape: f32[1,128], index: 3, kind: input, shape index: {}]
  %s4 = inlined_call_operand.vmem [shape: bf16[2,16,16,128], index: 4, kind: output, shape index: {}]
  %s5 = sld [smem:[#allocation0]]
  $region49: #{upsample_layer_forward.4} parent=0
    _
  %s7 = ssub.s32 1, %s5
  %s8 = scalar_select 0, %s7, %s5
  loop: start=0, step=1, limit=4
  $region2: #{upsample_layer_forward.4} parent=0 // loop_pre_header
    _
  $region3: #{upsample_layer_forward.4} parent=0 // loop_header
    %s10 = sphi 0, %s14
    %p11 = scmp.ge.s32.totalorder %s10, 4
    %s17 = sphi 0, %s36
    %s18 = sphi 0, %s32
    %s19 = sphi 0, %s28
    %s20 = sphi 0, %s17
    %s21 = sphi 0, %s18
    %s22 = sphi 0, %s19
    %s23 = sphi 0, %s20
    %s24 = sphi 0, %s21
    %s25 = sphi 0, %s22
    %s39 = sphi 0, %s41
    %s42 = sphi 0, %s39
    %s43 = sphi 0, %s42
    %s59 = sphi 0, %s43
    %s65 = sphi 0, %s67
    %s68 = sphi 0, %s65
    %s69 = sphi 0, %s68
    %s85 = sphi 0, %s69
    %s91 = sphi 0, %s93
    %s94 = sphi 0, %s91
    %s95 = sphi 0, %s94
    %s111 = sphi 0, %s95
    %s117 = sphi 0, %s119
    %s120 = sphi 0, %s117
    %s121 = sphi 0, %s120
    %s137 = sphi 0, %s121
    %s147 = sphi 0, %s149
    %s150 = sphi 0, %s147
    %s151 = sphi 0, %s150
    %s167 = sphi 0, %s151
  $region4: #{upsample_layer_forward.4} parent=0 // loop_header_branch
    %13 = sbr.rel (%p11) target = $region8
  $region5: #{upsample_layer_forward.4} parent=0 // loop_body
    %s15 = ssub.s32 %s10, 1
    %s16 = ssub.s32 %s10, 2
    %s26 = sadd.s32 1, %s19
    %p27 = scmp.ge.s32.totalorder %s26, 1
    %s28 = scalar_select %p27, 0, %s26
    %s29 = sadd.s32 1, %s18
    %s30 = scalar_select %p27, %s29, %s18
    %p31 = scmp.ge.s32.totalorder %s30, 1
    %s32 = scalar_select %p31, 0, %s30
    %s33 = sadd.s32 1, %s17
    %s34 = scalar_select %p31, %s33, %s17
    %p35 = scmp.ge.s32.totalorder %s34, 2
    %s36 = scalar_select %p35, 0, %s34
    %s37 = ssub.s32 %s17, %s36
    %p38 = scmp.eq.s32.totalorder %s37, 0
    %s40 = sadd.s32 %s39, 1
    %s41 = scalar_select %p38, %s39, %s40
    %p44 = pneg %p38
    %p45 = scmp.eq.s32.totalorder %s10, 1
    %p46 = por %p44, %p45
    %p47 = scmp.ne.s32.totalorder %s39, %s42
    %p48 = scmp.eq.s32.totalorder %s10, 0
    %p49 = por %p47, %p48
    %p50 = scmp.ne.s32.totalorder %s39, %s42
    %p51 = scmp.eq.s32.totalorder %s15, 1
    %p52 = por %p50, %p51
    %p53 = scmp.ne.s32.totalorder %s42, %s43
    %p54 = scmp.eq.s32.totalorder %s15, 0
    %p55 = por %p53, %p54
    %p56 = scmp.ne.s32.totalorder %s42, %s43
    %p57 = scmp.eq.s32.totalorder %s16, 1
    %p58 = por %p56, %p57
    %p60 = scmp.ne.s32.totalorder %s43, %s59
    %p61 = scmp.eq.s32.totalorder %s16, 0
    %p62 = por %p60, %p61
    %s63 = ssub.s32 %s18, %s32
    %p64 = scmp.eq.s32.totalorder %s63, 0
    %s66 = sadd.s32 %s65, 1
    %s67 = scalar_select %p64, %s65, %s66
    %p70 = pneg %p64
    %p71 = scmp.eq.s32.totalorder %s10, 1
    %p72 = por %p70, %p71
    %p73 = scmp.ne.s32.totalorder %s65, %s68
    %p74 = scmp.eq.s32.totalorder %s10, 0
    %p75 = por %p73, %p74
    %p76 = scmp.ne.s32.totalorder %s65, %s68
    %p77 = scmp.eq.s32.totalorder %s15, 1
    %p78 = por %p76, %p77
    %p79 = scmp.ne.s32.totalorder %s68, %s69
    %p80 = scmp.eq.s32.totalorder %s15, 0
    %p81 = por %p79, %p80
    %p82 = scmp.ne.s32.totalorder %s68, %s69
    %p83 = scmp.eq.s32.totalorder %s16, 1
    %p84 = por %p82, %p83
    %p86 = scmp.ne.s32.totalorder %s69, %s85
    %p87 = scmp.eq.s32.totalorder %s16, 0
    %p88 = por %p86, %p87
    %s89 = ssub.s32 %s18, %s32
    %p90 = scmp.eq.s32.totalorder %s89, 0
    %s92 = sadd.s32 %s91, 1
    %s93 = scalar_select %p90, %s91, %s92
    %p96 = pneg %p90
    %p97 = scmp.eq.s32.totalorder %s10, 1
    %p98 = por %p96, %p97
    %p99 = scmp.ne.s32.totalorder %s91, %s94
    %p100 = scmp.eq.s32.totalorder %s10, 0
    %p101 = por %p99, %p100
    %p102 = scmp.ne.s32.totalorder %s91, %s94
    %p103 = scmp.eq.s32.totalorder %s15, 1
    %p104 = por %p102, %p103
    %p105 = scmp.ne.s32.totalorder %s94, %s95
    %p106 = scmp.eq.s32.totalorder %s15, 0
    %p107 = por %p105, %p106
    %p108 = scmp.ne.s32.totalorder %s94, %s95
    %p109 = scmp.eq.s32.totalorder %s16, 1
    %p110 = por %p108, %p109
    %p112 = scmp.ne.s32.totalorder %s95, %s111
    %p113 = scmp.eq.s32.totalorder %s16, 0
    %p114 = por %p112, %p113
    %s115 = ssub.s32 %s18, %s32
    %p116 = scmp.eq.s32.totalorder %s115, 0
    %s118 = sadd.s32 %s117, 1
    %s119 = scalar_select %p116, %s117, %s118
    %p122 = pneg %p116
    %p123 = scmp.eq.s32.totalorder %s10, 1
    %p124 = por %p122, %p123
    %p125 = scmp.ne.s32.totalorder %s117, %s120
    %p126 = scmp.eq.s32.totalorder %s10, 0
    %p127 = por %p125, %p126
    %p128 = scmp.ne.s32.totalorder %s117, %s120
    %p129 = scmp.eq.s32.totalorder %s15, 1
    %p130 = por %p128, %p129
    %p131 = scmp.ne.s32.totalorder %s120, %s121
    %p132 = scmp.eq.s32.totalorder %s15, 0
    %p133 = por %p131, %p132
    %p134 = scmp.ne.s32.totalorder %s120, %s121
    %p135 = scmp.eq.s32.totalorder %s16, 1
    %p136 = por %p134, %p135
    %p138 = scmp.ne.s32.totalorder %s121, %s137
    %p139 = scmp.eq.s32.totalorder %s16, 0
    %p140 = por %p138, %p139
    %s141 = ssub.s32 %s17, %s36
    %s142 = ssub.s32 %s19, %s28
    %s143 = sor.u32 %s141, %s142
    %s144 = ssub.s32 %s18, %s32
    %s145 = sor.u32 %s143, %s144
    %p146 = scmp.eq.s32.totalorder %s145, 0
    %s148 = sadd.s32 %s147, 1
    %s149 = scalar_select %p146, %s147, %s148
    %p152 = pneg %p146
    %p153 = scmp.eq.s32.totalorder %s10, 1
    %p154 = por %p152, %p153
    %p155 = scmp.ne.s32.totalorder %s147, %s150
    %p156 = scmp.eq.s32.totalorder %s10, 0
    %p157 = por %p155, %p156
    %p158 = scmp.ne.s32.totalorder %s147, %s150
    %p159 = scmp.eq.s32.totalorder %s15, 1
    %p160 = por %p158, %p159
    %p161 = scmp.ne.s32.totalorder %s150, %s151
    %p162 = scmp.eq.s32.totalorder %s15, 0
    %p163 = por %p161, %p162
    %p164 = scmp.ne.s32.totalorder %s150, %s151
    %p165 = scmp.eq.s32.totalorder %s16, 1
    %p166 = por %p164, %p165
    %p168 = scmp.ne.s32.totalorder %s151, %s167
    %p169 = scmp.eq.s32.totalorder %s16, 0
    %p170 = por %p168, %p169
    %p171 = scmp.le.s32.totalorder 1, %s10
    %p172 = scmp.lt.s32.totalorder %s10, 3
    %p173 = pnand %p171, %p172
    %p174 = pneg %p173
    // Predicated region
    $region9: #{upsample_layer_forward.4} parent=5 // pred_check
      _
    $region10: #{upsample_layer_forward.4} parent=5 // pred_check_branch
      %176 = sbr.rel (%p173) target = $region12
    $region11: #{upsample_layer_forward.4} parent=5 // pred_region
      %s177 = ssub.s32 %s10, 1
      // Predicated region
      $region13: #{upsample_layer_forward.4} parent=11 // pred_check
        %p178 = pneg %p81
      $region14: #{upsample_layer_forward.4} parent=11 // pred_check_branch
        %180 = sbr.rel (%p178) target = $region16
      $region15: #{upsample_layer_forward.4} parent=11 // pred_region
        %p181 = scmp.lt.s32.totalorder %s21, 0
        %s182 = scalar_select %p181, %s21, 0
        %s183 = smul.addr %s182, 4
        %s184 = scalar_lea.vmem %s1, %s183
      $region16: #{upsample_layer_forward.4} parent=11 // pred_fallthru
        _
      // Predicated region
      $region17: #{upsample_layer_forward.4} parent=11 // pred_check
        %p185 = pneg %p107
      $region18: #{upsample_layer_forward.4} parent=11 // pred_check_branch
        %187 = sbr.rel (%p185) target = $region20
      $region19: #{upsample_layer_forward.4} parent=11 // pred_region
        %p188 = scmp.lt.s32.totalorder %s21, 0
        %s189 = scalar_select %p188, %s21, 0
        %s190 = scalar_lea.vmem %s2, %s189
      $region20: #{upsample_layer_forward.4} parent=11 // pred_fallthru
        _
      // Predicated region
      $region21: #{upsample_layer_forward.4} parent=11 // pred_check
        %p191 = pneg %p133
      $region22: #{upsample_layer_forward.4} parent=11 // pred_check_branch
        %193 = sbr.rel (%p191) target = $region24
      $region23: #{upsample_layer_forward.4} parent=11 // pred_region
        %p194 = scmp.lt.s32.totalorder %s21, 0
        %s195 = scalar_select %p194, %s21, 0
        %s196 = scalar_lea.vmem %s3, %s195
      $region24: #{upsample_layer_forward.4} parent=11 // pred_fallthru
        _
    $region12: #{upsample_layer_forward.4} parent=5 // pred_fallthru
      _
    %p197 = scmp.lt.s32.totalorder %s10, 2
    // Predicated region
    $region25: #{upsample_layer_forward.4} parent=5 // pred_check
      %p198 = pneg %p197
    $region26: #{upsample_layer_forward.4} parent=5 // pred_check_branch
      %200 = sbr.rel (%p198) target = $region28
    $region27: #{upsample_layer_forward.4} parent=5 // pred_region
      // Predicated region
      $region29: #{upsample_layer_forward.4} parent=27 // pred_check
        %p201 = pneg %p49
      $region30: #{upsample_layer_forward.4} parent=27 // pred_check_branch
        %203 = sbr.rel (%p201) target = $region32
      $region31: #{upsample_layer_forward.4} parent=27 // pred_region
        %p204 = scmp.lt.s32.totalorder %s17, 1
        %s205 = scalar_select %p204, %s17, 1
        %s206 = smul.addr %s205, 54
        %s207 = smul.addr %s206, 4
        %s208 = scalar_lea.vmem %s0, %s207
      $region32: #{upsample_layer_forward.4} parent=27 // pred_fallthru
        _
    $region28: #{upsample_layer_forward.4} parent=5 // pred_fallthru
      _
    %p209 = scmp.le.s32.totalorder 1, %s10
    %p210 = scmp.lt.s32.totalorder %s10, 3
    %p211 = pnand %p209, %p210
    %p212 = pneg %p211
    // Predicated region
    $region33: #{upsample_layer_forward.4} parent=5 // pred_check
      _
    $region34: #{upsample_layer_forward.4} parent=5 // pred_check_branch
      %214 = sbr.rel (%p211) target = $region36
    $region35: #{upsample_layer_forward.4} parent=5 // pred_region
      %s215 = ssub.s32 %s10, 1
      %p216 = scmp.lt.s32.totalorder %s20, 1
      %s217 = scalar_select %p216, %s20, 1
      %s218 = smul.addr %s217, 54
      %s219 = smul.addr %s218, 4
      %s220 = scalar_lea.vmem %s0, %s219
      %p221 = pneg %p55
      %p222 = pneg %p52
      %p223 = scmp.lt.s32.totalorder %s21, 0
      %s224 = scalar_select %p223, %s21, 0
      %s225 = smul.addr %s224, 4
      %s226 = scalar_lea.vmem %s1, %s225
      %p227 = pneg %p81
      %p228 = pneg %p78
      %p229 = scmp.lt.s32.totalorder %s21, 0
      %s230 = scalar_select %p229, %s21, 0
      %s231 = scalar_lea.vmem %s2, %s230
      %p232 = pneg %p107
      %p233 = pneg %p104
      %p234 = scmp.lt.s32.totalorder %s21, 0
      %s235 = scalar_select %p234, %s21, 0
      %s236 = scalar_lea.vmem %s3, %s235
      %p237 = pneg %p133
      %p238 = pneg %p130
      %p239 = pneg %p163
      %p240 = pneg %p160
      %s241 = smul.u32 16, %s22
      %p242 = scmp.lt.s32.totalorder %s20, 1
      %s243 = scalar_select %p242, %s20, 1
      %p244 = scmp.lt.s32.totalorder %s241, 15
      %s245 = scalar_select %p244, %s241, 15
      %p246 = scmp.lt.s32.totalorder %s21, 0
      %s247 = scalar_select %p246, %s21, 0
      %s248 = smul.addr %s245, 2
      %s249 = sadd.s32 %s247, %s248
      %s250 = smul.addr %s243, 32
      %s251 = sadd.s32 %s249, %s250
      %s252 = smul.addr %s251, 4
      %s253 = scalar_lea.vmem %s4, %s252
      %p254 = scmp.lt.s32.totalorder %s20, 1
      %s255 = scalar_select %p254, %s20, 1
      %s256 = smul.addr %s255, 54
      %s257 = smul.addr %s256, 4
      %s258 = scalar_lea.vmem %s0, %s257
      %p259 = scmp.lt.s32.totalorder %s21, 0
      %s260 = scalar_select %p259, %s21, 0
      %s261 = smul.addr %s260, 4
      %s262 = scalar_lea.vmem %s1, %s261
      %p263 = scmp.lt.s32.totalorder %s21, 0
      %s264 = scalar_select %p263, %s21, 0
      %s265 = scalar_lea.vmem %s2, %s264
      %p266 = scmp.lt.s32.totalorder %s21, 0
      %s267 = scalar_select %p266, %s21, 0
      %s268 = scalar_lea.vmem %s3, %s267
      %s269 = smul.u32 16, %s22
      %p270 = scmp.lt.s32.totalorder %s20, 1
      %s271 = scalar_select %p270, %s20, 1
      %p272 = scmp.lt.s32.totalorder %s269, 15
      %s273 = scalar_select %p272, %s269, 15
      %p274 = scmp.lt.s32.totalorder %s21, 0
      %s275 = scalar_select %p274, %s21, 0
      %s276 = smul.addr %s273, 2
      %s277 = sadd.s32 %s275, %s276
      %s278 = smul.addr %s271, 32
      %s279 = sadd.s32 %s277, %s278
      %s280 = smul.addr %s279, 4
      %s281 = scalar_lea.vmem %s4, %s280
      %s282 = smul.u32 16, %s22
      %s284 = smul.u32 %s22, 16
      %s285 = smul.u32 %s284, 3
      %s286 = smul.addr %s285, 4
      %s287 = scalar_lea.vmem %s258, %s286
      %v288 = vld [vmem:[%s287] sm:$0xf]
      %v289 = vld [vmem:[%s287 + $0x4] sm:$0xf]
      %v290 = vld [vmem:[%s287 + $0x8] sm:$0x1]
      %v291 = vld [vmem:[%s287 + $0xc] sm:$0xf]
      %v292 = vld [vmem:[%s287 + $0x10] sm:$0xf]
      %v293 = vld [vmem:[%s287 + $0x14] sm:$0x1]
      %v294 = vld [vmem:[%s287 + $0x18] sm:$0xf]
      %v295 = vld [vmem:[%s287 + $0x1c] sm:$0xf]
      %v296 = vld [vmem:[%s287 + $0x20] sm:$0x1]
      %v297 = vld [vmem:[%s287 + $0x24] sm:$0xf]
      %v298 = vld [vmem:[%s287 + $0x28] sm:$0xf]
      %v299 = vld [vmem:[%s287 + $0x2c] sm:$0x1]
      %v300 = vld [vmem:[%s287 + $0x30] sm:$0xf]
      %v301 = vld [vmem:[%s287 + $0x34] sm:$0xf]
      %v302 = vld [vmem:[%s287 + $0x38] sm:$0x1]
      %v303 = vld [vmem:[%s287 + $0x3c] sm:$0xf]
      %v304 = vld [vmem:[%s287 + $0x40] sm:$0xf]
      %v305 = vld [vmem:[%s287 + $0x44] sm:$0x1]
      %v306 = vld [vmem:[%s287 + $0x48] sm:$0xf]
      %v307 = vld [vmem:[%s287 + $0x4c] sm:$0xf]
      %v308 = vld [vmem:[%s287 + $0x50] sm:$0x1]
      %v309 = vld [vmem:[%s287 + $0x54] sm:$0xf]
      %v310 = vld [vmem:[%s287 + $0x58] sm:$0xf]
      %v311 = vld [vmem:[%s287 + $0x5c] sm:$0x1]
      %v312 = vld [vmem:[%s287 + $0x60] sm:$0xf]
      %v313 = vld [vmem:[%s287 + $0x64] sm:$0xf]
      %v314 = vld [vmem:[%s287 + $0x68] sm:$0x1]
      %v315 = vld [vmem:[%s287 + $0x6c] sm:$0xf]
      %v316 = vld [vmem:[%s287 + $0x70] sm:$0xf]
      %v317 = vld [vmem:[%s287 + $0x74] sm:$0x1]
      %v318 = vld [vmem:[%s287 + $0x78] sm:$0xf]
      %v319 = vld [vmem:[%s287 + $0x7c] sm:$0xf]
      %v320 = vld [vmem:[%s287 + $0x80] sm:$0x1]
      %v321 = vld [vmem:[%s287 + $0x84] sm:$0xf]
      %v322 = vld [vmem:[%s287 + $0x88] sm:$0xf]
      %v323 = vld [vmem:[%s287 + $0x8c] sm:$0x1]
      %v324 = vld [vmem:[%s287 + $0x90] sm:$0xf]
      %v325 = vld [vmem:[%s287 + $0x94] sm:$0xf]
      %v326 = vld [vmem:[%s287 + $0x98] sm:$0x1]
      %v327 = vld [vmem:[%s287 + $0x9c] sm:$0xf]
      %v328 = vld [vmem:[%s287 + $0xa0] sm:$0xf]
      %v329 = vld [vmem:[%s287 + $0xa4] sm:$0x1]
      %v330 = vld [vmem:[%s287 + $0xa8] sm:$0xf]
      %v331 = vld [vmem:[%s287 + $0xac] sm:$0xf]
      %v332 = vld [vmem:[%s287 + $0xb0] sm:$0x1]
      %v333 = vld [vmem:[%s287 + $0xb4] sm:$0xf]
      %v334 = vld [vmem:[%s287 + $0xb8] sm:$0xf]
      %v335 = vld [vmem:[%s287 + $0xbc] sm:$0x1]
      %v336 = vld [vmem:[%s287 + $0xc0] sm:$0xf]
      %v337 = vld [vmem:[%s287 + $0xc4] sm:$0xf]
      %v338 = vld [vmem:[%s287 + $0xc8] sm:$0x1]
      %v339 = vld [vmem:[%s287 + $0xcc] sm:$0xf]
      %v340 = vld [vmem:[%s287 + $0xd0] sm:$0xf]
      %v341 = vld [vmem:[%s287 + $0xd4] sm:$0x1]
      %v390 = vunpack.c.l.b16 %v288
      %v391 = vunpack.c.l.b16 %v289
      %v392 = vunpack.c.l.b16 %v290
      %v393 = vunpack.c.l.b16 %v291
      %v394 = vunpack.c.l.b16 %v292
      %v395 = vunpack.c.l.b16 %v293
      %v396 = vunpack.c.l.b16 %v294
      %v397 = vunpack.c.l.b16 %v295
      %v398 = vunpack.c.l.b16 %v296
      %v399 = vunpack.c.l.b16 %v297
      %v400 = vunpack.c.l.b16 %v298
      %v401 = vunpack.c.l.b16 %v299
      %v402 = vunpack.c.l.b16 %v300
      %v403 = vunpack.c.l.b16 %v301
      %v404 = vunpack.c.l.b16 %v302
      %v405 = vunpack.c.l.b16 %v303
      %v406 = vunpack.c.l.b16 %v304
      %v407 = vunpack.c.l.b16 %v305
      %v408 = vunpack.c.l.b16 %v306
      %v409 = vunpack.c.l.b16 %v307
      %v410 = vunpack.c.l.b16 %v308
      %v411 = vunpack.c.l.b16 %v309
      %v412 = vunpack.c.l.b16 %v310
      %v413 = vunpack.c.l.b16 %v311
      %v414 = vunpack.c.l.b16 %v312
      %v415 = vunpack.c.l.b16 %v313
      %v416 = vunpack.c.l.b16 %v314
      %v417 = vunpack.c.l.b16 %v315
      %v418 = vunpack.c.l.b16 %v316
      %v419 = vunpack.c.l.b16 %v317
      %v420 = vunpack.c.l.b16 %v318
      %v421 = vunpack.c.l.b16 %v319
      %v422 = vunpack.c.l.b16 %v320
      %v423 = vunpack.c.l.b16 %v321
      %v424 = vunpack.c.l.b16 %v322
      %v425 = vunpack.c.l.b16 %v323
      %v426 = vunpack.c.l.b16 %v324
      %v427 = vunpack.c.l.b16 %v325
      %v428 = vunpack.c.l.b16 %v326
      %v429 = vunpack.c.l.b16 %v327
      %v430 = vunpack.c.l.b16 %v328
      %v431 = vunpack.c.l.b16 %v329
      %v432 = vunpack.c.l.b16 %v330
      %v433 = vunpack.c.l.b16 %v331
      %v434 = vunpack.c.l.b16 %v332
      %v435 = vunpack.c.l.b16 %v333
      %v436 = vunpack.c.l.b16 %v334
      %v437 = vunpack.c.l.b16 %v335
      %v438 = vpack.c.b16 %v391, %v390
      %v439 = vpack.c.b16 %v392, %v392
      %v440 = vpack.c.b16 %v394, %v393
      %v441 = vpack.c.b16 %v395, %v395
      %v442 = vpack.c.b16 %v397, %v396
      %v443 = vpack.c.b16 %v398, %v398
      %v444 = vpack.c.b16 %v400, %v399
      %v445 = vpack.c.b16 %v401, %v401
      %v446 = vpack.c.b16 %v403, %v402
      %v447 = vpack.c.b16 %v404, %v404
      %v448 = vpack.c.b16 %v406, %v405
      %v449 = vpack.c.b16 %v407, %v407
      %v450 = vpack.c.b16 %v409, %v408
      %v451 = vpack.c.b16 %v410, %v410
      %v452 = vpack.c.b16 %v412, %v411
      %v453 = vpack.c.b16 %v413, %v413
      %v454 = vpack.c.b16 %v415, %v414
      %v455 = vpack.c.b16 %v416, %v416
      %v456 = vpack.c.b16 %v418, %v417
      %v457 = vpack.c.b16 %v419, %v419
      %v458 = vpack.c.b16 %v421, %v420
      %v459 = vpack.c.b16 %v422, %v422
      %v460 = vpack.c.b16 %v424, %v423
      %v461 = vpack.c.b16 %v425, %v425
      %v462 = vpack.c.b16 %v427, %v426
      %v463 = vpack.c.b16 %v428, %v428
      %v464 = vpack.c.b16 %v430, %v429
      %v465 = vpack.c.b16 %v431, %v431
      %v466 = vpack.c.b16 %v433, %v432
      %v467 = vpack.c.b16 %v434, %v434
      %v468 = vpack.c.b16 %v436, %v435
      %v469 = vpack.c.b16 %v437, %v437
      %v489 = vunpack.c.l.b16 %v336
      %v490 = vunpack.c.l.b16 %v337
      %v491 = vunpack.c.l.b16 %v338
      %v492 = vpack.c.b16 %v490, %v489
      %v493 = vpack.c.b16 %v491, %v491
      %v498 = vunpack.c.l.b16 %v339
      %v499 = vunpack.c.l.b16 %v340
      %v500 = vunpack.c.l.b16 %v341
      %v501 = vpack.c.b16 %v499, %v498
      %v502 = vpack.c.b16 %v500, %v500
      %v504 = vld [vmem:[%s262] sm:$0xf]
      %v505 = vld [vmem:[%s262 + $0x4] sm:$0xf]
      %v506 = vld [vmem:[%s262 + $0x8] sm:$0xf]
      %v507 = vld [vmem:[%s262 + $0xc] sm:$0xf]
      %v508 = vld [vmem:[%s262 + $0x10] sm:$0xf]
      %v509 = vld [vmem:[%s262 + $0x14] sm:$0xf]
      %v510 = vld [vmem:[%s262 + $0x18] sm:$0xf]
      %v511 = vld [vmem:[%s262 + $0x1c] sm:$0xf]
      %v512 = vld [vmem:[%s262 + $0x20] sm:$0xf]
      %v513 = vld [vmem:[%s262 + $0x24] sm:$0xf]
      %v514 = vld [vmem:[%s262 + $0x28] sm:$0xf]
      %v515 = vld [vmem:[%s262 + $0x2c] sm:$0xf]
      %v516 = vld [vmem:[%s262 + $0x30] sm:$0xf]
      %v517 = vld [vmem:[%s262 + $0x34] sm:$0xf]
      %v518 = vld [vmem:[%s262 + $0x38] sm:$0xf]
      %v519 = vld [vmem:[%s262 + $0x3c] sm:$0xf]
      %v520 = vld [vmem:[%s262 + $0x40] sm:$0xf]
      %v521 = vld [vmem:[%s262 + $0x44] sm:$0xf]
      %v522 = vld [vmem:[%s262 + $0x48] sm:$0xf]
      %v523 = vld [vmem:[%s262 + $0x4c] sm:$0xf]
      %v524 = vld [vmem:[%s262 + $0x50] sm:$0xf]
      %v525 = vld [vmem:[%s262 + $0x54] sm:$0xf]
      %v526 = vld [vmem:[%s262 + $0x58] sm:$0xf]
      %v527 = vld [vmem:[%s262 + $0x5c] sm:$0xf]
      %v528 = vld [vmem:[%s262 + $0x60] sm:$0xf]
      %v529 = vld [vmem:[%s262 + $0x64] sm:$0xf]
      %v530 = vld [vmem:[%s262 + $0x68] sm:$0xf]
      %v531 = vld [vmem:[%s262 + $0x6c] sm:$0xf]
      %v532 = vld [vmem:[%s262 + $0x70] sm:$0xf]
      %v533 = vld [vmem:[%s262 + $0x74] sm:$0xf]
      %v534 = vld [vmem:[%s262 + $0x78] sm:$0xf]
      %v535 = vld [vmem:[%s262 + $0x7c] sm:$0xf]
      %v536 = vld [vmem:[%s262 + $0x80] sm:$0xf]
      %v537 = vld [vmem:[%s262 + $0x84] sm:$0xf]
      %v538 = vld [vmem:[%s262 + $0x88] sm:$0xf]
      %v539 = vld [vmem:[%s262 + $0x8c] sm:$0xf]
      %v540 = vld [vmem:[%s262 + $0x90] sm:$0xf]
      %v541 = vld [vmem:[%s262 + $0x94] sm:$0xf]
      %v542 = vld [vmem:[%s262 + $0x98] sm:$0xf]
      %v543 = vld [vmem:[%s262 + $0x9c] sm:$0xf]
      %v544 = vld [vmem:[%s262 + $0xa0] sm:$0xf]
      %v545 = vld [vmem:[%s262 + $0xa4] sm:$0xf]
      %v546 = vld [vmem:[%s262 + $0xa8] sm:$0xf]
      %v547 = vld [vmem:[%s262 + $0xac] sm:$0xf]
      %v548 = vld [vmem:[%s262 + $0xb0] sm:$0xf]
      %v549 = vld [vmem:[%s262 + $0xb4] sm:$0xf]
      %v550 = vld [vmem:[%s262 + $0xb8] sm:$0xf]
      %v551 = vld [vmem:[%s262 + $0xbc] sm:$0xf]
      %vm552 = vsmask.f32 7424
      %v554 = vshrl.u32 %v438, 16
      %v556 = vshll.u32 %v438, 16
      %v558 = vrot.slane %v556, 1
      %v559 = vor.u32 %v554, %v558
      %v561 = vshll.u32 %v439, 16
      %v563 = vrot.slane %v561, 1
      %v564 = vsel %vm552, %v559, %v563
      %v566 = vshrl.u32 %v440, 16
      %v568 = vshll.u32 %v440, 16
      %v570 = vrot.slane %v568, 1
      %v571 = vor.u32 %v566, %v570
      %v573 = vshll.u32 %v441, 16
      %v575 = vrot.slane %v573, 1
      %v576 = vsel %vm552, %v571, %v575
      %v578 = vshrl.u32 %v442, 16
      %v580 = vshll.u32 %v442, 16
      %v582 = vrot.slane %v580, 1
      %v583 = vor.u32 %v578, %v582
      %v585 = vshll.u32 %v443, 16
      %v587 = vrot.slane %v585, 1
      %v588 = vsel %vm552, %v583, %v587
      %v590 = vshrl.u32 %v444, 16
      %v592 = vshll.u32 %v444, 16
      %v594 = vrot.slane %v592, 1
      %v595 = vor.u32 %v590, %v594
      %v597 = vshll.u32 %v445, 16
      %v599 = vrot.slane %v597, 1
      %v600 = vsel %vm552, %v595, %v599
      %v602 = vshrl.u32 %v446, 16
      %v604 = vshll.u32 %v446, 16
      %v606 = vrot.slane %v604, 1
      %v607 = vor.u32 %v602, %v606
      %v609 = vshll.u32 %v447, 16
      %v611 = vrot.slane %v609, 1
      %v612 = vsel %vm552, %v607, %v611
      %v614 = vshrl.u32 %v448, 16
      %v616 = vshll.u32 %v448, 16
      %v618 = vrot.slane %v616, 1
      %v619 = vor.u32 %v614, %v618
      %v621 = vshll.u32 %v449, 16
      %v623 = vrot.slane %v621, 1
      %v624 = vsel %vm552, %v619, %v623
      %v626 = vshrl.u32 %v450, 16
      %v628 = vshll.u32 %v450, 16
      %v630 = vrot.slane %v628, 1
      %v631 = vor.u32 %v626, %v630
      %v633 = vshll.u32 %v451, 16
      %v635 = vrot.slane %v633, 1
      %v636 = vsel %vm552, %v631, %v635
      %v638 = vshrl.u32 %v452, 16
      %v640 = vshll.u32 %v452, 16
      %v642 = vrot.slane %v640, 1
      %v643 = vor.u32 %v638, %v642
      %v645 = vshll.u32 %v453, 16
      %v647 = vrot.slane %v645, 1
      %v648 = vsel %vm552, %v643, %v647
      %v650 = vshrl.u32 %v454, 16
      %v652 = vshll.u32 %v454, 16
      %v654 = vrot.slane %v652, 1
      %v655 = vor.u32 %v650, %v654
      %v657 = vshll.u32 %v455, 16
      %v659 = vrot.slane %v657, 1
      %v660 = vsel %vm552, %v655, %v659
      %v662 = vshrl.u32 %v456, 16
      %v664 = vshll.u32 %v456, 16
      %v666 = vrot.slane %v664, 1
      %v667 = vor.u32 %v662, %v666
      %v669 = vshll.u32 %v457, 16
      %v671 = vrot.slane %v669, 1
      %v672 = vsel %vm552, %v667, %v671
      %v674 = vshrl.u32 %v458, 16
      %v676 = vshll.u32 %v458, 16
      %v678 = vrot.slane %v676, 1
      %v679 = vor.u32 %v674, %v678
      %v681 = vshll.u32 %v459, 16
      %v683 = vrot.slane %v681, 1
      %v684 = vsel %vm552, %v679, %v683
      %v686 = vshrl.u32 %v460, 16
      %v688 = vshll.u32 %v460, 16
      %v690 = vrot.slane %v688, 1
      %v691 = vor.u32 %v686, %v690
      %v693 = vshll.u32 %v461, 16
      %v695 = vrot.slane %v693, 1
      %v696 = vsel %vm552, %v691, %v695
      %v698 = vshrl.u32 %v462, 16
      %v700 = vshll.u32 %v462, 16
      %v702 = vrot.slane %v700, 1
      %v703 = vor.u32 %v698, %v702
      %v705 = vshll.u32 %v463, 16
      %v707 = vrot.slane %v705, 1
      %v708 = vsel %vm552, %v703, %v707
      %v710 = vshrl.u32 %v464, 16
      %v712 = vshll.u32 %v464, 16
      %v714 = vrot.slane %v712, 1
      %v715 = vor.u32 %v710, %v714
      %v717 = vshll.u32 %v465, 16
      %v719 = vrot.slane %v717, 1
      %v720 = vsel %vm552, %v715, %v719
      %v722 = vshrl.u32 %v466, 16
      %v724 = vshll.u32 %v466, 16
      %v726 = vrot.slane %v724, 1
      %v727 = vor.u32 %v722, %v726
      %v729 = vshll.u32 %v467, 16
      %v731 = vrot.slane %v729, 1
      %v732 = vsel %vm552, %v727, %v731
      %v734 = vshrl.u32 %v468, 16
      %v736 = vshll.u32 %v468, 16
      %v738 = vrot.slane %v736, 1
      %v739 = vor.u32 %v734, %v738
      %v741 = vshll.u32 %v469, 16
      %v743 = vrot.slane %v741, 1
      %v744 = vsel %vm552, %v739, %v743
      %v746 = vshrl.u32 %v492, 16
      %v748 = vshll.u32 %v492, 16
      %v750 = vrot.slane %v748, 1
      %v751 = vor.u32 %v746, %v750
      %v753 = vshll.u32 %v493, 16
      %v755 = vrot.slane %v753, 1
      %v756 = vsel %vm552, %v751, %v755
      %v758 = vshrl.u32 %v501, 16
      %v760 = vshll.u32 %v501, 16
      %v762 = vrot.slane %v760, 1
      %v763 = vor.u32 %v758, %v762
      %v765 = vshll.u32 %v502, 16
      %v767 = vrot.slane %v765, 1
      %v768 = vsel %vm552, %v763, %v767
      %s787 = scalar_lea.vmem %s262, 192
      %v788 = vld [vmem:[%s787] sm:$0xf]
      %v789 = vld [vmem:[%s787 + $0x4] sm:$0xf]
      %v790 = vld [vmem:[%s787 + $0x8] sm:$0xf]
      %v791 = vld [vmem:[%s787 + $0xc] sm:$0xf]
      %v792 = vld [vmem:[%s787 + $0x10] sm:$0xf]
      %v793 = vld [vmem:[%s787 + $0x14] sm:$0xf]
      %v794 = vld [vmem:[%s787 + $0x18] sm:$0xf]
      %v795 = vld [vmem:[%s787 + $0x1c] sm:$0xf]
      %v796 = vld [vmem:[%s787 + $0x20] sm:$0xf]
      %v797 = vld [vmem:[%s787 + $0x24] sm:$0xf]
      %v798 = vld [vmem:[%s787 + $0x28] sm:$0xf]
      %v799 = vld [vmem:[%s787 + $0x2c] sm:$0xf]
      %v800 = vld [vmem:[%s787 + $0x30] sm:$0xf]
      %v801 = vld [vmem:[%s787 + $0x34] sm:$0xf]
      %v802 = vld [vmem:[%s787 + $0x38] sm:$0xf]
      %v803 = vld [vmem:[%s787 + $0x3c] sm:$0xf]
      %v804 = vld [vmem:[%s787 + $0x40] sm:$0xf]
      %v805 = vld [vmem:[%s787 + $0x44] sm:$0xf]
      %v806 = vld [vmem:[%s787 + $0x48] sm:$0xf]
      %v807 = vld [vmem:[%s787 + $0x4c] sm:$0xf]
      %v808 = vld [vmem:[%s787 + $0x50] sm:$0xf]
      %v809 = vld [vmem:[%s787 + $0x54] sm:$0xf]
      %v810 = vld [vmem:[%s787 + $0x58] sm:$0xf]
      %v811 = vld [vmem:[%s787 + $0x5c] sm:$0xf]
      %v812 = vld [vmem:[%s787 + $0x60] sm:$0xf]
      %v813 = vld [vmem:[%s787 + $0x64] sm:$0xf]
      %v814 = vld [vmem:[%s787 + $0x68] sm:$0xf]
      %v815 = vld [vmem:[%s787 + $0x6c] sm:$0xf]
      %v816 = vld [vmem:[%s787 + $0x70] sm:$0xf]
      %v817 = vld [vmem:[%s787 + $0x74] sm:$0xf]
      %v818 = vld [vmem:[%s787 + $0x78] sm:$0xf]
      %v819 = vld [vmem:[%s787 + $0x7c] sm:$0xf]
      %v820 = vld [vmem:[%s787 + $0x80] sm:$0xf]
      %v821 = vld [vmem:[%s787 + $0x84] sm:$0xf]
      %v822 = vld [vmem:[%s787 + $0x88] sm:$0xf]
      %v823 = vld [vmem:[%s787 + $0x8c] sm:$0xf]
      %v824 = vld [vmem:[%s787 + $0x90] sm:$0xf]
      %v825 = vld [vmem:[%s787 + $0x94] sm:$0xf]
      %v826 = vld [vmem:[%s787 + $0x98] sm:$0xf]
      %v827 = vld [vmem:[%s787 + $0x9c] sm:$0xf]
      %v828 = vld [vmem:[%s787 + $0xa0] sm:$0xf]
      %v829 = vld [vmem:[%s787 + $0xa4] sm:$0xf]
      %v830 = vld [vmem:[%s787 + $0xa8] sm:$0xf]
      %v831 = vld [vmem:[%s787 + $0xac] sm:$0xf]
      %v832 = vld [vmem:[%s787 + $0xb0] sm:$0xf]
      %v833 = vld [vmem:[%s787 + $0xb4] sm:$0xf]
      %v834 = vld [vmem:[%s787 + $0xb8] sm:$0xf]
      %v835 = vld [vmem:[%s787 + $0xbc] sm:$0xf]
      %v884 = vunpack.c.l.b16 %v788
      %v885 = vunpack.c.l.b16 %v789
      %v886 = vunpack.c.l.b16 %v790
      %v887 = vunpack.c.l.b16 %v791
      %v888 = vunpack.c.l.b16 %v792
      %v889 = vunpack.c.l.b16 %v793
      %v890 = vunpack.c.l.b16 %v794
      %v891 = vunpack.c.l.b16 %v795
      %v892 = vunpack.c.l.b16 %v796
      %v893 = vunpack.c.l.b16 %v797
      %v894 = vunpack.c.l.b16 %v798
      %v895 = vunpack.c.l.b16 %v799
      %v896 = vunpack.c.l.b16 %v800
      %v897 = vunpack.c.l.b16 %v801
      %v898 = vunpack.c.l.b16 %v802
      %v899 = vunpack.c.l.b16 %v803
      %v900 = vunpack.c.l.b16 %v804
      %v901 = vunpack.c.l.b16 %v805
      %v902 = vunpack.c.l.b16 %v806
      %v903 = vunpack.c.l.b16 %v807
      %v904 = vunpack.c.l.b16 %v808
      %v905 = vunpack.c.l.b16 %v809
      %v906 = vunpack.c.l.b16 %v810
      %v907 = vunpack.c.l.b16 %v811
      %v908 = vunpack.c.l.b16 %v812
      %v909 = vunpack.c.l.b16 %v813
      %v910 = vunpack.c.l.b16 %v814
      %v911 = vunpack.c.l.b16 %v815
      %v912 = vunpack.c.l.b16 %v816
      %v913 = vunpack.c.l.b16 %v817
      %v914 = vunpack.c.l.b16 %v818
      %v915 = vunpack.c.l.b16 %v819
      %v916 = vunpack.c.l.b16 %v820
      %v917 = vunpack.c.l.b16 %v821
      %v918 = vunpack.c.l.b16 %v822
      %v919 = vunpack.c.l.b16 %v823
      %v920 = vunpack.c.l.b16 %v824
      %v921 = vunpack.c.l.b16 %v825
      %v922 = vunpack.c.l.b16 %v826
      %v923 = vunpack.c.l.b16 %v827
      %v924 = vunpack.c.l.b16 %v828
      %v925 = vunpack.c.l.b16 %v829
      %v926 = vunpack.c.l.b16 %v830
      %v927 = vunpack.c.l.b16 %v831
      %v928 = vunpack.c.l.b16 %v832
      %v929 = vunpack.c.l.b16 %v833
      %v930 = vunpack.c.l.b16 %v834
      %v931 = vunpack.c.l.b16 %v835
      %v932 = vpack.c.b16 %v885, %v884
      %v933 = vpack.c.b16 %v887, %v886
      %v934 = vpack.c.b16 %v889, %v888
      %v935 = vpack.c.b16 %v891, %v890
      %v936 = vpack.c.b16 %v893, %v892
      %v937 = vpack.c.b16 %v895, %v894
      %v938 = vpack.c.b16 %v897, %v896
      %v939 = vpack.c.b16 %v899, %v898
      %v940 = vpack.c.b16 %v901, %v900
      %v941 = vpack.c.b16 %v903, %v902
      %v942 = vpack.c.b16 %v905, %v904
      %v943 = vpack.c.b16 %v907, %v906
      %v944 = vpack.c.b16 %v909, %v908
      %v945 = vpack.c.b16 %v911, %v910
      %v946 = vpack.c.b16 %v913, %v912
      %v947 = vpack.c.b16 %v915, %v914
      %v948 = vpack.c.b16 %v917, %v916
      %v949 = vpack.c.b16 %v919, %v918
      %v950 = vpack.c.b16 %v921, %v920
      %v951 = vpack.c.b16 %v923, %v922
      %v952 = vpack.c.b16 %v925, %v924
      %v953 = vpack.c.b16 %v927, %v926
      %v954 = vpack.c.b16 %v929, %v928
      %v955 = vpack.c.b16 %v931, %v930
      %980 = vmatprep.subr.bf16.mxu0 0
      %981 = vmatpush1.bf16.msra.mxu0 %v932
      %982 = vmatprep.subr.bf16.mxu0 0
      %983 = vmatpush1.bf16.msra.mxu0 %v933
      %984 = vmatprep.subr.bf16.mxu0 0
      %985 = vmatpush1.bf16.msra.mxu0 %v934
      %986 = vmatprep.subr.bf16.mxu0 0
      %987 = vmatpush1.bf16.msra.mxu0 %v935
      %988 = vmatprep.subr.bf16.mxu0 0
      %989 = vmatpush1.bf16.msra.mxu0 %v936
      %990 = vmatprep.subr.bf16.mxu0 0
      %991 = vmatpush1.bf16.msra.mxu0 %v937
      %992 = vmatprep.subr.bf16.mxu0 0
      %993 = vmatpush1.bf16.msra.mxu0 %v938
      %994 = vmatprep.subr.bf16.mxu0 0
      %995 = vmatpush1.bf16.msra.mxu0 %v939
      %996 = vmatprep.subr.bf16.mxu0 0
      %997 = vmatpush1.bf16.msra.mxu0 %v940
      %998 = vmatprep.subr.bf16.mxu0 0
      %999 = vmatpush1.bf16.msra.mxu0 %v941
      %1000 = vmatprep.subr.bf16.mxu0 0
      %1001 = vmatpush1.bf16.msra.mxu0 %v942
      %1002 = vmatprep.subr.bf16.mxu0 0
      %1003 = vmatpush1.bf16.msra.mxu0 %v943
      %1004 = vmatprep.subr.bf16.mxu0 0
      %1005 = vmatpush1.bf16.msra.mxu0 %v944
      %1006 = vmatprep.subr.bf16.mxu0 0
      %1007 = vmatpush1.bf16.msra.mxu0 %v945
      %1008 = vmatprep.subr.bf16.mxu0 0
      %1009 = vmatpush1.bf16.msra.mxu0 %v946
      %1010 = vmatprep.subr.bf16.mxu0 0
      %1011 = vmatpush1.bf16.msra.mxu0 %v947
      %1012 = vmatprep.mubr.bf16.mxu0 %v576
      %1013 = vmatmul.mubr.bf16.gmra.mrb[0].mxu0 %v564
      %v1014 = vpop.f32.mrb[0].mxu0
      %v1015 = vadd.f32 0.0, %v1014
      %v1016 = vpop.f32.mrb[0].mxu0
      %v1017 = vpop.f32.mrb[0].mxu0
      %v1018 = vadd.f32 0.0, %v1017
      %v1019 = vpop.f32.mrb[0].mxu0
      %1020 = vmatprep.mubr.bf16.mxu0 %v588
      %1021 = vmatmul.mubr.bf16.gmra.mrb[0].mxu0 %v576
      %v1022 = vpop.f32.mrb[0].mxu0
      %v1023 = vadd.f32 0.0, %v1022
      %v1024 = vpop.f32.mrb[0].mxu0
      %v1025 = vpop.f32.mrb[0].mxu0
      %v1026 = vadd.f32 0.0, %v1025
      %v1027 = vpop.f32.mrb[0].mxu0
      %1028 = vmatprep.mubr.bf16.mxu0 %v600
      %1029 = vmatmul.mubr.bf16.gmra.mrb[0].mxu0 %v588
      %v1030 = vpop.f32.mrb[0].mxu0
      %v1031 = vadd.f32 0.0, %v1030
      %v1032 = vpop.f32.mrb[0].mxu0
      %v1033 = vpop.f32.mrb[0].mxu0
      %v1034 = vadd.f32 0.0, %v1033
      %v1035 = vpop.f32.mrb[0].mxu0
      %1036 = vmatprep.mubr.bf16.mxu0 %v612
      %1037 = vmatmul.mubr.bf16.gmra.mrb[0].mxu0 %v600
      %v1038 = vpop.f32.mrb[0].mxu0
      %v1039 = vadd.f32 0.0, %v1038
      %v1040 = vpop.f32.mrb[0].mxu0
      %v1041 = vpop.f32.mrb[0].mxu0
      %v1042 = vadd.f32 0.0, %v1041
      %v1043 = vpop.f32.mrb[0].mxu0
      %1044 = vmatprep.mubr.bf16.mxu0 %v624
      %1045 = vmatmul.mubr.bf16.gmra.mrb[0].mxu0 %v612
      %v1046 = vpop.f32.mrb[0].mxu0
      %v1047 = vadd.f32 0.0, %v1046
      %v1048 = vpop.f32.mrb[0].mxu0
      %v1049 = vpop.f32.mrb[0].mxu0
      %v1050 = vadd.f32 0.0, %v1049
      %v1051 = vpop.f32.mrb[0].mxu0
      %1052 = vmatprep.mubr.bf16.mxu0 %v636
      %1053 = vmatmul.mubr.bf16.gmra.mrb[0].mxu0 %v624
      %v1054 = vpop.f32.mrb[0].mxu0
      %v1055 = vadd.f32 0.0, %v1054
      %v1056 = vpop.f32.mrb[0].mxu0
      %v1057 = vpop.f32.mrb[0].mxu0
      %v1058 = vadd.f32 0.0, %v1057
      %v1059 = vpop.f32.mrb[0].mxu0
      %1060 = vmatprep.mubr.bf16.mxu0 %v648
      %1061 = vmatmul.mubr.bf16.gmra.mrb[0].mxu0 %v636
      %v1062 = vpop.f32.mrb[0].mxu0
      %v1063 = vadd.f32 0.0, %v1062
      %v1064 = vpop.f32.mrb[0].mxu0
      %v1065 = vpop.f32.mrb[0].mxu0
      %v1066 = vadd.f32 0.0, %v1065
      %v1067 = vpop.f32.mrb[0].mxu0
      %1068 = vmatprep.mubr.bf16.mxu0 %v660
      %1069 = vmatmul.mubr.bf16.gmra.mrb[0].mxu0 %v648
      %v1070 = vpop.f32.mrb[0].mxu0
      %v1071 = vadd.f32 0.0, %v1070
      %v1072 = vpop.f32.mrb[0].mxu0
      %v1073 = vpop.f32.mrb[0].mxu0
      %v1074 = vadd.f32 0.0, %v1073
      %v1075 = vpop.f32.mrb[0].mxu0
      %1076 = vmatprep.mubr.bf16.mxu0 %v672
      %1077 = vmatmul.mubr.bf16.gmra.mrb[0].mxu0 %v660
      %v1078 = vpop.f32.mrb[0].mxu0
      %v1079 = vadd.f32 0.0, %v1078
      %v1080 = vpop.f32.mrb[0].mxu0
      %v1081 = vpop.f32.mrb[0].mxu0
      %v1082 = vadd.f32 0.0, %v1081
      %v1083 = vpop.f32.mrb[0].mxu0
      %1084 = vmatprep.mubr.bf16.mxu0 %v684
      %1085 = vmatmul.mubr.bf16.gmra.mrb[0].mxu0 %v672
      %v1086 = vpop.f32.mrb[0].mxu0
      %v1087 = vadd.f32 0.0, %v1086
      %v1088 = vpop.f32.mrb[0].mxu0
      %v1089 = vpop.f32.mrb[0].mxu0
      %v1090 = vadd.f32 0.0, %v1089
      %v1091 = vpop.f32.mrb[0].mxu0
      %1092 = vmatprep.mubr.bf16.mxu0 %v696
      %1093 = vmatmul.mubr.bf16.gmra.mrb[0].mxu0 %v684
      %v1094 = vpop.f32.mrb[0].mxu0
      %v1095 = vadd.f32 0.0, %v1094
      %v1096 = vpop.f32.mrb[0].mxu0
      %v1097 = vpop.f32.mrb[0].mxu0
      %v1098 = vadd.f32 0.0, %v1097
      %v1099 = vpop.f32.mrb[0].mxu0
      %1100 = vmatprep.mubr.bf16.mxu0 %v708
      %1101 = vmatmul.mubr.bf16.gmra.mrb[0].mxu0 %v696
      %v1102 = vpop.f32.mrb[0].mxu0
      %v1103 = vadd.f32 0.0, %v1102
      %v1104 = vpop.f32.mrb[0].mxu0
      %v1105 = vpop.f32.mrb[0].mxu0
      %v1106 = vadd.f32 0.0, %v1105
      %v1107 = vpop.f32.mrb[0].mxu0
      %1108 = vmatprep.mubr.bf16.mxu0 %v720
      %1109 = vmatmul.mubr.bf16.gmra.mrb[0].mxu0 %v708
      %v1110 = vpop.f32.mrb[0].mxu0
      %v1111 = vadd.f32 0.0, %v1110
      %v1112 = vpop.f32.mrb[0].mxu0
      %v1113 = vpop.f32.mrb[0].mxu0
      %v1114 = vadd.f32 0.0, %v1113
      %v1115 = vpop.f32.mrb[0].mxu0
      %1116 = vmatprep.mubr.bf16.mxu0 %v732
      %1117 = vmatmul.mubr.bf16.gmra.mrb[0].mxu0 %v720
      %v1118 = vpop.f32.mrb[0].mxu0
      %v1119 = vadd.f32 0.0, %v1118
      %v1120 = vpop.f32.mrb[0].mxu0
      %v1121 = vpop.f32.mrb[0].mxu0
      %v1122 = vadd.f32 0.0, %v1121
      %v1123 = vpop.f32.mrb[0].mxu0
      %1124 = vmatprep.mubr.bf16.mxu0 %v744
      %1125 = vmatmul.mubr.bf16.gmra.mrb[0].mxu0 %v732
      %v1126 = vpop.f32.mrb[0].mxu0
      %v1127 = vadd.f32 0.0, %v1126
      %v1128 = vpop.f32.mrb[0].mxu0
      %v1129 = vpop.f32.mrb[0].mxu0
      %v1130 = vadd.f32 0.0, %v1129
      %v1131 = vpop.f32.mrb[0].mxu0
      %1132 = vmatprep.mubr.bf16.mxu0 %v756
      %1133 = vmatmul.mubr.bf16.gmra.mrb[0].mxu0 %v744
      %v1134 = vpop.f32.mrb[0].mxu0
      %v1135 = vadd.f32 0.0, %v1134
      %v1136 = vpop.f32.mrb[0].mxu0
      %v1137 = vpop.f32.mrb[0].mxu0
      %v1138 = vadd.f32 0.0, %v1137
      %v1139 = vpop.f32.mrb[0].mxu0
      %1140 = vdwg.mxu0
      %1141 = vmatprep.subr.bf16.mxu0 0
      %1142 = vmatpush1.bf16.msra.mxu0 %v948
      %1143 = vmatprep.subr.bf16.mxu0 0
      %1144 = vmatpush1.bf16.msra.mxu0 %v949
      %1145 = vmatprep.subr.bf16.mxu0 0
      %1146 = vmatpush1.bf16.msra.mxu0 %v950
      %1147 = vmatprep.subr.bf16.mxu0 0
      %1148 = vmatpush1.bf16.msra.mxu0 %v951
      %1149 = vmatprep.subr.bf16.mxu0 0
      %1150 = vmatpush1.bf16.msra.mxu0 %v952
      %1151 = vmatprep.subr.bf16.mxu0 0
      %1152 = vmatpush1.bf16.msra.mxu0 %v953
      %1153 = vmatprep.subr.bf16.mxu0 0
      %1154 = vmatpush1.bf16.msra.mxu0 %v954
      %1155 = vmatprep.subr.bf16.mxu0 0
      %1156 = vmatpush1.bf16.msra.mxu0 %v955
      %1157 = vmatprep.subr.bf16.mxu0 0
      %1158 = vmatpush1.bf16.msra.mxu0 0
      %1159 = vmatprep.subr.bf16.mxu0 0
      %1160 = vmatpush1.bf16.msra.mxu0 0
      %1161 = vmatprep.subr.bf16.mxu0 0
      %1162 = vmatpush1.bf16.msra.mxu0 0
      %1163 = vmatprep.subr.bf16.mxu0 0
      %1164 = vmatpush1.bf16.msra.mxu0 0
      %1165 = vmatprep.subr.bf16.mxu0 0
      %1166 = vmatpush1.bf16.msra.mxu0 0
      %1167 = vmatprep.subr.bf16.mxu0 0
      %1168 = vmatpush1.bf16.msra.mxu0 0
      %1169 = vmatprep.subr.bf16.mxu0 0
      %1170 = vmatpush1.bf16.msra.mxu0 0
      %1171 = vmatprep.subr.bf16.mxu0 0
      %1172 = vmatpush1.bf16.msra.mxu0 0
      %1173 = vmatprep.mubr.bf16.mxu0 0
      %1174 = vmatmul.mubr.bf16.gmra.mrb[0].mxu0 %v588
      %v1175 = vpop.f32.mrb[0].mxu0
      %v1176 = vadd.f32 %v1015, %v1175
      %v1177 = vpop.f32.mrb[0].mxu0
      %v1178 = vpop.f32.mrb[0].mxu0
      %v1179 = vadd.f32 %v1018, %v1178
      %v1180 = vpop.f32.mrb[0].mxu0
      %1181 = vmatprep.mubr.bf16.mxu0 0
      %1182 = vmatmul.mubr.bf16.gmra.mrb[0].mxu0 %v600
      %v1183 = vpop.f32.mrb[0].mxu0
      %v1184 = vadd.f32 %v1023, %v1183
      %v1185 = vpop.f32.mrb[0].mxu0
      %v1186 = vpop.f32.mrb[0].mxu0
      %v1187 = vadd.f32 %v1026, %v1186
      %v1188 = vpop.f32.mrb[0].mxu0
      %1189 = vmatprep.mubr.bf16.mxu0 0
      %1190 = vmatmul.mubr.bf16.gmra.mrb[0].mxu0 %v612
      %v1191 = vpop.f32.mrb[0].mxu0
      %v1192 = vadd.f32 %v1031, %v1191
      %v1193 = vpop.f32.mrb[0].mxu0
      %v1194 = vpop.f32.mrb[0].mxu0
      %v1195 = vadd.f32 %v1034, %v1194
      %v1196 = vpop.f32.mrb[0].mxu0
      %1197 = vmatprep.mubr.bf16.mxu0 0
      %1198 = vmatmul.mubr.bf16.gmra.mrb[0].mxu0 %v624
      %v1199 = vpop.f32.mrb[0].mxu0
      %v1200 = vadd.f32 %v1039, %v1199
      %v1201 = vpop.f32.mrb[0].mxu0
      %v1202 = vpop.f32.mrb[0].mxu0
      %v1203 = vadd.f32 %v1042, %v1202
      %v1204 = vpop.f32.mrb[0].mxu0
      %1205 = vmatprep.mubr.bf16.mxu0 0
      %1206 = vmatmul.mubr.bf16.gmra.mrb[0].mxu0 %v636
      %v1207 = vpop.f32.mrb[0].mxu0
      %v1208 = vadd.f32 %v1047, %v1207
      %v1209 = vpop.f32.mrb[0].mxu0
      %v1210 = vpop.f32.mrb[0].mxu0
      %v1211 = vadd.f32 %v1050, %v1210
      %v1212 = vpop.f32.mrb[0].mxu0
      %1213 = vmatprep.mubr.bf16.mxu0 0
      %1214 = vmatmul.mubr.bf16.gmra.mrb[0].mxu0 %v648
      %v1215 = vpop.f32.mrb[0].mxu0
      %v1216 = vadd.f32 %v1055, %v1215
      %v1217 = vpop.f32.mrb[0].mxu0
      %v1218 = vpop.f32.mrb[0].mxu0
      %v1219 = vadd.f32 %v1058, %v1218
      %v1220 = vpop.f32.mrb[0].mxu0
      %1221 = vmatprep.mubr.bf16.mxu0 0
      %1222 = vmatmul.mubr.bf16.gmra.mrb[0].mxu0 %v660
      %v1223 = vpop.f32.mrb[0].mxu0
      %v1224 = vadd.f32 %v1063, %v1223
      %v1225 = vpop.f32.mrb[0].mxu0
      %v1226 = vpop.f32.mrb[0].mxu0
      %v1227 = vadd.f32 %v1066, %v1226
      %v1228 = vpop.f32.mrb[0].mxu0
      %1229 = vmatprep.mubr.bf16.mxu0 0
      %1230 = vmatmul.mubr.bf16.gmra.mrb[0].mxu0 %v672
      %v1231 = vpop.f32.mrb[0].mxu0
      %v1232 = vadd.f32 %v1071, %v1231
      %v1233 = vpop.f32.mrb[0].mxu0
      %v1234 = vpop.f32.mrb[0].mxu0
      %v1235 = vadd.f32 %v1074, %v1234
      %v1236 = vpop.f32.mrb[0].mxu0
      %1237 = vmatprep.mubr.bf16.mxu0 0
      %1238 = vmatmul.mubr.bf16.gmra.mrb[0].mxu0 %v684
      %v1239 = vpop.f32.mrb[0].mxu0
      %v1240 = vadd.f32 %v1079, %v1239
      %v1241 = vpop.f32.mrb[0].mxu0
      %v1242 = vpop.f32.mrb[0].mxu0
      %v1243 = vadd.f32 %v1082, %v1242
      %v1244 = vpop.f32.mrb[0].mxu0
      %1245 = vmatprep.mubr.bf16.mxu0 0
      %1246 = vmatmul.mubr.bf16.gmra.mrb[0].mxu0 %v696
      %v1247 = vpop.f32.mrb[0].mxu0
      %v1248 = vadd.f32 %v1087, %v1247
      %v1249 = vpop.f32.mrb[0].mxu0
      %v1250 = vpop.f32.mrb[0].mxu0
      %v1251 = vadd.f32 %v1090, %v1250
      %v1252 = vpop.f32.mrb[0].mxu0
      %1253 = vmatprep.mubr.bf16.mxu0 0
      %1254 = vmatmul.mubr.bf16.gmra.mrb[0].mxu0 %v708
      %v1255 = vpop.f32.mrb[0].mxu0
      %v1256 = vadd.f32 %v1095, %v1255
      %v1257 = vpop.f32.mrb[0].mxu0
      %v1258 = vpop.f32.mrb[0].mxu0
      %v1259 = vadd.f32 %v1098, %v1258
      %v1260 = vpop.f32.mrb[0].mxu0
      %1261 = vmatprep.mubr.bf16.mxu0 0
      %1262 = vmatmul.mubr.bf16.gmra.mrb[0].mxu0 %v720
      %v1263 = vpop.f32.mrb[0].mxu0
      %v1264 = vadd.f32 %v1103, %v1263
      %v1265 = vpop.f32.mrb[0].mxu0
      %v1266 = vpop.f32.mrb[0].mxu0
      %v1267 = vadd.f32 %v1106, %v1266
      %v1268 = vpop.f32.mrb[0].mxu0
      %1269 = vmatprep.mubr.bf16.mxu0 0
      %1270 = vmatmul.mubr.bf16.gmra.mrb[0].mxu0 %v732
      %v1271 = vpop.f32.mrb[0].mxu0
      %v1272 = vadd.f32 %v1111, %v1271
      %v1273 = vpop.f32.mrb[0].mxu0
      %v1274 = vpop.f32.mrb[0].mxu0
      %v1275 = vadd.f32 %v1114, %v1274
      %v1276 = vpop.f32.mrb[0].mxu0
      %1277 = vmatprep.mubr.bf16.mxu0 0
      %1278 = vmatmul.mubr.bf16.gmra.mrb[0].mxu0 %v744
      %v1279 = vpop.f32.mrb[0].mxu0
      %v1280 = vadd.f32 %v1119, %v1279
      %v1281 = vpop.f32.mrb[0].mxu0
      %v1282 = vpop.f32.mrb[0].mxu0
      %v1283 = vadd.f32 %v1122, %v1282
      %v1284 = vpop.f32.mrb[0].mxu0
      %1285 = vmatprep.mubr.bf16.mxu0 0
      %1286 = vmatmul.mubr.bf16.gmra.mrb[0].mxu0 %v756
      %v1287 = vpop.f32.mrb[0].mxu0
      %v1288 = vadd.f32 %v1127, %v1287
      %v1289 = vpop.f32.mrb[0].mxu0
      %v1290 = vpop.f32.mrb[0].mxu0
      %v1291 = vadd.f32 %v1130, %v1290
      %v1292 = vpop.f32.mrb[0].mxu0
      %1293 = vmatprep.mubr.bf16.mxu0 0
      %1294 = vmatmul.mubr.bf16.gmra.mrb[0].mxu0 %v768
      %v1295 = vpop.f32.mrb[0].mxu0
      %v1296 = vadd.f32 %v1135, %v1295
      %v1297 = vpop.f32.mrb[0].mxu0
      %v1298 = vpop.f32.mrb[0].mxu0
      %v1299 = vadd.f32 %v1138, %v1298
      %v1300 = vpop.f32.mrb[0].mxu0
      %1301 = vdwg.mxu0
      %v1350 = vunpack.c.l.b16 %v504
      %v1351 = vunpack.c.l.b16 %v505
      %v1352 = vunpack.c.l.b16 %v506
      %v1353 = vunpack.c.l.b16 %v507
      %v1354 = vunpack.c.l.b16 %v508
      %v1355 = vunpack.c.l.b16 %v509
      %v1356 = vunpack.c.l.b16 %v510
      %v1357 = vunpack.c.l.b16 %v511
      %v1358 = vunpack.c.l.b16 %v512
      %v1359 = vunpack.c.l.b16 %v513
      %v1360 = vunpack.c.l.b16 %v514
      %v1361 = vunpack.c.l.b16 %v515
      %v1362 = vunpack.c.l.b16 %v516
      %v1363 = vunpack.c.l.b16 %v517
      %v1364 = vunpack.c.l.b16 %v518
      %v1365 = vunpack.c.l.b16 %v519
      %v1366 = vunpack.c.l.b16 %v520
      %v1367 = vunpack.c.l.b16 %v521
      %v1368 = vunpack.c.l.b16 %v522
      %v1369 = vunpack.c.l.b16 %v523
      %v1370 = vunpack.c.l.b16 %v524
      %v1371 = vunpack.c.l.b16 %v525
      %v1372 = vunpack.c.l.b16 %v526
      %v1373 = vunpack.c.l.b16 %v527
      %v1374 = vunpack.c.l.b16 %v528
      %v1375 = vunpack.c.l.b16 %v529
      %v1376 = vunpack.c.l.b16 %v530
      %v1377 = vunpack.c.l.b16 %v531
      %v1378 = vunpack.c.l.b16 %v532
      %v1379 = vunpack.c.l.b16 %v533
      %v1380 = vunpack.c.l.b16 %v534
      %v1381 = vunpack.c.l.b16 %v535
      %v1382 = vunpack.c.l.b16 %v536
      %v1383 = vunpack.c.l.b16 %v537
      %v1384 = vunpack.c.l.b16 %v538
      %v1385 = vunpack.c.l.b16 %v539
      %v1386 = vunpack.c.l.b16 %v540
      %v1387 = vunpack.c.l.b16 %v541
      %v1388 = vunpack.c.l.b16 %v542
      %v1389 = vunpack.c.l.b16 %v543
      %v1390 = vunpack.c.l.b16 %v544
      %v1391 = vunpack.c.l.b16 %v545
      %v1392 = vunpack.c.l.b16 %v546
      %v1393 = vunpack.c.l.b16 %v547
      %v1394 = vunpack.c.l.b16 %v548
      %v1395 = vunpack.c.l.b16 %v549
      %v1396 = vunpack.c.l.b16 %v550
      %v1397 = vunpack.c.l.b16 %v551
      %v1398 = vpack.c.b16 %v1351, %v1350
      %v1399 = vpack.c.b16 %v1353, %v1352
      %v1400 = vpack.c.b16 %v1355, %v1354
      %v1401 = vpack.c.b16 %v1357, %v1356
      %v1402 = vpack.c.b16 %v1359, %v1358
      %v1403 = vpack.c.b16 %v1361, %v1360
      %v1404 = vpack.c.b16 %v1363, %v1362
      %v1405 = vpack.c.b16 %v1365, %v1364
      %v1406 = vpack.c.b16 %v1367, %v1366
      %v1407 = vpack.c.b16 %v1369, %v1368
      %v1408 = vpack.c.b16 %v1371, %v1370
      %v1409 = vpack.c.b16 %v1373, %v1372
      %v1410 = vpack.c.b16 %v1375, %v1374
      %v1411 = vpack.c.b16 %v1377, %v1376
      %v1412 = vpack.c.b16 %v1379, %v1378
      %v1413 = vpack.c.b16 %v1381, %v1380
      %v1414 = vpack.c.b16 %v1383, %v1382
      %v1415 = vpack.c.b16 %v1385, %v1384
      %v1416 = vpack.c.b16 %v1387, %v1386
      %v1417 = vpack.c.b16 %v1389, %v1388
      %v1418 = vpack.c.b16 %v1391, %v1390
      %v1419 = vpack.c.b16 %v1393, %v1392
      %v1420 = vpack.c.b16 %v1395, %v1394
      %v1421 = vpack.c.b16 %v1397, %v1396
      %1446 = vmatprep.subr.bf16.mxu0 0
      %1447 = vmatpush1.bf16.msra.mxu0 %v1398
      %1448 = vmatprep.subr.bf16.mxu0 0
      %1449 = vmatpush1.bf16.msra.mxu0 %v1399
      %1450 = vmatprep.subr.bf16.mxu0 0
      %1451 = vmatpush1.bf16.msra.mxu0 %v1400
      %1452 = vmatprep.subr.bf16.mxu0 0
      %1453 = vmatpush1.bf16.msra.mxu0 %v1401
      %1454 = vmatprep.subr.bf16.mxu0 0
      %1455 = vmatpush1.bf16.msra.mxu0 %v1402
      %1456 = vmatprep.subr.bf16.mxu0 0
      %1457 = vmatpush1.bf16.msra.mxu0 %v1403
      %1458 = vmatprep.subr.bf16.mxu0 0
      %1459 = vmatpush1.bf16.msra.mxu0 %v1404
      %1460 = vmatprep.subr.bf16.mxu0 0
      %1461 = vmatpush1.bf16.msra.mxu0 %v1405
      %1462 = vmatprep.subr.bf16.mxu0 0
      %1463 = vmatpush1.bf16.msra.mxu0 %v1406
      %1464 = vmatprep.subr.bf16.mxu0 0
      %1465 = vmatpush1.bf16.msra.mxu0 %v1407
      %1466 = vmatprep.subr.bf16.mxu0 0
      %1467 = vmatpush1.bf16.msra.mxu0 %v1408
      %1468 = vmatprep.subr.bf16.mxu0 0
      %1469 = vmatpush1.bf16.msra.mxu0 %v1409
      %1470 = vmatprep.subr.bf16.mxu0 0
      %1471 = vmatpush1.bf16.msra.mxu0 %v1410
      %1472 = vmatprep.subr.bf16.mxu0 0
      %1473 = vmatpush1.bf16.msra.mxu0 %v1411
      %1474 = vmatprep.subr.bf16.mxu0 0
      %1475 = vmatpush1.bf16.msra.mxu0 %v1412
      %1476 = vmatprep.subr.bf16.mxu0 0
      %1477 = vmatpush1.bf16.msra.mxu0 %v1413
      %1478 = vmatprep.mubr.bf16.mxu0 %v440
      %1479 = vmatmul.mubr.bf16.gmra.mrb[0].mxu0 %v438
      %v1480 = vpop.f32.mrb[0].mxu0
      %v1481 = vadd.f32 %v1176, %v1480
      %v1482 = vpop.f32.mrb[0].mxu0
      %v1483 = vpop.f32.mrb[0].mxu0
      %v1484 = vadd.f32 %v1179, %v1483
      %v1485 = vpop.f32.mrb[0].mxu0
      %1486 = vmatprep.mubr.bf16.mxu0 %v442
      %1487 = vmatmul.mubr.bf16.gmra.mrb[0].mxu0 %v440
      %v1488 = vpop.f32.mrb[0].mxu0
      %v1489 = vadd.f32 %v1184, %v1488
      %v1490 = vpop.f32.mrb[0].mxu0
      %v1491 = vpop.f32.mrb[0].mxu0
      %v1492 = vadd.f32 %v1187, %v1491
      %v1493 = vpop.f32.mrb[0].mxu0
      %1494 = vmatprep.mubr.bf16.mxu0 %v444
      %1495 = vmatmul.mubr.bf16.gmra.mrb[0].mxu0 %v442
      %v1496 = vpop.f32.mrb[0].mxu0
      %v1497 = vadd.f32 %v1192, %v1496
      %v1498 = vpop.f32.mrb[0].mxu0
      %v1499 = vpop.f32.mrb[0].mxu0
      %v1500 = vadd.f32 %v1195, %v1499
      %v1501 = vpop.f32.mrb[0].mxu0
      %1502 = vmatprep.mubr.bf16.mxu0 %v446
      %1503 = vmatmul.mubr.bf16.gmra.mrb[0].mxu0 %v444
      %v1504 = vpop.f32.mrb[0].mxu0
      %v1505 = vadd.f32 %v1200, %v1504
      %v1506 = vpop.f32.mrb[0].mxu0
      %v1507 = vpop.f32.mrb[0].mxu0
      %v1508 = vadd.f32 %v1203, %v1507
      %v1509 = vpop.f32.mrb[0].mxu0
      %1510 = vmatprep.mubr.bf16.mxu0 %v448
      %1511 = vmatmul.mubr.bf16.gmra.mrb[0].mxu0 %v446
      %v1512 = vpop.f32.mrb[0].mxu0
      %v1513 = vadd.f32 %v1208, %v1512
      %v1514 = vpop.f32.mrb[0].mxu0
      %v1515 = vpop.f32.mrb[0].mxu0
      %v1516 = vadd.f32 %v1211, %v1515
      %v1517 = vpop.f32.mrb[0].mxu0
      %1518 = vmatprep.mubr.bf16.mxu0 %v450
      %1519 = vmatmul.mubr.bf16.gmra.mrb[0].mxu0 %v448
      %v1520 = vpop.f32.mrb[0].mxu0
      %v1521 = vadd.f32 %v1216, %v1520
      %v1522 = vpop.f32.mrb[0].mxu0
      %v1523 = vpop.f32.mrb[0].mxu0
      %v1524 = vadd.f32 %v1219, %v1523
      %v1525 = vpop.f32.mrb[0].mxu0
      %1526 = vmatprep.mubr.bf16.mxu0 %v452
      %1527 = vmatmul.mubr.bf16.gmra.mrb[0].mxu0 %v450
      %v1528 = vpop.f32.mrb[0].mxu0
      %v1529 = vadd.f32 %v1224, %v1528
      %v1530 = vpop.f32.mrb[0].mxu0
      %v1531 = vpop.f32.mrb[0].mxu0
      %v1532 = vadd.f32 %v1227, %v1531
      %v1533 = vpop.f32.mrb[0].mxu0
      %1534 = vmatprep.mubr.bf16.mxu0 %v454
      %1535 = vmatmul.mubr.bf16.gmra.mrb[0].mxu0 %v452
      %v1536 = vpop.f32.mrb[0].mxu0
      %v1537 = vadd.f32 %v1232, %v1536
      %v1538 = vpop.f32.mrb[0].mxu0
      %v1539 = vpop.f32.mrb[0].mxu0
      %v1540 = vadd.f32 %v1235, %v1539
      %v1541 = vpop.f32.mrb[0].mxu0
      %1542 = vmatprep.mubr.bf16.mxu0 %v456
      %1543 = vmatmul.mubr.bf16.gmra.mrb[0].mxu0 %v454
      %v1544 = vpop.f32.mrb[0].mxu0
      %v1545 = vadd.f32 %v1240, %v1544
      %v1546 = vpop.f32.mrb[0].mxu0
      %v1547 = vpop.f32.mrb[0].mxu0
      %v1548 = vadd.f32 %v1243, %v1547
      %v1549 = vpop.f32.mrb[0].mxu0
      %1550 = vmatprep.mubr.bf16.mxu0 %v458
      %1551 = vmatmul.mubr.bf16.gmra.mrb[0].mxu0 %v456
      %v1552 = vpop.f32.mrb[0].mxu0
      %v1553 = vadd.f32 %v1248, %v1552
      %v1554 = vpop.f32.mrb[0].mxu0
      %v1555 = vpop.f32.mrb[0].mxu0
      %v1556 = vadd.f32 %v1251, %v1555
      %v1557 = vpop.f32.mrb[0].mxu0
      %1558 = vmatprep.mubr.bf16.mxu0 %v460
      %1559 = vmatmul.mubr.bf16.gmra.mrb[0].mxu0 %v458
      %v1560 = vpop.f32.mrb[0].mxu0
      %v1561 = vadd.f32 %v1256, %v1560
      %v1562 = vpop.f32.mrb[0].mxu0
      %v1563 = vpop.f32.mrb[0].mxu0
      %v1564 = vadd.f32 %v1259, %v1563
      %v1565 = vpop.f32.mrb[0].mxu0
      %1566 = vmatprep.mubr.bf16.mxu0 %v462
      %1567 = vmatmul.mubr.bf16.gmra.mrb[0].mxu0 %v460
      %v1568 = vpop.f32.mrb[0].mxu0
      %v1569 = vadd.f32 %v1264, %v1568
      %v1570 = vpop.f32.mrb[0].mxu0
      %v1571 = vpop.f32.mrb[0].mxu0
      %v1572 = vadd.f32 %v1267, %v1571
      %v1573 = vpop.f32.mrb[0].mxu0
      %1574 = vmatprep.mubr.bf16.mxu0 %v464
      %1575 = vmatmul.mubr.bf16.gmra.mrb[0].mxu0 %v462
      %v1576 = vpop.f32.mrb[0].mxu0
      %v1577 = vadd.f32 %v1272, %v1576
      %v1578 = vpop.f32.mrb[0].mxu0
      %v1579 = vpop.f32.mrb[0].mxu0
      %v1580 = vadd.f32 %v1275, %v1579
      %v1581 = vpop.f32.mrb[0].mxu0
      %1582 = vmatprep.mubr.bf16.mxu0 %v466
      %1583 = vmatmul.mubr.bf16.gmra.mrb[0].mxu0 %v464
      %v1584 = vpop.f32.mrb[0].mxu0
      %v1585 = vadd.f32 %v1280, %v1584
      %v1586 = vpop.f32.mrb[0].mxu0
      %v1587 = vpop.f32.mrb[0].mxu0
      %v1588 = vadd.f32 %v1283, %v1587
      %v1589 = vpop.f32.mrb[0].mxu0
      %1590 = vmatprep.mubr.bf16.mxu0 %v468
      %1591 = vmatmul.mubr.bf16.gmra.mrb[0].mxu0 %v466
      %v1592 = vpop.f32.mrb[0].mxu0
      %v1593 = vadd.f32 %v1288, %v1592
      %v1594 = vpop.f32.mrb[0].mxu0
      %v1595 = vpop.f32.mrb[0].mxu0
      %v1596 = vadd.f32 %v1291, %v1595
      %v1597 = vpop.f32.mrb[0].mxu0
      %1598 = vmatprep.mubr.bf16.mxu0 %v492
      %1599 = vmatmul.mubr.bf16.gmra.mrb[0].mxu0 %v468
      %v1600 = vpop.f32.mrb[0].mxu0
      %v1601 = vadd.f32 %v1296, %v1600
      %v1602 = vpop.f32.mrb[0].mxu0
      %v1603 = vpop.f32.mrb[0].mxu0
      %v1604 = vadd.f32 %v1299, %v1603
      %v1605 = vpop.f32.mrb[0].mxu0
      %1606 = vdwg.mxu0
      %1607 = vmatprep.subr.bf16.mxu0 0
      %1608 = vmatpush1.bf16.msra.mxu0 %v1414
      %1609 = vmatprep.subr.bf16.mxu0 0
      %1610 = vmatpush1.bf16.msra.mxu0 %v1415
      %1611 = vmatprep.subr.bf16.mxu0 0
      %1612 = vmatpush1.bf16.msra.mxu0 %v1416
      %1613 = vmatprep.subr.bf16.mxu0 0
      %1614 = vmatpush1.bf16.msra.mxu0 %v1417
      %1615 = vmatprep.subr.bf16.mxu0 0
      %1616 = vmatpush1.bf16.msra.mxu0 %v1418
      %1617 = vmatprep.subr.bf16.mxu0 0
      %1618 = vmatpush1.bf16.msra.mxu0 %v1419
      %1619 = vmatprep.subr.bf16.mxu0 0
      %1620 = vmatpush1.bf16.msra.mxu0 %v1420
      %1621 = vmatprep.subr.bf16.mxu0 0
      %1622 = vmatpush1.bf16.msra.mxu0 %v1421
      %1623 = vmatprep.subr.bf16.mxu0 0
      %1624 = vmatpush1.bf16.msra.mxu0 0
      %1625 = vmatprep.subr.bf16.mxu0 0
      %1626 = vmatpush1.bf16.msra.mxu0 0
      %1627 = vmatprep.subr.bf16.mxu0 0
      %1628 = vmatpush1.bf16.msra.mxu0 0
      %1629 = vmatprep.subr.bf16.mxu0 0
      %1630 = vmatpush1.bf16.msra.mxu0 0
      %1631 = vmatprep.subr.bf16.mxu0 0
      %1632 = vmatpush1.bf16.msra.mxu0 0
      %1633 = vmatprep.subr.bf16.mxu0 0
      %1634 = vmatpush1.bf16.msra.mxu0 0
      %1635 = vmatprep.subr.bf16.mxu0 0
      %1636 = vmatpush1.bf16.msra.mxu0 0
      %1637 = vmatprep.subr.bf16.mxu0 0
      %1638 = vmatpush1.bf16.msra.mxu0 0
      %1639 = vmatprep.mubr.bf16.mxu0 0
      %1640 = vmatmul.mubr.bf16.gmra.mrb[0].mxu0 %v442
      %v1641 = vpop.f32.mrb[0].mxu0
      %v1642 = vadd.f32 %v1481, %v1641
      %v1643 = vpop.f32.mrb[0].mxu0
      %v1644 = vpop.f32.mrb[0].mxu0
      %v1645 = vadd.f32 %v1484, %v1644
      %v1646 = vpop.f32.mrb[0].mxu0
      %1647 = vmatprep.mubr.bf16.mxu0 0
      %1648 = vmatmul.mubr.bf16.gmra.mrb[0].mxu0 %v444
      %v1649 = vpop.f32.mrb[0].mxu0
      %v1650 = vadd.f32 %v1489, %v1649
      %v1651 = vpop.f32.mrb[0].mxu0
      %v1652 = vpop.f32.mrb[0].mxu0
      %v1653 = vadd.f32 %v1492, %v1652
      %v1654 = vpop.f32.mrb[0].mxu0
      %1655 = vmatprep.mubr.bf16.mxu0 0
      %1656 = vmatmul.mubr.bf16.gmra.mrb[0].mxu0 %v446
      %v1657 = vpop.f32.mrb[0].mxu0
      %v1658 = vadd.f32 %v1497, %v1657
      %v1659 = vpop.f32.mrb[0].mxu0
      %v1660 = vpop.f32.mrb[0].mxu0
      %v1661 = vadd.f32 %v1500, %v1660
      %v1662 = vpop.f32.mrb[0].mxu0
      %1663 = vmatprep.mubr.bf16.mxu0 0
      %1664 = vmatmul.mubr.bf16.gmra.mrb[0].mxu0 %v448
      %v1665 = vpop.f32.mrb[0].mxu0
      %v1666 = vadd.f32 %v1505, %v1665
      %v1667 = vpop.f32.mrb[0].mxu0
      %v1668 = vpop.f32.mrb[0].mxu0
      %v1669 = vadd.f32 %v1508, %v1668
      %v1670 = vpop.f32.mrb[0].mxu0
      %1671 = vmatprep.mubr.bf16.mxu0 0
      %1672 = vmatmul.mubr.bf16.gmra.mrb[0].mxu0 %v450
      %v1673 = vpop.f32.mrb[0].mxu0
      %v1674 = vadd.f32 %v1513, %v1673
      %v1675 = vpop.f32.mrb[0].mxu0
      %v1676 = vpop.f32.mrb[0].mxu0
      %v1677 = vadd.f32 %v1516, %v1676
      %v1678 = vpop.f32.mrb[0].mxu0
      %1679 = vmatprep.mubr.bf16.mxu0 0
      %1680 = vmatmul.mubr.bf16.gmra.mrb[0].mxu0 %v452
      %v1681 = vpop.f32.mrb[0].mxu0
      %v1682 = vadd.f32 %v1521, %v1681
      %v1683 = vpop.f32.mrb[0].mxu0
      %v1684 = vpop.f32.mrb[0].mxu0
      %v1685 = vadd.f32 %v1524, %v1684
      %v1686 = vpop.f32.mrb[0].mxu0
      %1687 = vmatprep.mubr.bf16.mxu0 0
      %1688 = vmatmul.mubr.bf16.gmra.mrb[0].mxu0 %v454
      %v1689 = vpop.f32.mrb[0].mxu0
      %v1690 = vadd.f32 %v1529, %v1689
      %v1691 = vpop.f32.mrb[0].mxu0
      %v1692 = vpop.f32.mrb[0].mxu0
      %v1693 = vadd.f32 %v1532, %v1692
      %v1694 = vpop.f32.mrb[0].mxu0
      %1695 = vmatprep.mubr.bf16.mxu0 0
      %1696 = vmatmul.mubr.bf16.gmra.mrb[0].mxu0 %v456
      %v1697 = vpop.f32.mrb[0].mxu0
      %v1698 = vadd.f32 %v1537, %v1697
      %v1699 = vpop.f32.mrb[0].mxu0
      %v1700 = vpop.f32.mrb[0].mxu0
      %v1701 = vadd.f32 %v1540, %v1700
      %v1702 = vpop.f32.mrb[0].mxu0
      %1703 = vmatprep.mubr.bf16.mxu0 0
      %1704 = vmatmul.mubr.bf16.gmra.mrb[0].mxu0 %v458
      %v1705 = vpop.f32.mrb[0].mxu0
      %v1706 = vadd.f32 %v1545, %v1705
      %v1707 = vpop.f32.mrb[0].mxu0
      %v1708 = vpop.f32.mrb[0].mxu0
      %v1709 = vadd.f32 %v1548, %v1708
      %v1710 = vpop.f32.mrb[0].mxu0
      %1711 = vmatprep.mubr.bf16.mxu0 0
      %1712 = vmatmul.mubr.bf16.gmra.mrb[0].mxu0 %v460
      %v1713 = vpop.f32.mrb[0].mxu0
      %v1714 = vadd.f32 %v1553, %v1713
      %v1715 = vpop.f32.mrb[0].mxu0
      %v1716 = vpop.f32.mrb[0].mxu0
      %v1717 = vadd.f32 %v1556, %v1716
      %v1718 = vpop.f32.mrb[0].mxu0
      %1719 = vmatprep.mubr.bf16.mxu0 0
      %1720 = vmatmul.mubr.bf16.gmra.mrb[0].mxu0 %v462
      %v1721 = vpop.f32.mrb[0].mxu0
      %v1722 = vadd.f32 %v1561, %v1721
      %v1723 = vpop.f32.mrb[0].mxu0
      %v1724 = vpop.f32.mrb[0].mxu0
      %v1725 = vadd.f32 %v1564, %v1724
      %v1726 = vpop.f32.mrb[0].mxu0
      %1727 = vmatprep.mubr.bf16.mxu0 0
      %1728 = vmatmul.mubr.bf16.gmra.mrb[0].mxu0 %v464
      %v1729 = vpop.f32.mrb[0].mxu0
      %v1730 = vadd.f32 %v1569, %v1729
      %v1731 = vpop.f32.mrb[0].mxu0
      %v1732 = vpop.f32.mrb[0].mxu0
      %v1733 = vadd.f32 %v1572, %v1732
      %v1734 = vpop.f32.mrb[0].mxu0
      %1735 = vmatprep.mubr.bf16.mxu0 0
      %1736 = vmatmul.mubr.bf16.gmra.mrb[0].mxu0 %v466
      %v1737 = vpop.f32.mrb[0].mxu0
      %v1738 = vadd.f32 %v1577, %v1737
      %v1739 = vpop.f32.mrb[0].mxu0
      %v1740 = vpop.f32.mrb[0].mxu0
      %v1741 = vadd.f32 %v1580, %v1740
      %v1742 = vpop.f32.mrb[0].mxu0
      %1743 = vmatprep.mubr.bf16.mxu0 0
      %1744 = vmatmul.mubr.bf16.gmra.mrb[0].mxu0 %v468
      %v1745 = vpop.f32.mrb[0].mxu0
      %v1746 = vadd.f32 %v1585, %v1745
      %v1747 = vpop.f32.mrb[0].mxu0
      %v1748 = vpop.f32.mrb[0].mxu0
      %v1749 = vadd.f32 %v1588, %v1748
      %v1750 = vpop.f32.mrb[0].mxu0
      %1751 = vmatprep.mubr.bf16.mxu0 0
      %1752 = vmatmul.mubr.bf16.gmra.mrb[0].mxu0 %v492
      %v1753 = vpop.f32.mrb[0].mxu0
      %v1754 = vadd.f32 %v1593, %v1753
      %v1755 = vpop.f32.mrb[0].mxu0
      %v1756 = vpop.f32.mrb[0].mxu0
      %v1757 = vadd.f32 %v1596, %v1756
      %v1758 = vpop.f32.mrb[0].mxu0
      %1759 = vmatprep.mubr.bf16.mxu0 0
      %1760 = vmatmul.mubr.bf16.gmra.mrb[0].mxu0 %v501
      %v1761 = vpop.f32.mrb[0].mxu0
      %v1762 = vadd.f32 %v1601, %v1761
      %v1763 = vpop.f32.mrb[0].mxu0
      %v1764 = vpop.f32.mrb[0].mxu0
      %v1765 = vadd.f32 %v1604, %v1764
      %v1766 = vpop.f32.mrb[0].mxu0
      %1767 = vdwg.mxu0
      %vm1768 = vcmask 1046528
      %v1769 = vrot.slane %v438, 1
      %v1770 = vrot.slane %v439, 1
      %v1771 = vsel %vm1768, %v1769, %v1770
      %v1772 = vrot.slane %v440, 1
      %v1773 = vrot.slane %v441, 1
      %v1774 = vsel %vm1768, %v1772, %v1773
      %v1775 = vrot.slane %v442, 1
      %v1776 = vrot.slane %v443, 1
      %v1777 = vsel %vm1768, %v1775, %v1776
      %v1778 = vrot.slane %v444, 1
      %v1779 = vrot.slane %v445, 1
      %v1780 = vsel %vm1768, %v1778, %v1779
      %v1781 = vrot.slane %v446, 1
      %v1782 = vrot.slane %v447, 1
      %v1783 = vsel %vm1768, %v1781, %v1782
      %v1784 = vrot.slane %v448, 1
      %v1785 = vrot.slane %v449, 1
      %v1786 = vsel %vm1768, %v1784, %v1785
      %v1787 = vrot.slane %v450, 1
      %v1788 = vrot.slane %v451, 1
      %v1789 = vsel %vm1768, %v1787, %v1788
      %v1790 = vrot.slane %v452, 1
      %v1791 = vrot.slane %v453, 1
      %v1792 = vsel %vm1768, %v1790, %v1791
      %v1793 = vrot.slane %v454, 1
      %v1794 = vrot.slane %v455, 1
      %v1795 = vsel %vm1768, %v1793, %v1794
      %v1796 = vrot.slane %v456, 1
      %v1797 = vrot.slane %v457, 1
      %v1798 = vsel %vm1768, %v1796, %v1797
      %v1799 = vrot.slane %v458, 1
      %v1800 = vrot.slane %v459, 1
      %v1801 = vsel %vm1768, %v1799, %v1800
      %v1802 = vrot.slane %v460, 1
      %v1803 = vrot.slane %v461, 1
      %v1804 = vsel %vm1768, %v1802, %v1803
      %v1805 = vrot.slane %v462, 1
      %v1806 = vrot.slane %v463, 1
      %v1807 = vsel %vm1768, %v1805, %v1806
      %v1808 = vrot.slane %v464, 1
      %v1809 = vrot.slane %v465, 1
      %v1810 = vsel %vm1768, %v1808, %v1809
      %v1811 = vrot.slane %v466, 1
      %v1812 = vrot.slane %v467, 1
      %v1813 = vsel %vm1768, %v1811, %v1812
      %v1814 = vrot.slane %v468, 1
      %v1815 = vrot.slane %v469, 1
      %v1816 = vsel %vm1768, %v1814, %v1815
      %v1817 = vrot.slane %v492, 1
      %v1818 = vrot.slane %v493, 1
      %v1819 = vsel %vm1768, %v1817, %v1818
      %v1820 = vrot.slane %v501, 1
      %v1821 = vrot.slane %v502, 1
      %v1822 = vsel %vm1768, %v1820, %v1821
      %s1841 = scalar_lea.vmem %s262, 384
      %v1842 = vld [vmem:[%s1841] sm:$0xf]
      %v1843 = vld [vmem:[%s1841 + $0x4] sm:$0xf]
      %v1844 = vld [vmem:[%s1841 + $0x8] sm:$0xf]
      %v1845 = vld [vmem:[%s1841 + $0xc] sm:$0xf]
      %v1846 = vld [vmem:[%s1841 + $0x10] sm:$0xf]
      %v1847 = vld [vmem:[%s1841 + $0x14] sm:$0xf]
      %v1848 = vld [vmem:[%s1841 + $0x18] sm:$0xf]
      %v1849 = vld [vmem:[%s1841 + $0x1c] sm:$0xf]
      %v1850 = vld [vmem:[%s1841 + $0x20] sm:$0xf]
      %v1851 = vld [vmem:[%s1841 + $0x24] sm:$0xf]
      %v1852 = vld [vmem:[%s1841 + $0x28] sm:$0xf]
      %v1853 = vld [vmem:[%s1841 + $0x2c] sm:$0xf]
      %v1854 = vld [vmem:[%s1841 + $0x30] sm:$0xf]
      %v1855 = vld [vmem:[%s1841 + $0x34] sm:$0xf]
      %v1856 = vld [vmem:[%s1841 + $0x38] sm:$0xf]
      %v1857 = vld [vmem:[%s1841 + $0x3c] sm:$0xf]
      %v1858 = vld [vmem:[%s1841 + $0x40] sm:$0xf]
      %v1859 = vld [vmem:[%s1841 + $0x44] sm:$0xf]
      %v1860 = vld [vmem:[%s1841 + $0x48] sm:$0xf]
      %v1861 = vld [vmem:[%s1841 + $0x4c] sm:$0xf]
      %v1862 = vld [vmem:[%s1841 + $0x50] sm:$0xf]
      %v1863 = vld [vmem:[%s1841 + $0x54] sm:$0xf]
      %v1864 = vld [vmem:[%s1841 + $0x58] sm:$0xf]
      %v1865 = vld [vmem:[%s1841 + $0x5c] sm:$0xf]
      %v1866 = vld [vmem:[%s1841 + $0x60] sm:$0xf]
      %v1867 = vld [vmem:[%s1841 + $0x64] sm:$0xf]
      %v1868 = vld [vmem:[%s1841 + $0x68] sm:$0xf]
      %v1869 = vld [vmem:[%s1841 + $0x6c] sm:$0xf]
      %v1870 = vld [vmem:[%s1841 + $0x70] sm:$0xf]
      %v1871 = vld [vmem:[%s1841 + $0x74] sm:$0xf]
      %v1872 = vld [vmem:[%s1841 + $0x78] sm:$0xf]
      %v1873 = vld [vmem:[%s1841 + $0x7c] sm:$0xf]
      %v1874 = vld [vmem:[%s1841 + $0x80] sm:$0xf]
      %v1875 = vld [vmem:[%s1841 + $0x84] sm:$0xf]
      %v1876 = vld [vmem:[%s1841 + $0x88] sm:$0xf]
      %v1877 = vld [vmem:[%s1841 + $0x8c] sm:$0xf]
      %v1878 = vld [vmem:[%s1841 + $0x90] sm:$0xf]
      %v1879 = vld [vmem:[%s1841 + $0x94] sm:$0xf]
      %v1880 = vld [vmem:[%s1841 + $0x98] sm:$0xf]
      %v1881 = vld [vmem:[%s1841 + $0x9c] sm:$0xf]
      %v1882 = vld [vmem:[%s1841 + $0xa0] sm:$0xf]
      %v1883 = vld [vmem:[%s1841 + $0xa4] sm:$0xf]
      %v1884 = vld [vmem:[%s1841 + $0xa8] sm:$0xf]
      %v1885 = vld [vmem:[%s1841 + $0xac] sm:$0xf]
      %v1886 = vld [vmem:[%s1841 + $0xb0] sm:$0xf]
      %v1887 = vld [vmem:[%s1841 + $0xb4] sm:$0xf]
      %v1888 = vld [vmem:[%s1841 + $0xb8] sm:$0xf]
      %v1889 = vld [vmem:[%s1841 + $0xbc] sm:$0xf]
      %v1938 = vunpack.c.l.b16 %v1842
      %v1939 = vunpack.c.l.b16 %v1843
      %v1940 = vunpack.c.l.b16 %v1844
      %v1941 = vunpack.c.l.b16 %v1845
      %v1942 = vunpack.c.l.b16 %v1846
      %v1943 = vunpack.c.l.b16 %v1847
      %v1944 = vunpack.c.l.b16 %v1848
      %v1945 = vunpack.c.l.b16 %v1849
      %v1946 = vunpack.c.l.b16 %v1850
      %v1947 = vunpack.c.l.b16 %v1851
      %v1948 = vunpack.c.l.b16 %v1852
      %v1949 = vunpack.c.l.b16 %v1853
      %v1950 = vunpack.c.l.b16 %v1854
      %v1951 = vunpack.c.l.b16 %v1855
      %v1952 = vunpack.c.l.b16 %v1856
      %v1953 = vunpack.c.l.b16 %v1857
      %v1954 = vunpack.c.l.b16 %v1858
      %v1955 = vunpack.c.l.b16 %v1859
      %v1956 = vunpack.c.l.b16 %v1860
      %v1957 = vunpack.c.l.b16 %v1861
      %v1958 = vunpack.c.l.b16 %v1862
      %v1959 = vunpack.c.l.b16 %v1863
      %v1960 = vunpack.c.l.b16 %v1864
      %v1961 = vunpack.c.l.b16 %v1865
      %v1962 = vunpack.c.l.b16 %v1866
      %v1963 = vunpack.c.l.b16 %v1867
      %v1964 = vunpack.c.l.b16 %v1868
      %v1965 = vunpack.c.l.b16 %v1869
      %v1966 = vunpack.c.l.b16 %v1870
      %v1967 = vunpack.c.l.b16 %v1871
      %v1968 = vunpack.c.l.b16 %v1872
      %v1969 = vunpack.c.l.b16 %v1873
      %v1970 = vunpack.c.l.b16 %v1874
      %v1971 = vunpack.c.l.b16 %v1875
      %v1972 = vunpack.c.l.b16 %v1876
      %v1973 = vunpack.c.l.b16 %v1877
      %v1974 = vunpack.c.l.b16 %v1878
      %v1975 = vunpack.c.l.b16 %v1879
      %v1976 = vunpack.c.l.b16 %v1880
      %v1977 = vunpack.c.l.b16 %v1881
      %v1978 = vunpack.c.l.b16 %v1882
      %v1979 = vunpack.c.l.b16 %v1883
      %v1980 = vunpack.c.l.b16 %v1884
      %v1981 = vunpack.c.l.b16 %v1885
      %v1982 = vunpack.c.l.b16 %v1886
      %v1983 = vunpack.c.l.b16 %v1887
      %v1984 = vunpack.c.l.b16 %v1888
      %v1985 = vunpack.c.l.b16 %v1889
      %v1986 = vpack.c.b16 %v1939, %v1938
      %v1987 = vpack.c.b16 %v1941, %v1940
      %v1988 = vpack.c.b16 %v1943, %v1942
      %v1989 = vpack.c.b16 %v1945, %v1944
      %v1990 = vpack.c.b16 %v1947, %v1946
      %v1991 = vpack.c.b16 %v1949, %v1948
      %v1992 = vpack.c.b16 %v1951, %v1950
      %v1993 = vpack.c.b16 %v1953, %v1952
      %v1994 = vpack.c.b16 %v1955, %v1954
      %v1995 = vpack.c.b16 %v1957, %v1956
      %v1996 = vpack.c.b16 %v1959, %v1958
      %v1997 = vpack.c.b16 %v1961, %v1960
      %v1998 = vpack.c.b16 %v1963, %v1962
      %v1999 = vpack.c.b16 %v1965, %v1964
      %v2000 = vpack.c.b16 %v1967, %v1966
      %v2001 = vpack.c.b16 %v1969, %v1968
      %v2002 = vpack.c.b16 %v1971, %v1970
      %v2003 = vpack.c.b16 %v1973, %v1972
      %v2004 = vpack.c.b16 %v1975, %v1974
      %v2005 = vpack.c.b16 %v1977, %v1976
      %v2006 = vpack.c.b16 %v1979, %v1978
      %v2007 = vpack.c.b16 %v1981, %v1980
      %v2008 = vpack.c.b16 %v1983, %v1982
      %v2009 = vpack.c.b16 %v1985, %v1984
      %2034 = vmatprep.subr.bf16.mxu0 0
      %2035 = vmatpush1.bf16.msra.mxu0 %v1986
      %2036 = vmatprep.subr.bf16.mxu0 0
      %2037 = vmatpush1.bf16.msra.mxu0 %v1987
      %2038 = vmatprep.subr.bf16.mxu0 0
      %2039 = vmatpush1.bf16.msra.mxu0 %v1988
      %2040 = vmatprep.subr.bf16.mxu0 0
      %2041 = vmatpush1.bf16.msra.mxu0 %v1989
      %2042 = vmatprep.subr.bf16.mxu0 0
      %2043 = vmatpush1.bf16.msra.mxu0 %v1990
      %2044 = vmatprep.subr.bf16.mxu0 0
      %2045 = vmatpush1.bf16.msra.mxu0 %v1991
      %2046 = vmatprep.subr.bf16.mxu0 0
      %2047 = vmatpush1.bf16.msra.mxu0 %v1992
      %2048 = vmatprep.subr.bf16.mxu0 0
      %2049 = vmatpush1.bf16.msra.mxu0 %v1993
      %2050 = vmatprep.subr.bf16.mxu0 0
      %2051 = vmatpush1.bf16.msra.mxu0 %v1994
      %2052 = vmatprep.subr.bf16.mxu0 0
      %2053 = vmatpush1.bf16.msra.mxu0 %v1995
      %2054 = vmatprep.subr.bf16.mxu0 0
      %2055 = vmatpush1.bf16.msra.mxu0 %v1996
      %2056 = vmatprep.subr.bf16.mxu0 0
      %2057 = vmatpush1.bf16.msra.mxu0 %v1997
      %2058 = vmatprep.subr.bf16.mxu0 0
      %2059 = vmatpush1.bf16.msra.mxu0 %v1998
      %2060 = vmatprep.subr.bf16.mxu0 0
      %2061 = vmatpush1.bf16.msra.mxu0 %v1999
      %2062 = vmatprep.subr.bf16.mxu0 0
      %2063 = vmatpush1.bf16.msra.mxu0 %v2000
      %2064 = vmatprep.subr.bf16.mxu0 0
      %2065 = vmatpush1.bf16.msra.mxu0 %v2001
      %2066 = vmatprep.mubr.bf16.mxu0 %v1774
      %2067 = vmatmul.mubr.bf16.gmra.mrb[0].mxu0 %v1771
      %v2068 = vpop.f32.mrb[0].mxu0
      %v2069 = vadd.f32 0.0, %v2068
      %v2070 = vpop.f32.mrb[0].mxu0
      %v2071 = vpop.f32.mrb[0].mxu0
      %v2072 = vadd.f32 0.0, %v2071
      %v2073 = vpop.f32.mrb[0].mxu0
      %2074 = vmatprep.mubr.bf16.mxu0 %v1777
      %2075 = vmatmul.mubr.bf16.gmra.mrb[0].mxu0 %v1774
      %v2076 = vpop.f32.mrb[0].mxu0
      %v2077 = vadd.f32 0.0, %v2076
      %v2078 = vpop.f32.mrb[0].mxu0
      %v2079 = vpop.f32.mrb[0].mxu0
      %v2080 = vadd.f32 0.0, %v2079
      %v2081 = vpop.f32.mrb[0].mxu0
      %2082 = vmatprep.mubr.bf16.mxu0 %v1780
      %2083 = vmatmul.mubr.bf16.gmra.mrb[0].mxu0 %v1777
      %v2084 = vpop.f32.mrb[0].mxu0
      %v2085 = vadd.f32 0.0, %v2084
      %v2086 = vpop.f32.mrb[0].mxu0
      %v2087 = vpop.f32.mrb[0].mxu0
      %v2088 = vadd.f32 0.0, %v2087
      %v2089 = vpop.f32.mrb[0].mxu0
      %2090 = vmatprep.mubr.bf16.mxu0 %v1783
      %2091 = vmatmul.mubr.bf16.gmra.mrb[0].mxu0 %v1780
      %v2092 = vpop.f32.mrb[0].mxu0
      %v2093 = vadd.f32 0.0, %v2092
      %v2094 = vpop.f32.mrb[0].mxu0
      %v2095 = vpop.f32.mrb[0].mxu0
      %v2096 = vadd.f32 0.0, %v2095
      %v2097 = vpop.f32.mrb[0].mxu0
      %2098 = vmatprep.mubr.bf16.mxu0 %v1786
      %2099 = vmatmul.mubr.bf16.gmra.mrb[0].mxu0 %v1783
      %v2100 = vpop.f32.mrb[0].mxu0
      %v2101 = vadd.f32 0.0, %v2100
      %v2102 = vpop.f32.mrb[0].mxu0
      %v2103 = vpop.f32.mrb[0].mxu0
      %v2104 = vadd.f32 0.0, %v2103
      %v2105 = vpop.f32.mrb[0].mxu0
      %2106 = vmatprep.mubr.bf16.mxu0 %v1789
      %2107 = vmatmul.mubr.bf16.gmra.mrb[0].mxu0 %v1786
      %v2108 = vpop.f32.mrb[0].mxu0
      %v2109 = vadd.f32 0.0, %v2108
      %v2110 = vpop.f32.mrb[0].mxu0
      %v2111 = vpop.f32.mrb[0].mxu0
      %v2112 = vadd.f32 0.0, %v2111
      %v2113 = vpop.f32.mrb[0].mxu0
      %2114 = vmatprep.mubr.bf16.mxu0 %v1792
      %2115 = vmatmul.mubr.bf16.gmra.mrb[0].mxu0 %v1789
      %v2116 = vpop.f32.mrb[0].mxu0
      %v2117 = vadd.f32 0.0, %v2116
      %v2118 = vpop.f32.mrb[0].mxu0
      %v2119 = vpop.f32.mrb[0].mxu0
      %v2120 = vadd.f32 0.0, %v2119
      %v2121 = vpop.f32.mrb[0].mxu0
      %2122 = vmatprep.mubr.bf16.mxu0 %v1795
      %2123 = vmatmul.mubr.bf16.gmra.mrb[0].mxu0 %v1792
      %v2124 = vpop.f32.mrb[0].mxu0
      %v2125 = vadd.f32 0.0, %v2124
      %v2126 = vpop.f32.mrb[0].mxu0
      %v2127 = vpop.f32.mrb[0].mxu0
      %v2128 = vadd.f32 0.0, %v2127
      %v2129 = vpop.f32.mrb[0].mxu0
      %2130 = vmatprep.mubr.bf16.mxu0 %v1798
      %2131 = vmatmul.mubr.bf16.gmra.mrb[0].mxu0 %v1795
      %v2132 = vpop.f32.mrb[0].mxu0
      %v2133 = vadd.f32 0.0, %v2132
      %v2134 = vpop.f32.mrb[0].mxu0
      %v2135 = vpop.f32.mrb[0].mxu0
      %v2136 = vadd.f32 0.0, %v2135
      %v2137 = vpop.f32.mrb[0].mxu0
      %2138 = vmatprep.mubr.bf16.mxu0 %v1801
      %2139 = vmatmul.mubr.bf16.gmra.mrb[0].mxu0 %v1798
      %v2140 = vpop.f32.mrb[0].mxu0
      %v2141 = vadd.f32 0.0, %v2140
      %v2142 = vpop.f32.mrb[0].mxu0
      %v2143 = vpop.f32.mrb[0].mxu0
      %v2144 = vadd.f32 0.0, %v2143
      %v2145 = vpop.f32.mrb[0].mxu0
      %2146 = vmatprep.mubr.bf16.mxu0 %v1804
      %2147 = vmatmul.mubr.bf16.gmra.mrb[0].mxu0 %v1801
      %v2148 = vpop.f32.mrb[0].mxu0
      %v2149 = vadd.f32 0.0, %v2148
      %v2150 = vpop.f32.mrb[0].mxu0
      %v2151 = vpop.f32.mrb[0].mxu0
      %v2152 = vadd.f32 0.0, %v2151
      %v2153 = vpop.f32.mrb[0].mxu0
      %2154 = vmatprep.mubr.bf16.mxu0 %v1807
      %2155 = vmatmul.mubr.bf16.gmra.mrb[0].mxu0 %v1804
      %v2156 = vpop.f32.mrb[0].mxu0
      %v2157 = vadd.f32 0.0, %v2156
      %v2158 = vpop.f32.mrb[0].mxu0
      %v2159 = vpop.f32.mrb[0].mxu0
      %v2160 = vadd.f32 0.0, %v2159
      %v2161 = vpop.f32.mrb[0].mxu0
      %2162 = vmatprep.mubr.bf16.mxu0 %v1810
      %2163 = vmatmul.mubr.bf16.gmra.mrb[0].mxu0 %v1807
      %v2164 = vpop.f32.mrb[0].mxu0
      %v2165 = vadd.f32 0.0, %v2164
      %v2166 = vpop.f32.mrb[0].mxu0
      %v2167 = vpop.f32.mrb[0].mxu0
      %v2168 = vadd.f32 0.0, %v2167
      %v2169 = vpop.f32.mrb[0].mxu0
      %2170 = vmatprep.mubr.bf16.mxu0 %v1813
      %2171 = vmatmul.mubr.bf16.gmra.mrb[0].mxu0 %v1810
      %v2172 = vpop.f32.mrb[0].mxu0
      %v2173 = vadd.f32 0.0, %v2172
      %v2174 = vpop.f32.mrb[0].mxu0
      %v2175 = vpop.f32.mrb[0].mxu0
      %v2176 = vadd.f32 0.0, %v2175
      %v2177 = vpop.f32.mrb[0].mxu0
      %2178 = vmatprep.mubr.bf16.mxu0 %v1816
      %2179 = vmatmul.mubr.bf16.gmra.mrb[0].mxu0 %v1813
      %v2180 = vpop.f32.mrb[0].mxu0
      %v2181 = vadd.f32 0.0, %v2180
      %v2182 = vpop.f32.mrb[0].mxu0
      %v2183 = vpop.f32.mrb[0].mxu0
      %v2184 = vadd.f32 0.0, %v2183
      %v2185 = vpop.f32.mrb[0].mxu0
      %2186 = vmatprep.mubr.bf16.mxu0 %v1819
      %2187 = vmatmul.mubr.bf16.gmra.mrb[0].mxu0 %v1816
      %v2188 = vpop.f32.mrb[0].mxu0
      %v2189 = vadd.f32 0.0, %v2188
      %v2190 = vpop.f32.mrb[0].mxu0
      %v2191 = vpop.f32.mrb[0].mxu0
      %v2192 = vadd.f32 0.0, %v2191
      %v2193 = vpop.f32.mrb[0].mxu0
      %2194 = vdwg.mxu0
      %2195 = vmatprep.subr.bf16.mxu0 0
      %2196 = vmatpush1.bf16.msra.mxu0 %v2002
      %2197 = vmatprep.subr.bf16.mxu0 0
      %2198 = vmatpush1.bf16.msra.mxu0 %v2003
      %2199 = vmatprep.subr.bf16.mxu0 0
      %2200 = vmatpush1.bf16.msra.mxu0 %v2004
      %2201 = vmatprep.subr.bf16.mxu0 0
      %2202 = vmatpush1.bf16.msra.mxu0 %v2005
      %2203 = vmatprep.subr.bf16.mxu0 0
      %2204 = vmatpush1.bf16.msra.mxu0 %v2006
      %2205 = vmatprep.subr.bf16.mxu0 0
      %2206 = vmatpush1.bf16.msra.mxu0 %v2007
      %2207 = vmatprep.subr.bf16.mxu0 0
      %2208 = vmatpush1.bf16.msra.mxu0 %v2008
      %2209 = vmatprep.subr.bf16.mxu0 0
      %2210 = vmatpush1.bf16.msra.mxu0 %v2009
      %2211 = vmatprep.subr.bf16.mxu0 0
      %2212 = vmatpush1.bf16.msra.mxu0 0
      %2213 = vmatprep.subr.bf16.mxu0 0
      %2214 = vmatpush1.bf16.msra.mxu0 0
      %2215 = vmatprep.subr.bf16.mxu0 0
      %2216 = vmatpush1.bf16.msra.mxu0 0
      %2217 = vmatprep.subr.bf16.mxu0 0
      %2218 = vmatpush1.bf16.msra.mxu0 0
      %2219 = vmatprep.subr.bf16.mxu0 0
      %2220 = vmatpush1.bf16.msra.mxu0 0
      %2221 = vmatprep.subr.bf16.mxu0 0
      %2222 = vmatpush1.bf16.msra.mxu0 0
      %2223 = vmatprep.subr.bf16.mxu0 0
      %2224 = vmatpush1.bf16.msra.mxu0 0
      %2225 = vmatprep.subr.bf16.mxu0 0
      %2226 = vmatpush1.bf16.msra.mxu0 0
      %2227 = vmatprep.mubr.bf16.mxu0 0
      %2228 = vmatmul.mubr.bf16.gmra.mrb[0].mxu0 %v1777
      %v2229 = vpop.f32.mrb[0].mxu0
      %v2230 = vadd.f32 %v2069, %v2229
      %v2231 = vpop.f32.mrb[0].mxu0
      %v2232 = vpop.f32.mrb[0].mxu0
      %v2233 = vadd.f32 %v2072, %v2232
      %v2234 = vpop.f32.mrb[0].mxu0
      %2235 = vmatprep.mubr.bf16.mxu0 0
      %2236 = vmatmul.mubr.bf16.gmra.mrb[0].mxu0 %v1780
      %v2237 = vpop.f32.mrb[0].mxu0
      %v2238 = vadd.f32 %v2077, %v2237
      %v2239 = vpop.f32.mrb[0].mxu0
      %v2240 = vpop.f32.mrb[0].mxu0
      %v2241 = vadd.f32 %v2080, %v2240
      %v2242 = vpop.f32.mrb[0].mxu0
      %2243 = vmatprep.mubr.bf16.mxu0 0
      %2244 = vmatmul.mubr.bf16.gmra.mrb[0].mxu0 %v1783
      %v2245 = vpop.f32.mrb[0].mxu0
      %v2246 = vadd.f32 %v2085, %v2245
      %v2247 = vpop.f32.mrb[0].mxu0
      %v2248 = vpop.f32.mrb[0].mxu0
      %v2249 = vadd.f32 %v2088, %v2248
      %v2250 = vpop.f32.mrb[0].mxu0
      %2251 = vmatprep.mubr.bf16.mxu0 0
      %2252 = vmatmul.mubr.bf16.gmra.mrb[0].mxu0 %v1786
      %v2253 = vpop.f32.mrb[0].mxu0
      %v2254 = vadd.f32 %v2093, %v2253
      %v2255 = vpop.f32.mrb[0].mxu0
      %v2256 = vpop.f32.mrb[0].mxu0
      %v2257 = vadd.f32 %v2096, %v2256
      %v2258 = vpop.f32.mrb[0].mxu0
      %2259 = vmatprep.mubr.bf16.mxu0 0
      %2260 = vmatmul.mubr.bf16.gmra.mrb[0].mxu0 %v1789
      %v2261 = vpop.f32.mrb[0].mxu0
      %v2262 = vadd.f32 %v2101, %v2261
      %v2263 = vpop.f32.mrb[0].mxu0
      %v2264 = vpop.f32.mrb[0].mxu0
      %v2265 = vadd.f32 %v2104, %v2264
      %v2266 = vpop.f32.mrb[0].mxu0
      %2267 = vmatprep.mubr.bf16.mxu0 0
      %2268 = vmatmul.mubr.bf16.gmra.mrb[0].mxu0 %v1792
      %v2269 = vpop.f32.mrb[0].mxu0
      %v2270 = vadd.f32 %v2109, %v2269
      %v2271 = vpop.f32.mrb[0].mxu0
      %v2272 = vpop.f32.mrb[0].mxu0
      %v2273 = vadd.f32 %v2112, %v2272
      %v2274 = vpop.f32.mrb[0].mxu0
      %2275 = vmatprep.mubr.bf16.mxu0 0
      %2276 = vmatmul.mubr.bf16.gmra.mrb[0].mxu0 %v1795
      %v2277 = vpop.f32.mrb[0].mxu0
      %v2278 = vadd.f32 %v2117, %v2277
      %v2279 = vpop.f32.mrb[0].mxu0
      %v2280 = vpop.f32.mrb[0].mxu0
      %v2281 = vadd.f32 %v2120, %v2280
      %v2282 = vpop.f32.mrb[0].mxu0
      %2283 = vmatprep.mubr.bf16.mxu0 0
      %2284 = vmatmul.mubr.bf16.gmra.mrb[0].mxu0 %v1798
      %v2285 = vpop.f32.mrb[0].mxu0
      %v2286 = vadd.f32 %v2125, %v2285
      %v2287 = vpop.f32.mrb[0].mxu0
      %v2288 = vpop.f32.mrb[0].mxu0
      %v2289 = vadd.f32 %v2128, %v2288
      %v2290 = vpop.f32.mrb[0].mxu0
      %2291 = vmatprep.mubr.bf16.mxu0 0
      %2292 = vmatmul.mubr.bf16.gmra.mrb[0].mxu0 %v1801
      %v2293 = vpop.f32.mrb[0].mxu0
      %v2294 = vadd.f32 %v2133, %v2293
      %v2295 = vpop.f32.mrb[0].mxu0
      %v2296 = vpop.f32.mrb[0].mxu0
      %v2297 = vadd.f32 %v2136, %v2296
      %v2298 = vpop.f32.mrb[0].mxu0
      %2299 = vmatprep.mubr.bf16.mxu0 0
      %2300 = vmatmul.mubr.bf16.gmra.mrb[0].mxu0 %v1804
      %v2301 = vpop.f32.mrb[0].mxu0
      %v2302 = vadd.f32 %v2141, %v2301
      %v2303 = vpop.f32.mrb[0].mxu0
      %v2304 = vpop.f32.mrb[0].mxu0
      %v2305 = vadd.f32 %v2144, %v2304
      %v2306 = vpop.f32.mrb[0].mxu0
      %2307 = vmatprep.mubr.bf16.mxu0 0
      %2308 = vmatmul.mubr.bf16.gmra.mrb[0].mxu0 %v1807
      %v2309 = vpop.f32.mrb[0].mxu0
      %v2310 = vadd.f32 %v2149, %v2309
      %v2311 = vpop.f32.mrb[0].mxu0
      %v2312 = vpop.f32.mrb[0].mxu0
      %v2313 = vadd.f32 %v2152, %v2312
      %v2314 = vpop.f32.mrb[0].mxu0
      %2315 = vmatprep.mubr.bf16.mxu0 0
      %2316 = vmatmul.mubr.bf16.gmra.mrb[0].mxu0 %v1810
      %v2317 = vpop.f32.mrb[0].mxu0
      %v2318 = vadd.f32 %v2157, %v2317
      %v2319 = vpop.f32.mrb[0].mxu0
      %v2320 = vpop.f32.mrb[0].mxu0
      %v2321 = vadd.f32 %v2160, %v2320
      %v2322 = vpop.f32.mrb[0].mxu0
      %2323 = vmatprep.mubr.bf16.mxu0 0
      %2324 = vmatmul.mubr.bf16.gmra.mrb[0].mxu0 %v1813
      %v2325 = vpop.f32.mrb[0].mxu0
      %v2326 = vadd.f32 %v2165, %v2325
      %v2327 = vpop.f32.mrb[0].mxu0
      %v2328 = vpop.f32.mrb[0].mxu0
      %v2329 = vadd.f32 %v2168, %v2328
      %v2330 = vpop.f32.mrb[0].mxu0
      %2331 = vmatprep.mubr.bf16.mxu0 0
      %2332 = vmatmul.mubr.bf16.gmra.mrb[0].mxu0 %v1816
      %v2333 = vpop.f32.mrb[0].mxu0
      %v2334 = vadd.f32 %v2173, %v2333
      %v2335 = vpop.f32.mrb[0].mxu0
      %v2336 = vpop.f32.mrb[0].mxu0
      %v2337 = vadd.f32 %v2176, %v2336
      %v2338 = vpop.f32.mrb[0].mxu0
      %2339 = vmatprep.mubr.bf16.mxu0 0
      %2340 = vmatmul.mubr.bf16.gmra.mrb[0].mxu0 %v1819
      %v2341 = vpop.f32.mrb[0].mxu0
      %v2342 = vadd.f32 %v2181, %v2341
      %v2343 = vpop.f32.mrb[0].mxu0
      %v2344 = vpop.f32.mrb[0].mxu0
      %v2345 = vadd.f32 %v2184, %v2344
      %v2346 = vpop.f32.mrb[0].mxu0
      %2347 = vmatprep.mubr.bf16.mxu0 0
      %2348 = vmatmul.mubr.bf16.gmra.mrb[0].mxu0 %v1822
      %v2349 = vpop.f32.mrb[0].mxu0
      %v2350 = vadd.f32 %v2189, %v2349
      %v2351 = vpop.f32.mrb[0].mxu0
      %v2352 = vpop.f32.mrb[0].mxu0
      %v2353 = vadd.f32 %v2192, %v2352
      %v2354 = vpop.f32.mrb[0].mxu0
      %2355 = vdwg.mxu0
      %v2356 = vadd.f32 %v1642, %v2230
      %v2357 = vadd.f32 %v1645, %v2233
      %v2358 = vadd.f32 %v1650, %v2238
      %v2359 = vadd.f32 %v1653, %v2241
      %v2360 = vadd.f32 %v1658, %v2246
      %v2361 = vadd.f32 %v1661, %v2249
      %v2362 = vadd.f32 %v1666, %v2254
      %v2363 = vadd.f32 %v1669, %v2257
      %v2364 = vadd.f32 %v1674, %v2262
      %v2365 = vadd.f32 %v1677, %v2265
      %v2366 = vadd.f32 %v1682, %v2270
      %v2367 = vadd.f32 %v1685, %v2273
      %v2368 = vadd.f32 %v1690, %v2278
      %v2369 = vadd.f32 %v1693, %v2281
      %v2370 = vadd.f32 %v1698, %v2286
      %v2371 = vadd.f32 %v1701, %v2289
      %v2372 = vadd.f32 %v1706, %v2294
      %v2373 = vadd.f32 %v1709, %v2297
      %v2374 = vadd.f32 %v1714, %v2302
      %v2375 = vadd.f32 %v1717, %v2305
      %v2376 = vadd.f32 %v1722, %v2310
      %v2377 = vadd.f32 %v1725, %v2313
      %v2378 = vadd.f32 %v1730, %v2318
      %v2379 = vadd.f32 %v1733, %v2321
      %v2380 = vadd.f32 %v1738, %v2326
      %v2381 = vadd.f32 %v1741, %v2329
      %v2382 = vadd.f32 %v1746, %v2334
      %v2383 = vadd.f32 %v1749, %v2337
      %v2384 = vadd.f32 %v1754, %v2342
      %v2385 = vadd.f32 %v1757, %v2345
      %v2386 = vadd.f32 %v1762, %v2350
      %v2387 = vadd.f32 %v1765, %v2353
      %v2388 = vld [vmem:[%s265] sm:$0x1]
      %v2390 = vlaneseq
      %v2391 = vshrl.u32 %v2390, 7
      %v2392 = vsub.s32 0, %v2391
      %v2393 = vrot.slane %v2388, %v2392
      %v2395 = vmul.f32 %v2356, %v2393
      %v2396 = vmul.f32 %v2357, %v2393
      %v2397 = vmul.f32 %v2358, %v2393
      %v2398 = vmul.f32 %v2359, %v2393
      %v2399 = vmul.f32 %v2360, %v2393
      %v2400 = vmul.f32 %v2361, %v2393
      %v2401 = vmul.f32 %v2362, %v2393
      %v2402 = vmul.f32 %v2363, %v2393
      %v2403 = vmul.f32 %v2364, %v2393
      %v2404 = vmul.f32 %v2365, %v2393
      %v2405 = vmul.f32 %v2366, %v2393
      %v2406 = vmul.f32 %v2367, %v2393
      %v2407 = vmul.f32 %v2368, %v2393
      %v2408 = vmul.f32 %v2369, %v2393
      %v2409 = vmul.f32 %v2370, %v2393
      %v2410 = vmul.f32 %v2371, %v2393
      %v2411 = vmul.f32 %v2372, %v2393
      %v2412 = vmul.f32 %v2373, %v2393
      %v2413 = vmul.f32 %v2374, %v2393
      %v2414 = vmul.f32 %v2375, %v2393
      %v2415 = vmul.f32 %v2376, %v2393
      %v2416 = vmul.f32 %v2377, %v2393
      %v2417 = vmul.f32 %v2378, %v2393
      %v2418 = vmul.f32 %v2379, %v2393
      %v2419 = vmul.f32 %v2380, %v2393
      %v2420 = vmul.f32 %v2381, %v2393
      %v2421 = vmul.f32 %v2382, %v2393
      %v2422 = vmul.f32 %v2383, %v2393
      %v2423 = vmul.f32 %v2384, %v2393
      %v2424 = vmul.f32 %v2385, %v2393
      %v2425 = vmul.f32 %v2386, %v2393
      %v2426 = vmul.f32 %v2387, %v2393
      %v2427 = vld [vmem:[%s268] sm:$0x1]
      %v2429 = vlaneseq
      %v2430 = vshrl.u32 %v2429, 7
      %v2431 = vsub.s32 0, %v2430
      %v2432 = vrot.slane %v2427, %v2431
      %v2434 = vadd.f32 %v2395, %v2432
      %v2435 = vadd.f32 %v2396, %v2432
      %v2436 = vadd.f32 %v2397, %v2432
      %v2437 = vadd.f32 %v2398, %v2432
      %v2438 = vadd.f32 %v2399, %v2432
      %v2439 = vadd.f32 %v2400, %v2432
      %v2440 = vadd.f32 %v2401, %v2432
      %v2441 = vadd.f32 %v2402, %v2432
      %v2442 = vadd.f32 %v2403, %v2432
      %v2443 = vadd.f32 %v2404, %v2432
      %v2444 = vadd.f32 %v2405, %v2432
      %v2445 = vadd.f32 %v2406, %v2432
      %v2446 = vadd.f32 %v2407, %v2432
      %v2447 = vadd.f32 %v2408, %v2432
      %v2448 = vadd.f32 %v2409, %v2432
      %v2449 = vadd.f32 %v2410, %v2432
      %v2450 = vadd.f32 %v2411, %v2432
      %v2451 = vadd.f32 %v2412, %v2432
      %v2452 = vadd.f32 %v2413, %v2432
      %v2453 = vadd.f32 %v2414, %v2432
      %v2454 = vadd.f32 %v2415, %v2432
      %v2455 = vadd.f32 %v2416, %v2432
      %v2456 = vadd.f32 %v2417, %v2432
      %v2457 = vadd.f32 %v2418, %v2432
      %v2458 = vadd.f32 %v2419, %v2432
      %v2459 = vadd.f32 %v2420, %v2432
      %v2460 = vadd.f32 %v2421, %v2432
      %v2461 = vadd.f32 %v2422, %v2432
      %v2462 = vadd.f32 %v2423, %v2432
      %v2463 = vadd.f32 %v2424, %v2432
      %v2464 = vadd.f32 %v2425, %v2432
      %v2465 = vadd.f32 %v2426, %v2432
      %vm2466 = vcmp.gt.f32.partialorder %v2434, 0.0
      %vm2467 = vcmp.gt.f32.partialorder %v2435, 0.0
      %vm2468 = vcmp.gt.f32.partialorder %v2436, 0.0
      %vm2469 = vcmp.gt.f32.partialorder %v2437, 0.0
      %vm2470 = vcmp.gt.f32.partialorder %v2438, 0.0
      %vm2471 = vcmp.gt.f32.partialorder %v2439, 0.0
      %vm2472 = vcmp.gt.f32.partialorder %v2440, 0.0
      %vm2473 = vcmp.gt.f32.partialorder %v2441, 0.0
      %vm2474 = vcmp.gt.f32.partialorder %v2442, 0.0
      %vm2475 = vcmp.gt.f32.partialorder %v2443, 0.0
      %vm2476 = vcmp.gt.f32.partialorder %v2444, 0.0
      %vm2477 = vcmp.gt.f32.partialorder %v2445, 0.0
      %vm2478 = vcmp.gt.f32.partialorder %v2446, 0.0
      %vm2479 = vcmp.gt.f32.partialorder %v2447, 0.0
      %vm2480 = vcmp.gt.f32.partialorder %v2448, 0.0
      %vm2481 = vcmp.gt.f32.partialorder %v2449, 0.0
      %vm2482 = vcmp.gt.f32.partialorder %v2450, 0.0
      %vm2483 = vcmp.gt.f32.partialorder %v2451, 0.0
      %vm2484 = vcmp.gt.f32.partialorder %v2452, 0.0
      %vm2485 = vcmp.gt.f32.partialorder %v2453, 0.0
      %vm2486 = vcmp.gt.f32.partialorder %v2454, 0.0
      %vm2487 = vcmp.gt.f32.partialorder %v2455, 0.0
      %vm2488 = vcmp.gt.f32.partialorder %v2456, 0.0
      %vm2489 = vcmp.gt.f32.partialorder %v2457, 0.0
      %vm2490 = vcmp.gt.f32.partialorder %v2458, 0.0
      %vm2491 = vcmp.gt.f32.partialorder %v2459, 0.0
      %vm2492 = vcmp.gt.f32.partialorder %v2460, 0.0
      %vm2493 = vcmp.gt.f32.partialorder %v2461, 0.0
      %vm2494 = vcmp.gt.f32.partialorder %v2462, 0.0
      %vm2495 = vcmp.gt.f32.partialorder %v2463, 0.0
      %vm2496 = vcmp.gt.f32.partialorder %v2464, 0.0
      %vm2497 = vcmp.gt.f32.partialorder %v2465, 0.0
      %v2498 = vmul.f32 %v2434, 0.1
      %v2499 = vmul.f32 %v2435, 0.1
      %v2500 = vmul.f32 %v2436, 0.1
      %v2501 = vmul.f32 %v2437, 0.1
      %v2502 = vmul.f32 %v2438, 0.1
      %v2503 = vmul.f32 %v2439, 0.1
      %v2504 = vmul.f32 %v2440, 0.1
      %v2505 = vmul.f32 %v2441, 0.1
      %v2506 = vmul.f32 %v2442, 0.1
      %v2507 = vmul.f32 %v2443, 0.1
      %v2508 = vmul.f32 %v2444, 0.1
      %v2509 = vmul.f32 %v2445, 0.1
      %v2510 = vmul.f32 %v2446, 0.1
      %v2511 = vmul.f32 %v2447, 0.1
      %v2512 = vmul.f32 %v2448, 0.1
      %v2513 = vmul.f32 %v2449, 0.1
      %v2514 = vmul.f32 %v2450, 0.1
      %v2515 = vmul.f32 %v2451, 0.1
      %v2516 = vmul.f32 %v2452, 0.1
      %v2517 = vmul.f32 %v2453, 0.1
      %v2518 = vmul.f32 %v2454, 0.1
      %v2519 = vmul.f32 %v2455, 0.1
      %v2520 = vmul.f32 %v2456, 0.1
      %v2521 = vmul.f32 %v2457, 0.1
      %v2522 = vmul.f32 %v2458, 0.1
      %v2523 = vmul.f32 %v2459, 0.1
      %v2524 = vmul.f32 %v2460, 0.1
      %v2525 = vmul.f32 %v2461, 0.1
      %v2526 = vmul.f32 %v2462, 0.1
      %v2527 = vmul.f32 %v2463, 0.1
      %v2528 = vmul.f32 %v2464, 0.1
      %v2529 = vmul.f32 %v2465, 0.1
      %v2530 = vsel %vm2466, %v2434, %v2498
      %v2531 = vsel %vm2467, %v2435, %v2499
      %v2532 = vsel %vm2468, %v2436, %v2500
      %v2533 = vsel %vm2469, %v2437, %v2501
      %v2534 = vsel %vm2470, %v2438, %v2502
      %v2535 = vsel %vm2471, %v2439, %v2503
      %v2536 = vsel %vm2472, %v2440, %v2504
      %v2537 = vsel %vm2473, %v2441, %v2505
      %v2538 = vsel %vm2474, %v2442, %v2506
      %v2539 = vsel %vm2475, %v2443, %v2507
      %v2540 = vsel %vm2476, %v2444, %v2508
      %v2541 = vsel %vm2477, %v2445, %v2509
      %v2542 = vsel %vm2478, %v2446, %v2510
      %v2543 = vsel %vm2479, %v2447, %v2511
      %v2544 = vsel %vm2480, %v2448, %v2512
      %v2545 = vsel %vm2481, %v2449, %v2513
      %v2546 = vsel %vm2482, %v2450, %v2514
      %v2547 = vsel %vm2483, %v2451, %v2515
      %v2548 = vsel %vm2484, %v2452, %v2516
      %v2549 = vsel %vm2485, %v2453, %v2517
      %v2550 = vsel %vm2486, %v2454, %v2518
      %v2551 = vsel %vm2487, %v2455, %v2519
      %v2552 = vsel %vm2488, %v2456, %v2520
      %v2553 = vsel %vm2489, %v2457, %v2521
      %v2554 = vsel %vm2490, %v2458, %v2522
      %v2555 = vsel %vm2491, %v2459, %v2523
      %v2556 = vsel %vm2492, %v2460, %v2524
      %v2557 = vsel %vm2493, %v2461, %v2525
      %v2558 = vsel %vm2494, %v2462, %v2526
      %v2559 = vsel %vm2495, %v2463, %v2527
      %v2560 = vsel %vm2496, %v2464, %v2528
      %v2561 = vsel %vm2497, %v2465, %v2529
      %v2562 = vpack.c.bf16 %v2531, %v2530
      %v2563 = vpack.c.bf16 %v2533, %v2532
      %v2564 = vpack.c.bf16 %v2535, %v2534
      %v2565 = vpack.c.bf16 %v2537, %v2536
      %v2566 = vpack.c.bf16 %v2539, %v2538
      %v2567 = vpack.c.bf16 %v2541, %v2540
      %v2568 = vpack.c.bf16 %v2543, %v2542
      %v2569 = vpack.c.bf16 %v2545, %v2544
      %v2570 = vpack.c.bf16 %v2547, %v2546
      %v2571 = vpack.c.bf16 %v2549, %v2548
      %v2572 = vpack.c.bf16 %v2551, %v2550
      %v2573 = vpack.c.bf16 %v2553, %v2552
      %v2574 = vpack.c.bf16 %v2555, %v2554
      %v2575 = vpack.c.bf16 %v2557, %v2556
      %v2576 = vpack.c.bf16 %v2559, %v2558
      %v2577 = vpack.c.bf16 %v2561, %v2560
      %v2594 = vunpack.c.l.b16 %v2562
      %v2595 = vunpack.c.h.b16 %v2562
      %v2596 = vunpack.c.l.b16 %v2563
      %v2597 = vunpack.c.h.b16 %v2563
      %v2598 = vunpack.c.l.b16 %v2564
      %v2599 = vunpack.c.h.b16 %v2564
      %v2600 = vunpack.c.l.b16 %v2565
      %v2601 = vunpack.c.h.b16 %v2565
      %v2602 = vunpack.c.l.b16 %v2566
      %v2603 = vunpack.c.h.b16 %v2566
      %v2604 = vunpack.c.l.b16 %v2567
      %v2605 = vunpack.c.h.b16 %v2567
      %v2606 = vunpack.c.l.b16 %v2568
      %v2607 = vunpack.c.h.b16 %v2568
      %v2608 = vunpack.c.l.b16 %v2569
      %v2609 = vunpack.c.h.b16 %v2569
      %v2610 = vunpack.c.l.b16 %v2570
      %v2611 = vunpack.c.h.b16 %v2570
      %v2612 = vunpack.c.l.b16 %v2571
      %v2613 = vunpack.c.h.b16 %v2571
      %v2614 = vunpack.c.l.b16 %v2572
      %v2615 = vunpack.c.h.b16 %v2572
      %v2616 = vunpack.c.l.b16 %v2573
      %v2617 = vunpack.c.h.b16 %v2573
      %v2618 = vunpack.c.l.b16 %v2574
      %v2619 = vunpack.c.h.b16 %v2574
      %v2620 = vunpack.c.l.b16 %v2575
      %v2621 = vunpack.c.h.b16 %v2575
      %v2622 = vunpack.c.l.b16 %v2576
      %v2623 = vunpack.c.h.b16 %v2576
      %v2624 = vunpack.c.l.b16 %v2577
      %v2625 = vunpack.c.h.b16 %v2577
      %v2626 = vpack.c.b16 %v2594, %v2594
      %v2627 = vpack.c.b16 %v2595, %v2595
      %v2628 = vpack.c.b16 %v2596, %v2596
      %v2629 = vpack.c.b16 %v2597, %v2597
      %v2630 = vpack.c.b16 %v2598, %v2598
      %v2631 = vpack.c.b16 %v2599, %v2599
      %v2632 = vpack.c.b16 %v2600, %v2600
      %v2633 = vpack.c.b16 %v2601, %v2601
      %v2634 = vpack.c.b16 %v2602, %v2602
      %v2635 = vpack.c.b16 %v2603, %v2603
      %v2636 = vpack.c.b16 %v2604, %v2604
      %v2637 = vpack.c.b16 %v2605, %v2605
      %v2638 = vpack.c.b16 %v2606, %v2606
      %v2639 = vpack.c.b16 %v2607, %v2607
      %v2640 = vpack.c.b16 %v2608, %v2608
      %v2641 = vpack.c.b16 %v2609, %v2609
      %v2642 = vpack.c.b16 %v2610, %v2610
      %v2643 = vpack.c.b16 %v2611, %v2611
      %v2644 = vpack.c.b16 %v2612, %v2612
      %v2645 = vpack.c.b16 %v2613, %v2613
      %v2646 = vpack.c.b16 %v2614, %v2614
      %v2647 = vpack.c.b16 %v2615, %v2615
      %v2648 = vpack.c.b16 %v2616, %v2616
      %v2649 = vpack.c.b16 %v2617, %v2617
      %v2650 = vpack.c.b16 %v2618, %v2618
      %v2651 = vpack.c.b16 %v2619, %v2619
      %v2652 = vpack.c.b16 %v2620, %v2620
      %v2653 = vpack.c.b16 %v2621, %v2621
      %v2654 = vpack.c.b16 %v2622, %v2622
      %v2655 = vpack.c.b16 %v2623, %v2623
      %v2656 = vpack.c.b16 %v2624, %v2624
      %v2657 = vpack.c.b16 %v2625, %v2625
      %2690 = vst [vmem:[%s281] sm:$0xf] %v2626
      %2691 = vst [vmem:[%s281 + $0x4] sm:$0xf] %v2627
      %2692 = vst [vmem:[%s281 + $0x8] sm:$0xf] %v2628
      %2693 = vst [vmem:[%s281 + $0xc] sm:$0xf] %v2629
      %2694 = vst [vmem:[%s281 + $0x10] sm:$0xf] %v2630
      %2695 = vst [vmem:[%s281 + $0x14] sm:$0xf] %v2631
      %2696 = vst [vmem:[%s281 + $0x18] sm:$0xf] %v2632
      %2697 = vst [vmem:[%s281 + $0x1c] sm:$0xf] %v2633
      %2698 = vst [vmem:[%s281 + $0x20] sm:$0xf] %v2634
      %2699 = vst [vmem:[%s281 + $0x24] sm:$0xf] %v2635
      %2700 = vst [vmem:[%s281 + $0x28] sm:$0xf] %v2636
      %2701 = vst [vmem:[%s281 + $0x2c] sm:$0xf] %v2637
      %2702 = vst [vmem:[%s281 + $0x30] sm:$0xf] %v2638
      %2703 = vst [vmem:[%s281 + $0x34] sm:$0xf] %v2639
      %2704 = vst [vmem:[%s281 + $0x38] sm:$0xf] %v2640
      %2705 = vst [vmem:[%s281 + $0x3c] sm:$0xf] %v2641
      %2706 = vst [vmem:[%s281 + $0x40] sm:$0xf] %v2642
      %2707 = vst [vmem:[%s281 + $0x44] sm:$0xf] %v2643
      %2708 = vst [vmem:[%s281 + $0x48] sm:$0xf] %v2644
      %2709 = vst [vmem:[%s281 + $0x4c] sm:$0xf] %v2645
      %2710 = vst [vmem:[%s281 + $0x50] sm:$0xf] %v2646
      %2711 = vst [vmem:[%s281 + $0x54] sm:$0xf] %v2647
      %2712 = vst [vmem:[%s281 + $0x58] sm:$0xf] %v2648
      %2713 = vst [vmem:[%s281 + $0x5c] sm:$0xf] %v2649
      %2714 = vst [vmem:[%s281 + $0x60] sm:$0xf] %v2650
      %2715 = vst [vmem:[%s281 + $0x64] sm:$0xf] %v2651
      %2716 = vst [vmem:[%s281 + $0x68] sm:$0xf] %v2652
      %2717 = vst [vmem:[%s281 + $0x6c] sm:$0xf] %v2653
      %2718 = vst [vmem:[%s281 + $0x70] sm:$0xf] %v2654
      %2719 = vst [vmem:[%s281 + $0x74] sm:$0xf] %v2655
      %2720 = vst [vmem:[%s281 + $0x78] sm:$0xf] %v2656
      %2721 = vst [vmem:[%s281 + $0x7c] sm:$0xf] %v2657
      %s2722 = smul.u32 16, %s22
      %p2723 = scmp.lt.s32.totalorder %s20, 1
      %s2724 = scalar_select %p2723, %s20, 1
      %p2725 = scmp.lt.s32.totalorder %s2722, 15
      %s2726 = scalar_select %p2725, %s2722, 15
      %p2727 = scmp.lt.s32.totalorder %s21, 0
      %s2728 = scalar_select %p2727, %s21, 0
      %s2729 = smul.addr %s2726, 2
      %s2730 = sadd.s32 %s2728, %s2729
      %s2731 = smul.addr %s2724, 32
      %s2732 = sadd.s32 %s2730, %s2731
      %s2733 = smul.addr %s2732, 4
      %s2734 = scalar_lea.vmem %s4, %s2733
      // Predicated region
      $region37: #{upsample_layer_forward.4} parent=35 // pred_check
        %p2735 = pneg %p160
      $region38: #{upsample_layer_forward.4} parent=35 // pred_check_branch
        %2737 = sbr.rel (%p2735) target = $region40
      $region39: #{upsample_layer_forward.4} parent=35 // pred_region
        %s2738 = smul.u32 16, %s22
      $region40: #{upsample_layer_forward.4} parent=35 // pred_fallthru
        _
    $region36: #{upsample_layer_forward.4} parent=5 // pred_fallthru
      _
    %p2739 = scmp.le.s32.totalorder 2, %s10
    // Predicated region
    $region41: #{upsample_layer_forward.4} parent=5 // pred_check
      %p2740 = pneg %p2739
    $region42: #{upsample_layer_forward.4} parent=5 // pred_check_branch
      %2742 = sbr.rel (%p2740) target = $region44
    $region43: #{upsample_layer_forward.4} parent=5 // pred_region
      %s2743 = ssub.s32 %s10, 2
      // Predicated region
      $region45: #{upsample_layer_forward.4} parent=43 // pred_check
        %p2744 = pneg %p166
      $region46: #{upsample_layer_forward.4} parent=43 // pred_check_branch
        %2746 = sbr.rel (%p2744) target = $region48
      $region47: #{upsample_layer_forward.4} parent=43 // pred_region
        %s2747 = smul.u32 16, %s25
        %p2748 = scmp.lt.s32.totalorder %s23, 1
        %s2749 = scalar_select %p2748, %s23, 1
        %p2750 = scmp.lt.s32.totalorder %s2747, 15
        %s2751 = scalar_select %p2750, %s2747, 15
        %p2752 = scmp.lt.s32.totalorder %s24, 0
        %s2753 = scalar_select %p2752, %s24, 0
        %s2754 = smul.addr %s2751, 2
        %s2755 = sadd.s32 %s2753, %s2754
        %s2756 = smul.addr %s2749, 32
        %s2757 = sadd.s32 %s2755, %s2756
        %s2758 = smul.addr %s2757, 4
        %s2759 = scalar_lea.vmem %s4, %s2758
      $region48: #{upsample_layer_forward.4} parent=43 // pred_fallthru
        _
    $region44: #{upsample_layer_forward.4} parent=5 // pred_fallthru
      _
  $region6: #{upsample_layer_forward.4} parent=0 // loop_footer
    %s14 = sadd.s32 1, %s10
  $region7: #{upsample_layer_forward.4} parent=0 // loop_footer_branch
    %9 = sbr.rel target = $region3
  $region8: #{upsample_layer_forward.4} parent=0 // loop_exit
    _

// kernel: upsample_layer_forward.5
$region0: #{upsample_layer_forward.5}
  #allocation0 [shape = 'u32[]', space=smem, size = 0x4, offset = 0x4, fixed_abs, tag = 'smem constant byte address 0x4 - core index']
  #allocation1 [shape = 'u32[144,128]{1,0:T(1,128)}', space=vmem, size = 0x12000, scoped, tag = 'internal scratch']
  %s0 = inlined_call_operand.vmem [shape: bf16[2,18,18,128], index: 0, kind: input, shape index: {}]
  %s1 = inlined_call_operand.vmem [shape: bf16[3,384,32], index: 1, kind: input, shape index: {}]
  %s2 = inlined_call_operand.vmem [shape: f32[1,32], index: 2, kind: input, shape index: {}]
  %s3 = inlined_call_operand.vmem [shape: f32[1,32], index: 3, kind: input, shape index: {}]
  %s4 = inlined_call_operand.hbm [shape: f32[2,16,16,32], index: 4, kind: output, shape index: {}]
  %s5 = sld [smem:[#allocation0]]
  $region49: #{upsample_layer_forward.5} parent=0
    _
  %s7 = ssub.s32 1, %s5
  %s8 = scalar_select 0, %s7, %s5
  $region1: #{upsample_layer_forward.5} parent=0
    #allocation2 [shape = 'u8[262144]{0}', space=vmem, size = 0x40000, scoped, tag = 'output window, operand 0']
    #allocation3 [shape = 's32[2]{0}', space=sflag, size = 0x8, scoped, tag = 'scoped memory for upsample_layer_forward.5']
    %9 = vsyncpa [#allocation3], 0
    %s10 = scalar_lea.sflag [#allocation3], 1
    %11 = vsyncpa %s10, 0
    loop: start=0, step=1, limit=4
    $region2: #{upsample_layer_forward.5} parent=1 // loop_pre_header
      _
    $region3: #{upsample_layer_forward.5} parent=1 // loop_header
      %s13 = sphi 0, %s17
      %p14 = scmp.ge.s32.totalorder %s13, 4
      %s20 = sphi 0, %s39
      %s21 = sphi 0, %s35
      %s22 = sphi 0, %s31
      %s23 = sphi 0, %s20
      %s24 = sphi 0, %s21
      %s25 = sphi 0, %s22
      %s26 = sphi 0, %s23
      %s27 = sphi 0, %s24
      %s28 = sphi 0, %s25
      %s42 = sphi 0, %s44
      %s45 = sphi 0, %s42
      %s46 = sphi 0, %s45
      %s62 = sphi 0, %s46
      %s68 = sphi 0, %s70
      %s71 = sphi 0, %s68
      %s72 = sphi 0, %s71
      %s88 = sphi 0, %s72
      %s94 = sphi 0, %s96
      %s97 = sphi 0, %s94
      %s98 = sphi 0, %s97
      %s114 = sphi 0, %s98
      %s120 = sphi 0, %s122
      %s123 = sphi 0, %s120
      %s124 = sphi 0, %s123
      %s140 = sphi 0, %s124
      %s150 = sphi 0, %s152
      %s153 = sphi 0, %s150
      %s154 = sphi 0, %s153
      %s170 = sphi 0, %s154
    $region4: #{upsample_layer_forward.5} parent=1 // loop_header_branch
      %16 = sbr.rel (%p14) target = $region8
    $region5: #{upsample_layer_forward.5} parent=1 // loop_body
      %s18 = ssub.s32 %s13, 1
      %s19 = ssub.s32 %s13, 2
      %s29 = sadd.s32 1, %s22
      %p30 = scmp.ge.s32.totalorder %s29, 1
      %s31 = scalar_select %p30, 0, %s29
      %s32 = sadd.s32 1, %s21
      %s33 = scalar_select %p30, %s32, %s21
      %p34 = scmp.ge.s32.totalorder %s33, 1
      %s35 = scalar_select %p34, 0, %s33
      %s36 = sadd.s32 1, %s20
      %s37 = scalar_select %p34, %s36, %s20
      %p38 = scmp.ge.s32.totalorder %s37, 2
      %s39 = scalar_select %p38, 0, %s37
      %s40 = ssub.s32 %s20, %s39
      %p41 = scmp.eq.s32.totalorder %s40, 0
      %s43 = sadd.s32 %s42, 1
      %s44 = scalar_select %p41, %s42, %s43
      %p47 = pneg %p41
      %p48 = scmp.eq.s32.totalorder %s13, 1
      %p49 = por %p47, %p48
      %p50 = scmp.ne.s32.totalorder %s42, %s45
      %p51 = scmp.eq.s32.totalorder %s13, 0
      %p52 = por %p50, %p51
      %p53 = scmp.ne.s32.totalorder %s42, %s45
      %p54 = scmp.eq.s32.totalorder %s18, 1
      %p55 = por %p53, %p54
      %p56 = scmp.ne.s32.totalorder %s45, %s46
      %p57 = scmp.eq.s32.totalorder %s18, 0
      %p58 = por %p56, %p57
      %p59 = scmp.ne.s32.totalorder %s45, %s46
      %p60 = scmp.eq.s32.totalorder %s19, 1
      %p61 = por %p59, %p60
      %p63 = scmp.ne.s32.totalorder %s46, %s62
      %p64 = scmp.eq.s32.totalorder %s19, 0
      %p65 = por %p63, %p64
      %s66 = ssub.s32 %s21, %s35
      %p67 = scmp.eq.s32.totalorder %s66, 0
      %s69 = sadd.s32 %s68, 1
      %s70 = scalar_select %p67, %s68, %s69
      %p73 = pneg %p67
      %p74 = scmp.eq.s32.totalorder %s13, 1
      %p75 = por %p73, %p74
      %p76 = scmp.ne.s32.totalorder %s68, %s71
      %p77 = scmp.eq.s32.totalorder %s13, 0
      %p78 = por %p76, %p77
      %p79 = scmp.ne.s32.totalorder %s68, %s71
      %p80 = scmp.eq.s32.totalorder %s18, 1
      %p81 = por %p79, %p80
      %p82 = scmp.ne.s32.totalorder %s71, %s72
      %p83 = scmp.eq.s32.totalorder %s18, 0
      %p84 = por %p82, %p83
      %p85 = scmp.ne.s32.totalorder %s71, %s72
      %p86 = scmp.eq.s32.totalorder %s19, 1
      %p87 = por %p85, %p86
      %p89 = scmp.ne.s32.totalorder %s72, %s88
      %p90 = scmp.eq.s32.totalorder %s19, 0
      %p91 = por %p89, %p90
      %s92 = ssub.s32 %s21, %s35
      %p93 = scmp.eq.s32.totalorder %s92, 0
      %s95 = sadd.s32 %s94, 1
      %s96 = scalar_select %p93, %s94, %s95
      %p99 = pneg %p93
      %p100 = scmp.eq.s32.totalorder %s13, 1
      %p101 = por %p99, %p100
      %p102 = scmp.ne.s32.totalorder %s94, %s97
      %p103 = scmp.eq.s32.totalorder %s13, 0
      %p104 = por %p102, %p103
      %p105 = scmp.ne.s32.totalorder %s94, %s97
      %p106 = scmp.eq.s32.totalorder %s18, 1
      %p107 = por %p105, %p106
      %p108 = scmp.ne.s32.totalorder %s97, %s98
      %p109 = scmp.eq.s32.totalorder %s18, 0
      %p110 = por %p108, %p109
      %p111 = scmp.ne.s32.totalorder %s97, %s98
      %p112 = scmp.eq.s32.totalorder %s19, 1
      %p113 = por %p111, %p112
      %p115 = scmp.ne.s32.totalorder %s98, %s114
      %p116 = scmp.eq.s32.totalorder %s19, 0
      %p117 = por %p115, %p116
      %s118 = ssub.s32 %s21, %s35
      %p119 = scmp.eq.s32.totalorder %s118, 0
      %s121 = sadd.s32 %s120, 1
      %s122 = scalar_select %p119, %s120, %s121
      %p125 = pneg %p119
      %p126 = scmp.eq.s32.totalorder %s13, 1
      %p127 = por %p125, %p126
      %p128 = scmp.ne.s32.totalorder %s120, %s123
      %p129 = scmp.eq.s32.totalorder %s13, 0
      %p130 = por %p128, %p129
      %p131 = scmp.ne.s32.totalorder %s120, %s123
      %p132 = scmp.eq.s32.totalorder %s18, 1
      %p133 = por %p131, %p132
      %p134 = scmp.ne.s32.totalorder %s123, %s124
      %p135 = scmp.eq.s32.totalorder %s18, 0
      %p136 = por %p134, %p135
      %p137 = scmp.ne.s32.totalorder %s123, %s124
      %p138 = scmp.eq.s32.totalorder %s19, 1
      %p139 = por %p137, %p138
      %p141 = scmp.ne.s32.totalorder %s124, %s140
      %p142 = scmp.eq.s32.totalorder %s19, 0
      %p143 = por %p141, %p142
      %s144 = ssub.s32 %s20, %s39
      %s145 = ssub.s32 %s22, %s31
      %s146 = sor.u32 %s144, %s145
      %s147 = ssub.s32 %s21, %s35
      %s148 = sor.u32 %s146, %s147
      %p149 = scmp.eq.s32.totalorder %s148, 0
      %s151 = sadd.s32 %s150, 1
      %s152 = scalar_select %p149, %s150, %s151
      %p155 = pneg %p149
      %p156 = scmp.eq.s32.totalorder %s13, 1
      %p157 = por %p155, %p156
      %p158 = scmp.ne.s32.totalorder %s150, %s153
      %p159 = scmp.eq.s32.totalorder %s13, 0
      %p160 = por %p158, %p159
      %p161 = scmp.ne.s32.totalorder %s150, %s153
      %p162 = scmp.eq.s32.totalorder %s18, 1
      %p163 = por %p161, %p162
      %p164 = scmp.ne.s32.totalorder %s153, %s154
      %p165 = scmp.eq.s32.totalorder %s18, 0
      %p166 = por %p164, %p165
      %p167 = scmp.ne.s32.totalorder %s153, %s154
      %p168 = scmp.eq.s32.totalorder %s19, 1
      %p169 = por %p167, %p168
      %p171 = scmp.ne.s32.totalorder %s154, %s170
      %p172 = scmp.eq.s32.totalorder %s19, 0
      %p173 = por %p171, %p172
      %p174 = scmp.le.s32.totalorder 1, %s13
      %p175 = scmp.lt.s32.totalorder %s13, 3
      %p176 = pnand %p174, %p175
      %p177 = pneg %p176
      // Predicated region
      $region9: #{upsample_layer_forward.5} parent=5 // pred_check
        _
      $region10: #{upsample_layer_forward.5} parent=5 // pred_check_branch
        %179 = sbr.rel (%p176) target = $region12
      $region11: #{upsample_layer_forward.5} parent=5 // pred_region
        %s180 = ssub.s32 %s13, 1
        // Predicated region
        $region13: #{upsample_layer_forward.5} parent=11 // pred_check
          %p181 = pneg %p84
        $region14: #{upsample_layer_forward.5} parent=11 // pred_check_branch
          %183 = sbr.rel (%p181) target = $region16
        $region15: #{upsample_layer_forward.5} parent=11 // pred_region
          %p184 = scmp.lt.s32.totalorder %s24, 0
          %s185 = scalar_select %p184, %s24, 0
          %s186 = smul.addr %s185, 4
          %s187 = scalar_lea.vmem %s1, %s186
        $region16: #{upsample_layer_forward.5} parent=11 // pred_fallthru
          _
        // Predicated region
        $region17: #{upsample_layer_forward.5} parent=11 // pred_check
          %p188 = pneg %p110
        $region18: #{upsample_layer_forward.5} parent=11 // pred_check_branch
          %190 = sbr.rel (%p188) target = $region20
        $region19: #{upsample_layer_forward.5} parent=11 // pred_region
          %p191 = scmp.lt.s32.totalorder %s24, 0
          %s192 = scalar_select %p191, %s24, 0
          %s193 = scalar_lea.vmem %s2, %s192
        $region20: #{upsample_layer_forward.5} parent=11 // pred_fallthru
          _
        // Predicated region
        $region21: #{upsample_layer_forward.5} parent=11 // pred_check
          %p194 = pneg %p136
        $region22: #{upsample_layer_forward.5} parent=11 // pred_check_branch
          %196 = sbr.rel (%p194) target = $region24
        $region23: #{upsample_layer_forward.5} parent=11 // pred_region
          %p197 = scmp.lt.s32.totalorder %s24, 0
          %s198 = scalar_select %p197, %s24, 0
          %s199 = scalar_lea.vmem %s3, %s198
        $region24: #{upsample_layer_forward.5} parent=11 // pred_fallthru
          _
      $region12: #{upsample_layer_forward.5} parent=5 // pred_fallthru
        _
      %p200 = scmp.lt.s32.totalorder %s13, 2
      // Predicated region
      $region25: #{upsample_layer_forward.5} parent=5 // pred_check
        %p201 = pneg %p200
      $region26: #{upsample_layer_forward.5} parent=5 // pred_check_branch
        %203 = sbr.rel (%p201) target = $region28
      $region27: #{upsample_layer_forward.5} parent=5 // pred_region
        // Predicated region
        $region29: #{upsample_layer_forward.5} parent=27 // pred_check
          %p204 = pneg %p52
        $region30: #{upsample_layer_forward.5} parent=27 // pred_check_branch
          %206 = sbr.rel (%p204) target = $region32
        $region31: #{upsample_layer_forward.5} parent=27 // pred_region
          %p207 = scmp.lt.s32.totalorder %s20, 1
          %s208 = scalar_select %p207, %s20, 1
          %s209 = smul.addr %s208, 54
          %s210 = smul.addr %s209, 4
          %s211 = scalar_lea.vmem %s0, %s210
        $region32: #{upsample_layer_forward.5} parent=27 // pred_fallthru
          _
      $region28: #{upsample_layer_forward.5} parent=5 // pred_fallthru
        _
      %p212 = scmp.le.s32.totalorder 1, %s13
      %p213 = scmp.lt.s32.totalorder %s13, 3
      %p214 = pnand %p212, %p213
      %p215 = pneg %p214
      // Predicated region
      $region33: #{upsample_layer_forward.5} parent=5 // pred_check
        _
      $region34: #{upsample_layer_forward.5} parent=5 // pred_check_branch
        %217 = sbr.rel (%p214) target = $region36
      $region35: #{upsample_layer_forward.5} parent=5 // pred_region
        %s218 = ssub.s32 %s13, 1
        %p219 = scmp.lt.s32.totalorder %s23, 1
        %s220 = scalar_select %p219, %s23, 1
        %s221 = smul.addr %s220, 54
        %s222 = smul.addr %s221, 4
        %s223 = scalar_lea.vmem %s0, %s222
        %p224 = pneg %p58
        %p225 = pneg %p55
        %p226 = scmp.lt.s32.totalorder %s24, 0
        %s227 = scalar_select %p226, %s24, 0
        %s228 = smul.addr %s227, 4
        %s229 = scalar_lea.vmem %s1, %s228
        %p230 = pneg %p84
        %p231 = pneg %p81
        %p232 = scmp.lt.s32.totalorder %s24, 0
        %s233 = scalar_select %p232, %s24, 0
        %s234 = scalar_lea.vmem %s2, %s233
        %p235 = pneg %p110
        %p236 = pneg %p107
        %p237 = scmp.lt.s32.totalorder %s24, 0
        %s238 = scalar_select %p237, %s24, 0
        %s239 = scalar_lea.vmem %s3, %s238
        %p240 = pneg %p136
        %p241 = pneg %p133
        %p242 = pneg %p166
        %p243 = pneg %p163
        %s244 = sand.u32 %s153, 1
        %s245 = scalar_lea.sflag [#allocation3], %s244
        %s246 = sand.u32 %s153, 1
        %s247 = smul.addr %s246, 256
        %s248 = scalar_lea.vmem [#allocation2], %s247
        %p249 = scmp.lt.s32.totalorder %s23, 1
        %s250 = scalar_select %p249, %s23, 1
        %s251 = smul.addr %s250, 54
        %s252 = smul.addr %s251, 4
        %s253 = scalar_lea.vmem %s0, %s252
        %p254 = scmp.lt.s32.totalorder %s24, 0
        %s255 = scalar_select %p254, %s24, 0
        %s256 = smul.addr %s255, 4
        %s257 = scalar_lea.vmem %s1, %s256
        %p258 = scmp.lt.s32.totalorder %s24, 0
        %s259 = scalar_select %p258, %s24, 0
        %s260 = scalar_lea.vmem %s2, %s259
        %p261 = scmp.lt.s32.totalorder %s24, 0
        %s262 = scalar_select %p261, %s24, 0
        %s263 = scalar_lea.vmem %s3, %s262
        %s264 = smul.u32 16, %s25
        %s266 = smul.u32 %s25, 16
        %s267 = smul.u32 %s266, 3
        %s268 = smul.addr %s267, 4
        %s269 = scalar_lea.vmem %s253, %s268
        %v270 = vld [vmem:[%s269] sm:$0xf]
        %v271 = vld [vmem:[%s269 + $0x4] sm:$0xf]
        %v272 = vld [vmem:[%s269 + $0x8] sm:$0x1]
        %v273 = vld [vmem:[%s269 + $0xc] sm:$0xf]
        %v274 = vld [vmem:[%s269 + $0x10] sm:$0xf]
        %v275 = vld [vmem:[%s269 + $0x14] sm:$0x1]
        %v276 = vld [vmem:[%s269 + $0x18] sm:$0xf]
        %v277 = vld [vmem:[%s269 + $0x1c] sm:$0xf]
        %v278 = vld [vmem:[%s269 + $0x20] sm:$0x1]
        %v279 = vld [vmem:[%s269 + $0x24] sm:$0xf]
        %v280 = vld [vmem:[%s269 + $0x28] sm:$0xf]
        %v281 = vld [vmem:[%s269 + $0x2c] sm:$0x1]
        %v282 = vld [vmem:[%s269 + $0x30] sm:$0xf]
        %v283 = vld [vmem:[%s269 + $0x34] sm:$0xf]
        %v284 = vld [vmem:[%s269 + $0x38] sm:$0x1]
        %v285 = vld [vmem:[%s269 + $0x3c] sm:$0xf]
        %v286 = vld [vmem:[%s269 + $0x40] sm:$0xf]
        %v287 = vld [vmem:[%s269 + $0x44] sm:$0x1]
        %v288 = vld [vmem:[%s269 + $0x48] sm:$0xf]
        %v289 = vld [vmem:[%s269 + $0x4c] sm:$0xf]
        %v290 = vld [vmem:[%s269 + $0x50] sm:$0x1]
        %v291 = vld [vmem:[%s269 + $0x54] sm:$0xf]
        %v292 = vld [vmem:[%s269 + $0x58] sm:$0xf]
        %v293 = vld [vmem:[%s269 + $0x5c] sm:$0x1]
        %v294 = vld [vmem:[%s269 + $0x60] sm:$0xf]
        %v295 = vld [vmem:[%s269 + $0x64] sm:$0xf]
        %v296 = vld [vmem:[%s269 + $0x68] sm:$0x1]
        %v297 = vld [vmem:[%s269 + $0x6c] sm:$0xf]
        %v298 = vld [vmem:[%s269 + $0x70] sm:$0xf]
        %v299 = vld [vmem:[%s269 + $0x74] sm:$0x1]
        %v300 = vld [vmem:[%s269 + $0x78] sm:$0xf]
        %v301 = vld [vmem:[%s269 + $0x7c] sm:$0xf]
        %v302 = vld [vmem:[%s269 + $0x80] sm:$0x1]
        %v303 = vld [vmem:[%s269 + $0x84] sm:$0xf]
        %v304 = vld [vmem:[%s269 + $0x88] sm:$0xf]
        %v305 = vld [vmem:[%s269 + $0x8c] sm:$0x1]
        %v306 = vld [vmem:[%s269 + $0x90] sm:$0xf]
        %v307 = vld [vmem:[%s269 + $0x94] sm:$0xf]
        %v308 = vld [vmem:[%s269 + $0x98] sm:$0x1]
        %v309 = vld [vmem:[%s269 + $0x9c] sm:$0xf]
        %v310 = vld [vmem:[%s269 + $0xa0] sm:$0xf]
        %v311 = vld [vmem:[%s269 + $0xa4] sm:$0x1]
        %v312 = vld [vmem:[%s269 + $0xa8] sm:$0xf]
        %v313 = vld [vmem:[%s269 + $0xac] sm:$0xf]
        %v314 = vld [vmem:[%s269 + $0xb0] sm:$0x1]
        %v315 = vld [vmem:[%s269 + $0xb4] sm:$0xf]
        %v316 = vld [vmem:[%s269 + $0xb8] sm:$0xf]
        %v317 = vld [vmem:[%s269 + $0xbc] sm:$0x1]
        %v318 = vld [vmem:[%s269 + $0xc0] sm:$0xf]
        %v319 = vld [vmem:[%s269 + $0xc4] sm:$0xf]
        %v320 = vld [vmem:[%s269 + $0xc8] sm:$0x1]
        %v321 = vld [vmem:[%s269 + $0xcc] sm:$0xf]
        %v322 = vld [vmem:[%s269 + $0xd0] sm:$0xf]
        %v323 = vld [vmem:[%s269 + $0xd4] sm:$0x1]
        %v372 = vunpack.c.l.b16 %v270
        %v373 = vunpack.c.l.b16 %v271
        %v374 = vunpack.c.l.b16 %v272
        %v375 = vunpack.c.l.b16 %v273
        %v376 = vunpack.c.l.b16 %v274
        %v377 = vunpack.c.l.b16 %v275
        %v378 = vunpack.c.l.b16 %v276
        %v379 = vunpack.c.l.b16 %v277
        %v380 = vunpack.c.l.b16 %v278
        %v381 = vunpack.c.l.b16 %v279
        %v382 = vunpack.c.l.b16 %v280
        %v383 = vunpack.c.l.b16 %v281
        %v384 = vunpack.c.l.b16 %v282
        %v385 = vunpack.c.l.b16 %v283
        %v386 = vunpack.c.l.b16 %v284
        %v387 = vunpack.c.l.b16 %v285
        %v388 = vunpack.c.l.b16 %v286
        %v389 = vunpack.c.l.b16 %v287
        %v390 = vunpack.c.l.b16 %v288
        %v391 = vunpack.c.l.b16 %v289
        %v392 = vunpack.c.l.b16 %v290
        %v393 = vunpack.c.l.b16 %v291
        %v394 = vunpack.c.l.b16 %v292
        %v395 = vunpack.c.l.b16 %v293
        %v396 = vunpack.c.l.b16 %v294
        %v397 = vunpack.c.l.b16 %v295
        %v398 = vunpack.c.l.b16 %v296
        %v399 = vunpack.c.l.b16 %v297
        %v400 = vunpack.c.l.b16 %v298
        %v401 = vunpack.c.l.b16 %v299
        %v402 = vunpack.c.l.b16 %v300
        %v403 = vunpack.c.l.b16 %v301
        %v404 = vunpack.c.l.b16 %v302
        %v405 = vunpack.c.l.b16 %v303
        %v406 = vunpack.c.l.b16 %v304
        %v407 = vunpack.c.l.b16 %v305
        %v408 = vunpack.c.l.b16 %v306
        %v409 = vunpack.c.l.b16 %v307
        %v410 = vunpack.c.l.b16 %v308
        %v411 = vunpack.c.l.b16 %v309
        %v412 = vunpack.c.l.b16 %v310
        %v413 = vunpack.c.l.b16 %v311
        %v414 = vunpack.c.l.b16 %v312
        %v415 = vunpack.c.l.b16 %v313
        %v416 = vunpack.c.l.b16 %v314
        %v417 = vunpack.c.l.b16 %v315
        %v418 = vunpack.c.l.b16 %v316
        %v419 = vunpack.c.l.b16 %v317
        %v420 = vpack.c.b16 %v373, %v372
        %v421 = vpack.c.b16 %v374, %v374
        %v422 = vpack.c.b16 %v376, %v375
        %v423 = vpack.c.b16 %v377, %v377
        %v424 = vpack.c.b16 %v379, %v378
        %v425 = vpack.c.b16 %v380, %v380
        %v426 = vpack.c.b16 %v382, %v381
        %v427 = vpack.c.b16 %v383, %v383
        %v428 = vpack.c.b16 %v385, %v384
        %v429 = vpack.c.b16 %v386, %v386
        %v430 = vpack.c.b16 %v388, %v387
        %v431 = vpack.c.b16 %v389, %v389
        %v432 = vpack.c.b16 %v391, %v390
        %v433 = vpack.c.b16 %v392, %v392
        %v434 = vpack.c.b16 %v394, %v393
        %v435 = vpack.c.b16 %v395, %v395
        %v436 = vpack.c.b16 %v397, %v396
        %v437 = vpack.c.b16 %v398, %v398
        %v438 = vpack.c.b16 %v400, %v399
        %v439 = vpack.c.b16 %v401, %v401
        %v440 = vpack.c.b16 %v403, %v402
        %v441 = vpack.c.b16 %v404, %v404
        %v442 = vpack.c.b16 %v406, %v405
        %v443 = vpack.c.b16 %v407, %v407
        %v444 = vpack.c.b16 %v409, %v408
        %v445 = vpack.c.b16 %v410, %v410
        %v446 = vpack.c.b16 %v412, %v411
        %v447 = vpack.c.b16 %v413, %v413
        %v448 = vpack.c.b16 %v415, %v414
        %v449 = vpack.c.b16 %v416, %v416
        %v450 = vpack.c.b16 %v418, %v417
        %v451 = vpack.c.b16 %v419, %v419
        %v471 = vunpack.c.l.b16 %v318
        %v472 = vunpack.c.l.b16 %v319
        %v473 = vunpack.c.l.b16 %v320
        %v474 = vpack.c.b16 %v472, %v471
        %v475 = vpack.c.b16 %v473, %v473
        %v480 = vunpack.c.l.b16 %v321
        %v481 = vunpack.c.l.b16 %v322
        %v482 = vunpack.c.l.b16 %v323
        %v483 = vpack.c.b16 %v481, %v480
        %v484 = vpack.c.b16 %v482, %v482
        %v486 = vld [vmem:[%s257] sm:$0xf]
        %v487 = vld [vmem:[%s257 + $0x4] sm:$0xf]
        %v488 = vld [vmem:[%s257 + $0x8] sm:$0xf]
        %v489 = vld [vmem:[%s257 + $0xc] sm:$0xf]
        %v490 = vld [vmem:[%s257 + $0x10] sm:$0xf]
        %v491 = vld [vmem:[%s257 + $0x14] sm:$0xf]
        %v492 = vld [vmem:[%s257 + $0x18] sm:$0xf]
        %v493 = vld [vmem:[%s257 + $0x1c] sm:$0xf]
        %v494 = vld [vmem:[%s257 + $0x20] sm:$0xf]
        %v495 = vld [vmem:[%s257 + $0x24] sm:$0xf]
        %v496 = vld [vmem:[%s257 + $0x28] sm:$0xf]
        %v497 = vld [vmem:[%s257 + $0x2c] sm:$0xf]
        %v498 = vld [vmem:[%s257 + $0x30] sm:$0xf]
        %v499 = vld [vmem:[%s257 + $0x34] sm:$0xf]
        %v500 = vld [vmem:[%s257 + $0x38] sm:$0xf]
        %v501 = vld [vmem:[%s257 + $0x3c] sm:$0xf]
        %v502 = vld [vmem:[%s257 + $0x40] sm:$0xf]
        %v503 = vld [vmem:[%s257 + $0x44] sm:$0xf]
        %v504 = vld [vmem:[%s257 + $0x48] sm:$0xf]
        %v505 = vld [vmem:[%s257 + $0x4c] sm:$0xf]
        %v506 = vld [vmem:[%s257 + $0x50] sm:$0xf]
        %v507 = vld [vmem:[%s257 + $0x54] sm:$0xf]
        %v508 = vld [vmem:[%s257 + $0x58] sm:$0xf]
        %v509 = vld [vmem:[%s257 + $0x5c] sm:$0xf]
        %v510 = vld [vmem:[%s257 + $0x60] sm:$0xf]
        %v511 = vld [vmem:[%s257 + $0x64] sm:$0xf]
        %v512 = vld [vmem:[%s257 + $0x68] sm:$0xf]
        %v513 = vld [vmem:[%s257 + $0x6c] sm:$0xf]
        %v514 = vld [vmem:[%s257 + $0x70] sm:$0xf]
        %v515 = vld [vmem:[%s257 + $0x74] sm:$0xf]
        %v516 = vld [vmem:[%s257 + $0x78] sm:$0xf]
        %v517 = vld [vmem:[%s257 + $0x7c] sm:$0xf]
        %v518 = vld [vmem:[%s257 + $0x80] sm:$0xf]
        %v519 = vld [vmem:[%s257 + $0x84] sm:$0xf]
        %v520 = vld [vmem:[%s257 + $0x88] sm:$0xf]
        %v521 = vld [vmem:[%s257 + $0x8c] sm:$0xf]
        %v522 = vld [vmem:[%s257 + $0x90] sm:$0xf]
        %v523 = vld [vmem:[%s257 + $0x94] sm:$0xf]
        %v524 = vld [vmem:[%s257 + $0x98] sm:$0xf]
        %v525 = vld [vmem:[%s257 + $0x9c] sm:$0xf]
        %v526 = vld [vmem:[%s257 + $0xa0] sm:$0xf]
        %v527 = vld [vmem:[%s257 + $0xa4] sm:$0xf]
        %v528 = vld [vmem:[%s257 + $0xa8] sm:$0xf]
        %v529 = vld [vmem:[%s257 + $0xac] sm:$0xf]
        %v530 = vld [vmem:[%s257 + $0xb0] sm:$0xf]
        %v531 = vld [vmem:[%s257 + $0xb4] sm:$0xf]
        %v532 = vld [vmem:[%s257 + $0xb8] sm:$0xf]
        %v533 = vld [vmem:[%s257 + $0xbc] sm:$0xf]
        %vm534 = vsmask.f32 7424
        %v536 = vshrl.u32 %v420, 16
        %v538 = vshll.u32 %v420, 16
        %v540 = vrot.slane %v538, 1
        %v541 = vor.u32 %v536, %v540
        %v543 = vshll.u32 %v421, 16
        %v545 = vrot.slane %v543, 1
        %v546 = vsel %vm534, %v541, %v545
        %v548 = vshrl.u32 %v422, 16
        %v550 = vshll.u32 %v422, 16
        %v552 = vrot.slane %v550, 1
        %v553 = vor.u32 %v548, %v552
        %v555 = vshll.u32 %v423, 16
        %v557 = vrot.slane %v555, 1
        %v558 = vsel %vm534, %v553, %v557
        %v560 = vshrl.u32 %v424, 16
        %v562 = vshll.u32 %v424, 16
        %v564 = vrot.slane %v562, 1
        %v565 = vor.u32 %v560, %v564
        %v567 = vshll.u32 %v425, 16
        %v569 = vrot.slane %v567, 1
        %v570 = vsel %vm534, %v565, %v569
        %v572 = vshrl.u32 %v426, 16
        %v574 = vshll.u32 %v426, 16
        %v576 = vrot.slane %v574, 1
        %v577 = vor.u32 %v572, %v576
        %v579 = vshll.u32 %v427, 16
        %v581 = vrot.slane %v579, 1
        %v582 = vsel %vm534, %v577, %v581
        %v584 = vshrl.u32 %v428, 16
        %v586 = vshll.u32 %v428, 16
        %v588 = vrot.slane %v586, 1
        %v589 = vor.u32 %v584, %v588
        %v591 = vshll.u32 %v429, 16
        %v593 = vrot.slane %v591, 1
        %v594 = vsel %vm534, %v589, %v593
        %v596 = vshrl.u32 %v430, 16
        %v598 = vshll.u32 %v430, 16
        %v600 = vrot.slane %v598, 1
        %v601 = vor.u32 %v596, %v600
        %v603 = vshll.u32 %v431, 16
        %v605 = vrot.slane %v603, 1
        %v606 = vsel %vm534, %v601, %v605
        %v608 = vshrl.u32 %v432, 16
        %v610 = vshll.u32 %v432, 16
        %v612 = vrot.slane %v610, 1
        %v613 = vor.u32 %v608, %v612
        %v615 = vshll.u32 %v433, 16
        %v617 = vrot.slane %v615, 1
        %v618 = vsel %vm534, %v613, %v617
        %v620 = vshrl.u32 %v434, 16
        %v622 = vshll.u32 %v434, 16
        %v624 = vrot.slane %v622, 1
        %v625 = vor.u32 %v620, %v624
        %v627 = vshll.u32 %v435, 16
        %v629 = vrot.slane %v627, 1
        %v630 = vsel %vm534, %v625, %v629
        %v632 = vshrl.u32 %v436, 16
        %v634 = vshll.u32 %v436, 16
        %v636 = vrot.slane %v634, 1
        %v637 = vor.u32 %v632, %v636
        %v639 = vshll.u32 %v437, 16
        %v641 = vrot.slane %v639, 1
        %v642 = vsel %vm534, %v637, %v641
        %v644 = vshrl.u32 %v438, 16
        %v646 = vshll.u32 %v438, 16
        %v648 = vrot.slane %v646, 1
        %v649 = vor.u32 %v644, %v648
        %v651 = vshll.u32 %v439, 16
        %v653 = vrot.slane %v651, 1
        %v654 = vsel %vm534, %v649, %v653
        %v656 = vshrl.u32 %v440, 16
        %v658 = vshll.u32 %v440, 16
        %v660 = vrot.slane %v658, 1
        %v661 = vor.u32 %v656, %v660
        %v663 = vshll.u32 %v441, 16
        %v665 = vrot.slane %v663, 1
        %v666 = vsel %vm534, %v661, %v665
        %v668 = vshrl.u32 %v442, 16
        %v670 = vshll.u32 %v442, 16
        %v672 = vrot.slane %v670, 1
        %v673 = vor.u32 %v668, %v672
        %v675 = vshll.u32 %v443, 16
        %v677 = vrot.slane %v675, 1
        %v678 = vsel %vm534, %v673, %v677
        %v680 = vshrl.u32 %v444, 16
        %v682 = vshll.u32 %v444, 16
        %v684 = vrot.slane %v682, 1
        %v685 = vor.u32 %v680, %v684
        %v687 = vshll.u32 %v445, 16
        %v689 = vrot.slane %v687, 1
        %v690 = vsel %vm534, %v685, %v689
        %v692 = vshrl.u32 %v446, 16
        %v694 = vshll.u32 %v446, 16
        %v696 = vrot.slane %v694, 1
        %v697 = vor.u32 %v692, %v696
        %v699 = vshll.u32 %v447, 16
        %v701 = vrot.slane %v699, 1
        %v702 = vsel %vm534, %v697, %v701
        %v704 = vshrl.u32 %v448, 16
        %v706 = vshll.u32 %v448, 16
        %v708 = vrot.slane %v706, 1
        %v709 = vor.u32 %v704, %v708
        %v711 = vshll.u32 %v449, 16
        %v713 = vrot.slane %v711, 1
        %v714 = vsel %vm534, %v709, %v713
        %v716 = vshrl.u32 %v450, 16
        %v718 = vshll.u32 %v450, 16
        %v720 = vrot.slane %v718, 1
        %v721 = vor.u32 %v716, %v720
        %v723 = vshll.u32 %v451, 16
        %v725 = vrot.slane %v723, 1
        %v726 = vsel %vm534, %v721, %v725
        %v728 = vshrl.u32 %v474, 16
        %v730 = vshll.u32 %v474, 16
        %v732 = vrot.slane %v730, 1
        %v733 = vor.u32 %v728, %v732
        %v735 = vshll.u32 %v475, 16
        %v737 = vrot.slane %v735, 1
        %v738 = vsel %vm534, %v733, %v737
        %v740 = vshrl.u32 %v483, 16
        %v742 = vshll.u32 %v483, 16
        %v744 = vrot.slane %v742, 1
        %v745 = vor.u32 %v740, %v744
        %v747 = vshll.u32 %v484, 16
        %v749 = vrot.slane %v747, 1
        %v750 = vsel %vm534, %v745, %v749
        %s769 = scalar_lea.vmem %s257, 192
        %v770 = vld [vmem:[%s769] sm:$0xf]
        %v771 = vld [vmem:[%s769 + $0x4] sm:$0xf]
        %v772 = vld [vmem:[%s769 + $0x8] sm:$0xf]
        %v773 = vld [vmem:[%s769 + $0xc] sm:$0xf]
        %v774 = vld [vmem:[%s769 + $0x10] sm:$0xf]
        %v775 = vld [vmem:[%s769 + $0x14] sm:$0xf]
        %v776 = vld [vmem:[%s769 + $0x18] sm:$0xf]
        %v777 = vld [vmem:[%s769 + $0x1c] sm:$0xf]
        %v778 = vld [vmem:[%s769 + $0x20] sm:$0xf]
        %v779 = vld [vmem:[%s769 + $0x24] sm:$0xf]
        %v780 = vld [vmem:[%s769 + $0x28] sm:$0xf]
        %v781 = vld [vmem:[%s769 + $0x2c] sm:$0xf]
        %v782 = vld [vmem:[%s769 + $0x30] sm:$0xf]
        %v783 = vld [vmem:[%s769 + $0x34] sm:$0xf]
        %v784 = vld [vmem:[%s769 + $0x38] sm:$0xf]
        %v785 = vld [vmem:[%s769 + $0x3c] sm:$0xf]
        %v786 = vld [vmem:[%s769 + $0x40] sm:$0xf]
        %v787 = vld [vmem:[%s769 + $0x44] sm:$0xf]
        %v788 = vld [vmem:[%s769 + $0x48] sm:$0xf]
        %v789 = vld [vmem:[%s769 + $0x4c] sm:$0xf]
        %v790 = vld [vmem:[%s769 + $0x50] sm:$0xf]
        %v791 = vld [vmem:[%s769 + $0x54] sm:$0xf]
        %v792 = vld [vmem:[%s769 + $0x58] sm:$0xf]
        %v793 = vld [vmem:[%s769 + $0x5c] sm:$0xf]
        %v794 = vld [vmem:[%s769 + $0x60] sm:$0xf]
        %v795 = vld [vmem:[%s769 + $0x64] sm:$0xf]
        %v796 = vld [vmem:[%s769 + $0x68] sm:$0xf]
        %v797 = vld [vmem:[%s769 + $0x6c] sm:$0xf]
        %v798 = vld [vmem:[%s769 + $0x70] sm:$0xf]
        %v799 = vld [vmem:[%s769 + $0x74] sm:$0xf]
        %v800 = vld [vmem:[%s769 + $0x78] sm:$0xf]
        %v801 = vld [vmem:[%s769 + $0x7c] sm:$0xf]
        %v802 = vld [vmem:[%s769 + $0x80] sm:$0xf]
        %v803 = vld [vmem:[%s769 + $0x84] sm:$0xf]
        %v804 = vld [vmem:[%s769 + $0x88] sm:$0xf]
        %v805 = vld [vmem:[%s769 + $0x8c] sm:$0xf]
        %v806 = vld [vmem:[%s769 + $0x90] sm:$0xf]
        %v807 = vld [vmem:[%s769 + $0x94] sm:$0xf]
        %v808 = vld [vmem:[%s769 + $0x98] sm:$0xf]
        %v809 = vld [vmem:[%s769 + $0x9c] sm:$0xf]
        %v810 = vld [vmem:[%s769 + $0xa0] sm:$0xf]
        %v811 = vld [vmem:[%s769 + $0xa4] sm:$0xf]
        %v812 = vld [vmem:[%s769 + $0xa8] sm:$0xf]
        %v813 = vld [vmem:[%s769 + $0xac] sm:$0xf]
        %v814 = vld [vmem:[%s769 + $0xb0] sm:$0xf]
        %v815 = vld [vmem:[%s769 + $0xb4] sm:$0xf]
        %v816 = vld [vmem:[%s769 + $0xb8] sm:$0xf]
        %v817 = vld [vmem:[%s769 + $0xbc] sm:$0xf]
        %v866 = vunpack.c.l.b16 %v770
        %v867 = vunpack.c.l.b16 %v771
        %v868 = vunpack.c.l.b16 %v772
        %v869 = vunpack.c.l.b16 %v773
        %v870 = vunpack.c.l.b16 %v774
        %v871 = vunpack.c.l.b16 %v775
        %v872 = vunpack.c.l.b16 %v776
        %v873 = vunpack.c.l.b16 %v777
        %v874 = vunpack.c.l.b16 %v778
        %v875 = vunpack.c.l.b16 %v779
        %v876 = vunpack.c.l.b16 %v780
        %v877 = vunpack.c.l.b16 %v781
        %v878 = vunpack.c.l.b16 %v782
        %v879 = vunpack.c.l.b16 %v783
        %v880 = vunpack.c.l.b16 %v784
        %v881 = vunpack.c.l.b16 %v785
        %v882 = vunpack.c.l.b16 %v786
        %v883 = vunpack.c.l.b16 %v787
        %v884 = vunpack.c.l.b16 %v788
        %v885 = vunpack.c.l.b16 %v789
        %v886 = vunpack.c.l.b16 %v790
        %v887 = vunpack.c.l.b16 %v791
        %v888 = vunpack.c.l.b16 %v792
        %v889 = vunpack.c.l.b16 %v793
        %v890 = vunpack.c.l.b16 %v794
        %v891 = vunpack.c.l.b16 %v795
        %v892 = vunpack.c.l.b16 %v796
        %v893 = vunpack.c.l.b16 %v797
        %v894 = vunpack.c.l.b16 %v798
        %v895 = vunpack.c.l.b16 %v799
        %v896 = vunpack.c.l.b16 %v800
        %v897 = vunpack.c.l.b16 %v801
        %v898 = vunpack.c.l.b16 %v802
        %v899 = vunpack.c.l.b16 %v803
        %v900 = vunpack.c.l.b16 %v804
        %v901 = vunpack.c.l.b16 %v805
        %v902 = vunpack.c.l.b16 %v806
        %v903 = vunpack.c.l.b16 %v807
        %v904 = vunpack.c.l.b16 %v808
        %v905 = vunpack.c.l.b16 %v809
        %v906 = vunpack.c.l.b16 %v810
        %v907 = vunpack.c.l.b16 %v811
        %v908 = vunpack.c.l.b16 %v812
        %v909 = vunpack.c.l.b16 %v813
        %v910 = vunpack.c.l.b16 %v814
        %v911 = vunpack.c.l.b16 %v815
        %v912 = vunpack.c.l.b16 %v816
        %v913 = vunpack.c.l.b16 %v817
        %v914 = vpack.c.b16 %v867, %v866
        %v915 = vpack.c.b16 %v869, %v868
        %v916 = vpack.c.b16 %v871, %v870
        %v917 = vpack.c.b16 %v873, %v872
        %v918 = vpack.c.b16 %v875, %v874
        %v919 = vpack.c.b16 %v877, %v876
        %v920 = vpack.c.b16 %v879, %v878
        %v921 = vpack.c.b16 %v881, %v880
        %v922 = vpack.c.b16 %v883, %v882
        %v923 = vpack.c.b16 %v885, %v884
        %v924 = vpack.c.b16 %v887, %v886
        %v925 = vpack.c.b16 %v889, %v888
        %v926 = vpack.c.b16 %v891, %v890
        %v927 = vpack.c.b16 %v893, %v892
        %v928 = vpack.c.b16 %v895, %v894
        %v929 = vpack.c.b16 %v897, %v896
        %v930 = vpack.c.b16 %v899, %v898
        %v931 = vpack.c.b16 %v901, %v900
        %v932 = vpack.c.b16 %v903, %v902
        %v933 = vpack.c.b16 %v905, %v904
        %v934 = vpack.c.b16 %v907, %v906
        %v935 = vpack.c.b16 %v909, %v908
        %v936 = vpack.c.b16 %v911, %v910
        %v937 = vpack.c.b16 %v913, %v912
        %962 = vmatprep.subr.bf16.mxu0 0
        %963 = vmatpush1.bf16.msra.mxu0 %v914
        %964 = vmatprep.subr.bf16.mxu0 0
        %965 = vmatpush1.bf16.msra.mxu0 %v915
        %966 = vmatprep.subr.bf16.mxu0 0
        %967 = vmatpush1.bf16.msra.mxu0 %v916
        %968 = vmatprep.subr.bf16.mxu0 0
        %969 = vmatpush1.bf16.msra.mxu0 %v917
        %970 = vmatprep.subr.bf16.mxu0 0
        %971 = vmatpush1.bf16.msra.mxu0 %v918
        %972 = vmatprep.subr.bf16.mxu0 0
        %973 = vmatpush1.bf16.msra.mxu0 %v919
        %974 = vmatprep.subr.bf16.mxu0 0
        %975 = vmatpush1.bf16.msra.mxu0 %v920
        %976 = vmatprep.subr.bf16.mxu0 0
        %977 = vmatpush1.bf16.msra.mxu0 %v921
        %978 = vmatprep.subr.bf16.mxu0 0
        %979 = vmatpush1.bf16.msra.mxu0 %v922
        %980 = vmatprep.subr.bf16.mxu0 0
        %981 = vmatpush1.bf16.msra.mxu0 %v923
        %982 = vmatprep.subr.bf16.mxu0 0
        %983 = vmatpush1.bf16.msra.mxu0 %v924
        %984 = vmatprep.subr.bf16.mxu0 0
        %985 = vmatpush1.bf16.msra.mxu0 %v925
        %986 = vmatprep.subr.bf16.mxu0 0
        %987 = vmatpush1.bf16.msra.mxu0 %v926
        %988 = vmatprep.subr.bf16.mxu0 0
        %989 = vmatpush1.bf16.msra.mxu0 %v927
        %990 = vmatprep.subr.bf16.mxu0 0
        %991 = vmatpush1.bf16.msra.mxu0 %v928
        %992 = vmatprep.subr.bf16.mxu0 0
        %993 = vmatpush1.bf16.msra.mxu0 %v929
        %994 = vmatprep.mubr.bf16.mxu0 %v558
        %995 = vmatmul.mubr.bf16.gmra.mrb[0].mxu0 %v546
        %v996 = vpop.f32.mrb[0].mxu0
        %v997 = vadd.f32 0.0, %v996
        %v998 = vpop.f32.mrb[0].mxu0
        %v999 = vpop.f32.mrb[0].mxu0
        %v1000 = vadd.f32 0.0, %v999
        %v1001 = vpop.f32.mrb[0].mxu0
        %1002 = vmatprep.mubr.bf16.mxu0 %v570
        %1003 = vmatmul.mubr.bf16.gmra.mrb[0].mxu0 %v558
        %v1004 = vpop.f32.mrb[0].mxu0
        %v1005 = vadd.f32 0.0, %v1004
        %v1006 = vpop.f32.mrb[0].mxu0
        %v1007 = vpop.f32.mrb[0].mxu0
        %v1008 = vadd.f32 0.0, %v1007
        %v1009 = vpop.f32.mrb[0].mxu0
        %1010 = vmatprep.mubr.bf16.mxu0 %v582
        %1011 = vmatmul.mubr.bf16.gmra.mrb[0].mxu0 %v570
        %v1012 = vpop.f32.mrb[0].mxu0
        %v1013 = vadd.f32 0.0, %v1012
        %v1014 = vpop.f32.mrb[0].mxu0
        %v1015 = vpop.f32.mrb[0].mxu0
        %v1016 = vadd.f32 0.0, %v1015
        %v1017 = vpop.f32.mrb[0].mxu0
        %1018 = vmatprep.mubr.bf16.mxu0 %v594
        %1019 = vmatmul.mubr.bf16.gmra.mrb[0].mxu0 %v582
        %v1020 = vpop.f32.mrb[0].mxu0
        %v1021 = vadd.f32 0.0, %v1020
        %v1022 = vpop.f32.mrb[0].mxu0
        %v1023 = vpop.f32.mrb[0].mxu0
        %v1024 = vadd.f32 0.0, %v1023
        %v1025 = vpop.f32.mrb[0].mxu0
        %1026 = vmatprep.mubr.bf16.mxu0 %v606
        %1027 = vmatmul.mubr.bf16.gmra.mrb[0].mxu0 %v594
        %v1028 = vpop.f32.mrb[0].mxu0
        %v1029 = vadd.f32 0.0, %v1028
        %v1030 = vpop.f32.mrb[0].mxu0
        %v1031 = vpop.f32.mrb[0].mxu0
        %v1032 = vadd.f32 0.0, %v1031
        %v1033 = vpop.f32.mrb[0].mxu0
        %1034 = vmatprep.mubr.bf16.mxu0 %v618
        %1035 = vmatmul.mubr.bf16.gmra.mrb[0].mxu0 %v606
        %v1036 = vpop.f32.mrb[0].mxu0
        %v1037 = vadd.f32 0.0, %v1036
        %v1038 = vpop.f32.mrb[0].mxu0
        %v1039 = vpop.f32.mrb[0].mxu0
        %v1040 = vadd.f32 0.0, %v1039
        %v1041 = vpop.f32.mrb[0].mxu0
        %1042 = vmatprep.mubr.bf16.mxu0 %v630
        %1043 = vmatmul.mubr.bf16.gmra.mrb[0].mxu0 %v618
        %v1044 = vpop.f32.mrb[0].mxu0
        %v1045 = vadd.f32 0.0, %v1044
        %v1046 = vpop.f32.mrb[0].mxu0
        %v1047 = vpop.f32.mrb[0].mxu0
        %v1048 = vadd.f32 0.0, %v1047
        %v1049 = vpop.f32.mrb[0].mxu0
        %1050 = vmatprep.mubr.bf16.mxu0 %v642
        %1051 = vmatmul.mubr.bf16.gmra.mrb[0].mxu0 %v630
        %v1052 = vpop.f32.mrb[0].mxu0
        %v1053 = vadd.f32 0.0, %v1052
        %v1054 = vpop.f32.mrb[0].mxu0
        %v1055 = vpop.f32.mrb[0].mxu0
        %v1056 = vadd.f32 0.0, %v1055
        %v1057 = vpop.f32.mrb[0].mxu0
        %1058 = vmatprep.mubr.bf16.mxu0 %v654
        %1059 = vmatmul.mubr.bf16.gmra.mrb[0].mxu0 %v642
        %v1060 = vpop.f32.mrb[0].mxu0
        %v1061 = vadd.f32 0.0, %v1060
        %v1062 = vpop.f32.mrb[0].mxu0
        %v1063 = vpop.f32.mrb[0].mxu0
        %v1064 = vadd.f32 0.0, %v1063
        %v1065 = vpop.f32.mrb[0].mxu0
        %1066 = vmatprep.mubr.bf16.mxu0 %v666
        %1067 = vmatmul.mubr.bf16.gmra.mrb[0].mxu0 %v654
        %v1068 = vpop.f32.mrb[0].mxu0
        %v1069 = vadd.f32 0.0, %v1068
        %v1070 = vpop.f32.mrb[0].mxu0
        %v1071 = vpop.f32.mrb[0].mxu0
        %v1072 = vadd.f32 0.0, %v1071
        %v1073 = vpop.f32.mrb[0].mxu0
        %1074 = vmatprep.mubr.bf16.mxu0 %v678
        %1075 = vmatmul.mubr.bf16.gmra.mrb[0].mxu0 %v666
        %v1076 = vpop.f32.mrb[0].mxu0
        %v1077 = vadd.f32 0.0, %v1076
        %v1078 = vpop.f32.mrb[0].mxu0
        %v1079 = vpop.f32.mrb[0].mxu0
        %v1080 = vadd.f32 0.0, %v1079
        %v1081 = vpop.f32.mrb[0].mxu0
        %1082 = vmatprep.mubr.bf16.mxu0 %v690
        %1083 = vmatmul.mubr.bf16.gmra.mrb[0].mxu0 %v678
        %v1084 = vpop.f32.mrb[0].mxu0
        %v1085 = vadd.f32 0.0, %v1084
        %v1086 = vpop.f32.mrb[0].mxu0
        %v1087 = vpop.f32.mrb[0].mxu0
        %v1088 = vadd.f32 0.0, %v1087
        %v1089 = vpop.f32.mrb[0].mxu0
        %1090 = vmatprep.mubr.bf16.mxu0 %v702
        %1091 = vmatmul.mubr.bf16.gmra.mrb[0].mxu0 %v690
        %v1092 = vpop.f32.mrb[0].mxu0
        %v1093 = vadd.f32 0.0, %v1092
        %v1094 = vpop.f32.mrb[0].mxu0
        %v1095 = vpop.f32.mrb[0].mxu0
        %v1096 = vadd.f32 0.0, %v1095
        %v1097 = vpop.f32.mrb[0].mxu0
        %1098 = vmatprep.mubr.bf16.mxu0 %v714
        %1099 = vmatmul.mubr.bf16.gmra.mrb[0].mxu0 %v702
        %v1100 = vpop.f32.mrb[0].mxu0
        %v1101 = vadd.f32 0.0, %v1100
        %v1102 = vpop.f32.mrb[0].mxu0
        %v1103 = vpop.f32.mrb[0].mxu0
        %v1104 = vadd.f32 0.0, %v1103
        %v1105 = vpop.f32.mrb[0].mxu0
        %1106 = vmatprep.mubr.bf16.mxu0 %v726
        %1107 = vmatmul.mubr.bf16.gmra.mrb[0].mxu0 %v714
        %v1108 = vpop.f32.mrb[0].mxu0
        %v1109 = vadd.f32 0.0, %v1108
        %v1110 = vpop.f32.mrb[0].mxu0
        %v1111 = vpop.f32.mrb[0].mxu0
        %v1112 = vadd.f32 0.0, %v1111
        %v1113 = vpop.f32.mrb[0].mxu0
        %1114 = vmatprep.mubr.bf16.mxu0 %v738
        %1115 = vmatmul.mubr.bf16.gmra.mrb[0].mxu0 %v726
        %v1116 = vpop.f32.mrb[0].mxu0
        %v1117 = vadd.f32 0.0, %v1116
        %v1118 = vpop.f32.mrb[0].mxu0
        %v1119 = vpop.f32.mrb[0].mxu0
        %v1120 = vadd.f32 0.0, %v1119
        %v1121 = vpop.f32.mrb[0].mxu0
        %1122 = vdwg.mxu0
        %1123 = vmatprep.subr.bf16.mxu0 0
        %1124 = vmatpush1.bf16.msra.mxu0 %v930
        %1125 = vmatprep.subr.bf16.mxu0 0
        %1126 = vmatpush1.bf16.msra.mxu0 %v931
        %1127 = vmatprep.subr.bf16.mxu0 0
        %1128 = vmatpush1.bf16.msra.mxu0 %v932
        %1129 = vmatprep.subr.bf16.mxu0 0
        %1130 = vmatpush1.bf16.msra.mxu0 %v933
        %1131 = vmatprep.subr.bf16.mxu0 0
        %1132 = vmatpush1.bf16.msra.mxu0 %v934
        %1133 = vmatprep.subr.bf16.mxu0 0
        %1134 = vmatpush1.bf16.msra.mxu0 %v935
        %1135 = vmatprep.subr.bf16.mxu0 0
        %1136 = vmatpush1.bf16.msra.mxu0 %v936
        %1137 = vmatprep.subr.bf16.mxu0 0
        %1138 = vmatpush1.bf16.msra.mxu0 %v937
        %1139 = vmatprep.subr.bf16.mxu0 0
        %1140 = vmatpush1.bf16.msra.mxu0 0
        %1141 = vmatprep.subr.bf16.mxu0 0
        %1142 = vmatpush1.bf16.msra.mxu0 0
        %1143 = vmatprep.subr.bf16.mxu0 0
        %1144 = vmatpush1.bf16.msra.mxu0 0
        %1145 = vmatprep.subr.bf16.mxu0 0
        %1146 = vmatpush1.bf16.msra.mxu0 0
        %1147 = vmatprep.subr.bf16.mxu0 0
        %1148 = vmatpush1.bf16.msra.mxu0 0
        %1149 = vmatprep.subr.bf16.mxu0 0
        %1150 = vmatpush1.bf16.msra.mxu0 0
        %1151 = vmatprep.subr.bf16.mxu0 0
        %1152 = vmatpush1.bf16.msra.mxu0 0
        %1153 = vmatprep.subr.bf16.mxu0 0
        %1154 = vmatpush1.bf16.msra.mxu0 0
        %1155 = vmatprep.mubr.bf16.mxu0 0
        %1156 = vmatmul.mubr.bf16.gmra.mrb[0].mxu0 %v570
        %v1157 = vpop.f32.mrb[0].mxu0
        %v1158 = vadd.f32 %v997, %v1157
        %v1159 = vpop.f32.mrb[0].mxu0
        %v1160 = vpop.f32.mrb[0].mxu0
        %v1161 = vadd.f32 %v1000, %v1160
        %v1162 = vpop.f32.mrb[0].mxu0
        %1163 = vmatprep.mubr.bf16.mxu0 0
        %1164 = vmatmul.mubr.bf16.gmra.mrb[0].mxu0 %v582
        %v1165 = vpop.f32.mrb[0].mxu0
        %v1166 = vadd.f32 %v1005, %v1165
        %v1167 = vpop.f32.mrb[0].mxu0
        %v1168 = vpop.f32.mrb[0].mxu0
        %v1169 = vadd.f32 %v1008, %v1168
        %v1170 = vpop.f32.mrb[0].mxu0
        %1171 = vmatprep.mubr.bf16.mxu0 0
        %1172 = vmatmul.mubr.bf16.gmra.mrb[0].mxu0 %v594
        %v1173 = vpop.f32.mrb[0].mxu0
        %v1174 = vadd.f32 %v1013, %v1173
        %v1175 = vpop.f32.mrb[0].mxu0
        %v1176 = vpop.f32.mrb[0].mxu0
        %v1177 = vadd.f32 %v1016, %v1176
        %v1178 = vpop.f32.mrb[0].mxu0
        %1179 = vmatprep.mubr.bf16.mxu0 0
        %1180 = vmatmul.mubr.bf16.gmra.mrb[0].mxu0 %v606
        %v1181 = vpop.f32.mrb[0].mxu0
        %v1182 = vadd.f32 %v1021, %v1181
        %v1183 = vpop.f32.mrb[0].mxu0
        %v1184 = vpop.f32.mrb[0].mxu0
        %v1185 = vadd.f32 %v1024, %v1184
        %v1186 = vpop.f32.mrb[0].mxu0
        %1187 = vmatprep.mubr.bf16.mxu0 0
        %1188 = vmatmul.mubr.bf16.gmra.mrb[0].mxu0 %v618
        %v1189 = vpop.f32.mrb[0].mxu0
        %v1190 = vadd.f32 %v1029, %v1189
        %v1191 = vpop.f32.mrb[0].mxu0
        %v1192 = vpop.f32.mrb[0].mxu0
        %v1193 = vadd.f32 %v1032, %v1192
        %v1194 = vpop.f32.mrb[0].mxu0
        %1195 = vmatprep.mubr.bf16.mxu0 0
        %1196 = vmatmul.mubr.bf16.gmra.mrb[0].mxu0 %v630
        %v1197 = vpop.f32.mrb[0].mxu0
        %v1198 = vadd.f32 %v1037, %v1197
        %v1199 = vpop.f32.mrb[0].mxu0
        %v1200 = vpop.f32.mrb[0].mxu0
        %v1201 = vadd.f32 %v1040, %v1200
        %v1202 = vpop.f32.mrb[0].mxu0
        %1203 = vmatprep.mubr.bf16.mxu0 0
        %1204 = vmatmul.mubr.bf16.gmra.mrb[0].mxu0 %v642
        %v1205 = vpop.f32.mrb[0].mxu0
        %v1206 = vadd.f32 %v1045, %v1205
        %v1207 = vpop.f32.mrb[0].mxu0
        %v1208 = vpop.f32.mrb[0].mxu0
        %v1209 = vadd.f32 %v1048, %v1208
        %v1210 = vpop.f32.mrb[0].mxu0
        %1211 = vmatprep.mubr.bf16.mxu0 0
        %1212 = vmatmul.mubr.bf16.gmra.mrb[0].mxu0 %v654
        %v1213 = vpop.f32.mrb[0].mxu0
        %v1214 = vadd.f32 %v1053, %v1213
        %v1215 = vpop.f32.mrb[0].mxu0
        %v1216 = vpop.f32.mrb[0].mxu0
        %v1217 = vadd.f32 %v1056, %v1216
        %v1218 = vpop.f32.mrb[0].mxu0
        %1219 = vmatprep.mubr.bf16.mxu0 0
        %1220 = vmatmul.mubr.bf16.gmra.mrb[0].mxu0 %v666
        %v1221 = vpop.f32.mrb[0].mxu0
        %v1222 = vadd.f32 %v1061, %v1221
        %v1223 = vpop.f32.mrb[0].mxu0
        %v1224 = vpop.f32.mrb[0].mxu0
        %v1225 = vadd.f32 %v1064, %v1224
        %v1226 = vpop.f32.mrb[0].mxu0
        %1227 = vmatprep.mubr.bf16.mxu0 0
        %1228 = vmatmul.mubr.bf16.gmra.mrb[0].mxu0 %v678
        %v1229 = vpop.f32.mrb[0].mxu0
        %v1230 = vadd.f32 %v1069, %v1229
        %v1231 = vpop.f32.mrb[0].mxu0
        %v1232 = vpop.f32.mrb[0].mxu0
        %v1233 = vadd.f32 %v1072, %v1232
        %v1234 = vpop.f32.mrb[0].mxu0
        %1235 = vmatprep.mubr.bf16.mxu0 0
        %1236 = vmatmul.mubr.bf16.gmra.mrb[0].mxu0 %v690
        %v1237 = vpop.f32.mrb[0].mxu0
        %v1238 = vadd.f32 %v1077, %v1237
        %v1239 = vpop.f32.mrb[0].mxu0
        %v1240 = vpop.f32.mrb[0].mxu0
        %v1241 = vadd.f32 %v1080, %v1240
        %v1242 = vpop.f32.mrb[0].mxu0
        %1243 = vmatprep.mubr.bf16.mxu0 0
        %1244 = vmatmul.mubr.bf16.gmra.mrb[0].mxu0 %v702
        %v1245 = vpop.f32.mrb[0].mxu0
        %v1246 = vadd.f32 %v1085, %v1245
        %v1247 = vpop.f32.mrb[0].mxu0
        %v1248 = vpop.f32.mrb[0].mxu0
        %v1249 = vadd.f32 %v1088, %v1248
        %v1250 = vpop.f32.mrb[0].mxu0
        %1251 = vmatprep.mubr.bf16.mxu0 0
        %1252 = vmatmul.mubr.bf16.gmra.mrb[0].mxu0 %v714
        %v1253 = vpop.f32.mrb[0].mxu0
        %v1254 = vadd.f32 %v1093, %v1253
        %v1255 = vpop.f32.mrb[0].mxu0
        %v1256 = vpop.f32.mrb[0].mxu0
        %v1257 = vadd.f32 %v1096, %v1256
        %v1258 = vpop.f32.mrb[0].mxu0
        %1259 = vmatprep.mubr.bf16.mxu0 0
        %1260 = vmatmul.mubr.bf16.gmra.mrb[0].mxu0 %v726
        %v1261 = vpop.f32.mrb[0].mxu0
        %v1262 = vadd.f32 %v1101, %v1261
        %v1263 = vpop.f32.mrb[0].mxu0
        %v1264 = vpop.f32.mrb[0].mxu0
        %v1265 = vadd.f32 %v1104, %v1264
        %v1266 = vpop.f32.mrb[0].mxu0
        %1267 = vmatprep.mubr.bf16.mxu0 0
        %1268 = vmatmul.mubr.bf16.gmra.mrb[0].mxu0 %v738
        %v1269 = vpop.f32.mrb[0].mxu0
        %v1270 = vadd.f32 %v1109, %v1269
        %v1271 = vpop.f32.mrb[0].mxu0
        %v1272 = vpop.f32.mrb[0].mxu0
        %v1273 = vadd.f32 %v1112, %v1272
        %v1274 = vpop.f32.mrb[0].mxu0
        %1275 = vmatprep.mubr.bf16.mxu0 0
        %1276 = vmatmul.mubr.bf16.gmra.mrb[0].mxu0 %v750
        %v1277 = vpop.f32.mrb[0].mxu0
        %v1278 = vadd.f32 %v1117, %v1277
        %v1279 = vpop.f32.mrb[0].mxu0
        %v1280 = vpop.f32.mrb[0].mxu0
        %v1281 = vadd.f32 %v1120, %v1280
        %v1282 = vpop.f32.mrb[0].mxu0
        %1283 = vdwg.mxu0
        %v1332 = vunpack.c.l.b16 %v486
        %v1333 = vunpack.c.l.b16 %v487
        %v1334 = vunpack.c.l.b16 %v488
        %v1335 = vunpack.c.l.b16 %v489
        %v1336 = vunpack.c.l.b16 %v490
        %v1337 = vunpack.c.l.b16 %v491
        %v1338 = vunpack.c.l.b16 %v492
        %v1339 = vunpack.c.l.b16 %v493
        %v1340 = vunpack.c.l.b16 %v494
        %v1341 = vunpack.c.l.b16 %v495
        %v1342 = vunpack.c.l.b16 %v496
        %v1343 = vunpack.c.l.b16 %v497
        %v1344 = vunpack.c.l.b16 %v498
        %v1345 = vunpack.c.l.b16 %v499
        %v1346 = vunpack.c.l.b16 %v500
        %v1347 = vunpack.c.l.b16 %v501
        %v1348 = vunpack.c.l.b16 %v502
        %v1349 = vunpack.c.l.b16 %v503
        %v1350 = vunpack.c.l.b16 %v504
        %v1351 = vunpack.c.l.b16 %v505
        %v1352 = vunpack.c.l.b16 %v506
        %v1353 = vunpack.c.l.b16 %v507
        %v1354 = vunpack.c.l.b16 %v508
        %v1355 = vunpack.c.l.b16 %v509
        %v1356 = vunpack.c.l.b16 %v510
        %v1357 = vunpack.c.l.b16 %v511
        %v1358 = vunpack.c.l.b16 %v512
        %v1359 = vunpack.c.l.b16 %v513
        %v1360 = vunpack.c.l.b16 %v514
        %v1361 = vunpack.c.l.b16 %v515
        %v1362 = vunpack.c.l.b16 %v516
        %v1363 = vunpack.c.l.b16 %v517
        %v1364 = vunpack.c.l.b16 %v518
        %v1365 = vunpack.c.l.b16 %v519
        %v1366 = vunpack.c.l.b16 %v520
        %v1367 = vunpack.c.l.b16 %v521
        %v1368 = vunpack.c.l.b16 %v522
        %v1369 = vunpack.c.l.b16 %v523
        %v1370 = vunpack.c.l.b16 %v524
        %v1371 = vunpack.c.l.b16 %v525
        %v1372 = vunpack.c.l.b16 %v526
        %v1373 = vunpack.c.l.b16 %v527
        %v1374 = vunpack.c.l.b16 %v528
        %v1375 = vunpack.c.l.b16 %v529
        %v1376 = vunpack.c.l.b16 %v530
        %v1377 = vunpack.c.l.b16 %v531
        %v1378 = vunpack.c.l.b16 %v532
        %v1379 = vunpack.c.l.b16 %v533
        %v1380 = vpack.c.b16 %v1333, %v1332
        %v1381 = vpack.c.b16 %v1335, %v1334
        %v1382 = vpack.c.b16 %v1337, %v1336
        %v1383 = vpack.c.b16 %v1339, %v1338
        %v1384 = vpack.c.b16 %v1341, %v1340
        %v1385 = vpack.c.b16 %v1343, %v1342
        %v1386 = vpack.c.b16 %v1345, %v1344
        %v1387 = vpack.c.b16 %v1347, %v1346
        %v1388 = vpack.c.b16 %v1349, %v1348
        %v1389 = vpack.c.b16 %v1351, %v1350
        %v1390 = vpack.c.b16 %v1353, %v1352
        %v1391 = vpack.c.b16 %v1355, %v1354
        %v1392 = vpack.c.b16 %v1357, %v1356
        %v1393 = vpack.c.b16 %v1359, %v1358
        %v1394 = vpack.c.b16 %v1361, %v1360
        %v1395 = vpack.c.b16 %v1363, %v1362
        %v1396 = vpack.c.b16 %v1365, %v1364
        %v1397 = vpack.c.b16 %v1367, %v1366
        %v1398 = vpack.c.b16 %v1369, %v1368
        %v1399 = vpack.c.b16 %v1371, %v1370
        %v1400 = vpack.c.b16 %v1373, %v1372
        %v1401 = vpack.c.b16 %v1375, %v1374
        %v1402 = vpack.c.b16 %v1377, %v1376
        %v1403 = vpack.c.b16 %v1379, %v1378
        %1428 = vmatprep.subr.bf16.mxu0 0
        %1429 = vmatpush1.bf16.msra.mxu0 %v1380
        %1430 = vmatprep.subr.bf16.mxu0 0
        %1431 = vmatpush1.bf16.msra.mxu0 %v1381
        %1432 = vmatprep.subr.bf16.mxu0 0
        %1433 = vmatpush1.bf16.msra.mxu0 %v1382
        %1434 = vmatprep.subr.bf16.mxu0 0
        %1435 = vmatpush1.bf16.msra.mxu0 %v1383
        %1436 = vmatprep.subr.bf16.mxu0 0
        %1437 = vmatpush1.bf16.msra.mxu0 %v1384
        %1438 = vmatprep.subr.bf16.mxu0 0
        %1439 = vmatpush1.bf16.msra.mxu0 %v1385
        %1440 = vmatprep.subr.bf16.mxu0 0
        %1441 = vmatpush1.bf16.msra.mxu0 %v1386
        %1442 = vmatprep.subr.bf16.mxu0 0
        %1443 = vmatpush1.bf16.msra.mxu0 %v1387
        %1444 = vmatprep.subr.bf16.mxu0 0
        %1445 = vmatpush1.bf16.msra.mxu0 %v1388
        %1446 = vmatprep.subr.bf16.mxu0 0
        %1447 = vmatpush1.bf16.msra.mxu0 %v1389
        %1448 = vmatprep.subr.bf16.mxu0 0
        %1449 = vmatpush1.bf16.msra.mxu0 %v1390
        %1450 = vmatprep.subr.bf16.mxu0 0
        %1451 = vmatpush1.bf16.msra.mxu0 %v1391
        %1452 = vmatprep.subr.bf16.mxu0 0
        %1453 = vmatpush1.bf16.msra.mxu0 %v1392
        %1454 = vmatprep.subr.bf16.mxu0 0
        %1455 = vmatpush1.bf16.msra.mxu0 %v1393
        %1456 = vmatprep.subr.bf16.mxu0 0
        %1457 = vmatpush1.bf16.msra.mxu0 %v1394
        %1458 = vmatprep.subr.bf16.mxu0 0
        %1459 = vmatpush1.bf16.msra.mxu0 %v1395
        %1460 = vmatprep.mubr.bf16.mxu0 %v422
        %1461 = vmatmul.mubr.bf16.gmra.mrb[0].mxu0 %v420
        %v1462 = vpop.f32.mrb[0].mxu0
        %v1463 = vadd.f32 %v1158, %v1462
        %v1464 = vpop.f32.mrb[0].mxu0
        %v1465 = vpop.f32.mrb[0].mxu0
        %v1466 = vadd.f32 %v1161, %v1465
        %v1467 = vpop.f32.mrb[0].mxu0
        %1468 = vmatprep.mubr.bf16.mxu0 %v424
        %1469 = vmatmul.mubr.bf16.gmra.mrb[0].mxu0 %v422
        %v1470 = vpop.f32.mrb[0].mxu0
        %v1471 = vadd.f32 %v1166, %v1470
        %v1472 = vpop.f32.mrb[0].mxu0
        %v1473 = vpop.f32.mrb[0].mxu0
        %v1474 = vadd.f32 %v1169, %v1473
        %v1475 = vpop.f32.mrb[0].mxu0
        %1476 = vmatprep.mubr.bf16.mxu0 %v426
        %1477 = vmatmul.mubr.bf16.gmra.mrb[0].mxu0 %v424
        %v1478 = vpop.f32.mrb[0].mxu0
        %v1479 = vadd.f32 %v1174, %v1478
        %v1480 = vpop.f32.mrb[0].mxu0
        %v1481 = vpop.f32.mrb[0].mxu0
        %v1482 = vadd.f32 %v1177, %v1481
        %v1483 = vpop.f32.mrb[0].mxu0
        %1484 = vmatprep.mubr.bf16.mxu0 %v428
        %1485 = vmatmul.mubr.bf16.gmra.mrb[0].mxu0 %v426
        %v1486 = vpop.f32.mrb[0].mxu0
        %v1487 = vadd.f32 %v1182, %v1486
        %v1488 = vpop.f32.mrb[0].mxu0
        %v1489 = vpop.f32.mrb[0].mxu0
        %v1490 = vadd.f32 %v1185, %v1489
        %v1491 = vpop.f32.mrb[0].mxu0
        %1492 = vmatprep.mubr.bf16.mxu0 %v430
        %1493 = vmatmul.mubr.bf16.gmra.mrb[0].mxu0 %v428
        %v1494 = vpop.f32.mrb[0].mxu0
        %v1495 = vadd.f32 %v1190, %v1494
        %v1496 = vpop.f32.mrb[0].mxu0
        %v1497 = vpop.f32.mrb[0].mxu0
        %v1498 = vadd.f32 %v1193, %v1497
        %v1499 = vpop.f32.mrb[0].mxu0
        %1500 = vmatprep.mubr.bf16.mxu0 %v432
        %1501 = vmatmul.mubr.bf16.gmra.mrb[0].mxu0 %v430
        %v1502 = vpop.f32.mrb[0].mxu0
        %v1503 = vadd.f32 %v1198, %v1502
        %v1504 = vpop.f32.mrb[0].mxu0
        %v1505 = vpop.f32.mrb[0].mxu0
        %v1506 = vadd.f32 %v1201, %v1505
        %v1507 = vpop.f32.mrb[0].mxu0
        %1508 = vmatprep.mubr.bf16.mxu0 %v434
        %1509 = vmatmul.mubr.bf16.gmra.mrb[0].mxu0 %v432
        %v1510 = vpop.f32.mrb[0].mxu0
        %v1511 = vadd.f32 %v1206, %v1510
        %v1512 = vpop.f32.mrb[0].mxu0
        %v1513 = vpop.f32.mrb[0].mxu0
        %v1514 = vadd.f32 %v1209, %v1513
        %v1515 = vpop.f32.mrb[0].mxu0
        %1516 = vmatprep.mubr.bf16.mxu0 %v436
        %1517 = vmatmul.mubr.bf16.gmra.mrb[0].mxu0 %v434
        %v1518 = vpop.f32.mrb[0].mxu0
        %v1519 = vadd.f32 %v1214, %v1518
        %v1520 = vpop.f32.mrb[0].mxu0
        %v1521 = vpop.f32.mrb[0].mxu0
        %v1522 = vadd.f32 %v1217, %v1521
        %v1523 = vpop.f32.mrb[0].mxu0
        %1524 = vmatprep.mubr.bf16.mxu0 %v438
        %1525 = vmatmul.mubr.bf16.gmra.mrb[0].mxu0 %v436
        %v1526 = vpop.f32.mrb[0].mxu0
        %v1527 = vadd.f32 %v1222, %v1526
        %v1528 = vpop.f32.mrb[0].mxu0
        %v1529 = vpop.f32.mrb[0].mxu0
        %v1530 = vadd.f32 %v1225, %v1529
        %v1531 = vpop.f32.mrb[0].mxu0
        %1532 = vmatprep.mubr.bf16.mxu0 %v440
        %1533 = vmatmul.mubr.bf16.gmra.mrb[0].mxu0 %v438
        %v1534 = vpop.f32.mrb[0].mxu0
        %v1535 = vadd.f32 %v1230, %v1534
        %v1536 = vpop.f32.mrb[0].mxu0
        %v1537 = vpop.f32.mrb[0].mxu0
        %v1538 = vadd.f32 %v1233, %v1537
        %v1539 = vpop.f32.mrb[0].mxu0
        %1540 = vmatprep.mubr.bf16.mxu0 %v442
        %1541 = vmatmul.mubr.bf16.gmra.mrb[0].mxu0 %v440
        %v1542 = vpop.f32.mrb[0].mxu0
        %v1543 = vadd.f32 %v1238, %v1542
        %v1544 = vpop.f32.mrb[0].mxu0
        %v1545 = vpop.f32.mrb[0].mxu0
        %v1546 = vadd.f32 %v1241, %v1545
        %v1547 = vpop.f32.mrb[0].mxu0
        %1548 = vmatprep.mubr.bf16.mxu0 %v444
        %1549 = vmatmul.mubr.bf16.gmra.mrb[0].mxu0 %v442
        %v1550 = vpop.f32.mrb[0].mxu0
        %v1551 = vadd.f32 %v1246, %v1550
        %v1552 = vpop.f32.mrb[0].mxu0
        %v1553 = vpop.f32.mrb[0].mxu0
        %v1554 = vadd.f32 %v1249, %v1553
        %v1555 = vpop.f32.mrb[0].mxu0
        %1556 = vmatprep.mubr.bf16.mxu0 %v446
        %1557 = vmatmul.mubr.bf16.gmra.mrb[0].mxu0 %v444
        %v1558 = vpop.f32.mrb[0].mxu0
        %v1559 = vadd.f32 %v1254, %v1558
        %v1560 = vpop.f32.mrb[0].mxu0
        %v1561 = vpop.f32.mrb[0].mxu0
        %v1562 = vadd.f32 %v1257, %v1561
        %v1563 = vpop.f32.mrb[0].mxu0
        %1564 = vmatprep.mubr.bf16.mxu0 %v448
        %1565 = vmatmul.mubr.bf16.gmra.mrb[0].mxu0 %v446
        %v1566 = vpop.f32.mrb[0].mxu0
        %v1567 = vadd.f32 %v1262, %v1566
        %v1568 = vpop.f32.mrb[0].mxu0
        %v1569 = vpop.f32.mrb[0].mxu0
        %v1570 = vadd.f32 %v1265, %v1569
        %v1571 = vpop.f32.mrb[0].mxu0
        %1572 = vmatprep.mubr.bf16.mxu0 %v450
        %1573 = vmatmul.mubr.bf16.gmra.mrb[0].mxu0 %v448
        %v1574 = vpop.f32.mrb[0].mxu0
        %v1575 = vadd.f32 %v1270, %v1574
        %v1576 = vpop.f32.mrb[0].mxu0
        %v1577 = vpop.f32.mrb[0].mxu0
        %v1578 = vadd.f32 %v1273, %v1577
        %v1579 = vpop.f32.mrb[0].mxu0
        %1580 = vmatprep.mubr.bf16.mxu0 %v474
        %1581 = vmatmul.mubr.bf16.gmra.mrb[0].mxu0 %v450
        %v1582 = vpop.f32.mrb[0].mxu0
        %v1583 = vadd.f32 %v1278, %v1582
        %v1584 = vpop.f32.mrb[0].mxu0
        %v1585 = vpop.f32.mrb[0].mxu0
        %v1586 = vadd.f32 %v1281, %v1585
        %v1587 = vpop.f32.mrb[0].mxu0
        %1588 = vdwg.mxu0
        %1589 = vmatprep.subr.bf16.mxu0 0
        %1590 = vmatpush1.bf16.msra.mxu0 %v1396
        %1591 = vmatprep.subr.bf16.mxu0 0
        %1592 = vmatpush1.bf16.msra.mxu0 %v1397
        %1593 = vmatprep.subr.bf16.mxu0 0
        %1594 = vmatpush1.bf16.msra.mxu0 %v1398
        %1595 = vmatprep.subr.bf16.mxu0 0
        %1596 = vmatpush1.bf16.msra.mxu0 %v1399
        %1597 = vmatprep.subr.bf16.mxu0 0
        %1598 = vmatpush1.bf16.msra.mxu0 %v1400
        %1599 = vmatprep.subr.bf16.mxu0 0
        %1600 = vmatpush1.bf16.msra.mxu0 %v1401
        %1601 = vmatprep.subr.bf16.mxu0 0
        %1602 = vmatpush1.bf16.msra.mxu0 %v1402
        %1603 = vmatprep.subr.bf16.mxu0 0
        %1604 = vmatpush1.bf16.msra.mxu0 %v1403
        %1605 = vmatprep.subr.bf16.mxu0 0
        %1606 = vmatpush1.bf16.msra.mxu0 0
        %1607 = vmatprep.subr.bf16.mxu0 0
        %1608 = vmatpush1.bf16.msra.mxu0 0
        %1609 = vmatprep.subr.bf16.mxu0 0
        %1610 = vmatpush1.bf16.msra.mxu0 0
        %1611 = vmatprep.subr.bf16.mxu0 0
        %1612 = vmatpush1.bf16.msra.mxu0 0
        %1613 = vmatprep.subr.bf16.mxu0 0
        %1614 = vmatpush1.bf16.msra.mxu0 0
        %1615 = vmatprep.subr.bf16.mxu0 0
        %1616 = vmatpush1.bf16.msra.mxu0 0
        %1617 = vmatprep.subr.bf16.mxu0 0
        %1618 = vmatpush1.bf16.msra.mxu0 0
        %1619 = vmatprep.subr.bf16.mxu0 0
        %1620 = vmatpush1.bf16.msra.mxu0 0
        %1621 = vmatprep.mubr.bf16.mxu0 0
        %1622 = vmatmul.mubr.bf16.gmra.mrb[0].mxu0 %v424
        %v1623 = vpop.f32.mrb[0].mxu0
        %v1624 = vadd.f32 %v1463, %v1623
        %v1625 = vpop.f32.mrb[0].mxu0
        %v1626 = vpop.f32.mrb[0].mxu0
        %v1627 = vadd.f32 %v1466, %v1626
        %v1628 = vpop.f32.mrb[0].mxu0
        %1629 = vmatprep.mubr.bf16.mxu0 0
        %1630 = vmatmul.mubr.bf16.gmra.mrb[0].mxu0 %v426
        %v1631 = vpop.f32.mrb[0].mxu0
        %v1632 = vadd.f32 %v1471, %v1631
        %v1633 = vpop.f32.mrb[0].mxu0
        %v1634 = vpop.f32.mrb[0].mxu0
        %v1635 = vadd.f32 %v1474, %v1634
        %v1636 = vpop.f32.mrb[0].mxu0
        %1637 = vmatprep.mubr.bf16.mxu0 0
        %1638 = vmatmul.mubr.bf16.gmra.mrb[0].mxu0 %v428
        %v1639 = vpop.f32.mrb[0].mxu0
        %v1640 = vadd.f32 %v1479, %v1639
        %v1641 = vpop.f32.mrb[0].mxu0
        %v1642 = vpop.f32.mrb[0].mxu0
        %v1643 = vadd.f32 %v1482, %v1642
        %v1644 = vpop.f32.mrb[0].mxu0
        %1645 = vmatprep.mubr.bf16.mxu0 0
        %1646 = vmatmul.mubr.bf16.gmra.mrb[0].mxu0 %v430
        %v1647 = vpop.f32.mrb[0].mxu0
        %v1648 = vadd.f32 %v1487, %v1647
        %v1649 = vpop.f32.mrb[0].mxu0
        %v1650 = vpop.f32.mrb[0].mxu0
        %v1651 = vadd.f32 %v1490, %v1650
        %v1652 = vpop.f32.mrb[0].mxu0
        %1653 = vmatprep.mubr.bf16.mxu0 0
        %1654 = vmatmul.mubr.bf16.gmra.mrb[0].mxu0 %v432
        %v1655 = vpop.f32.mrb[0].mxu0
        %v1656 = vadd.f32 %v1495, %v1655
        %v1657 = vpop.f32.mrb[0].mxu0
        %v1658 = vpop.f32.mrb[0].mxu0
        %v1659 = vadd.f32 %v1498, %v1658
        %v1660 = vpop.f32.mrb[0].mxu0
        %1661 = vmatprep.mubr.bf16.mxu0 0
        %1662 = vmatmul.mubr.bf16.gmra.mrb[0].mxu0 %v434
        %v1663 = vpop.f32.mrb[0].mxu0
        %v1664 = vadd.f32 %v1503, %v1663
        %v1665 = vpop.f32.mrb[0].mxu0
        %v1666 = vpop.f32.mrb[0].mxu0
        %v1667 = vadd.f32 %v1506, %v1666
        %v1668 = vpop.f32.mrb[0].mxu0
        %1669 = vmatprep.mubr.bf16.mxu0 0
        %1670 = vmatmul.mubr.bf16.gmra.mrb[0].mxu0 %v436
        %v1671 = vpop.f32.mrb[0].mxu0
        %v1672 = vadd.f32 %v1511, %v1671
        %v1673 = vpop.f32.mrb[0].mxu0
        %v1674 = vpop.f32.mrb[0].mxu0
        %v1675 = vadd.f32 %v1514, %v1674
        %v1676 = vpop.f32.mrb[0].mxu0
        %1677 = vmatprep.mubr.bf16.mxu0 0
        %1678 = vmatmul.mubr.bf16.gmra.mrb[0].mxu0 %v438
        %v1679 = vpop.f32.mrb[0].mxu0
        %v1680 = vadd.f32 %v1519, %v1679
        %v1681 = vpop.f32.mrb[0].mxu0
        %v1682 = vpop.f32.mrb[0].mxu0
        %v1683 = vadd.f32 %v1522, %v1682
        %v1684 = vpop.f32.mrb[0].mxu0
        %1685 = vmatprep.mubr.bf16.mxu0 0
        %1686 = vmatmul.mubr.bf16.gmra.mrb[0].mxu0 %v440
        %v1687 = vpop.f32.mrb[0].mxu0
        %v1688 = vadd.f32 %v1527, %v1687
        %v1689 = vpop.f32.mrb[0].mxu0
        %v1690 = vpop.f32.mrb[0].mxu0
        %v1691 = vadd.f32 %v1530, %v1690
        %v1692 = vpop.f32.mrb[0].mxu0
        %1693 = vmatprep.mubr.bf16.mxu0 0
        %1694 = vmatmul.mubr.bf16.gmra.mrb[0].mxu0 %v442
        %v1695 = vpop.f32.mrb[0].mxu0
        %v1696 = vadd.f32 %v1535, %v1695
        %v1697 = vpop.f32.mrb[0].mxu0
        %v1698 = vpop.f32.mrb[0].mxu0
        %v1699 = vadd.f32 %v1538, %v1698
        %v1700 = vpop.f32.mrb[0].mxu0
        %1701 = vmatprep.mubr.bf16.mxu0 0
        %1702 = vmatmul.mubr.bf16.gmra.mrb[0].mxu0 %v444
        %v1703 = vpop.f32.mrb[0].mxu0
        %v1704 = vadd.f32 %v1543, %v1703
        %v1705 = vpop.f32.mrb[0].mxu0
        %v1706 = vpop.f32.mrb[0].mxu0
        %v1707 = vadd.f32 %v1546, %v1706
        %v1708 = vpop.f32.mrb[0].mxu0
        %1709 = vmatprep.mubr.bf16.mxu0 0
        %1710 = vmatmul.mubr.bf16.gmra.mrb[0].mxu0 %v446
        %v1711 = vpop.f32.mrb[0].mxu0
        %v1712 = vadd.f32 %v1551, %v1711
        %v1713 = vpop.f32.mrb[0].mxu0
        %v1714 = vpop.f32.mrb[0].mxu0
        %v1715 = vadd.f32 %v1554, %v1714
        %v1716 = vpop.f32.mrb[0].mxu0
        %1717 = vmatprep.mubr.bf16.mxu0 0
        %1718 = vmatmul.mubr.bf16.gmra.mrb[0].mxu0 %v448
        %v1719 = vpop.f32.mrb[0].mxu0
        %v1720 = vadd.f32 %v1559, %v1719
        %v1721 = vpop.f32.mrb[0].mxu0
        %v1722 = vpop.f32.mrb[0].mxu0
        %v1723 = vadd.f32 %v1562, %v1722
        %v1724 = vpop.f32.mrb[0].mxu0
        %1725 = vmatprep.mubr.bf16.mxu0 0
        %1726 = vmatmul.mubr.bf16.gmra.mrb[0].mxu0 %v450
        %v1727 = vpop.f32.mrb[0].mxu0
        %v1728 = vadd.f32 %v1567, %v1727
        %v1729 = vpop.f32.mrb[0].mxu0
        %v1730 = vpop.f32.mrb[0].mxu0
        %v1731 = vadd.f32 %v1570, %v1730
        %v1732 = vpop.f32.mrb[0].mxu0
        %1733 = vmatprep.mubr.bf16.mxu0 0
        %1734 = vmatmul.mubr.bf16.gmra.mrb[0].mxu0 %v474
        %v1735 = vpop.f32.mrb[0].mxu0
        %v1736 = vadd.f32 %v1575, %v1735
        %v1737 = vpop.f32.mrb[0].mxu0
        %v1738 = vpop.f32.mrb[0].mxu0
        %v1739 = vadd.f32 %v1578, %v1738
        %v1740 = vpop.f32.mrb[0].mxu0
        %1741 = vmatprep.mubr.bf16.mxu0 0
        %1742 = vmatmul.mubr.bf16.gmra.mrb[0].mxu0 %v483
        %v1743 = vpop.f32.mrb[0].mxu0
        %v1744 = vadd.f32 %v1583, %v1743
        %v1745 = vpop.f32.mrb[0].mxu0
        %v1746 = vpop.f32.mrb[0].mxu0
        %v1747 = vadd.f32 %v1586, %v1746
        %v1748 = vpop.f32.mrb[0].mxu0
        %1749 = vdwg.mxu0
        %vm1750 = vcmask 1046528
        %v1751 = vrot.slane %v420, 1
        %v1752 = vrot.slane %v421, 1
        %v1753 = vsel %vm1750, %v1751, %v1752
        %v1754 = vrot.slane %v422, 1
        %v1755 = vrot.slane %v423, 1
        %v1756 = vsel %vm1750, %v1754, %v1755
        %v1757 = vrot.slane %v424, 1
        %v1758 = vrot.slane %v425, 1
        %v1759 = vsel %vm1750, %v1757, %v1758
        %v1760 = vrot.slane %v426, 1
        %v1761 = vrot.slane %v427, 1
        %v1762 = vsel %vm1750, %v1760, %v1761
        %v1763 = vrot.slane %v428, 1
        %v1764 = vrot.slane %v429, 1
        %v1765 = vsel %vm1750, %v1763, %v1764
        %v1766 = vrot.slane %v430, 1
        %v1767 = vrot.slane %v431, 1
        %v1768 = vsel %vm1750, %v1766, %v1767
        %v1769 = vrot.slane %v432, 1
        %v1770 = vrot.slane %v433, 1
        %v1771 = vsel %vm1750, %v1769, %v1770
        %v1772 = vrot.slane %v434, 1
        %v1773 = vrot.slane %v435, 1
        %v1774 = vsel %vm1750, %v1772, %v1773
        %v1775 = vrot.slane %v436, 1
        %v1776 = vrot.slane %v437, 1
        %v1777 = vsel %vm1750, %v1775, %v1776
        %v1778 = vrot.slane %v438, 1
        %v1779 = vrot.slane %v439, 1
        %v1780 = vsel %vm1750, %v1778, %v1779
        %v1781 = vrot.slane %v440, 1
        %v1782 = vrot.slane %v441, 1
        %v1783 = vsel %vm1750, %v1781, %v1782
        %v1784 = vrot.slane %v442, 1
        %v1785 = vrot.slane %v443, 1
        %v1786 = vsel %vm1750, %v1784, %v1785
        %v1787 = vrot.slane %v444, 1
        %v1788 = vrot.slane %v445, 1
        %v1789 = vsel %vm1750, %v1787, %v1788
        %v1790 = vrot.slane %v446, 1
        %v1791 = vrot.slane %v447, 1
        %v1792 = vsel %vm1750, %v1790, %v1791
        %v1793 = vrot.slane %v448, 1
        %v1794 = vrot.slane %v449, 1
        %v1795 = vsel %vm1750, %v1793, %v1794
        %v1796 = vrot.slane %v450, 1
        %v1797 = vrot.slane %v451, 1
        %v1798 = vsel %vm1750, %v1796, %v1797
        %v1799 = vrot.slane %v474, 1
        %v1800 = vrot.slane %v475, 1
        %v1801 = vsel %vm1750, %v1799, %v1800
        %v1802 = vrot.slane %v483, 1
        %v1803 = vrot.slane %v484, 1
        %v1804 = vsel %vm1750, %v1802, %v1803
        %s1823 = scalar_lea.vmem %s257, 384
        %v1824 = vld [vmem:[%s1823] sm:$0xf]
        %v1825 = vld [vmem:[%s1823 + $0x4] sm:$0xf]
        %v1826 = vld [vmem:[%s1823 + $0x8] sm:$0xf]
        %v1827 = vld [vmem:[%s1823 + $0xc] sm:$0xf]
        %v1828 = vld [vmem:[%s1823 + $0x10] sm:$0xf]
        %v1829 = vld [vmem:[%s1823 + $0x14] sm:$0xf]
        %v1830 = vld [vmem:[%s1823 + $0x18] sm:$0xf]
        %v1831 = vld [vmem:[%s1823 + $0x1c] sm:$0xf]
        %v1832 = vld [vmem:[%s1823 + $0x20] sm:$0xf]
        %v1833 = vld [vmem:[%s1823 + $0x24] sm:$0xf]
        %v1834 = vld [vmem:[%s1823 + $0x28] sm:$0xf]
        %v1835 = vld [vmem:[%s1823 + $0x2c] sm:$0xf]
        %v1836 = vld [vmem:[%s1823 + $0x30] sm:$0xf]
        %v1837 = vld [vmem:[%s1823 + $0x34] sm:$0xf]
        %v1838 = vld [vmem:[%s1823 + $0x38] sm:$0xf]
        %v1839 = vld [vmem:[%s1823 + $0x3c] sm:$0xf]
        %v1840 = vld [vmem:[%s1823 + $0x40] sm:$0xf]
        %v1841 = vld [vmem:[%s1823 + $0x44] sm:$0xf]
        %v1842 = vld [vmem:[%s1823 + $0x48] sm:$0xf]
        %v1843 = vld [vmem:[%s1823 + $0x4c] sm:$0xf]
        %v1844 = vld [vmem:[%s1823 + $0x50] sm:$0xf]
        %v1845 = vld [vmem:[%s1823 + $0x54] sm:$0xf]
        %v1846 = vld [vmem:[%s1823 + $0x58] sm:$0xf]
        %v1847 = vld [vmem:[%s1823 + $0x5c] sm:$0xf]
        %v1848 = vld [vmem:[%s1823 + $0x60] sm:$0xf]
        %v1849 = vld [vmem:[%s1823 + $0x64] sm:$0xf]
        %v1850 = vld [vmem:[%s1823 + $0x68] sm:$0xf]
        %v1851 = vld [vmem:[%s1823 + $0x6c] sm:$0xf]
        %v1852 = vld [vmem:[%s1823 + $0x70] sm:$0xf]
        %v1853 = vld [vmem:[%s1823 + $0x74] sm:$0xf]
        %v1854 = vld [vmem:[%s1823 + $0x78] sm:$0xf]
        %v1855 = vld [vmem:[%s1823 + $0x7c] sm:$0xf]
        %v1856 = vld [vmem:[%s1823 + $0x80] sm:$0xf]
        %v1857 = vld [vmem:[%s1823 + $0x84] sm:$0xf]
        %v1858 = vld [vmem:[%s1823 + $0x88] sm:$0xf]
        %v1859 = vld [vmem:[%s1823 + $0x8c] sm:$0xf]
        %v1860 = vld [vmem:[%s1823 + $0x90] sm:$0xf]
        %v1861 = vld [vmem:[%s1823 + $0x94] sm:$0xf]
        %v1862 = vld [vmem:[%s1823 + $0x98] sm:$0xf]
        %v1863 = vld [vmem:[%s1823 + $0x9c] sm:$0xf]
        %v1864 = vld [vmem:[%s1823 + $0xa0] sm:$0xf]
        %v1865 = vld [vmem:[%s1823 + $0xa4] sm:$0xf]
        %v1866 = vld [vmem:[%s1823 + $0xa8] sm:$0xf]
        %v1867 = vld [vmem:[%s1823 + $0xac] sm:$0xf]
        %v1868 = vld [vmem:[%s1823 + $0xb0] sm:$0xf]
        %v1869 = vld [vmem:[%s1823 + $0xb4] sm:$0xf]
        %v1870 = vld [vmem:[%s1823 + $0xb8] sm:$0xf]
        %v1871 = vld [vmem:[%s1823 + $0xbc] sm:$0xf]
        %v1920 = vunpack.c.l.b16 %v1824
        %v1921 = vunpack.c.l.b16 %v1825
        %v1922 = vunpack.c.l.b16 %v1826
        %v1923 = vunpack.c.l.b16 %v1827
        %v1924 = vunpack.c.l.b16 %v1828
        %v1925 = vunpack.c.l.b16 %v1829
        %v1926 = vunpack.c.l.b16 %v1830
        %v1927 = vunpack.c.l.b16 %v1831
        %v1928 = vunpack.c.l.b16 %v1832
        %v1929 = vunpack.c.l.b16 %v1833
        %v1930 = vunpack.c.l.b16 %v1834
        %v1931 = vunpack.c.l.b16 %v1835
        %v1932 = vunpack.c.l.b16 %v1836
        %v1933 = vunpack.c.l.b16 %v1837
        %v1934 = vunpack.c.l.b16 %v1838
        %v1935 = vunpack.c.l.b16 %v1839
        %v1936 = vunpack.c.l.b16 %v1840
        %v1937 = vunpack.c.l.b16 %v1841
        %v1938 = vunpack.c.l.b16 %v1842
        %v1939 = vunpack.c.l.b16 %v1843
        %v1940 = vunpack.c.l.b16 %v1844
        %v1941 = vunpack.c.l.b16 %v1845
        %v1942 = vunpack.c.l.b16 %v1846
        %v1943 = vunpack.c.l.b16 %v1847
        %v1944 = vunpack.c.l.b16 %v1848
        %v1945 = vunpack.c.l.b16 %v1849
        %v1946 = vunpack.c.l.b16 %v1850
        %v1947 = vunpack.c.l.b16 %v1851
        %v1948 = vunpack.c.l.b16 %v1852
        %v1949 = vunpack.c.l.b16 %v1853
        %v1950 = vunpack.c.l.b16 %v1854
        %v1951 = vunpack.c.l.b16 %v1855
        %v1952 = vunpack.c.l.b16 %v1856
        %v1953 = vunpack.c.l.b16 %v1857
        %v1954 = vunpack.c.l.b16 %v1858
        %v1955 = vunpack.c.l.b16 %v1859
        %v1956 = vunpack.c.l.b16 %v1860
        %v1957 = vunpack.c.l.b16 %v1861
        %v1958 = vunpack.c.l.b16 %v1862
        %v1959 = vunpack.c.l.b16 %v1863
        %v1960 = vunpack.c.l.b16 %v1864
        %v1961 = vunpack.c.l.b16 %v1865
        %v1962 = vunpack.c.l.b16 %v1866
        %v1963 = vunpack.c.l.b16 %v1867
        %v1964 = vunpack.c.l.b16 %v1868
        %v1965 = vunpack.c.l.b16 %v1869
        %v1966 = vunpack.c.l.b16 %v1870
        %v1967 = vunpack.c.l.b16 %v1871
        %v1968 = vpack.c.b16 %v1921, %v1920
        %v1969 = vpack.c.b16 %v1923, %v1922
        %v1970 = vpack.c.b16 %v1925, %v1924
        %v1971 = vpack.c.b16 %v1927, %v1926
        %v1972 = vpack.c.b16 %v1929, %v1928
        %v1973 = vpack.c.b16 %v1931, %v1930
        %v1974 = vpack.c.b16 %v1933, %v1932
        %v1975 = vpack.c.b16 %v1935, %v1934
        %v1976 = vpack.c.b16 %v1937, %v1936
        %v1977 = vpack.c.b16 %v1939, %v1938
        %v1978 = vpack.c.b16 %v1941, %v1940
        %v1979 = vpack.c.b16 %v1943, %v1942
        %v1980 = vpack.c.b16 %v1945, %v1944
        %v1981 = vpack.c.b16 %v1947, %v1946
        %v1982 = vpack.c.b16 %v1949, %v1948
        %v1983 = vpack.c.b16 %v1951, %v1950
        %v1984 = vpack.c.b16 %v1953, %v1952
        %v1985 = vpack.c.b16 %v1955, %v1954
        %v1986 = vpack.c.b16 %v1957, %v1956
        %v1987 = vpack.c.b16 %v1959, %v1958
        %v1988 = vpack.c.b16 %v1961, %v1960
        %v1989 = vpack.c.b16 %v1963, %v1962
        %v1990 = vpack.c.b16 %v1965, %v1964
        %v1991 = vpack.c.b16 %v1967, %v1966
        %2016 = vmatprep.subr.bf16.mxu0 0
        %2017 = vmatpush1.bf16.msra.mxu0 %v1968
        %2018 = vmatprep.subr.bf16.mxu0 0
        %2019 = vmatpush1.bf16.msra.mxu0 %v1969
        %2020 = vmatprep.subr.bf16.mxu0 0
        %2021 = vmatpush1.bf16.msra.mxu0 %v1970
        %2022 = vmatprep.subr.bf16.mxu0 0
        %2023 = vmatpush1.bf16.msra.mxu0 %v1971
        %2024 = vmatprep.subr.bf16.mxu0 0
        %2025 = vmatpush1.bf16.msra.mxu0 %v1972
        %2026 = vmatprep.subr.bf16.mxu0 0
        %2027 = vmatpush1.bf16.msra.mxu0 %v1973
        %2028 = vmatprep.subr.bf16.mxu0 0
        %2029 = vmatpush1.bf16.msra.mxu0 %v1974
        %2030 = vmatprep.subr.bf16.mxu0 0
        %2031 = vmatpush1.bf16.msra.mxu0 %v1975
        %2032 = vmatprep.subr.bf16.mxu0 0
        %2033 = vmatpush1.bf16.msra.mxu0 %v1976
        %2034 = vmatprep.subr.bf16.mxu0 0
        %2035 = vmatpush1.bf16.msra.mxu0 %v1977
        %2036 = vmatprep.subr.bf16.mxu0 0
        %2037 = vmatpush1.bf16.msra.mxu0 %v1978
        %2038 = vmatprep.subr.bf16.mxu0 0
        %2039 = vmatpush1.bf16.msra.mxu0 %v1979
        %2040 = vmatprep.subr.bf16.mxu0 0
        %2041 = vmatpush1.bf16.msra.mxu0 %v1980
        %2042 = vmatprep.subr.bf16.mxu0 0
        %2043 = vmatpush1.bf16.msra.mxu0 %v1981
        %2044 = vmatprep.subr.bf16.mxu0 0
        %2045 = vmatpush1.bf16.msra.mxu0 %v1982
        %2046 = vmatprep.subr.bf16.mxu0 0
        %2047 = vmatpush1.bf16.msra.mxu0 %v1983
        %2048 = vmatprep.mubr.bf16.mxu0 %v1756
        %2049 = vmatmul.mubr.bf16.gmra.mrb[0].mxu0 %v1753
        %v2050 = vpop.f32.mrb[0].mxu0
        %v2051 = vadd.f32 0.0, %v2050
        %v2052 = vpop.f32.mrb[0].mxu0
        %v2053 = vpop.f32.mrb[0].mxu0
        %v2054 = vadd.f32 0.0, %v2053
        %v2055 = vpop.f32.mrb[0].mxu0
        %2056 = vmatprep.mubr.bf16.mxu0 %v1759
        %2057 = vmatmul.mubr.bf16.gmra.mrb[0].mxu0 %v1756
        %v2058 = vpop.f32.mrb[0].mxu0
        %v2059 = vadd.f32 0.0, %v2058
        %v2060 = vpop.f32.mrb[0].mxu0
        %v2061 = vpop.f32.mrb[0].mxu0
        %v2062 = vadd.f32 0.0, %v2061
        %v2063 = vpop.f32.mrb[0].mxu0
        %2064 = vmatprep.mubr.bf16.mxu0 %v1762
        %2065 = vmatmul.mubr.bf16.gmra.mrb[0].mxu0 %v1759
        %v2066 = vpop.f32.mrb[0].mxu0
        %v2067 = vadd.f32 0.0, %v2066
        %v2068 = vpop.f32.mrb[0].mxu0
        %v2069 = vpop.f32.mrb[0].mxu0
        %v2070 = vadd.f32 0.0, %v2069
        %v2071 = vpop.f32.mrb[0].mxu0
        %2072 = vmatprep.mubr.bf16.mxu0 %v1765
        %2073 = vmatmul.mubr.bf16.gmra.mrb[0].mxu0 %v1762
        %v2074 = vpop.f32.mrb[0].mxu0
        %v2075 = vadd.f32 0.0, %v2074
        %v2076 = vpop.f32.mrb[0].mxu0
        %v2077 = vpop.f32.mrb[0].mxu0
        %v2078 = vadd.f32 0.0, %v2077
        %v2079 = vpop.f32.mrb[0].mxu0
        %2080 = vmatprep.mubr.bf16.mxu0 %v1768
        %2081 = vmatmul.mubr.bf16.gmra.mrb[0].mxu0 %v1765
        %v2082 = vpop.f32.mrb[0].mxu0
        %v2083 = vadd.f32 0.0, %v2082
        %v2084 = vpop.f32.mrb[0].mxu0
        %v2085 = vpop.f32.mrb[0].mxu0
        %v2086 = vadd.f32 0.0, %v2085
        %v2087 = vpop.f32.mrb[0].mxu0
        %2088 = vmatprep.mubr.bf16.mxu0 %v1771
        %2089 = vmatmul.mubr.bf16.gmra.mrb[0].mxu0 %v1768
        %v2090 = vpop.f32.mrb[0].mxu0
        %v2091 = vadd.f32 0.0, %v2090
        %v2092 = vpop.f32.mrb[0].mxu0
        %v2093 = vpop.f32.mrb[0].mxu0
        %v2094 = vadd.f32 0.0, %v2093
        %v2095 = vpop.f32.mrb[0].mxu0
        %2096 = vmatprep.mubr.bf16.mxu0 %v1774
        %2097 = vmatmul.mubr.bf16.gmra.mrb[0].mxu0 %v1771
        %v2098 = vpop.f32.mrb[0].mxu0
        %v2099 = vadd.f32 0.0, %v2098
        %v2100 = vpop.f32.mrb[0].mxu0
        %v2101 = vpop.f32.mrb[0].mxu0
        %v2102 = vadd.f32 0.0, %v2101
        %v2103 = vpop.f32.mrb[0].mxu0
        %2104 = vmatprep.mubr.bf16.mxu0 %v1777
        %2105 = vmatmul.mubr.bf16.gmra.mrb[0].mxu0 %v1774
        %v2106 = vpop.f32.mrb[0].mxu0
        %v2107 = vadd.f32 0.0, %v2106
        %v2108 = vpop.f32.mrb[0].mxu0
        %v2109 = vpop.f32.mrb[0].mxu0
        %v2110 = vadd.f32 0.0, %v2109
        %v2111 = vpop.f32.mrb[0].mxu0
        %2112 = vmatprep.mubr.bf16.mxu0 %v1780
        %2113 = vmatmul.mubr.bf16.gmra.mrb[0].mxu0 %v1777
        %v2114 = vpop.f32.mrb[0].mxu0
        %v2115 = vadd.f32 0.0, %v2114
        %v2116 = vpop.f32.mrb[0].mxu0
        %v2117 = vpop.f32.mrb[0].mxu0
        %v2118 = vadd.f32 0.0, %v2117
        %v2119 = vpop.f32.mrb[0].mxu0
        %2120 = vmatprep.mubr.bf16.mxu0 %v1783
        %2121 = vmatmul.mubr.bf16.gmra.mrb[0].mxu0 %v1780
        %v2122 = vpop.f32.mrb[0].mxu0
        %v2123 = vadd.f32 0.0, %v2122
        %v2124 = vpop.f32.mrb[0].mxu0
        %v2125 = vpop.f32.mrb[0].mxu0
        %v2126 = vadd.f32 0.0, %v2125
        %v2127 = vpop.f32.mrb[0].mxu0
        %2128 = vmatprep.mubr.bf16.mxu0 %v1786
        %2129 = vmatmul.mubr.bf16.gmra.mrb[0].mxu0 %v1783
        %v2130 = vpop.f32.mrb[0].mxu0
        %v2131 = vadd.f32 0.0, %v2130
        %v2132 = vpop.f32.mrb[0].mxu0
        %v2133 = vpop.f32.mrb[0].mxu0
        %v2134 = vadd.f32 0.0, %v2133
        %v2135 = vpop.f32.mrb[0].mxu0
        %2136 = vmatprep.mubr.bf16.mxu0 %v1789
        %2137 = vmatmul.mubr.bf16.gmra.mrb[0].mxu0 %v1786
        %v2138 = vpop.f32.mrb[0].mxu0
        %v2139 = vadd.f32 0.0, %v2138
        %v2140 = vpop.f32.mrb[0].mxu0
        %v2141 = vpop.f32.mrb[0].mxu0
        %v2142 = vadd.f32 0.0, %v2141
        %v2143 = vpop.f32.mrb[0].mxu0
        %2144 = vmatprep.mubr.bf16.mxu0 %v1792
        %2145 = vmatmul.mubr.bf16.gmra.mrb[0].mxu0 %v1789
        %v2146 = vpop.f32.mrb[0].mxu0
        %v2147 = vadd.f32 0.0, %v2146
        %v2148 = vpop.f32.mrb[0].mxu0
        %v2149 = vpop.f32.mrb[0].mxu0
        %v2150 = vadd.f32 0.0, %v2149
        %v2151 = vpop.f32.mrb[0].mxu0
        %2152 = vmatprep.mubr.bf16.mxu0 %v1795
        %2153 = vmatmul.mubr.bf16.gmra.mrb[0].mxu0 %v1792
        %v2154 = vpop.f32.mrb[0].mxu0
        %v2155 = vadd.f32 0.0, %v2154
        %v2156 = vpop.f32.mrb[0].mxu0
        %v2157 = vpop.f32.mrb[0].mxu0
        %v2158 = vadd.f32 0.0, %v2157
        %v2159 = vpop.f32.mrb[0].mxu0
        %2160 = vmatprep.mubr.bf16.mxu0 %v1798
        %2161 = vmatmul.mubr.bf16.gmra.mrb[0].mxu0 %v1795
        %v2162 = vpop.f32.mrb[0].mxu0
        %v2163 = vadd.f32 0.0, %v2162
        %v2164 = vpop.f32.mrb[0].mxu0
        %v2165 = vpop.f32.mrb[0].mxu0
        %v2166 = vadd.f32 0.0, %v2165
        %v2167 = vpop.f32.mrb[0].mxu0
        %2168 = vmatprep.mubr.bf16.mxu0 %v1801
        %2169 = vmatmul.mubr.bf16.gmra.mrb[0].mxu0 %v1798
        %v2170 = vpop.f32.mrb[0].mxu0
        %v2171 = vadd.f32 0.0, %v2170
        %v2172 = vpop.f32.mrb[0].mxu0
        %v2173 = vpop.f32.mrb[0].mxu0
        %v2174 = vadd.f32 0.0, %v2173
        %v2175 = vpop.f32.mrb[0].mxu0
        %2176 = vdwg.mxu0
        %2177 = vmatprep.subr.bf16.mxu0 0
        %2178 = vmatpush1.bf16.msra.mxu0 %v1984
        %2179 = vmatprep.subr.bf16.mxu0 0
        %2180 = vmatpush1.bf16.msra.mxu0 %v1985
        %2181 = vmatprep.subr.bf16.mxu0 0
        %2182 = vmatpush1.bf16.msra.mxu0 %v1986
        %2183 = vmatprep.subr.bf16.mxu0 0
        %2184 = vmatpush1.bf16.msra.mxu0 %v1987
        %2185 = vmatprep.subr.bf16.mxu0 0
        %2186 = vmatpush1.bf16.msra.mxu0 %v1988
        %2187 = vmatprep.subr.bf16.mxu0 0
        %2188 = vmatpush1.bf16.msra.mxu0 %v1989
        %2189 = vmatprep.subr.bf16.mxu0 0
        %2190 = vmatpush1.bf16.msra.mxu0 %v1990
        %2191 = vmatprep.subr.bf16.mxu0 0
        %2192 = vmatpush1.bf16.msra.mxu0 %v1991
        %2193 = vmatprep.subr.bf16.mxu0 0
        %2194 = vmatpush1.bf16.msra.mxu0 0
        %2195 = vmatprep.subr.bf16.mxu0 0
        %2196 = vmatpush1.bf16.msra.mxu0 0
        %2197 = vmatprep.subr.bf16.mxu0 0
        %2198 = vmatpush1.bf16.msra.mxu0 0
        %2199 = vmatprep.subr.bf16.mxu0 0
        %2200 = vmatpush1.bf16.msra.mxu0 0
        %2201 = vmatprep.subr.bf16.mxu0 0
        %2202 = vmatpush1.bf16.msra.mxu0 0
        %2203 = vmatprep.subr.bf16.mxu0 0
        %2204 = vmatpush1.bf16.msra.mxu0 0
        %2205 = vmatprep.subr.bf16.mxu0 0
        %2206 = vmatpush1.bf16.msra.mxu0 0
        %2207 = vmatprep.subr.bf16.mxu0 0
        %2208 = vmatpush1.bf16.msra.mxu0 0
        %2209 = vmatprep.mubr.bf16.mxu0 0
        %2210 = vmatmul.mubr.bf16.gmra.mrb[0].mxu0 %v1759
        %v2211 = vpop.f32.mrb[0].mxu0
        %v2212 = vadd.f32 %v2051, %v2211
        %v2213 = vpop.f32.mrb[0].mxu0
        %v2214 = vpop.f32.mrb[0].mxu0
        %v2215 = vadd.f32 %v2054, %v2214
        %v2216 = vpop.f32.mrb[0].mxu0
        %2217 = vmatprep.mubr.bf16.mxu0 0
        %2218 = vmatmul.mubr.bf16.gmra.mrb[0].mxu0 %v1762
        %v2219 = vpop.f32.mrb[0].mxu0
        %v2220 = vadd.f32 %v2059, %v2219
        %v2221 = vpop.f32.mrb[0].mxu0
        %v2222 = vpop.f32.mrb[0].mxu0
        %v2223 = vadd.f32 %v2062, %v2222
        %v2224 = vpop.f32.mrb[0].mxu0
        %2225 = vmatprep.mubr.bf16.mxu0 0
        %2226 = vmatmul.mubr.bf16.gmra.mrb[0].mxu0 %v1765
        %v2227 = vpop.f32.mrb[0].mxu0
        %v2228 = vadd.f32 %v2067, %v2227
        %v2229 = vpop.f32.mrb[0].mxu0
        %v2230 = vpop.f32.mrb[0].mxu0
        %v2231 = vadd.f32 %v2070, %v2230
        %v2232 = vpop.f32.mrb[0].mxu0
        %2233 = vmatprep.mubr.bf16.mxu0 0
        %2234 = vmatmul.mubr.bf16.gmra.mrb[0].mxu0 %v1768
        %v2235 = vpop.f32.mrb[0].mxu0
        %v2236 = vadd.f32 %v2075, %v2235
        %v2237 = vpop.f32.mrb[0].mxu0
        %v2238 = vpop.f32.mrb[0].mxu0
        %v2239 = vadd.f32 %v2078, %v2238
        %v2240 = vpop.f32.mrb[0].mxu0
        %2241 = vmatprep.mubr.bf16.mxu0 0
        %2242 = vmatmul.mubr.bf16.gmra.mrb[0].mxu0 %v1771
        %v2243 = vpop.f32.mrb[0].mxu0
        %v2244 = vadd.f32 %v2083, %v2243
        %v2245 = vpop.f32.mrb[0].mxu0
        %v2246 = vpop.f32.mrb[0].mxu0
        %v2247 = vadd.f32 %v2086, %v2246
        %v2248 = vpop.f32.mrb[0].mxu0
        %2249 = vmatprep.mubr.bf16.mxu0 0
        %2250 = vmatmul.mubr.bf16.gmra.mrb[0].mxu0 %v1774
        %v2251 = vpop.f32.mrb[0].mxu0
        %v2252 = vadd.f32 %v2091, %v2251
        %v2253 = vpop.f32.mrb[0].mxu0
        %v2254 = vpop.f32.mrb[0].mxu0
        %v2255 = vadd.f32 %v2094, %v2254
        %v2256 = vpop.f32.mrb[0].mxu0
        %2257 = vmatprep.mubr.bf16.mxu0 0
        %2258 = vmatmul.mubr.bf16.gmra.mrb[0].mxu0 %v1777
        %v2259 = vpop.f32.mrb[0].mxu0
        %v2260 = vadd.f32 %v2099, %v2259
        %v2261 = vpop.f32.mrb[0].mxu0
        %v2262 = vpop.f32.mrb[0].mxu0
        %v2263 = vadd.f32 %v2102, %v2262
        %v2264 = vpop.f32.mrb[0].mxu0
        %2265 = vmatprep.mubr.bf16.mxu0 0
        %2266 = vmatmul.mubr.bf16.gmra.mrb[0].mxu0 %v1780
        %v2267 = vpop.f32.mrb[0].mxu0
        %v2268 = vadd.f32 %v2107, %v2267
        %v2269 = vpop.f32.mrb[0].mxu0
        %v2270 = vpop.f32.mrb[0].mxu0
        %v2271 = vadd.f32 %v2110, %v2270
        %v2272 = vpop.f32.mrb[0].mxu0
        %2273 = vmatprep.mubr.bf16.mxu0 0
        %2274 = vmatmul.mubr.bf16.gmra.mrb[0].mxu0 %v1783
        %v2275 = vpop.f32.mrb[0].mxu0
        %v2276 = vadd.f32 %v2115, %v2275
        %v2277 = vpop.f32.mrb[0].mxu0
        %v2278 = vpop.f32.mrb[0].mxu0
        %v2279 = vadd.f32 %v2118, %v2278
        %v2280 = vpop.f32.mrb[0].mxu0
        %2281 = vmatprep.mubr.bf16.mxu0 0
        %2282 = vmatmul.mubr.bf16.gmra.mrb[0].mxu0 %v1786
        %v2283 = vpop.f32.mrb[0].mxu0
        %v2284 = vadd.f32 %v2123, %v2283
        %v2285 = vpop.f32.mrb[0].mxu0
        %v2286 = vpop.f32.mrb[0].mxu0
        %v2287 = vadd.f32 %v2126, %v2286
        %v2288 = vpop.f32.mrb[0].mxu0
        %2289 = vmatprep.mubr.bf16.mxu0 0
        %2290 = vmatmul.mubr.bf16.gmra.mrb[0].mxu0 %v1789
        %v2291 = vpop.f32.mrb[0].mxu0
        %v2292 = vadd.f32 %v2131, %v2291
        %v2293 = vpop.f32.mrb[0].mxu0
        %v2294 = vpop.f32.mrb[0].mxu0
        %v2295 = vadd.f32 %v2134, %v2294
        %v2296 = vpop.f32.mrb[0].mxu0
        %2297 = vmatprep.mubr.bf16.mxu0 0
        %2298 = vmatmul.mubr.bf16.gmra.mrb[0].mxu0 %v1792
        %v2299 = vpop.f32.mrb[0].mxu0
        %v2300 = vadd.f32 %v2139, %v2299
        %v2301 = vpop.f32.mrb[0].mxu0
        %v2302 = vpop.f32.mrb[0].mxu0
        %v2303 = vadd.f32 %v2142, %v2302
        %v2304 = vpop.f32.mrb[0].mxu0
        %2305 = vmatprep.mubr.bf16.mxu0 0
        %2306 = vmatmul.mubr.bf16.gmra.mrb[0].mxu0 %v1795
        %v2307 = vpop.f32.mrb[0].mxu0
        %v2308 = vadd.f32 %v2147, %v2307
        %v2309 = vpop.f32.mrb[0].mxu0
        %v2310 = vpop.f32.mrb[0].mxu0
        %v2311 = vadd.f32 %v2150, %v2310
        %v2312 = vpop.f32.mrb[0].mxu0
        %2313 = vmatprep.mubr.bf16.mxu0 0
        %2314 = vmatmul.mubr.bf16.gmra.mrb[0].mxu0 %v1798
        %v2315 = vpop.f32.mrb[0].mxu0
        %v2316 = vadd.f32 %v2155, %v2315
        %v2317 = vpop.f32.mrb[0].mxu0
        %v2318 = vpop.f32.mrb[0].mxu0
        %v2319 = vadd.f32 %v2158, %v2318
        %v2320 = vpop.f32.mrb[0].mxu0
        %2321 = vmatprep.mubr.bf16.mxu0 0
        %2322 = vmatmul.mubr.bf16.gmra.mrb[0].mxu0 %v1801
        %v2323 = vpop.f32.mrb[0].mxu0
        %v2324 = vadd.f32 %v2163, %v2323
        %v2325 = vpop.f32.mrb[0].mxu0
        %v2326 = vpop.f32.mrb[0].mxu0
        %v2327 = vadd.f32 %v2166, %v2326
        %v2328 = vpop.f32.mrb[0].mxu0
        %2329 = vmatprep.mubr.bf16.mxu0 0
        %2330 = vmatmul.mubr.bf16.gmra.mrb[0].mxu0 %v1804
        %v2331 = vpop.f32.mrb[0].mxu0
        %v2332 = vadd.f32 %v2171, %v2331
        %v2333 = vpop.f32.mrb[0].mxu0
        %v2334 = vpop.f32.mrb[0].mxu0
        %v2335 = vadd.f32 %v2174, %v2334
        %v2336 = vpop.f32.mrb[0].mxu0
        %2337 = vdwg.mxu0
        %v2338 = vadd.f32 %v1624, %v2212
        %v2339 = vadd.f32 %v1627, %v2215
        %v2340 = vadd.f32 %v1632, %v2220
        %v2341 = vadd.f32 %v1635, %v2223
        %v2342 = vadd.f32 %v1640, %v2228
        %v2343 = vadd.f32 %v1643, %v2231
        %v2344 = vadd.f32 %v1648, %v2236
        %v2345 = vadd.f32 %v1651, %v2239
        %v2346 = vadd.f32 %v1656, %v2244
        %v2347 = vadd.f32 %v1659, %v2247
        %v2348 = vadd.f32 %v1664, %v2252
        %v2349 = vadd.f32 %v1667, %v2255
        %v2350 = vadd.f32 %v1672, %v2260
        %v2351 = vadd.f32 %v1675, %v2263
        %v2352 = vadd.f32 %v1680, %v2268
        %v2353 = vadd.f32 %v1683, %v2271
        %v2354 = vadd.f32 %v1688, %v2276
        %v2355 = vadd.f32 %v1691, %v2279
        %v2356 = vadd.f32 %v1696, %v2284
        %v2357 = vadd.f32 %v1699, %v2287
        %v2358 = vadd.f32 %v1704, %v2292
        %v2359 = vadd.f32 %v1707, %v2295
        %v2360 = vadd.f32 %v1712, %v2300
        %v2361 = vadd.f32 %v1715, %v2303
        %v2362 = vadd.f32 %v1720, %v2308
        %v2363 = vadd.f32 %v1723, %v2311
        %v2364 = vadd.f32 %v1728, %v2316
        %v2365 = vadd.f32 %v1731, %v2319
        %v2366 = vadd.f32 %v1736, %v2324
        %v2367 = vadd.f32 %v1739, %v2327
        %v2368 = vadd.f32 %v1744, %v2332
        %v2369 = vadd.f32 %v1747, %v2335
        %v2370 = vld [vmem:[%s260] sm:$0x1]
        %v2372 = vlaneseq
        %v2373 = vshrl.u32 %v2372, 7
        %v2374 = vsub.s32 0, %v2373
        %v2375 = vrot.slane %v2370, %v2374
        %v2377 = vmul.f32 %v2338, %v2375
        %v2378 = vmul.f32 %v2339, %v2375
        %v2379 = vmul.f32 %v2340, %v2375
        %v2380 = vmul.f32 %v2341, %v2375
        %v2381 = vmul.f32 %v2342, %v2375
        %v2382 = vmul.f32 %v2343, %v2375
        %v2383 = vmul.f32 %v2344, %v2375
        %v2384 = vmul.f32 %v2345, %v2375
        %v2385 = vmul.f32 %v2346, %v2375
        %v2386 = vmul.f32 %v2347, %v2375
        %v2387 = vmul.f32 %v2348, %v2375
        %v2388 = vmul.f32 %v2349, %v2375
        %v2389 = vmul.f32 %v2350, %v2375
        %v2390 = vmul.f32 %v2351, %v2375
        %v2391 = vmul.f32 %v2352, %v2375
        %v2392 = vmul.f32 %v2353, %v2375
        %v2393 = vmul.f32 %v2354, %v2375
        %v2394 = vmul.f32 %v2355, %v2375
        %v2395 = vmul.f32 %v2356, %v2375
        %v2396 = vmul.f32 %v2357, %v2375
        %v2397 = vmul.f32 %v2358, %v2375
        %v2398 = vmul.f32 %v2359, %v2375
        %v2399 = vmul.f32 %v2360, %v2375
        %v2400 = vmul.f32 %v2361, %v2375
        %v2401 = vmul.f32 %v2362, %v2375
        %v2402 = vmul.f32 %v2363, %v2375
        %v2403 = vmul.f32 %v2364, %v2375
        %v2404 = vmul.f32 %v2365, %v2375
        %v2405 = vmul.f32 %v2366, %v2375
        %v2406 = vmul.f32 %v2367, %v2375
        %v2407 = vmul.f32 %v2368, %v2375
        %v2408 = vmul.f32 %v2369, %v2375
        %v2409 = vld [vmem:[%s263] sm:$0x1]
        %v2411 = vlaneseq
        %v2412 = vshrl.u32 %v2411, 7
        %v2413 = vsub.s32 0, %v2412
        %v2414 = vrot.slane %v2409, %v2413
        %v2416 = vadd.f32 %v2377, %v2414
        %v2417 = vadd.f32 %v2378, %v2414
        %v2418 = vadd.f32 %v2379, %v2414
        %v2419 = vadd.f32 %v2380, %v2414
        %v2420 = vadd.f32 %v2381, %v2414
        %v2421 = vadd.f32 %v2382, %v2414
        %v2422 = vadd.f32 %v2383, %v2414
        %v2423 = vadd.f32 %v2384, %v2414
        %v2424 = vadd.f32 %v2385, %v2414
        %v2425 = vadd.f32 %v2386, %v2414
        %v2426 = vadd.f32 %v2387, %v2414
        %v2427 = vadd.f32 %v2388, %v2414
        %v2428 = vadd.f32 %v2389, %v2414
        %v2429 = vadd.f32 %v2390, %v2414
        %v2430 = vadd.f32 %v2391, %v2414
        %v2431 = vadd.f32 %v2392, %v2414
        %v2432 = vadd.f32 %v2393, %v2414
        %v2433 = vadd.f32 %v2394, %v2414
        %v2434 = vadd.f32 %v2395, %v2414
        %v2435 = vadd.f32 %v2396, %v2414
        %v2436 = vadd.f32 %v2397, %v2414
        %v2437 = vadd.f32 %v2398, %v2414
        %v2438 = vadd.f32 %v2399, %v2414
        %v2439 = vadd.f32 %v2400, %v2414
        %v2440 = vadd.f32 %v2401, %v2414
        %v2441 = vadd.f32 %v2402, %v2414
        %v2442 = vadd.f32 %v2403, %v2414
        %v2443 = vadd.f32 %v2404, %v2414
        %v2444 = vadd.f32 %v2405, %v2414
        %v2445 = vadd.f32 %v2406, %v2414
        %v2446 = vadd.f32 %v2407, %v2414
        %v2447 = vadd.f32 %v2408, %v2414
        %vm2448 = vcmp.gt.f32.partialorder %v2416, 0.0
        %vm2449 = vcmp.gt.f32.partialorder %v2417, 0.0
        %vm2450 = vcmp.gt.f32.partialorder %v2418, 0.0
        %vm2451 = vcmp.gt.f32.partialorder %v2419, 0.0
        %vm2452 = vcmp.gt.f32.partialorder %v2420, 0.0
        %vm2453 = vcmp.gt.f32.partialorder %v2421, 0.0
        %vm2454 = vcmp.gt.f32.partialorder %v2422, 0.0
        %vm2455 = vcmp.gt.f32.partialorder %v2423, 0.0
        %vm2456 = vcmp.gt.f32.partialorder %v2424, 0.0
        %vm2457 = vcmp.gt.f32.partialorder %v2425, 0.0
        %vm2458 = vcmp.gt.f32.partialorder %v2426, 0.0
        %vm2459 = vcmp.gt.f32.partialorder %v2427, 0.0
        %vm2460 = vcmp.gt.f32.partialorder %v2428, 0.0
        %vm2461 = vcmp.gt.f32.partialorder %v2429, 0.0
        %vm2462 = vcmp.gt.f32.partialorder %v2430, 0.0
        %vm2463 = vcmp.gt.f32.partialorder %v2431, 0.0
        %vm2464 = vcmp.gt.f32.partialorder %v2432, 0.0
        %vm2465 = vcmp.gt.f32.partialorder %v2433, 0.0
        %vm2466 = vcmp.gt.f32.partialorder %v2434, 0.0
        %vm2467 = vcmp.gt.f32.partialorder %v2435, 0.0
        %vm2468 = vcmp.gt.f32.partialorder %v2436, 0.0
        %vm2469 = vcmp.gt.f32.partialorder %v2437, 0.0
        %vm2470 = vcmp.gt.f32.partialorder %v2438, 0.0
        %vm2471 = vcmp.gt.f32.partialorder %v2439, 0.0
        %vm2472 = vcmp.gt.f32.partialorder %v2440, 0.0
        %vm2473 = vcmp.gt.f32.partialorder %v2441, 0.0
        %vm2474 = vcmp.gt.f32.partialorder %v2442, 0.0
        %vm2475 = vcmp.gt.f32.partialorder %v2443, 0.0
        %vm2476 = vcmp.gt.f32.partialorder %v2444, 0.0
        %vm2477 = vcmp.gt.f32.partialorder %v2445, 0.0
        %vm2478 = vcmp.gt.f32.partialorder %v2446, 0.0
        %vm2479 = vcmp.gt.f32.partialorder %v2447, 0.0
        %v2480 = vmul.f32 %v2416, 0.1
        %v2481 = vmul.f32 %v2417, 0.1
        %v2482 = vmul.f32 %v2418, 0.1
        %v2483 = vmul.f32 %v2419, 0.1
        %v2484 = vmul.f32 %v2420, 0.1
        %v2485 = vmul.f32 %v2421, 0.1
        %v2486 = vmul.f32 %v2422, 0.1
        %v2487 = vmul.f32 %v2423, 0.1
        %v2488 = vmul.f32 %v2424, 0.1
        %v2489 = vmul.f32 %v2425, 0.1
        %v2490 = vmul.f32 %v2426, 0.1
        %v2491 = vmul.f32 %v2427, 0.1
        %v2492 = vmul.f32 %v2428, 0.1
        %v2493 = vmul.f32 %v2429, 0.1
        %v2494 = vmul.f32 %v2430, 0.1
        %v2495 = vmul.f32 %v2431, 0.1
        %v2496 = vmul.f32 %v2432, 0.1
        %v2497 = vmul.f32 %v2433, 0.1
        %v2498 = vmul.f32 %v2434, 0.1
        %v2499 = vmul.f32 %v2435, 0.1
        %v2500 = vmul.f32 %v2436, 0.1
        %v2501 = vmul.f32 %v2437, 0.1
        %v2502 = vmul.f32 %v2438, 0.1
        %v2503 = vmul.f32 %v2439, 0.1
        %v2504 = vmul.f32 %v2440, 0.1
        %v2505 = vmul.f32 %v2441, 0.1
        %v2506 = vmul.f32 %v2442, 0.1
        %v2507 = vmul.f32 %v2443, 0.1
        %v2508 = vmul.f32 %v2444, 0.1
        %v2509 = vmul.f32 %v2445, 0.1
        %v2510 = vmul.f32 %v2446, 0.1
        %v2511 = vmul.f32 %v2447, 0.1
        %v2512 = vsel %vm2448, %v2416, %v2480
        %v2513 = vsel %vm2449, %v2417, %v2481
        %v2514 = vsel %vm2450, %v2418, %v2482
        %v2515 = vsel %vm2451, %v2419, %v2483
        %v2516 = vsel %vm2452, %v2420, %v2484
        %v2517 = vsel %vm2453, %v2421, %v2485
        %v2518 = vsel %vm2454, %v2422, %v2486
        %v2519 = vsel %vm2455, %v2423, %v2487
        %v2520 = vsel %vm2456, %v2424, %v2488
        %v2521 = vsel %vm2457, %v2425, %v2489
        %v2522 = vsel %vm2458, %v2426, %v2490
        %v2523 = vsel %vm2459, %v2427, %v2491
        %v2524 = vsel %vm2460, %v2428, %v2492
        %v2525 = vsel %vm2461, %v2429, %v2493
        %v2526 = vsel %vm2462, %v2430, %v2494
        %v2527 = vsel %vm2463, %v2431, %v2495
        %v2528 = vsel %vm2464, %v2432, %v2496
        %v2529 = vsel %vm2465, %v2433, %v2497
        %v2530 = vsel %vm2466, %v2434, %v2498
        %v2531 = vsel %vm2467, %v2435, %v2499
        %v2532 = vsel %vm2468, %v2436, %v2500
        %v2533 = vsel %vm2469, %v2437, %v2501
        %v2534 = vsel %vm2470, %v2438, %v2502
        %v2535 = vsel %vm2471, %v2439, %v2503
        %v2536 = vsel %vm2472, %v2440, %v2504
        %v2537 = vsel %vm2473, %v2441, %v2505
        %v2538 = vsel %vm2474, %v2442, %v2506
        %v2539 = vsel %vm2475, %v2443, %v2507
        %v2540 = vsel %vm2476, %v2444, %v2508
        %v2541 = vsel %vm2477, %v2445, %v2509
        %v2542 = vsel %vm2478, %v2446, %v2510
        %v2543 = vsel %vm2479, %v2447, %v2511
        %vm2544 = vcmask 261120
        %2545 = vst.msk [vmem:[%s248] sm:$0xff] %vm2544, %v2512
        %2546 = vst.msk [vmem:[%s248 + $0x8] sm:$0xff] %vm2544, %v2513
        %2547 = vst.msk [vmem:[%s248 + $0x10] sm:$0xff] %vm2544, %v2514
        %2548 = vst.msk [vmem:[%s248 + $0x18] sm:$0xff] %vm2544, %v2515
        %2549 = vst.msk [vmem:[%s248 + $0x20] sm:$0xff] %vm2544, %v2516
        %2550 = vst.msk [vmem:[%s248 + $0x28] sm:$0xff] %vm2544, %v2517
        %2551 = vst.msk [vmem:[%s248 + $0x30] sm:$0xff] %vm2544, %v2518
        %2552 = vst.msk [vmem:[%s248 + $0x38] sm:$0xff] %vm2544, %v2519
        %2553 = vst.msk [vmem:[%s248 + $0x40] sm:$0xff] %vm2544, %v2520
        %2554 = vst.msk [vmem:[%s248 + $0x48] sm:$0xff] %vm2544, %v2521
        %2555 = vst.msk [vmem:[%s248 + $0x50] sm:$0xff] %vm2544, %v2522
        %2556 = vst.msk [vmem:[%s248 + $0x58] sm:$0xff] %vm2544, %v2523
        %2557 = vst.msk [vmem:[%s248 + $0x60] sm:$0xff] %vm2544, %v2524
        %2558 = vst.msk [vmem:[%s248 + $0x68] sm:$0xff] %vm2544, %v2525
        %2559 = vst.msk [vmem:[%s248 + $0x70] sm:$0xff] %vm2544, %v2526
        %2560 = vst.msk [vmem:[%s248 + $0x78] sm:$0xff] %vm2544, %v2527
        %2561 = vst.msk [vmem:[%s248 + $0x80] sm:$0xff] %vm2544, %v2528
        %2562 = vst.msk [vmem:[%s248 + $0x88] sm:$0xff] %vm2544, %v2529
        %2563 = vst.msk [vmem:[%s248 + $0x90] sm:$0xff] %vm2544, %v2530
        %2564 = vst.msk [vmem:[%s248 + $0x98] sm:$0xff] %vm2544, %v2531
        %2565 = vst.msk [vmem:[%s248 + $0xa0] sm:$0xff] %vm2544, %v2532
        %2566 = vst.msk [vmem:[%s248 + $0xa8] sm:$0xff] %vm2544, %v2533
        %2567 = vst.msk [vmem:[%s248 + $0xb0] sm:$0xff] %vm2544, %v2534
        %2568 = vst.msk [vmem:[%s248 + $0xb8] sm:$0xff] %vm2544, %v2535
        %2569 = vst.msk [vmem:[%s248 + $0xc0] sm:$0xff] %vm2544, %v2536
        %2570 = vst.msk [vmem:[%s248 + $0xc8] sm:$0xff] %vm2544, %v2537
        %2571 = vst.msk [vmem:[%s248 + $0xd0] sm:$0xff] %vm2544, %v2538
        %2572 = vst.msk [vmem:[%s248 + $0xd8] sm:$0xff] %vm2544, %v2539
        %2573 = vst.msk [vmem:[%s248 + $0xe0] sm:$0xff] %vm2544, %v2540
        %2574 = vst.msk [vmem:[%s248 + $0xe8] sm:$0xff] %vm2544, %v2541
        %2575 = vst.msk [vmem:[%s248 + $0xf0] sm:$0xff] %vm2544, %v2542
        %2576 = vst.msk [vmem:[%s248 + $0xf8] sm:$0xff] %vm2544, %v2543
        %s2577 = sand.u32 %s153, 1
        %s2578 = scalar_lea.sflag [#allocation3], %s2577
        %s2579 = sand.u32 %s153, 1
        %s2580 = smul.addr %s2579, 256
        %s2581 = scalar_lea.vmem [#allocation2], %s2580
        // Predicated region
        $region37: #{upsample_layer_forward.5} parent=35 // pred_check
          %p2582 = pneg %p163
        $region38: #{upsample_layer_forward.5} parent=35 // pred_check_branch
          %2584 = sbr.rel (%p2582) target = $region40
        $region39: #{upsample_layer_forward.5} parent=35 // pred_region
          %s2585 = smul.u32 16, %s25
          %s2587 = ssub.s32 4096, 4096
          %2588 = vsyncadd %s2578, %s2587
          %s2589 = smul.addr %s2585, 2
          %s2590 = sadd.s32 %s24, %s2589
          %s2591 = smul.addr %s23, 32
          %s2592 = sadd.s32 %s2590, %s2591
          %s2593 = smul.addr %s2592, 128
          %s2594 = scalar_lea.hbm %s4, %s2593
          %s2595 = sshll.u32 %s2581, 4
          %s2596 = int_to_ptr.vmem [resolvable:$true] %s2595
          %2601 = dma.vmem_to_hbm [thread:$0]  %s2596, 4096, %s2594, %s2578, 128, 128, 8
        $region40: #{upsample_layer_forward.5} parent=35 // pred_fallthru
          _
      $region36: #{upsample_layer_forward.5} parent=5 // pred_fallthru
        _
      %p2602 = scmp.le.s32.totalorder 2, %s13
      // Predicated region
      $region41: #{upsample_layer_forward.5} parent=5 // pred_check
        %p2603 = pneg %p2602
      $region42: #{upsample_layer_forward.5} parent=5 // pred_check_branch
        %2605 = sbr.rel (%p2603) target = $region44
      $region43: #{upsample_layer_forward.5} parent=5 // pred_region
        %s2606 = ssub.s32 %s13, 2
        // Predicated region
        $region45: #{upsample_layer_forward.5} parent=43 // pred_check
          %p2607 = pneg %p169
        $region46: #{upsample_layer_forward.5} parent=43 // pred_check_branch
          %2609 = sbr.rel (%p2607) target = $region48
        $region47: #{upsample_layer_forward.5} parent=43 // pred_region
          %s2610 = sand.u32 %s154, 1
          %s2611 = scalar_lea.sflag [#allocation3], %s2610
          %s2612 = sand.u32 %s154, 1
          %s2613 = smul.addr %s2612, 256
          %s2614 = scalar_lea.vmem [#allocation2], %s2613
          %2615 = dma.done %s2611, 4096
        $region48: #{upsample_layer_forward.5} parent=43 // pred_fallthru
          _
      $region44: #{upsample_layer_forward.5} parent=5 // pred_fallthru
        _
    $region6: #{upsample_layer_forward.5} parent=1 // loop_footer
      %s17 = sadd.s32 1, %s13
    $region7: #{upsample_layer_forward.5} parent=1 // loop_footer_branch
      %12 = sbr.rel target = $region3
    $region8: #{upsample_layer_forward.5} parent=1 // loop_exit
      _
    %2616 = vsyncpa [#allocation3], 1
    %s2617 = scalar_lea.sflag [#allocation3], 1
    %2618 = vsyncpa %s2617, 1

// kernel: upsample_layer_forward.3
$region0: #{upsample_layer_forward.3}
  #allocation0 [shape = 'u32[]', space=smem, size = 0x4, offset = 0x4, fixed_abs, tag = 'smem constant byte address 0x4 - core index']
  #allocation1 [shape = 'u32[144,128]{1,0:T(1,128)}', space=vmem, size = 0x12000, scoped, tag = 'internal scratch']
  %s0 = inlined_call_operand.vmem [shape: bf16[2,18,18,32], index: 0, kind: input, shape index: {}]
  %s1 = inlined_call_operand.vmem [shape: bf16[2,10,18,64], index: 1, kind: input, shape index: {}]
  %s2 = inlined_call_operand.vmem [shape: bf16[3,96,128], index: 2, kind: input, shape index: {}]
  %s3 = inlined_call_operand.vmem [shape: bf16[3,192,128], index: 3, kind: input, shape index: {}]
  %s4 = inlined_call_operand.vmem [shape: f32[1,128], index: 4, kind: input, shape index: {}]
  %s5 = inlined_call_operand.vmem [shape: f32[1,128], index: 5, kind: input, shape index: {}]
  %s6 = inlined_call_operand.vmem [shape: bf16[2,16,16,128], index: 6, kind: output, shape index: {}]
  %s7 = sld [smem:[#allocation0]]
  $region57: #{upsample_layer_forward.3} parent=0
    _
  %s9 = ssub.s32 1, %s7
  %s10 = scalar_select 0, %s9, %s7
  loop: start=0, step=1, limit=4
  $region2: #{upsample_layer_forward.3} parent=0 // loop_pre_header
    _
  $region3: #{upsample_layer_forward.3} parent=0 // loop_header
    %s12 = sphi 0, %s16
    %p13 = scmp.ge.s32.totalorder %s12, 4
    %s19 = sphi 0, %s38
    %s20 = sphi 0, %s34
    %s21 = sphi 0, %s30
    %s22 = sphi 0, %s19
    %s23 = sphi 0, %s20
    %s24 = sphi 0, %s21
    %s25 = sphi 0, %s22
    %s26 = sphi 0, %s23
    %s27 = sphi 0, %s24
    %s41 = sphi 0, %s43
    %s44 = sphi 0, %s41
    %s45 = sphi 0, %s44
    %s61 = sphi 0, %s45
    %s67 = sphi 0, %s69
    %s70 = sphi 0, %s67
    %s71 = sphi 0, %s70
    %s87 = sphi 0, %s71
    %s93 = sphi 0, %s95
    %s96 = sphi 0, %s93
    %s97 = sphi 0, %s96
    %s113 = sphi 0, %s97
    %s119 = sphi 0, %s121
    %s122 = sphi 0, %s119
    %s123 = sphi 0, %s122
    %s139 = sphi 0, %s123
    %s145 = sphi 0, %s147
    %s148 = sphi 0, %s145
    %s149 = sphi 0, %s148
    %s165 = sphi 0, %s149
    %s171 = sphi 0, %s173
    %s174 = sphi 0, %s171
    %s175 = sphi 0, %s174
    %s191 = sphi 0, %s175
    %s201 = sphi 0, %s203
    %s204 = sphi 0, %s201
    %s205 = sphi 0, %s204
    %s221 = sphi 0, %s205
  $region4: #{upsample_layer_forward.3} parent=0 // loop_header_branch
    %15 = sbr.rel (%p13) target = $region8
  $region5: #{upsample_layer_forward.3} parent=0 // loop_body
    %s17 = ssub.s32 %s12, 1
    %s18 = ssub.s32 %s12, 2
    %s28 = sadd.s32 1, %s21
    %p29 = scmp.ge.s32.totalorder %s28, 1
    %s30 = scalar_select %p29, 0, %s28
    %s31 = sadd.s32 1, %s20
    %s32 = scalar_select %p29, %s31, %s20
    %p33 = scmp.ge.s32.totalorder %s32, 1
    %s34 = scalar_select %p33, 0, %s32
    %s35 = sadd.s32 1, %s19
    %s36 = scalar_select %p33, %s35, %s19
    %p37 = scmp.ge.s32.totalorder %s36, 2
    %s38 = scalar_select %p37, 0, %s36
    %s39 = ssub.s32 %s19, %s38
    %p40 = scmp.eq.s32.totalorder %s39, 0
    %s42 = sadd.s32 %s41, 1
    %s43 = scalar_select %p40, %s41, %s42
    %p46 = pneg %p40
    %p47 = scmp.eq.s32.totalorder %s12, 1
    %p48 = por %p46, %p47
    %p49 = scmp.ne.s32.totalorder %s41, %s44
    %p50 = scmp.eq.s32.totalorder %s12, 0
    %p51 = por %p49, %p50
    %p52 = scmp.ne.s32.totalorder %s41, %s44
    %p53 = scmp.eq.s32.totalorder %s17, 1
    %p54 = por %p52, %p53
    %p55 = scmp.ne.s32.totalorder %s44, %s45
    %p56 = scmp.eq.s32.totalorder %s17, 0
    %p57 = por %p55, %p56
    %p58 = scmp.ne.s32.totalorder %s44, %s45
    %p59 = scmp.eq.s32.totalorder %s18, 1
    %p60 = por %p58, %p59
    %p62 = scmp.ne.s32.totalorder %s45, %s61
    %p63 = scmp.eq.s32.totalorder %s18, 0
    %p64 = por %p62, %p63
    %s65 = ssub.s32 %s19, %s38
    %p66 = scmp.eq.s32.totalorder %s65, 0
    %s68 = sadd.s32 %s67, 1
    %s69 = scalar_select %p66, %s67, %s68
    %p72 = pneg %p66
    %p73 = scmp.eq.s32.totalorder %s12, 1
    %p74 = por %p72, %p73
    %p75 = scmp.ne.s32.totalorder %s67, %s70
    %p76 = scmp.eq.s32.totalorder %s12, 0
    %p77 = por %p75, %p76
    %p78 = scmp.ne.s32.totalorder %s67, %s70
    %p79 = scmp.eq.s32.totalorder %s17, 1
    %p80 = por %p78, %p79
    %p81 = scmp.ne.s32.totalorder %s70, %s71
    %p82 = scmp.eq.s32.totalorder %s17, 0
    %p83 = por %p81, %p82
    %p84 = scmp.ne.s32.totalorder %s70, %s71
    %p85 = scmp.eq.s32.totalorder %s18, 1
    %p86 = por %p84, %p85
    %p88 = scmp.ne.s32.totalorder %s71, %s87
    %p89 = scmp.eq.s32.totalorder %s18, 0
    %p90 = por %p88, %p89
    %s91 = ssub.s32 %s20, %s34
    %p92 = scmp.eq.s32.totalorder %s91, 0
    %s94 = sadd.s32 %s93, 1
    %s95 = scalar_select %p92, %s93, %s94
    %p98 = pneg %p92
    %p99 = scmp.eq.s32.totalorder %s12, 1
    %p100 = por %p98, %p99
    %p101 = scmp.ne.s32.totalorder %s93, %s96
    %p102 = scmp.eq.s32.totalorder %s12, 0
    %p103 = por %p101, %p102
    %p104 = scmp.ne.s32.totalorder %s93, %s96
    %p105 = scmp.eq.s32.totalorder %s17, 1
    %p106 = por %p104, %p105
    %p107 = scmp.ne.s32.totalorder %s96, %s97
    %p108 = scmp.eq.s32.totalorder %s17, 0
    %p109 = por %p107, %p108
    %p110 = scmp.ne.s32.totalorder %s96, %s97
    %p111 = scmp.eq.s32.totalorder %s18, 1
    %p112 = por %p110, %p111
    %p114 = scmp.ne.s32.totalorder %s97, %s113
    %p115 = scmp.eq.s32.totalorder %s18, 0
    %p116 = por %p114, %p115
    %s117 = ssub.s32 %s20, %s34
    %p118 = scmp.eq.s32.totalorder %s117, 0
    %s120 = sadd.s32 %s119, 1
    %s121 = scalar_select %p118, %s119, %s120
    %p124 = pneg %p118
    %p125 = scmp.eq.s32.totalorder %s12, 1
    %p126 = por %p124, %p125
    %p127 = scmp.ne.s32.totalorder %s119, %s122
    %p128 = scmp.eq.s32.totalorder %s12, 0
    %p129 = por %p127, %p128
    %p130 = scmp.ne.s32.totalorder %s119, %s122
    %p131 = scmp.eq.s32.totalorder %s17, 1
    %p132 = por %p130, %p131
    %p133 = scmp.ne.s32.totalorder %s122, %s123
    %p134 = scmp.eq.s32.totalorder %s17, 0
    %p135 = por %p133, %p134
    %p136 = scmp.ne.s32.totalorder %s122, %s123
    %p137 = scmp.eq.s32.totalorder %s18, 1
    %p138 = por %p136, %p137
    %p140 = scmp.ne.s32.totalorder %s123, %s139
    %p141 = scmp.eq.s32.totalorder %s18, 0
    %p142 = por %p140, %p141
    %s143 = ssub.s32 %s20, %s34
    %p144 = scmp.eq.s32.totalorder %s143, 0
    %s146 = sadd.s32 %s145, 1
    %s147 = scalar_select %p144, %s145, %s146
    %p150 = pneg %p144
    %p151 = scmp.eq.s32.totalorder %s12, 1
    %p152 = por %p150, %p151
    %p153 = scmp.ne.s32.totalorder %s145, %s148
    %p154 = scmp.eq.s32.totalorder %s12, 0
    %p155 = por %p153, %p154
    %p156 = scmp.ne.s32.totalorder %s145, %s148
    %p157 = scmp.eq.s32.totalorder %s17, 1
    %p158 = por %p156, %p157
    %p159 = scmp.ne.s32.totalorder %s148, %s149
    %p160 = scmp.eq.s32.totalorder %s17, 0
    %p161 = por %p159, %p160
    %p162 = scmp.ne.s32.totalorder %s148, %s149
    %p163 = scmp.eq.s32.totalorder %s18, 1
    %p164 = por %p162, %p163
    %p166 = scmp.ne.s32.totalorder %s149, %s165
    %p167 = scmp.eq.s32.totalorder %s18, 0
    %p168 = por %p166, %p167
    %s169 = ssub.s32 %s20, %s34
    %p170 = scmp.eq.s32.totalorder %s169, 0
    %s172 = sadd.s32 %s171, 1
    %s173 = scalar_select %p170, %s171, %s172
    %p176 = pneg %p170
    %p177 = scmp.eq.s32.totalorder %s12, 1
    %p178 = por %p176, %p177
    %p179 = scmp.ne.s32.totalorder %s171, %s174
    %p180 = scmp.eq.s32.totalorder %s12, 0
    %p181 = por %p179, %p180
    %p182 = scmp.ne.s32.totalorder %s171, %s174
    %p183 = scmp.eq.s32.totalorder %s17, 1
    %p184 = por %p182, %p183
    %p185 = scmp.ne.s32.totalorder %s174, %s175
    %p186 = scmp.eq.s32.totalorder %s17, 0
    %p187 = por %p185, %p186
    %p188 = scmp.ne.s32.totalorder %s174, %s175
    %p189 = scmp.eq.s32.totalorder %s18, 1
    %p190 = por %p188, %p189
    %p192 = scmp.ne.s32.totalorder %s175, %s191
    %p193 = scmp.eq.s32.totalorder %s18, 0
    %p194 = por %p192, %p193
    %s195 = ssub.s32 %s19, %s38
    %s196 = ssub.s32 %s21, %s30
    %s197 = sor.u32 %s195, %s196
    %s198 = ssub.s32 %s20, %s34
    %s199 = sor.u32 %s197, %s198
    %p200 = scmp.eq.s32.totalorder %s199, 0
    %s202 = sadd.s32 %s201, 1
    %s203 = scalar_select %p200, %s201, %s202
    %p206 = pneg %p200
    %p207 = scmp.eq.s32.totalorder %s12, 1
    %p208 = por %p206, %p207
    %p209 = scmp.ne.s32.totalorder %s201, %s204
    %p210 = scmp.eq.s32.totalorder %s12, 0
    %p211 = por %p209, %p210
    %p212 = scmp.ne.s32.totalorder %s201, %s204
    %p213 = scmp.eq.s32.totalorder %s17, 1
    %p214 = por %p212, %p213
    %p215 = scmp.ne.s32.totalorder %s204, %s205
    %p216 = scmp.eq.s32.totalorder %s17, 0
    %p217 = por %p215, %p216
    %p218 = scmp.ne.s32.totalorder %s204, %s205
    %p219 = scmp.eq.s32.totalorder %s18, 1
    %p220 = por %p218, %p219
    %p222 = scmp.ne.s32.totalorder %s205, %s221
    %p223 = scmp.eq.s32.totalorder %s18, 0
    %p224 = por %p222, %p223
    %p225 = scmp.le.s32.totalorder 1, %s12
    %p226 = scmp.lt.s32.totalorder %s12, 3
    %p227 = pnand %p225, %p226
    %p228 = pneg %p227
    // Predicated region
    $region9: #{upsample_layer_forward.3} parent=5 // pred_check
      _
    $region10: #{upsample_layer_forward.3} parent=5 // pred_check_branch
      %230 = sbr.rel (%p227) target = $region12
    $region11: #{upsample_layer_forward.3} parent=5 // pred_region
      %s231 = ssub.s32 %s12, 1
      // Predicated region
      $region13: #{upsample_layer_forward.3} parent=11 // pred_check
        %p232 = pneg %p109
      $region14: #{upsample_layer_forward.3} parent=11 // pred_check_branch
        %234 = sbr.rel (%p232) target = $region16
      $region15: #{upsample_layer_forward.3} parent=11 // pred_region
        %p235 = scmp.lt.s32.totalorder %s23, 0
        %s236 = scalar_select %p235, %s23, 0
        %s237 = smul.addr %s236, 4
        %s238 = scalar_lea.vmem %s2, %s237
      $region16: #{upsample_layer_forward.3} parent=11 // pred_fallthru
        _
      // Predicated region
      $region17: #{upsample_layer_forward.3} parent=11 // pred_check
        %p239 = pneg %p135
      $region18: #{upsample_layer_forward.3} parent=11 // pred_check_branch
        %241 = sbr.rel (%p239) target = $region20
      $region19: #{upsample_layer_forward.3} parent=11 // pred_region
        %p242 = scmp.lt.s32.totalorder %s23, 0
        %s243 = scalar_select %p242, %s23, 0
        %s244 = smul.addr %s243, 4
        %s245 = scalar_lea.vmem %s3, %s244
      $region20: #{upsample_layer_forward.3} parent=11 // pred_fallthru
        _
      // Predicated region
      $region21: #{upsample_layer_forward.3} parent=11 // pred_check
        %p246 = pneg %p161
      $region22: #{upsample_layer_forward.3} parent=11 // pred_check_branch
        %248 = sbr.rel (%p246) target = $region24
      $region23: #{upsample_layer_forward.3} parent=11 // pred_region
        %p249 = scmp.lt.s32.totalorder %s23, 0
        %s250 = scalar_select %p249, %s23, 0
        %s251 = scalar_lea.vmem %s4, %s250
      $region24: #{upsample_layer_forward.3} parent=11 // pred_fallthru
        _
      // Predicated region
      $region25: #{upsample_layer_forward.3} parent=11 // pred_check
        %p252 = pneg %p187
      $region26: #{upsample_layer_forward.3} parent=11 // pred_check_branch
        %254 = sbr.rel (%p252) target = $region28
      $region27: #{upsample_layer_forward.3} parent=11 // pred_region
        %p255 = scmp.lt.s32.totalorder %s23, 0
        %s256 = scalar_select %p255, %s23, 0
        %s257 = scalar_lea.vmem %s5, %s256
      $region28: #{upsample_layer_forward.3} parent=11 // pred_fallthru
        _
    $region12: #{upsample_layer_forward.3} parent=5 // pred_fallthru
      _
    %p258 = scmp.lt.s32.totalorder %s12, 2
    // Predicated region
    $region29: #{upsample_layer_forward.3} parent=5 // pred_check
      %p259 = pneg %p258
    $region30: #{upsample_layer_forward.3} parent=5 // pred_check_branch
      %261 = sbr.rel (%p259) target = $region32
    $region31: #{upsample_layer_forward.3} parent=5 // pred_region
      // Predicated region
      $region33: #{upsample_layer_forward.3} parent=31 // pred_check
        %p262 = pneg %p51
      $region34: #{upsample_layer_forward.3} parent=31 // pred_check_branch
        %264 = sbr.rel (%p262) target = $region36
      $region35: #{upsample_layer_forward.3} parent=31 // pred_region
        %p265 = scmp.lt.s32.totalorder %s19, 1
        %s266 = scalar_select %p265, %s19, 1
        %s267 = smul.addr %s266, 54
        %s268 = smul.addr %s267, 4
        %s269 = scalar_lea.vmem %s0, %s268
      $region36: #{upsample_layer_forward.3} parent=31 // pred_fallthru
        _
      // Predicated region
      $region37: #{upsample_layer_forward.3} parent=31 // pred_check
        %p270 = pneg %p77
      $region38: #{upsample_layer_forward.3} parent=31 // pred_check_branch
        %272 = sbr.rel (%p270) target = $region40
      $region39: #{upsample_layer_forward.3} parent=31 // pred_region
        %p273 = scmp.lt.s32.totalorder %s19, 1
        %s274 = scalar_select %p273, %s19, 1
        %s275 = smul.addr %s274, 30
        %s276 = smul.addr %s275, 4
        %s277 = scalar_lea.vmem %s1, %s276
      $region40: #{upsample_layer_forward.3} parent=31 // pred_fallthru
        _
    $region32: #{upsample_layer_forward.3} parent=5 // pred_fallthru
      _
    %p278 = scmp.le.s32.totalorder 1, %s12
    %p279 = scmp.lt.s32.totalorder %s12, 3
    %p280 = pnand %p278, %p279
    %p281 = pneg %p280
    // Predicated region
    $region41: #{upsample_layer_forward.3} parent=5 // pred_check
      _
    $region42: #{upsample_layer_forward.3} parent=5 // pred_check_branch
      %283 = sbr.rel (%p280) target = $region44
    $region43: #{upsample_layer_forward.3} parent=5 // pred_region
      %s284 = ssub.s32 %s12, 1
      %p285 = scmp.lt.s32.totalorder %s22, 1
      %s286 = scalar_select %p285, %s22, 1
      %s287 = smul.addr %s286, 54
      %s288 = smul.addr %s287, 4
      %s289 = scalar_lea.vmem %s0, %s288
      %p290 = pneg %p57
      %p291 = pneg %p54
      %p292 = scmp.lt.s32.totalorder %s22, 1
      %s293 = scalar_select %p292, %s22, 1
      %s294 = smul.addr %s293, 30
      %s295 = smul.addr %s294, 4
      %s296 = scalar_lea.vmem %s1, %s295
      %p297 = pneg %p83
      %p298 = pneg %p80
      %p299 = scmp.lt.s32.totalorder %s23, 0
      %s300 = scalar_select %p299, %s23, 0
      %s301 = smul.addr %s300, 4
      %s302 = scalar_lea.vmem %s2, %s301
      %p303 = pneg %p109
      %p304 = pneg %p106
      %p305 = scmp.lt.s32.totalorder %s23, 0
      %s306 = scalar_select %p305, %s23, 0
      %s307 = smul.addr %s306, 4
      %s308 = scalar_lea.vmem %s3, %s307
      %p309 = pneg %p135
      %p310 = pneg %p132
      %p311 = scmp.lt.s32.totalorder %s23, 0
      %s312 = scalar_select %p311, %s23, 0
      %s313 = scalar_lea.vmem %s4, %s312
      %p314 = pneg %p161
      %p315 = pneg %p158
      %p316 = scmp.lt.s32.totalorder %s23, 0
      %s317 = scalar_select %p316, %s23, 0
      %s318 = scalar_lea.vmem %s5, %s317
      %p319 = pneg %p187
      %p320 = pneg %p184
      %p321 = pneg %p217
      %p322 = pneg %p214
      %s323 = smul.u32 16, %s24
      %p324 = scmp.lt.s32.totalorder %s22, 1
      %s325 = scalar_select %p324, %s22, 1
      %p326 = scmp.lt.s32.totalorder %s323, 15
      %s327 = scalar_select %p326, %s323, 15
      %p328 = scmp.lt.s32.totalorder %s23, 0
      %s329 = scalar_select %p328, %s23, 0
      %s330 = smul.addr %s327, 2
      %s331 = sadd.s32 %s329, %s330
      %s332 = smul.addr %s325, 32
      %s333 = sadd.s32 %s331, %s332
      %s334 = smul.addr %s333, 4
      %s335 = scalar_lea.vmem %s6, %s334
      %p336 = scmp.lt.s32.totalorder %s22, 1
      %s337 = scalar_select %p336, %s22, 1
      %s338 = smul.addr %s337, 54
      %s339 = smul.addr %s338, 4
      %s340 = scalar_lea.vmem %s0, %s339
      %p341 = scmp.lt.s32.totalorder %s22, 1
      %s342 = scalar_select %p341, %s22, 1
      %s343 = smul.addr %s342, 30
      %s344 = smul.addr %s343, 4
      %s345 = scalar_lea.vmem %s1, %s344
      %p346 = scmp.lt.s32.totalorder %s23, 0
      %s347 = scalar_select %p346, %s23, 0
      %s348 = smul.addr %s347, 4
      %s349 = scalar_lea.vmem %s2, %s348
      %p350 = scmp.lt.s32.totalorder %s23, 0
      %s351 = scalar_select %p350, %s23, 0
      %s352 = smul.addr %s351, 4
      %s353 = scalar_lea.vmem %s3, %s352
      %p354 = scmp.lt.s32.totalorder %s23, 0
      %s355 = scalar_select %p354, %s23, 0
      %s356 = scalar_lea.vmem %s4, %s355
      %p357 = scmp.lt.s32.totalorder %s23, 0
      %s358 = scalar_select %p357, %s23, 0
      %s359 = scalar_lea.vmem %s5, %s358
      %s360 = smul.u32 16, %s24
      %p361 = scmp.lt.s32.totalorder %s22, 1
      %s362 = scalar_select %p361, %s22, 1
      %p363 = scmp.lt.s32.totalorder %s360, 15
      %s364 = scalar_select %p363, %s360, 15
      %p365 = scmp.lt.s32.totalorder %s23, 0
      %s366 = scalar_select %p365, %s23, 0
      %s367 = smul.addr %s364, 2
      %s368 = sadd.s32 %s366, %s367
      %s369 = smul.addr %s362, 32
      %s370 = sadd.s32 %s368, %s369
      %s371 = smul.addr %s370, 4
      %s372 = scalar_lea.vmem %s6, %s371
      %s373 = smul.u32 16, %s24
      %s375 = smul.u32 %s24, 16
      %s376 = smul.u32 %s375, 3
      %s377 = smul.addr %s376, 4
      %s378 = scalar_lea.vmem %s340, %s377
      %v379 = vld [vmem:[%s378] sm:$0xf]
      %v380 = vld [vmem:[%s378 + $0x4] sm:$0xf]
      %v381 = vld [vmem:[%s378 + $0x8] sm:$0x1]
      %v382 = vld [vmem:[%s378 + $0xc] sm:$0xf]
      %v383 = vld [vmem:[%s378 + $0x10] sm:$0xf]
      %v384 = vld [vmem:[%s378 + $0x14] sm:$0x1]
      %v385 = vld [vmem:[%s378 + $0x18] sm:$0xf]
      %v386 = vld [vmem:[%s378 + $0x1c] sm:$0xf]
      %v387 = vld [vmem:[%s378 + $0x20] sm:$0x1]
      %v388 = vld [vmem:[%s378 + $0x24] sm:$0xf]
      %v389 = vld [vmem:[%s378 + $0x28] sm:$0xf]
      %v390 = vld [vmem:[%s378 + $0x2c] sm:$0x1]
      %v391 = vld [vmem:[%s378 + $0x30] sm:$0xf]
      %v392 = vld [vmem:[%s378 + $0x34] sm:$0xf]
      %v393 = vld [vmem:[%s378 + $0x38] sm:$0x1]
      %v394 = vld [vmem:[%s378 + $0x3c] sm:$0xf]
      %v395 = vld [vmem:[%s378 + $0x40] sm:$0xf]
      %v396 = vld [vmem:[%s378 + $0x44] sm:$0x1]
      %v397 = vld [vmem:[%s378 + $0x48] sm:$0xf]
      %v398 = vld [vmem:[%s378 + $0x4c] sm:$0xf]
      %v399 = vld [vmem:[%s378 + $0x50] sm:$0x1]
      %v400 = vld [vmem:[%s378 + $0x54] sm:$0xf]
      %v401 = vld [vmem:[%s378 + $0x58] sm:$0xf]
      %v402 = vld [vmem:[%s378 + $0x5c] sm:$0x1]
      %v403 = vld [vmem:[%s378 + $0x60] sm:$0xf]
      %v404 = vld [vmem:[%s378 + $0x64] sm:$0xf]
      %v405 = vld [vmem:[%s378 + $0x68] sm:$0x1]
      %v406 = vld [vmem:[%s378 + $0x6c] sm:$0xf]
      %v407 = vld [vmem:[%s378 + $0x70] sm:$0xf]
      %v408 = vld [vmem:[%s378 + $0x74] sm:$0x1]
      %v409 = vld [vmem:[%s378 + $0x78] sm:$0xf]
      %v410 = vld [vmem:[%s378 + $0x7c] sm:$0xf]
      %v411 = vld [vmem:[%s378 + $0x80] sm:$0x1]
      %v412 = vld [vmem:[%s378 + $0x84] sm:$0xf]
      %v413 = vld [vmem:[%s378 + $0x88] sm:$0xf]
      %v414 = vld [vmem:[%s378 + $0x8c] sm:$0x1]
      %v415 = vld [vmem:[%s378 + $0x90] sm:$0xf]
      %v416 = vld [vmem:[%s378 + $0x94] sm:$0xf]
      %v417 = vld [vmem:[%s378 + $0x98] sm:$0x1]
      %v418 = vld [vmem:[%s378 + $0x9c] sm:$0xf]
      %v419 = vld [vmem:[%s378 + $0xa0] sm:$0xf]
      %v420 = vld [vmem:[%s378 + $0xa4] sm:$0x1]
      %v421 = vld [vmem:[%s378 + $0xa8] sm:$0xf]
      %v422 = vld [vmem:[%s378 + $0xac] sm:$0xf]
      %v423 = vld [vmem:[%s378 + $0xb0] sm:$0x1]
      %v424 = vld [vmem:[%s378 + $0xb4] sm:$0xf]
      %v425 = vld [vmem:[%s378 + $0xb8] sm:$0xf]
      %v426 = vld [vmem:[%s378 + $0xbc] sm:$0x1]
      %v427 = vld [vmem:[%s378 + $0xc0] sm:$0xf]
      %v428 = vld [vmem:[%s378 + $0xc4] sm:$0xf]
      %v429 = vld [vmem:[%s378 + $0xc8] sm:$0x1]
      %v430 = vld [vmem:[%s378 + $0xcc] sm:$0xf]
      %v431 = vld [vmem:[%s378 + $0xd0] sm:$0xf]
      %v432 = vld [vmem:[%s378 + $0xd4] sm:$0x1]
      %s433 = smul.u32 %s24, 8
      %s434 = smul.u32 %s433, 3
      %s435 = smul.addr %s434, 4
      %s436 = scalar_lea.vmem %s345, %s435
      %v437 = vld [vmem:[%s436] sm:$0xf]
      %v438 = vld [vmem:[%s436 + $0x4] sm:$0xf]
      %v439 = vld [vmem:[%s436 + $0x8] sm:$0x1]
      %v440 = vld [vmem:[%s436 + $0xc] sm:$0xf]
      %v441 = vld [vmem:[%s436 + $0x10] sm:$0xf]
      %v442 = vld [vmem:[%s436 + $0x14] sm:$0x1]
      %v443 = vld [vmem:[%s436 + $0x18] sm:$0xf]
      %v444 = vld [vmem:[%s436 + $0x1c] sm:$0xf]
      %v445 = vld [vmem:[%s436 + $0x20] sm:$0x1]
      %v446 = vld [vmem:[%s436 + $0x24] sm:$0xf]
      %v447 = vld [vmem:[%s436 + $0x28] sm:$0xf]
      %v448 = vld [vmem:[%s436 + $0x2c] sm:$0x1]
      %v449 = vld [vmem:[%s436 + $0x30] sm:$0xf]
      %v450 = vld [vmem:[%s436 + $0x34] sm:$0xf]
      %v451 = vld [vmem:[%s436 + $0x38] sm:$0x1]
      %v452 = vld [vmem:[%s436 + $0x3c] sm:$0xf]
      %v453 = vld [vmem:[%s436 + $0x40] sm:$0xf]
      %v454 = vld [vmem:[%s436 + $0x44] sm:$0x1]
      %v455 = vld [vmem:[%s436 + $0x48] sm:$0xf]
      %v456 = vld [vmem:[%s436 + $0x4c] sm:$0xf]
      %v457 = vld [vmem:[%s436 + $0x50] sm:$0x1]
      %v458 = vld [vmem:[%s436 + $0x54] sm:$0xf]
      %v459 = vld [vmem:[%s436 + $0x58] sm:$0xf]
      %v460 = vld [vmem:[%s436 + $0x5c] sm:$0x1]
      %v461 = vld [vmem:[%s436 + $0x60] sm:$0xf]
      %v462 = vld [vmem:[%s436 + $0x64] sm:$0xf]
      %v463 = vld [vmem:[%s436 + $0x68] sm:$0x1]
      %v464 = vld [vmem:[%s436 + $0x6c] sm:$0xf]
      %v465 = vld [vmem:[%s436 + $0x70] sm:$0xf]
      %v466 = vld [vmem:[%s436 + $0x74] sm:$0x1]
      %v515 = vunpack.c.l.b16 %v379
      %v516 = vunpack.c.l.b16 %v380
      %v517 = vunpack.c.l.b16 %v381
      %v518 = vunpack.c.l.b16 %v382
      %v519 = vunpack.c.l.b16 %v383
      %v520 = vunpack.c.l.b16 %v384
      %v521 = vunpack.c.l.b16 %v385
      %v522 = vunpack.c.l.b16 %v386
      %v523 = vunpack.c.l.b16 %v387
      %v524 = vunpack.c.l.b16 %v388
      %v525 = vunpack.c.l.b16 %v389
      %v526 = vunpack.c.l.b16 %v390
      %v527 = vunpack.c.l.b16 %v391
      %v528 = vunpack.c.l.b16 %v392
      %v529 = vunpack.c.l.b16 %v393
      %v530 = vunpack.c.l.b16 %v394
      %v531 = vunpack.c.l.b16 %v395
      %v532 = vunpack.c.l.b16 %v396
      %v533 = vunpack.c.l.b16 %v397
      %v534 = vunpack.c.l.b16 %v398
      %v535 = vunpack.c.l.b16 %v399
      %v536 = vunpack.c.l.b16 %v400
      %v537 = vunpack.c.l.b16 %v401
      %v538 = vunpack.c.l.b16 %v402
      %v539 = vunpack.c.l.b16 %v403
      %v540 = vunpack.c.l.b16 %v404
      %v541 = vunpack.c.l.b16 %v405
      %v542 = vunpack.c.l.b16 %v406
      %v543 = vunpack.c.l.b16 %v407
      %v544 = vunpack.c.l.b16 %v408
      %v545 = vunpack.c.l.b16 %v409
      %v546 = vunpack.c.l.b16 %v410
      %v547 = vunpack.c.l.b16 %v411
      %v548 = vunpack.c.l.b16 %v412
      %v549 = vunpack.c.l.b16 %v413
      %v550 = vunpack.c.l.b16 %v414
      %v551 = vunpack.c.l.b16 %v415
      %v552 = vunpack.c.l.b16 %v416
      %v553 = vunpack.c.l.b16 %v417
      %v554 = vunpack.c.l.b16 %v418
      %v555 = vunpack.c.l.b16 %v419
      %v556 = vunpack.c.l.b16 %v420
      %v557 = vunpack.c.l.b16 %v421
      %v558 = vunpack.c.l.b16 %v422
      %v559 = vunpack.c.l.b16 %v423
      %v560 = vunpack.c.l.b16 %v424
      %v561 = vunpack.c.l.b16 %v425
      %v562 = vunpack.c.l.b16 %v426
      %v563 = vpack.c.b16 %v516, %v515
      %v564 = vpack.c.b16 %v517, %v517
      %v565 = vpack.c.b16 %v519, %v518
      %v566 = vpack.c.b16 %v520, %v520
      %v567 = vpack.c.b16 %v522, %v521
      %v568 = vpack.c.b16 %v523, %v523
      %v569 = vpack.c.b16 %v525, %v524
      %v570 = vpack.c.b16 %v526, %v526
      %v571 = vpack.c.b16 %v528, %v527
      %v572 = vpack.c.b16 %v529, %v529
      %v573 = vpack.c.b16 %v531, %v530
      %v574 = vpack.c.b16 %v532, %v532
      %v575 = vpack.c.b16 %v534, %v533
      %v576 = vpack.c.b16 %v535, %v535
      %v577 = vpack.c.b16 %v537, %v536
      %v578 = vpack.c.b16 %v538, %v538
      %v579 = vpack.c.b16 %v540, %v539
      %v580 = vpack.c.b16 %v541, %v541
      %v581 = vpack.c.b16 %v543, %v542
      %v582 = vpack.c.b16 %v544, %v544
      %v583 = vpack.c.b16 %v546, %v545
      %v584 = vpack.c.b16 %v547, %v547
      %v585 = vpack.c.b16 %v549, %v548
      %v586 = vpack.c.b16 %v550, %v550
      %v587 = vpack.c.b16 %v552, %v551
      %v588 = vpack.c.b16 %v553, %v553
      %v589 = vpack.c.b16 %v555, %v554
      %v590 = vpack.c.b16 %v556, %v556
      %v591 = vpack.c.b16 %v558, %v557
      %v592 = vpack.c.b16 %v559, %v559
      %v593 = vpack.c.b16 %v561, %v560
      %v594 = vpack.c.b16 %v562, %v562
      %v598 = vunpack.c.l.b16 %v427
      %v599 = vunpack.c.l.b16 %v428
      %v600 = vunpack.c.l.b16 %v429
      %v601 = vpack.c.b16 %v599, %v598
      %v602 = vpack.c.b16 %v600, %v600
      %603 = vrot.lane.b32.xlu0 %v565, 32
      %v604 = vpop.permute.xlu0 %603
      %605 = vrot.lane.b32.xlu0 %v566, 32
      %v606 = vpop.permute.xlu0 %605
      %607 = vrot.lane.b32.xlu0 %v567, 32
      %v608 = vpop.permute.xlu0 %607
      %609 = vrot.lane.b32.xlu0 %v568, 32
      %v610 = vpop.permute.xlu0 %609
      %611 = vrot.lane.b32.xlu0 %v569, 32
      %v612 = vpop.permute.xlu0 %611
      %613 = vrot.lane.b32.xlu0 %v570, 32
      %v614 = vpop.permute.xlu0 %613
      %615 = vrot.lane.b32.xlu0 %v571, 32
      %v616 = vpop.permute.xlu0 %615
      %617 = vrot.lane.b32.xlu0 %v572, 32
      %v618 = vpop.permute.xlu0 %617
      %619 = vrot.lane.b32.xlu0 %v573, 32
      %v620 = vpop.permute.xlu0 %619
      %621 = vrot.lane.b32.xlu0 %v574, 32
      %v622 = vpop.permute.xlu0 %621
      %623 = vrot.lane.b32.xlu0 %v575, 32
      %v624 = vpop.permute.xlu0 %623
      %625 = vrot.lane.b32.xlu0 %v576, 32
      %v626 = vpop.permute.xlu0 %625
      %627 = vrot.lane.b32.xlu0 %v577, 32
      %v628 = vpop.permute.xlu0 %627
      %629 = vrot.lane.b32.xlu0 %v578, 32
      %v630 = vpop.permute.xlu0 %629
      %631 = vrot.lane.b32.xlu0 %v579, 32
      %v632 = vpop.permute.xlu0 %631
      %633 = vrot.lane.b32.xlu0 %v580, 32
      %v634 = vpop.permute.xlu0 %633
      %635 = vrot.lane.b32.xlu0 %v581, 32
      %v636 = vpop.permute.xlu0 %635
      %637 = vrot.lane.b32.xlu0 %v582, 32
      %v638 = vpop.permute.xlu0 %637
      %639 = vrot.lane.b32.xlu0 %v583, 32
      %v640 = vpop.permute.xlu0 %639
      %641 = vrot.lane.b32.xlu0 %v584, 32
      %v642 = vpop.permute.xlu0 %641
      %643 = vrot.lane.b32.xlu0 %v585, 32
      %v644 = vpop.permute.xlu0 %643
      %645 = vrot.lane.b32.xlu0 %v586, 32
      %v646 = vpop.permute.xlu0 %645
      %647 = vrot.lane.b32.xlu0 %v587, 32
      %v648 = vpop.permute.xlu0 %647
      %649 = vrot.lane.b32.xlu0 %v588, 32
      %v650 = vpop.permute.xlu0 %649
      %651 = vrot.lane.b32.xlu0 %v589, 32
      %v652 = vpop.permute.xlu0 %651
      %653 = vrot.lane.b32.xlu0 %v590, 32
      %v654 = vpop.permute.xlu0 %653
      %655 = vrot.lane.b32.xlu0 %v591, 32
      %v656 = vpop.permute.xlu0 %655
      %657 = vrot.lane.b32.xlu0 %v592, 32
      %v658 = vpop.permute.xlu0 %657
      %659 = vrot.lane.b32.xlu0 %v593, 32
      %v660 = vpop.permute.xlu0 %659
      %661 = vrot.lane.b32.xlu0 %v594, 32
      %v662 = vpop.permute.xlu0 %661
      %663 = vrot.lane.b32.xlu0 %v601, 32
      %v664 = vpop.permute.xlu0 %663
      %665 = vrot.lane.b32.xlu0 %v602, 32
      %v666 = vpop.permute.xlu0 %665
      %v670 = vunpack.c.l.b16 %v430
      %v671 = vunpack.c.l.b16 %v431
      %v672 = vunpack.c.l.b16 %v432
      %v673 = vpack.c.b16 %v671, %v670
      %v674 = vpack.c.b16 %v672, %v672
      %675 = vrot.lane.b32.xlu0 %v567, 64
      %v676 = vpop.permute.xlu0 %675
      %677 = vrot.lane.b32.xlu0 %v568, 64
      %v678 = vpop.permute.xlu0 %677
      %679 = vrot.lane.b32.xlu0 %v569, 64
      %v680 = vpop.permute.xlu0 %679
      %681 = vrot.lane.b32.xlu0 %v570, 64
      %v682 = vpop.permute.xlu0 %681
      %683 = vrot.lane.b32.xlu0 %v571, 64
      %v684 = vpop.permute.xlu0 %683
      %685 = vrot.lane.b32.xlu0 %v572, 64
      %v686 = vpop.permute.xlu0 %685
      %687 = vrot.lane.b32.xlu0 %v573, 64
      %v688 = vpop.permute.xlu0 %687
      %689 = vrot.lane.b32.xlu0 %v574, 64
      %v690 = vpop.permute.xlu0 %689
      %691 = vrot.lane.b32.xlu0 %v575, 64
      %v692 = vpop.permute.xlu0 %691
      %693 = vrot.lane.b32.xlu0 %v576, 64
      %v694 = vpop.permute.xlu0 %693
      %695 = vrot.lane.b32.xlu0 %v577, 64
      %v696 = vpop.permute.xlu0 %695
      %697 = vrot.lane.b32.xlu0 %v578, 64
      %v698 = vpop.permute.xlu0 %697
      %699 = vrot.lane.b32.xlu0 %v579, 64
      %v700 = vpop.permute.xlu0 %699
      %701 = vrot.lane.b32.xlu0 %v580, 64
      %v702 = vpop.permute.xlu0 %701
      %703 = vrot.lane.b32.xlu0 %v581, 64
      %v704 = vpop.permute.xlu0 %703
      %705 = vrot.lane.b32.xlu0 %v582, 64
      %v706 = vpop.permute.xlu0 %705
      %707 = vrot.lane.b32.xlu0 %v583, 64
      %v708 = vpop.permute.xlu0 %707
      %709 = vrot.lane.b32.xlu0 %v584, 64
      %v710 = vpop.permute.xlu0 %709
      %711 = vrot.lane.b32.xlu0 %v585, 64
      %v712 = vpop.permute.xlu0 %711
      %713 = vrot.lane.b32.xlu0 %v586, 64
      %v714 = vpop.permute.xlu0 %713
      %715 = vrot.lane.b32.xlu0 %v587, 64
      %v716 = vpop.permute.xlu0 %715
      %717 = vrot.lane.b32.xlu0 %v588, 64
      %v718 = vpop.permute.xlu0 %717
      %719 = vrot.lane.b32.xlu0 %v589, 64
      %v720 = vpop.permute.xlu0 %719
      %721 = vrot.lane.b32.xlu0 %v590, 64
      %v722 = vpop.permute.xlu0 %721
      %723 = vrot.lane.b32.xlu0 %v591, 64
      %v724 = vpop.permute.xlu0 %723
      %725 = vrot.lane.b32.xlu0 %v592, 64
      %v726 = vpop.permute.xlu0 %725
      %727 = vrot.lane.b32.xlu0 %v593, 64
      %v728 = vpop.permute.xlu0 %727
      %729 = vrot.lane.b32.xlu0 %v594, 64
      %v730 = vpop.permute.xlu0 %729
      %731 = vrot.lane.b32.xlu0 %v601, 64
      %v732 = vpop.permute.xlu0 %731
      %733 = vrot.lane.b32.xlu0 %v602, 64
      %v734 = vpop.permute.xlu0 %733
      %735 = vrot.lane.b32.xlu0 %v673, 64
      %v736 = vpop.permute.xlu0 %735
      %737 = vrot.lane.b32.xlu0 %v674, 64
      %v738 = vpop.permute.xlu0 %737
      %vm739 = vcmask 261120
      %v742 = vsel %vm739, %v563, %v604
      %v745 = vsel %vm739, %v564, %v606
      %v748 = vsel %vm739, %v565, %v608
      %v751 = vsel %vm739, %v566, %v610
      %v754 = vsel %vm739, %v567, %v612
      %v757 = vsel %vm739, %v568, %v614
      %v760 = vsel %vm739, %v569, %v616
      %v763 = vsel %vm739, %v570, %v618
      %v766 = vsel %vm739, %v571, %v620
      %v769 = vsel %vm739, %v572, %v622
      %v772 = vsel %vm739, %v573, %v624
      %v775 = vsel %vm739, %v574, %v626
      %v778 = vsel %vm739, %v575, %v628
      %v781 = vsel %vm739, %v576, %v630
      %v784 = vsel %vm739, %v577, %v632
      %v787 = vsel %vm739, %v578, %v634
      %v790 = vsel %vm739, %v579, %v636
      %v793 = vsel %vm739, %v580, %v638
      %v796 = vsel %vm739, %v581, %v640
      %v799 = vsel %vm739, %v582, %v642
      %v802 = vsel %vm739, %v583, %v644
      %v805 = vsel %vm739, %v584, %v646
      %v808 = vsel %vm739, %v585, %v648
      %v811 = vsel %vm739, %v586, %v650
      %v814 = vsel %vm739, %v587, %v652
      %v817 = vsel %vm739, %v588, %v654
      %v820 = vsel %vm739, %v589, %v656
      %v823 = vsel %vm739, %v590, %v658
      %v826 = vsel %vm739, %v591, %v660
      %v829 = vsel %vm739, %v592, %v662
      %v832 = vsel %vm739, %v593, %v664
      %v835 = vsel %vm739, %v594, %v666
      %vm836 = vcmask 523264
      %v838 = vsel %vm836, %v742, %v676
      %v840 = vsel %vm836, %v745, %v678
      %v842 = vsel %vm836, %v748, %v680
      %v844 = vsel %vm836, %v751, %v682
      %v846 = vsel %vm836, %v754, %v684
      %v848 = vsel %vm836, %v757, %v686
      %v850 = vsel %vm836, %v760, %v688
      %v852 = vsel %vm836, %v763, %v690
      %v854 = vsel %vm836, %v766, %v692
      %v856 = vsel %vm836, %v769, %v694
      %v858 = vsel %vm836, %v772, %v696
      %v860 = vsel %vm836, %v775, %v698
      %v862 = vsel %vm836, %v778, %v700
      %v864 = vsel %vm836, %v781, %v702
      %v866 = vsel %vm836, %v784, %v704
      %v868 = vsel %vm836, %v787, %v706
      %v870 = vsel %vm836, %v790, %v708
      %v872 = vsel %vm836, %v793, %v710
      %v874 = vsel %vm836, %v796, %v712
      %v876 = vsel %vm836, %v799, %v714
      %v878 = vsel %vm836, %v802, %v716
      %v880 = vsel %vm836, %v805, %v718
      %v882 = vsel %vm836, %v808, %v720
      %v884 = vsel %vm836, %v811, %v722
      %v886 = vsel %vm836, %v814, %v724
      %v888 = vsel %vm836, %v817, %v726
      %v890 = vsel %vm836, %v820, %v728
      %v892 = vsel %vm836, %v823, %v730
      %v894 = vsel %vm836, %v826, %v732
      %v896 = vsel %vm836, %v829, %v734
      %v898 = vsel %vm836, %v832, %v736
      %v900 = vsel %vm836, %v835, %v738
      %v901 = vld [vmem:[%s349] sm:$0xf]
      %v902 = vld [vmem:[%s349 + $0x4] sm:$0xf]
      %v903 = vld [vmem:[%s349 + $0x8] sm:$0xf]
      %v904 = vld [vmem:[%s349 + $0xc] sm:$0xf]
      %v905 = vld [vmem:[%s349 + $0x10] sm:$0xf]
      %v906 = vld [vmem:[%s349 + $0x14] sm:$0xf]
      %v907 = vld [vmem:[%s349 + $0x18] sm:$0xf]
      %v908 = vld [vmem:[%s349 + $0x1c] sm:$0xf]
      %v909 = vld [vmem:[%s349 + $0x20] sm:$0xf]
      %v910 = vld [vmem:[%s349 + $0x24] sm:$0xf]
      %v911 = vld [vmem:[%s349 + $0x28] sm:$0xf]
      %v912 = vld [vmem:[%s349 + $0x2c] sm:$0xf]
      %vm913 = vsmask.f32 7424
      %v914 = vshrl.u32 %v838, 16
      %v916 = vshll.u32 %v838, 16
      %v918 = vrot.slane %v916, 1
      %v919 = vor.u32 %v914, %v918
      %v920 = vshll.u32 %v840, 16
      %v922 = vrot.slane %v920, 1
      %v923 = vsel %vm913, %v919, %v922
      %v924 = vshrl.u32 %v842, 16
      %v926 = vshll.u32 %v842, 16
      %v928 = vrot.slane %v926, 1
      %v929 = vor.u32 %v924, %v928
      %v930 = vshll.u32 %v844, 16
      %v932 = vrot.slane %v930, 1
      %v933 = vsel %vm913, %v929, %v932
      %v934 = vshrl.u32 %v846, 16
      %v936 = vshll.u32 %v846, 16
      %v938 = vrot.slane %v936, 1
      %v939 = vor.u32 %v934, %v938
      %v940 = vshll.u32 %v848, 16
      %v942 = vrot.slane %v940, 1
      %v943 = vsel %vm913, %v939, %v942
      %v944 = vshrl.u32 %v850, 16
      %v946 = vshll.u32 %v850, 16
      %v948 = vrot.slane %v946, 1
      %v949 = vor.u32 %v944, %v948
      %v950 = vshll.u32 %v852, 16
      %v952 = vrot.slane %v950, 1
      %v953 = vsel %vm913, %v949, %v952
      %v954 = vshrl.u32 %v854, 16
      %v956 = vshll.u32 %v854, 16
      %v958 = vrot.slane %v956, 1
      %v959 = vor.u32 %v954, %v958
      %v960 = vshll.u32 %v856, 16
      %v962 = vrot.slane %v960, 1
      %v963 = vsel %vm913, %v959, %v962
      %v964 = vshrl.u32 %v858, 16
      %v966 = vshll.u32 %v858, 16
      %v968 = vrot.slane %v966, 1
      %v969 = vor.u32 %v964, %v968
      %v970 = vshll.u32 %v860, 16
      %v972 = vrot.slane %v970, 1
      %v973 = vsel %vm913, %v969, %v972
      %v974 = vshrl.u32 %v862, 16
      %v976 = vshll.u32 %v862, 16
      %v978 = vrot.slane %v976, 1
      %v979 = vor.u32 %v974, %v978
      %v980 = vshll.u32 %v864, 16
      %v982 = vrot.slane %v980, 1
      %v983 = vsel %vm913, %v979, %v982
      %v984 = vshrl.u32 %v866, 16
      %v986 = vshll.u32 %v866, 16
      %v988 = vrot.slane %v986, 1
      %v989 = vor.u32 %v984, %v988
      %v990 = vshll.u32 %v868, 16
      %v992 = vrot.slane %v990, 1
      %v993 = vsel %vm913, %v989, %v992
      %v994 = vshrl.u32 %v870, 16
      %v996 = vshll.u32 %v870, 16
      %v998 = vrot.slane %v996, 1
      %v999 = vor.u32 %v994, %v998
      %v1000 = vshll.u32 %v872, 16
      %v1002 = vrot.slane %v1000, 1
      %v1003 = vsel %vm913, %v999, %v1002
      %v1004 = vshrl.u32 %v874, 16
      %v1006 = vshll.u32 %v874, 16
      %v1008 = vrot.slane %v1006, 1
      %v1009 = vor.u32 %v1004, %v1008
      %v1010 = vshll.u32 %v876, 16
      %v1012 = vrot.slane %v1010, 1
      %v1013 = vsel %vm913, %v1009, %v1012
      %v1014 = vshrl.u32 %v878, 16
      %v1016 = vshll.u32 %v878, 16
      %v1018 = vrot.slane %v1016, 1
      %v1019 = vor.u32 %v1014, %v1018
      %v1020 = vshll.u32 %v880, 16
      %v1022 = vrot.slane %v1020, 1
      %v1023 = vsel %vm913, %v1019, %v1022
      %v1024 = vshrl.u32 %v882, 16
      %v1026 = vshll.u32 %v882, 16
      %v1028 = vrot.slane %v1026, 1
      %v1029 = vor.u32 %v1024, %v1028
      %v1030 = vshll.u32 %v884, 16
      %v1032 = vrot.slane %v1030, 1
      %v1033 = vsel %vm913, %v1029, %v1032
      %v1034 = vshrl.u32 %v886, 16
      %v1036 = vshll.u32 %v886, 16
      %v1038 = vrot.slane %v1036, 1
      %v1039 = vor.u32 %v1034, %v1038
      %v1040 = vshll.u32 %v888, 16
      %v1042 = vrot.slane %v1040, 1
      %v1043 = vsel %vm913, %v1039, %v1042
      %v1044 = vshrl.u32 %v890, 16
      %v1046 = vshll.u32 %v890, 16
      %v1048 = vrot.slane %v1046, 1
      %v1049 = vor.u32 %v1044, %v1048
      %v1050 = vshll.u32 %v892, 16
      %v1052 = vrot.slane %v1050, 1
      %v1053 = vsel %vm913, %v1049, %v1052
      %v1054 = vshrl.u32 %v894, 16
      %v1056 = vshll.u32 %v894, 16
      %v1058 = vrot.slane %v1056, 1
      %v1059 = vor.u32 %v1054, %v1058
      %v1060 = vshll.u32 %v896, 16
      %v1062 = vrot.slane %v1060, 1
      %v1063 = vsel %vm913, %v1059, %v1062
      %v1064 = vshrl.u32 %v898, 16
      %v1066 = vshll.u32 %v898, 16
      %v1068 = vrot.slane %v1066, 1
      %v1069 = vor.u32 %v1064, %v1068
      %v1070 = vshll.u32 %v900, 16
      %v1072 = vrot.slane %v1070, 1
      %v1073 = vsel %vm913, %v1069, %v1072
      %s1074 = scalar_lea.vmem %s349, 48
      %v1075 = vld [vmem:[%s1074] sm:$0xf]
      %v1076 = vld [vmem:[%s1074 + $0x4] sm:$0xf]
      %v1077 = vld [vmem:[%s1074 + $0x8] sm:$0xf]
      %v1078 = vld [vmem:[%s1074 + $0xc] sm:$0xf]
      %v1079 = vld [vmem:[%s1074 + $0x10] sm:$0xf]
      %v1080 = vld [vmem:[%s1074 + $0x14] sm:$0xf]
      %v1081 = vld [vmem:[%s1074 + $0x18] sm:$0xf]
      %v1082 = vld [vmem:[%s1074 + $0x1c] sm:$0xf]
      %v1083 = vld [vmem:[%s1074 + $0x20] sm:$0xf]
      %v1084 = vld [vmem:[%s1074 + $0x24] sm:$0xf]
      %v1085 = vld [vmem:[%s1074 + $0x28] sm:$0xf]
      %v1086 = vld [vmem:[%s1074 + $0x2c] sm:$0xf]
      %v1099 = vunpack.c.l.b16 %v1075
      %v1100 = vunpack.c.l.b16 %v1076
      %v1101 = vunpack.c.l.b16 %v1077
      %v1102 = vunpack.c.l.b16 %v1078
      %v1103 = vunpack.c.l.b16 %v1079
      %v1104 = vunpack.c.l.b16 %v1080
      %v1105 = vunpack.c.l.b16 %v1081
      %v1106 = vunpack.c.l.b16 %v1082
      %v1107 = vunpack.c.l.b16 %v1083
      %v1108 = vunpack.c.l.b16 %v1084
      %v1109 = vunpack.c.l.b16 %v1085
      %v1110 = vunpack.c.l.b16 %v1086
      %v1111 = vpack.c.b16 %v1100, %v1099
      %v1112 = vpack.c.b16 %v1102, %v1101
      %v1113 = vpack.c.b16 %v1104, %v1103
      %v1114 = vpack.c.b16 %v1106, %v1105
      %v1115 = vpack.c.b16 %v1108, %v1107
      %v1116 = vpack.c.b16 %v1110, %v1109
      %vm1123 = vcmask 785408
      %v1125 = vsel %vm1123, %v923, 0
      %v1128 = vsel %vm1123, %v933, 0
      %v1131 = vsel %vm1123, %v943, 0
      %v1134 = vsel %vm1123, %v953, 0
      %v1137 = vsel %vm1123, %v963, 0
      %v1140 = vsel %vm1123, %v973, 0
      %v1143 = vsel %vm1123, %v983, 0
      %v1146 = vsel %vm1123, %v993, 0
      %v1149 = vsel %vm1123, %v1003, 0
      %v1152 = vsel %vm1123, %v1013, 0
      %v1155 = vsel %vm1123, %v1023, 0
      %v1158 = vsel %vm1123, %v1033, 0
      %v1161 = vsel %vm1123, %v1043, 0
      %v1164 = vsel %vm1123, %v1053, 0
      %v1167 = vsel %vm1123, %v1063, 0
      %v1170 = vsel %vm1123, %v1073, 0
      %1172 = vmatprep.subr.bf16.mxu0 0
      %1173 = vmatpush1.bf16.msra.mxu0 %v1111
      %1174 = vmatprep.subr.bf16.mxu0 0
      %1175 = vmatpush1.bf16.msra.mxu0 %v1112
      %1176 = vmatprep.subr.bf16.mxu0 0
      %1177 = vmatpush1.bf16.msra.mxu0 %v1113
      %1178 = vmatprep.subr.bf16.mxu0 0
      %1179 = vmatpush1.bf16.msra.mxu0 %v1114
      %1180 = vmatprep.subr.bf16.mxu0 0
      %1181 = vmatpush1.bf16.msra.mxu0 %v1115
      %1182 = vmatprep.subr.bf16.mxu0 0
      %1183 = vmatpush1.bf16.msra.mxu0 %v1116
      %1184 = vmatprep.subr.bf16.mxu0 0
      %1185 = vmatpush1.bf16.msra.mxu0 0
      %1186 = vmatprep.subr.bf16.mxu0 0
      %1187 = vmatpush1.bf16.msra.mxu0 0
      %1188 = vmatprep.subr.bf16.mxu0 0
      %1189 = vmatpush1.bf16.msra.mxu0 0
      %1190 = vmatprep.subr.bf16.mxu0 0
      %1191 = vmatpush1.bf16.msra.mxu0 0
      %1192 = vmatprep.subr.bf16.mxu0 0
      %1193 = vmatpush1.bf16.msra.mxu0 0
      %1194 = vmatprep.subr.bf16.mxu0 0
      %1195 = vmatpush1.bf16.msra.mxu0 0
      %1196 = vmatprep.subr.bf16.mxu0 0
      %1197 = vmatpush1.bf16.msra.mxu0 0
      %1198 = vmatprep.subr.bf16.mxu0 0
      %1199 = vmatpush1.bf16.msra.mxu0 0
      %1200 = vmatprep.subr.bf16.mxu0 0
      %1201 = vmatpush1.bf16.msra.mxu0 0
      %1202 = vmatprep.subr.bf16.mxu0 0
      %1203 = vmatpush1.bf16.msra.mxu0 0
      %1204 = vmatprep.mubr.bf16.mxu0 0
      %1205 = vmatmul.mubr.bf16.gmra.mrb[0].mxu0 %v1125
      %v1206 = vpop.f32.mrb[0].mxu0
      %v1207 = vadd.f32 0.0, %v1206
      %v1208 = vpop.f32.mrb[0].mxu0
      %v1209 = vpop.f32.mrb[0].mxu0
      %v1210 = vadd.f32 0.0, %v1209
      %v1211 = vpop.f32.mrb[0].mxu0
      %1212 = vmatprep.mubr.bf16.mxu0 0
      %1213 = vmatmul.mubr.bf16.gmra.mrb[0].mxu0 %v1128
      %v1214 = vpop.f32.mrb[0].mxu0
      %v1215 = vadd.f32 0.0, %v1214
      %v1216 = vpop.f32.mrb[0].mxu0
      %v1217 = vpop.f32.mrb[0].mxu0
      %v1218 = vadd.f32 0.0, %v1217
      %v1219 = vpop.f32.mrb[0].mxu0
      %1220 = vmatprep.mubr.bf16.mxu0 0
      %1221 = vmatmul.mubr.bf16.gmra.mrb[0].mxu0 %v1131
      %v1222 = vpop.f32.mrb[0].mxu0
      %v1223 = vadd.f32 0.0, %v1222
      %v1224 = vpop.f32.mrb[0].mxu0
      %v1225 = vpop.f32.mrb[0].mxu0
      %v1226 = vadd.f32 0.0, %v1225
      %v1227 = vpop.f32.mrb[0].mxu0
      %1228 = vmatprep.mubr.bf16.mxu0 0
      %1229 = vmatmul.mubr.bf16.gmra.mrb[0].mxu0 %v1134
      %v1230 = vpop.f32.mrb[0].mxu0
      %v1231 = vadd.f32 0.0, %v1230
      %v1232 = vpop.f32.mrb[0].mxu0
      %v1233 = vpop.f32.mrb[0].mxu0
      %v1234 = vadd.f32 0.0, %v1233
      %v1235 = vpop.f32.mrb[0].mxu0
      %1236 = vmatprep.mubr.bf16.mxu0 0
      %1237 = vmatmul.mubr.bf16.gmra.mrb[0].mxu0 %v1137
      %v1238 = vpop.f32.mrb[0].mxu0
      %v1239 = vadd.f32 0.0, %v1238
      %v1240 = vpop.f32.mrb[0].mxu0
      %v1241 = vpop.f32.mrb[0].mxu0
      %v1242 = vadd.f32 0.0, %v1241
      %v1243 = vpop.f32.mrb[0].mxu0
      %1244 = vmatprep.mubr.bf16.mxu0 0
      %1245 = vmatmul.mubr.bf16.gmra.mrb[0].mxu0 %v1140
      %v1246 = vpop.f32.mrb[0].mxu0
      %v1247 = vadd.f32 0.0, %v1246
      %v1248 = vpop.f32.mrb[0].mxu0
      %v1249 = vpop.f32.mrb[0].mxu0
      %v1250 = vadd.f32 0.0, %v1249
      %v1251 = vpop.f32.mrb[0].mxu0
      %1252 = vmatprep.mubr.bf16.mxu0 0
      %1253 = vmatmul.mubr.bf16.gmra.mrb[0].mxu0 %v1143
      %v1254 = vpop.f32.mrb[0].mxu0
      %v1255 = vadd.f32 0.0, %v1254
      %v1256 = vpop.f32.mrb[0].mxu0
      %v1257 = vpop.f32.mrb[0].mxu0
      %v1258 = vadd.f32 0.0, %v1257
      %v1259 = vpop.f32.mrb[0].mxu0
      %1260 = vmatprep.mubr.bf16.mxu0 0
      %1261 = vmatmul.mubr.bf16.gmra.mrb[0].mxu0 %v1146
      %v1262 = vpop.f32.mrb[0].mxu0
      %v1263 = vadd.f32 0.0, %v1262
      %v1264 = vpop.f32.mrb[0].mxu0
      %v1265 = vpop.f32.mrb[0].mxu0
      %v1266 = vadd.f32 0.0, %v1265
      %v1267 = vpop.f32.mrb[0].mxu0
      %1268 = vmatprep.mubr.bf16.mxu0 0
      %1269 = vmatmul.mubr.bf16.gmra.mrb[0].mxu0 %v1149
      %v1270 = vpop.f32.mrb[0].mxu0
      %v1271 = vadd.f32 0.0, %v1270
      %v1272 = vpop.f32.mrb[0].mxu0
      %v1273 = vpop.f32.mrb[0].mxu0
      %v1274 = vadd.f32 0.0, %v1273
      %v1275 = vpop.f32.mrb[0].mxu0
      %1276 = vmatprep.mubr.bf16.mxu0 0
      %1277 = vmatmul.mubr.bf16.gmra.mrb[0].mxu0 %v1152
      %v1278 = vpop.f32.mrb[0].mxu0
      %v1279 = vadd.f32 0.0, %v1278
      %v1280 = vpop.f32.mrb[0].mxu0
      %v1281 = vpop.f32.mrb[0].mxu0
      %v1282 = vadd.f32 0.0, %v1281
      %v1283 = vpop.f32.mrb[0].mxu0
      %1284 = vmatprep.mubr.bf16.mxu0 0
      %1285 = vmatmul.mubr.bf16.gmra.mrb[0].mxu0 %v1155
      %v1286 = vpop.f32.mrb[0].mxu0
      %v1287 = vadd.f32 0.0, %v1286
      %v1288 = vpop.f32.mrb[0].mxu0
      %v1289 = vpop.f32.mrb[0].mxu0
      %v1290 = vadd.f32 0.0, %v1289
      %v1291 = vpop.f32.mrb[0].mxu0
      %1292 = vmatprep.mubr.bf16.mxu0 0
      %1293 = vmatmul.mubr.bf16.gmra.mrb[0].mxu0 %v1158
      %v1294 = vpop.f32.mrb[0].mxu0
      %v1295 = vadd.f32 0.0, %v1294
      %v1296 = vpop.f32.mrb[0].mxu0
      %v1297 = vpop.f32.mrb[0].mxu0
      %v1298 = vadd.f32 0.0, %v1297
      %v1299 = vpop.f32.mrb[0].mxu0
      %1300 = vmatprep.mubr.bf16.mxu0 0
      %1301 = vmatmul.mubr.bf16.gmra.mrb[0].mxu0 %v1161
      %v1302 = vpop.f32.mrb[0].mxu0
      %v1303 = vadd.f32 0.0, %v1302
      %v1304 = vpop.f32.mrb[0].mxu0
      %v1305 = vpop.f32.mrb[0].mxu0
      %v1306 = vadd.f32 0.0, %v1305
      %v1307 = vpop.f32.mrb[0].mxu0
      %1308 = vmatprep.mubr.bf16.mxu0 0
      %1309 = vmatmul.mubr.bf16.gmra.mrb[0].mxu0 %v1164
      %v1310 = vpop.f32.mrb[0].mxu0
      %v1311 = vadd.f32 0.0, %v1310
      %v1312 = vpop.f32.mrb[0].mxu0
      %v1313 = vpop.f32.mrb[0].mxu0
      %v1314 = vadd.f32 0.0, %v1313
      %v1315 = vpop.f32.mrb[0].mxu0
      %1316 = vmatprep.mubr.bf16.mxu0 0
      %1317 = vmatmul.mubr.bf16.gmra.mrb[0].mxu0 %v1167
      %v1318 = vpop.f32.mrb[0].mxu0
      %v1319 = vadd.f32 0.0, %v1318
      %v1320 = vpop.f32.mrb[0].mxu0
      %v1321 = vpop.f32.mrb[0].mxu0
      %v1322 = vadd.f32 0.0, %v1321
      %v1323 = vpop.f32.mrb[0].mxu0
      %1324 = vmatprep.mubr.bf16.mxu0 0
      %1325 = vmatmul.mubr.bf16.gmra.mrb[0].mxu0 %v1170
      %v1326 = vpop.f32.mrb[0].mxu0
      %v1327 = vadd.f32 0.0, %v1326
      %v1328 = vpop.f32.mrb[0].mxu0
      %v1329 = vpop.f32.mrb[0].mxu0
      %v1330 = vadd.f32 0.0, %v1329
      %v1331 = vpop.f32.mrb[0].mxu0
      %1332 = vdwg.mxu0
      %v1345 = vunpack.c.l.b16 %v901
      %v1346 = vunpack.c.l.b16 %v902
      %v1347 = vunpack.c.l.b16 %v903
      %v1348 = vunpack.c.l.b16 %v904
      %v1349 = vunpack.c.l.b16 %v905
      %v1350 = vunpack.c.l.b16 %v906
      %v1351 = vunpack.c.l.b16 %v907
      %v1352 = vunpack.c.l.b16 %v908
      %v1353 = vunpack.c.l.b16 %v909
      %v1354 = vunpack.c.l.b16 %v910
      %v1355 = vunpack.c.l.b16 %v911
      %v1356 = vunpack.c.l.b16 %v912
      %v1357 = vpack.c.b16 %v1346, %v1345
      %v1358 = vpack.c.b16 %v1348, %v1347
      %v1359 = vpack.c.b16 %v1350, %v1349
      %v1360 = vpack.c.b16 %v1352, %v1351
      %v1361 = vpack.c.b16 %v1354, %v1353
      %v1362 = vpack.c.b16 %v1356, %v1355
      %v1369 = vsel %vm1123, %v838, 0
      %v1371 = vsel %vm1123, %v842, 0
      %v1373 = vsel %vm1123, %v846, 0
      %v1375 = vsel %vm1123, %v850, 0
      %v1377 = vsel %vm1123, %v854, 0
      %v1379 = vsel %vm1123, %v858, 0
      %v1381 = vsel %vm1123, %v862, 0
      %v1383 = vsel %vm1123, %v866, 0
      %v1385 = vsel %vm1123, %v870, 0
      %v1387 = vsel %vm1123, %v874, 0
      %v1389 = vsel %vm1123, %v878, 0
      %v1391 = vsel %vm1123, %v882, 0
      %v1393 = vsel %vm1123, %v886, 0
      %v1395 = vsel %vm1123, %v890, 0
      %v1397 = vsel %vm1123, %v894, 0
      %v1399 = vsel %vm1123, %v898, 0
      %1401 = vmatprep.subr.bf16.mxu0 0
      %1402 = vmatpush1.bf16.msra.mxu0 %v1357
      %1403 = vmatprep.subr.bf16.mxu0 0
      %1404 = vmatpush1.bf16.msra.mxu0 %v1358
      %1405 = vmatprep.subr.bf16.mxu0 0
      %1406 = vmatpush1.bf16.msra.mxu0 %v1359
      %1407 = vmatprep.subr.bf16.mxu0 0
      %1408 = vmatpush1.bf16.msra.mxu0 %v1360
      %1409 = vmatprep.subr.bf16.mxu0 0
      %1410 = vmatpush1.bf16.msra.mxu0 %v1361
      %1411 = vmatprep.subr.bf16.mxu0 0
      %1412 = vmatpush1.bf16.msra.mxu0 %v1362
      %1413 = vmatprep.subr.bf16.mxu0 0
      %1414 = vmatpush1.bf16.msra.mxu0 0
      %1415 = vmatprep.subr.bf16.mxu0 0
      %1416 = vmatpush1.bf16.msra.mxu0 0
      %1417 = vmatprep.subr.bf16.mxu0 0
      %1418 = vmatpush1.bf16.msra.mxu0 0
      %1419 = vmatprep.subr.bf16.mxu0 0
      %1420 = vmatpush1.bf16.msra.mxu0 0
      %1421 = vmatprep.subr.bf16.mxu0 0
      %1422 = vmatpush1.bf16.msra.mxu0 0
      %1423 = vmatprep.subr.bf16.mxu0 0
      %1424 = vmatpush1.bf16.msra.mxu0 0
      %1425 = vmatprep.subr.bf16.mxu0 0
      %1426 = vmatpush1.bf16.msra.mxu0 0
      %1427 = vmatprep.subr.bf16.mxu0 0
      %1428 = vmatpush1.bf16.msra.mxu0 0
      %1429 = vmatprep.subr.bf16.mxu0 0
      %1430 = vmatpush1.bf16.msra.mxu0 0
      %1431 = vmatprep.subr.bf16.mxu0 0
      %1432 = vmatpush1.bf16.msra.mxu0 0
      %1433 = vmatprep.mubr.bf16.mxu0 0
      %1434 = vmatmul.mubr.bf16.gmra.mrb[0].mxu0 %v1369
      %v1435 = vpop.f32.mrb[0].mxu0
      %v1436 = vadd.f32 %v1207, %v1435
      %v1437 = vpop.f32.mrb[0].mxu0
      %v1438 = vpop.f32.mrb[0].mxu0
      %v1439 = vadd.f32 %v1210, %v1438
      %v1440 = vpop.f32.mrb[0].mxu0
      %1441 = vmatprep.mubr.bf16.mxu0 0
      %1442 = vmatmul.mubr.bf16.gmra.mrb[0].mxu0 %v1371
      %v1443 = vpop.f32.mrb[0].mxu0
      %v1444 = vadd.f32 %v1215, %v1443
      %v1445 = vpop.f32.mrb[0].mxu0
      %v1446 = vpop.f32.mrb[0].mxu0
      %v1447 = vadd.f32 %v1218, %v1446
      %v1448 = vpop.f32.mrb[0].mxu0
      %1449 = vmatprep.mubr.bf16.mxu0 0
      %1450 = vmatmul.mubr.bf16.gmra.mrb[0].mxu0 %v1373
      %v1451 = vpop.f32.mrb[0].mxu0
      %v1452 = vadd.f32 %v1223, %v1451
      %v1453 = vpop.f32.mrb[0].mxu0
      %v1454 = vpop.f32.mrb[0].mxu0
      %v1455 = vadd.f32 %v1226, %v1454
      %v1456 = vpop.f32.mrb[0].mxu0
      %1457 = vmatprep.mubr.bf16.mxu0 0
      %1458 = vmatmul.mubr.bf16.gmra.mrb[0].mxu0 %v1375
      %v1459 = vpop.f32.mrb[0].mxu0
      %v1460 = vadd.f32 %v1231, %v1459
      %v1461 = vpop.f32.mrb[0].mxu0
      %v1462 = vpop.f32.mrb[0].mxu0
      %v1463 = vadd.f32 %v1234, %v1462
      %v1464 = vpop.f32.mrb[0].mxu0
      %1465 = vmatprep.mubr.bf16.mxu0 0
      %1466 = vmatmul.mubr.bf16.gmra.mrb[0].mxu0 %v1377
      %v1467 = vpop.f32.mrb[0].mxu0
      %v1468 = vadd.f32 %v1239, %v1467
      %v1469 = vpop.f32.mrb[0].mxu0
      %v1470 = vpop.f32.mrb[0].mxu0
      %v1471 = vadd.f32 %v1242, %v1470
      %v1472 = vpop.f32.mrb[0].mxu0
      %1473 = vmatprep.mubr.bf16.mxu0 0
      %1474 = vmatmul.mubr.bf16.gmra.mrb[0].mxu0 %v1379
      %v1475 = vpop.f32.mrb[0].mxu0
      %v1476 = vadd.f32 %v1247, %v1475
      %v1477 = vpop.f32.mrb[0].mxu0
      %v1478 = vpop.f32.mrb[0].mxu0
      %v1479 = vadd.f32 %v1250, %v1478
      %v1480 = vpop.f32.mrb[0].mxu0
      %1481 = vmatprep.mubr.bf16.mxu0 0
      %1482 = vmatmul.mubr.bf16.gmra.mrb[0].mxu0 %v1381
      %v1483 = vpop.f32.mrb[0].mxu0
      %v1484 = vadd.f32 %v1255, %v1483
      %v1485 = vpop.f32.mrb[0].mxu0
      %v1486 = vpop.f32.mrb[0].mxu0
      %v1487 = vadd.f32 %v1258, %v1486
      %v1488 = vpop.f32.mrb[0].mxu0
      %1489 = vmatprep.mubr.bf16.mxu0 0
      %1490 = vmatmul.mubr.bf16.gmra.mrb[0].mxu0 %v1383
      %v1491 = vpop.f32.mrb[0].mxu0
      %v1492 = vadd.f32 %v1263, %v1491
      %v1493 = vpop.f32.mrb[0].mxu0
      %v1494 = vpop.f32.mrb[0].mxu0
      %v1495 = vadd.f32 %v1266, %v1494
      %v1496 = vpop.f32.mrb[0].mxu0
      %1497 = vmatprep.mubr.bf16.mxu0 0
      %1498 = vmatmul.mubr.bf16.gmra.mrb[0].mxu0 %v1385
      %v1499 = vpop.f32.mrb[0].mxu0
      %v1500 = vadd.f32 %v1271, %v1499
      %v1501 = vpop.f32.mrb[0].mxu0
      %v1502 = vpop.f32.mrb[0].mxu0
      %v1503 = vadd.f32 %v1274, %v1502
      %v1504 = vpop.f32.mrb[0].mxu0
      %1505 = vmatprep.mubr.bf16.mxu0 0
      %1506 = vmatmul.mubr.bf16.gmra.mrb[0].mxu0 %v1387
      %v1507 = vpop.f32.mrb[0].mxu0
      %v1508 = vadd.f32 %v1279, %v1507
      %v1509 = vpop.f32.mrb[0].mxu0
      %v1510 = vpop.f32.mrb[0].mxu0
      %v1511 = vadd.f32 %v1282, %v1510
      %v1512 = vpop.f32.mrb[0].mxu0
      %1513 = vmatprep.mubr.bf16.mxu0 0
      %1514 = vmatmul.mubr.bf16.gmra.mrb[0].mxu0 %v1389
      %v1515 = vpop.f32.mrb[0].mxu0
      %v1516 = vadd.f32 %v1287, %v1515
      %v1517 = vpop.f32.mrb[0].mxu0
      %v1518 = vpop.f32.mrb[0].mxu0
      %v1519 = vadd.f32 %v1290, %v1518
      %v1520 = vpop.f32.mrb[0].mxu0
      %1521 = vmatprep.mubr.bf16.mxu0 0
      %1522 = vmatmul.mubr.bf16.gmra.mrb[0].mxu0 %v1391
      %v1523 = vpop.f32.mrb[0].mxu0
      %v1524 = vadd.f32 %v1295, %v1523
      %v1525 = vpop.f32.mrb[0].mxu0
      %v1526 = vpop.f32.mrb[0].mxu0
      %v1527 = vadd.f32 %v1298, %v1526
      %v1528 = vpop.f32.mrb[0].mxu0
      %1529 = vmatprep.mubr.bf16.mxu0 0
      %1530 = vmatmul.mubr.bf16.gmra.mrb[0].mxu0 %v1393
      %v1531 = vpop.f32.mrb[0].mxu0
      %v1532 = vadd.f32 %v1303, %v1531
      %v1533 = vpop.f32.mrb[0].mxu0
      %v1534 = vpop.f32.mrb[0].mxu0
      %v1535 = vadd.f32 %v1306, %v1534
      %v1536 = vpop.f32.mrb[0].mxu0
      %1537 = vmatprep.mubr.bf16.mxu0 0
      %1538 = vmatmul.mubr.bf16.gmra.mrb[0].mxu0 %v1395
      %v1539 = vpop.f32.mrb[0].mxu0
      %v1540 = vadd.f32 %v1311, %v1539
      %v1541 = vpop.f32.mrb[0].mxu0
      %v1542 = vpop.f32.mrb[0].mxu0
      %v1543 = vadd.f32 %v1314, %v1542
      %v1544 = vpop.f32.mrb[0].mxu0
      %1545 = vmatprep.mubr.bf16.mxu0 0
      %1546 = vmatmul.mubr.bf16.gmra.mrb[0].mxu0 %v1397
      %v1547 = vpop.f32.mrb[0].mxu0
      %v1548 = vadd.f32 %v1319, %v1547
      %v1549 = vpop.f32.mrb[0].mxu0
      %v1550 = vpop.f32.mrb[0].mxu0
      %v1551 = vadd.f32 %v1322, %v1550
      %v1552 = vpop.f32.mrb[0].mxu0
      %1553 = vmatprep.mubr.bf16.mxu0 0
      %1554 = vmatmul.mubr.bf16.gmra.mrb[0].mxu0 %v1399
      %v1555 = vpop.f32.mrb[0].mxu0
      %v1556 = vadd.f32 %v1327, %v1555
      %v1557 = vpop.f32.mrb[0].mxu0
      %v1558 = vpop.f32.mrb[0].mxu0
      %v1559 = vadd.f32 %v1330, %v1558
      %v1560 = vpop.f32.mrb[0].mxu0
      %1561 = vdwg.mxu0
      %vm1594 = vcmask 1046528
      %v1595 = vrot.slane %v838, 1
      %v1596 = vrot.slane %v840, 1
      %v1597 = vsel %vm1594, %v1595, %v1596
      %v1598 = vrot.slane %v842, 1
      %v1599 = vrot.slane %v844, 1
      %v1600 = vsel %vm1594, %v1598, %v1599
      %v1601 = vrot.slane %v846, 1
      %v1602 = vrot.slane %v848, 1
      %v1603 = vsel %vm1594, %v1601, %v1602
      %v1604 = vrot.slane %v850, 1
      %v1605 = vrot.slane %v852, 1
      %v1606 = vsel %vm1594, %v1604, %v1605
      %v1607 = vrot.slane %v854, 1
      %v1608 = vrot.slane %v856, 1
      %v1609 = vsel %vm1594, %v1607, %v1608
      %v1610 = vrot.slane %v858, 1
      %v1611 = vrot.slane %v860, 1
      %v1612 = vsel %vm1594, %v1610, %v1611
      %v1613 = vrot.slane %v862, 1
      %v1614 = vrot.slane %v864, 1
      %v1615 = vsel %vm1594, %v1613, %v1614
      %v1616 = vrot.slane %v866, 1
      %v1617 = vrot.slane %v868, 1
      %v1618 = vsel %vm1594, %v1616, %v1617
      %v1619 = vrot.slane %v870, 1
      %v1620 = vrot.slane %v872, 1
      %v1621 = vsel %vm1594, %v1619, %v1620
      %v1622 = vrot.slane %v874, 1
      %v1623 = vrot.slane %v876, 1
      %v1624 = vsel %vm1594, %v1622, %v1623
      %v1625 = vrot.slane %v878, 1
      %v1626 = vrot.slane %v880, 1
      %v1627 = vsel %vm1594, %v1625, %v1626
      %v1628 = vrot.slane %v882, 1
      %v1629 = vrot.slane %v884, 1
      %v1630 = vsel %vm1594, %v1628, %v1629
      %v1631 = vrot.slane %v886, 1
      %v1632 = vrot.slane %v888, 1
      %v1633 = vsel %vm1594, %v1631, %v1632
      %v1634 = vrot.slane %v890, 1
      %v1635 = vrot.slane %v892, 1
      %v1636 = vsel %vm1594, %v1634, %v1635
      %v1637 = vrot.slane %v894, 1
      %v1638 = vrot.slane %v896, 1
      %v1639 = vsel %vm1594, %v1637, %v1638
      %v1640 = vrot.slane %v898, 1
      %v1641 = vrot.slane %v900, 1
      %v1642 = vsel %vm1594, %v1640, %v1641
      %s1643 = scalar_lea.vmem %s349, 96
      %v1644 = vld [vmem:[%s1643] sm:$0xf]
      %v1645 = vld [vmem:[%s1643 + $0x4] sm:$0xf]
      %v1646 = vld [vmem:[%s1643 + $0x8] sm:$0xf]
      %v1647 = vld [vmem:[%s1643 + $0xc] sm:$0xf]
      %v1648 = vld [vmem:[%s1643 + $0x10] sm:$0xf]
      %v1649 = vld [vmem:[%s1643 + $0x14] sm:$0xf]
      %v1650 = vld [vmem:[%s1643 + $0x18] sm:$0xf]
      %v1651 = vld [vmem:[%s1643 + $0x1c] sm:$0xf]
      %v1652 = vld [vmem:[%s1643 + $0x20] sm:$0xf]
      %v1653 = vld [vmem:[%s1643 + $0x24] sm:$0xf]
      %v1654 = vld [vmem:[%s1643 + $0x28] sm:$0xf]
      %v1655 = vld [vmem:[%s1643 + $0x2c] sm:$0xf]
      %v1668 = vunpack.c.l.b16 %v1644
      %v1669 = vunpack.c.l.b16 %v1645
      %v1670 = vunpack.c.l.b16 %v1646
      %v1671 = vunpack.c.l.b16 %v1647
      %v1672 = vunpack.c.l.b16 %v1648
      %v1673 = vunpack.c.l.b16 %v1649
      %v1674 = vunpack.c.l.b16 %v1650
      %v1675 = vunpack.c.l.b16 %v1651
      %v1676 = vunpack.c.l.b16 %v1652
      %v1677 = vunpack.c.l.b16 %v1653
      %v1678 = vunpack.c.l.b16 %v1654
      %v1679 = vunpack.c.l.b16 %v1655
      %v1680 = vpack.c.b16 %v1669, %v1668
      %v1681 = vpack.c.b16 %v1671, %v1670
      %v1682 = vpack.c.b16 %v1673, %v1672
      %v1683 = vpack.c.b16 %v1675, %v1674
      %v1684 = vpack.c.b16 %v1677, %v1676
      %v1685 = vpack.c.b16 %v1679, %v1678
      %v1693 = vsel %vm1123, %v1597, 0
      %v1696 = vsel %vm1123, %v1600, 0
      %v1699 = vsel %vm1123, %v1603, 0
      %v1702 = vsel %vm1123, %v1606, 0
      %v1705 = vsel %vm1123, %v1609, 0
      %v1708 = vsel %vm1123, %v1612, 0
      %v1711 = vsel %vm1123, %v1615, 0
      %v1714 = vsel %vm1123, %v1618, 0
      %v1717 = vsel %vm1123, %v1621, 0
      %v1720 = vsel %vm1123, %v1624, 0
      %v1723 = vsel %vm1123, %v1627, 0
      %v1726 = vsel %vm1123, %v1630, 0
      %v1729 = vsel %vm1123, %v1633, 0
      %v1732 = vsel %vm1123, %v1636, 0
      %v1735 = vsel %vm1123, %v1639, 0
      %v1738 = vsel %vm1123, %v1642, 0
      %1740 = vmatprep.subr.bf16.mxu0 0
      %1741 = vmatpush1.bf16.msra.mxu0 %v1680
      %1742 = vmatprep.subr.bf16.mxu0 0
      %1743 = vmatpush1.bf16.msra.mxu0 %v1681
      %1744 = vmatprep.subr.bf16.mxu0 0
      %1745 = vmatpush1.bf16.msra.mxu0 %v1682
      %1746 = vmatprep.subr.bf16.mxu0 0
      %1747 = vmatpush1.bf16.msra.mxu0 %v1683
      %1748 = vmatprep.subr.bf16.mxu0 0
      %1749 = vmatpush1.bf16.msra.mxu0 %v1684
      %1750 = vmatprep.subr.bf16.mxu0 0
      %1751 = vmatpush1.bf16.msra.mxu0 %v1685
      %1752 = vmatprep.subr.bf16.mxu0 0
      %1753 = vmatpush1.bf16.msra.mxu0 0
      %1754 = vmatprep.subr.bf16.mxu0 0
      %1755 = vmatpush1.bf16.msra.mxu0 0
      %1756 = vmatprep.subr.bf16.mxu0 0
      %1757 = vmatpush1.bf16.msra.mxu0 0
      %1758 = vmatprep.subr.bf16.mxu0 0
      %1759 = vmatpush1.bf16.msra.mxu0 0
      %1760 = vmatprep.subr.bf16.mxu0 0
      %1761 = vmatpush1.bf16.msra.mxu0 0
      %1762 = vmatprep.subr.bf16.mxu0 0
      %1763 = vmatpush1.bf16.msra.mxu0 0
      %1764 = vmatprep.subr.bf16.mxu0 0
      %1765 = vmatpush1.bf16.msra.mxu0 0
      %1766 = vmatprep.subr.bf16.mxu0 0
      %1767 = vmatpush1.bf16.msra.mxu0 0
      %1768 = vmatprep.subr.bf16.mxu0 0
      %1769 = vmatpush1.bf16.msra.mxu0 0
      %1770 = vmatprep.subr.bf16.mxu0 0
      %1771 = vmatpush1.bf16.msra.mxu0 0
      %1772 = vmatprep.mubr.bf16.mxu0 0
      %1773 = vmatmul.mubr.bf16.gmra.mrb[0].mxu0 %v1693
      %v1774 = vpop.f32.mrb[0].mxu0
      %v1775 = vadd.f32 0.0, %v1774
      %v1776 = vpop.f32.mrb[0].mxu0
      %v1777 = vpop.f32.mrb[0].mxu0
      %v1778 = vadd.f32 0.0, %v1777
      %v1779 = vpop.f32.mrb[0].mxu0
      %1780 = vmatprep.mubr.bf16.mxu0 0
      %1781 = vmatmul.mubr.bf16.gmra.mrb[0].mxu0 %v1696
      %v1782 = vpop.f32.mrb[0].mxu0
      %v1783 = vadd.f32 0.0, %v1782
      %v1784 = vpop.f32.mrb[0].mxu0
      %v1785 = vpop.f32.mrb[0].mxu0
      %v1786 = vadd.f32 0.0, %v1785
      %v1787 = vpop.f32.mrb[0].mxu0
      %1788 = vmatprep.mubr.bf16.mxu0 0
      %1789 = vmatmul.mubr.bf16.gmra.mrb[0].mxu0 %v1699
      %v1790 = vpop.f32.mrb[0].mxu0
      %v1791 = vadd.f32 0.0, %v1790
      %v1792 = vpop.f32.mrb[0].mxu0
      %v1793 = vpop.f32.mrb[0].mxu0
      %v1794 = vadd.f32 0.0, %v1793
      %v1795 = vpop.f32.mrb[0].mxu0
      %1796 = vmatprep.mubr.bf16.mxu0 0
      %1797 = vmatmul.mubr.bf16.gmra.mrb[0].mxu0 %v1702
      %v1798 = vpop.f32.mrb[0].mxu0
      %v1799 = vadd.f32 0.0, %v1798
      %v1800 = vpop.f32.mrb[0].mxu0
      %v1801 = vpop.f32.mrb[0].mxu0
      %v1802 = vadd.f32 0.0, %v1801
      %v1803 = vpop.f32.mrb[0].mxu0
      %1804 = vmatprep.mubr.bf16.mxu0 0
      %1805 = vmatmul.mubr.bf16.gmra.mrb[0].mxu0 %v1705
      %v1806 = vpop.f32.mrb[0].mxu0
      %v1807 = vadd.f32 0.0, %v1806
      %v1808 = vpop.f32.mrb[0].mxu0
      %v1809 = vpop.f32.mrb[0].mxu0
      %v1810 = vadd.f32 0.0, %v1809
      %v1811 = vpop.f32.mrb[0].mxu0
      %1812 = vmatprep.mubr.bf16.mxu0 0
      %1813 = vmatmul.mubr.bf16.gmra.mrb[0].mxu0 %v1708
      %v1814 = vpop.f32.mrb[0].mxu0
      %v1815 = vadd.f32 0.0, %v1814
      %v1816 = vpop.f32.mrb[0].mxu0
      %v1817 = vpop.f32.mrb[0].mxu0
      %v1818 = vadd.f32 0.0, %v1817
      %v1819 = vpop.f32.mrb[0].mxu0
      %1820 = vmatprep.mubr.bf16.mxu0 0
      %1821 = vmatmul.mubr.bf16.gmra.mrb[0].mxu0 %v1711
      %v1822 = vpop.f32.mrb[0].mxu0
      %v1823 = vadd.f32 0.0, %v1822
      %v1824 = vpop.f32.mrb[0].mxu0
      %v1825 = vpop.f32.mrb[0].mxu0
      %v1826 = vadd.f32 0.0, %v1825
      %v1827 = vpop.f32.mrb[0].mxu0
      %1828 = vmatprep.mubr.bf16.mxu0 0
      %1829 = vmatmul.mubr.bf16.gmra.mrb[0].mxu0 %v1714
      %v1830 = vpop.f32.mrb[0].mxu0
      %v1831 = vadd.f32 0.0, %v1830
      %v1832 = vpop.f32.mrb[0].mxu0
      %v1833 = vpop.f32.mrb[0].mxu0
      %v1834 = vadd.f32 0.0, %v1833
      %v1835 = vpop.f32.mrb[0].mxu0
      %1836 = vmatprep.mubr.bf16.mxu0 0
      %1837 = vmatmul.mubr.bf16.gmra.mrb[0].mxu0 %v1717
      %v1838 = vpop.f32.mrb[0].mxu0
      %v1839 = vadd.f32 0.0, %v1838
      %v1840 = vpop.f32.mrb[0].mxu0
      %v1841 = vpop.f32.mrb[0].mxu0
      %v1842 = vadd.f32 0.0, %v1841
      %v1843 = vpop.f32.mrb[0].mxu0
      %1844 = vmatprep.mubr.bf16.mxu0 0
      %1845 = vmatmul.mubr.bf16.gmra.mrb[0].mxu0 %v1720
      %v1846 = vpop.f32.mrb[0].mxu0
      %v1847 = vadd.f32 0.0, %v1846
      %v1848 = vpop.f32.mrb[0].mxu0
      %v1849 = vpop.f32.mrb[0].mxu0
      %v1850 = vadd.f32 0.0, %v1849
      %v1851 = vpop.f32.mrb[0].mxu0
      %1852 = vmatprep.mubr.bf16.mxu0 0
      %1853 = vmatmul.mubr.bf16.gmra.mrb[0].mxu0 %v1723
      %v1854 = vpop.f32.mrb[0].mxu0
      %v1855 = vadd.f32 0.0, %v1854
      %v1856 = vpop.f32.mrb[0].mxu0
      %v1857 = vpop.f32.mrb[0].mxu0
      %v1858 = vadd.f32 0.0, %v1857
      %v1859 = vpop.f32.mrb[0].mxu0
      %1860 = vmatprep.mubr.bf16.mxu0 0
      %1861 = vmatmul.mubr.bf16.gmra.mrb[0].mxu0 %v1726
      %v1862 = vpop.f32.mrb[0].mxu0
      %v1863 = vadd.f32 0.0, %v1862
      %v1864 = vpop.f32.mrb[0].mxu0
      %v1865 = vpop.f32.mrb[0].mxu0
      %v1866 = vadd.f32 0.0, %v1865
      %v1867 = vpop.f32.mrb[0].mxu0
      %1868 = vmatprep.mubr.bf16.mxu0 0
      %1869 = vmatmul.mubr.bf16.gmra.mrb[0].mxu0 %v1729
      %v1870 = vpop.f32.mrb[0].mxu0
      %v1871 = vadd.f32 0.0, %v1870
      %v1872 = vpop.f32.mrb[0].mxu0
      %v1873 = vpop.f32.mrb[0].mxu0
      %v1874 = vadd.f32 0.0, %v1873
      %v1875 = vpop.f32.mrb[0].mxu0
      %1876 = vmatprep.mubr.bf16.mxu0 0
      %1877 = vmatmul.mubr.bf16.gmra.mrb[0].mxu0 %v1732
      %v1878 = vpop.f32.mrb[0].mxu0
      %v1879 = vadd.f32 0.0, %v1878
      %v1880 = vpop.f32.mrb[0].mxu0
      %v1881 = vpop.f32.mrb[0].mxu0
      %v1882 = vadd.f32 0.0, %v1881
      %v1883 = vpop.f32.mrb[0].mxu0
      %1884 = vmatprep.mubr.bf16.mxu0 0
      %1885 = vmatmul.mubr.bf16.gmra.mrb[0].mxu0 %v1735
      %v1886 = vpop.f32.mrb[0].mxu0
      %v1887 = vadd.f32 0.0, %v1886
      %v1888 = vpop.f32.mrb[0].mxu0
      %v1889 = vpop.f32.mrb[0].mxu0
      %v1890 = vadd.f32 0.0, %v1889
      %v1891 = vpop.f32.mrb[0].mxu0
      %1892 = vmatprep.mubr.bf16.mxu0 0
      %1893 = vmatmul.mubr.bf16.gmra.mrb[0].mxu0 %v1738
      %v1894 = vpop.f32.mrb[0].mxu0
      %v1895 = vadd.f32 0.0, %v1894
      %v1896 = vpop.f32.mrb[0].mxu0
      %v1897 = vpop.f32.mrb[0].mxu0
      %v1898 = vadd.f32 0.0, %v1897
      %v1899 = vpop.f32.mrb[0].mxu0
      %1900 = vdwg.mxu0
      %v1901 = vadd.f32 %v1436, %v1775
      %v1902 = vadd.f32 %v1439, %v1778
      %v1903 = vadd.f32 %v1444, %v1783
      %v1904 = vadd.f32 %v1447, %v1786
      %v1905 = vadd.f32 %v1452, %v1791
      %v1906 = vadd.f32 %v1455, %v1794
      %v1907 = vadd.f32 %v1460, %v1799
      %v1908 = vadd.f32 %v1463, %v1802
      %v1909 = vadd.f32 %v1468, %v1807
      %v1910 = vadd.f32 %v1471, %v1810
      %v1911 = vadd.f32 %v1476, %v1815
      %v1912 = vadd.f32 %v1479, %v1818
      %v1913 = vadd.f32 %v1484, %v1823
      %v1914 = vadd.f32 %v1487, %v1826
      %v1915 = vadd.f32 %v1492, %v1831
      %v1916 = vadd.f32 %v1495, %v1834
      %v1917 = vadd.f32 %v1500, %v1839
      %v1918 = vadd.f32 %v1503, %v1842
      %v1919 = vadd.f32 %v1508, %v1847
      %v1920 = vadd.f32 %v1511, %v1850
      %v1921 = vadd.f32 %v1516, %v1855
      %v1922 = vadd.f32 %v1519, %v1858
      %v1923 = vadd.f32 %v1524, %v1863
      %v1924 = vadd.f32 %v1527, %v1866
      %v1925 = vadd.f32 %v1532, %v1871
      %v1926 = vadd.f32 %v1535, %v1874
      %v1927 = vadd.f32 %v1540, %v1879
      %v1928 = vadd.f32 %v1543, %v1882
      %v1929 = vadd.f32 %v1548, %v1887
      %v1930 = vadd.f32 %v1551, %v1890
      %v1931 = vadd.f32 %v1556, %v1895
      %v1932 = vadd.f32 %v1559, %v1898
      %v1960 = vunpack.c.l.b16 %v437
      %v1961 = vunpack.c.l.b16 %v438
      %v1962 = vunpack.c.l.b16 %v439
      %v1963 = vunpack.c.l.b16 %v440
      %v1964 = vunpack.c.l.b16 %v441
      %v1965 = vunpack.c.l.b16 %v442
      %v1966 = vunpack.c.l.b16 %v443
      %v1967 = vunpack.c.l.b16 %v444
      %v1968 = vunpack.c.l.b16 %v445
      %v1969 = vunpack.c.l.b16 %v446
      %v1970 = vunpack.c.l.b16 %v447
      %v1971 = vunpack.c.l.b16 %v448
      %v1972 = vunpack.c.l.b16 %v449
      %v1973 = vunpack.c.l.b16 %v450
      %v1974 = vunpack.c.l.b16 %v451
      %v1975 = vunpack.c.l.b16 %v452
      %v1976 = vunpack.c.l.b16 %v453
      %v1977 = vunpack.c.l.b16 %v454
      %v1978 = vunpack.c.l.b16 %v455
      %v1979 = vunpack.c.l.b16 %v456
      %v1980 = vunpack.c.l.b16 %v457
      %v1981 = vunpack.c.l.b16 %v458
      %v1982 = vunpack.c.l.b16 %v459
      %v1983 = vunpack.c.l.b16 %v460
      %v1984 = vunpack.c.l.b16 %v461
      %v1985 = vunpack.c.l.b16 %v462
      %v1986 = vunpack.c.l.b16 %v463
      %v1987 = vpack.c.b16 %v1961, %v1960
      %v1988 = vpack.c.b16 %v1962, %v1962
      %v1989 = vpack.c.b16 %v1964, %v1963
      %v1990 = vpack.c.b16 %v1965, %v1965
      %v1991 = vpack.c.b16 %v1967, %v1966
      %v1992 = vpack.c.b16 %v1968, %v1968
      %v1993 = vpack.c.b16 %v1970, %v1969
      %v1994 = vpack.c.b16 %v1971, %v1971
      %v1995 = vpack.c.b16 %v1973, %v1972
      %v1996 = vpack.c.b16 %v1974, %v1974
      %v1997 = vpack.c.b16 %v1976, %v1975
      %v1998 = vpack.c.b16 %v1977, %v1977
      %v1999 = vpack.c.b16 %v1979, %v1978
      %v2000 = vpack.c.b16 %v1980, %v1980
      %v2001 = vpack.c.b16 %v1982, %v1981
      %v2002 = vpack.c.b16 %v1983, %v1983
      %v2003 = vpack.c.b16 %v1985, %v1984
      %v2004 = vpack.c.b16 %v1986, %v1986
      %2005 = vrot.lane.b32.xlu0 %v1989, 64
      %v2006 = vpop.permute.xlu0 %2005
      %2007 = vrot.lane.b32.xlu0 %v1990, 64
      %v2008 = vpop.permute.xlu0 %2007
      %2009 = vrot.lane.b32.xlu0 %v1991, 64
      %v2010 = vpop.permute.xlu0 %2009
      %2011 = vrot.lane.b32.xlu0 %v1992, 64
      %v2012 = vpop.permute.xlu0 %2011
      %2013 = vrot.lane.b32.xlu0 %v1993, 64
      %v2014 = vpop.permute.xlu0 %2013
      %2015 = vrot.lane.b32.xlu0 %v1994, 64
      %v2016 = vpop.permute.xlu0 %2015
      %2017 = vrot.lane.b32.xlu0 %v1995, 64
      %v2018 = vpop.permute.xlu0 %2017
      %2019 = vrot.lane.b32.xlu0 %v1996, 64
      %v2020 = vpop.permute.xlu0 %2019
      %2021 = vrot.lane.b32.xlu0 %v1997, 64
      %v2022 = vpop.permute.xlu0 %2021
      %2023 = vrot.lane.b32.xlu0 %v1998, 64
      %v2024 = vpop.permute.xlu0 %2023
      %2025 = vrot.lane.b32.xlu0 %v1999, 64
      %v2026 = vpop.permute.xlu0 %2025
      %2027 = vrot.lane.b32.xlu0 %v2000, 64
      %v2028 = vpop.permute.xlu0 %2027
      %2029 = vrot.lane.b32.xlu0 %v2001, 64
      %v2030 = vpop.permute.xlu0 %2029
      %2031 = vrot.lane.b32.xlu0 %v2002, 64
      %v2032 = vpop.permute.xlu0 %2031
      %2033 = vrot.lane.b32.xlu0 %v2003, 64
      %v2034 = vpop.permute.xlu0 %2033
      %2035 = vrot.lane.b32.xlu0 %v2004, 64
      %v2036 = vpop.permute.xlu0 %2035
      %v2040 = vunpack.c.l.b16 %v464
      %v2041 = vunpack.c.l.b16 %v465
      %v2042 = vunpack.c.l.b16 %v466
      %v2043 = vpack.c.b16 %v2041, %v2040
      %v2044 = vpack.c.b16 %v2042, %v2042
      %v2047 = vsel %vm836, %v1987, %v2006
      %v2051 = vsel %vm836, %v1988, %v2008
      %v2053 = vsel %vm836, %v1989, %v2006
      %v2056 = vsel %vm836, %v1990, %v2008
      %v2058 = vsel %vm836, %v1989, %v2010
      %v2061 = vsel %vm836, %v1990, %v2012
      %v2063 = vsel %vm836, %v1991, %v2010
      %v2066 = vsel %vm836, %v1992, %v2012
      %v2068 = vsel %vm836, %v1991, %v2014
      %v2071 = vsel %vm836, %v1992, %v2016
      %v2073 = vsel %vm836, %v1993, %v2014
      %v2076 = vsel %vm836, %v1994, %v2016
      %v2078 = vsel %vm836, %v1993, %v2018
      %v2081 = vsel %vm836, %v1994, %v2020
      %v2083 = vsel %vm836, %v1995, %v2018
      %v2086 = vsel %vm836, %v1996, %v2020
      %v2088 = vsel %vm836, %v1995, %v2022
      %v2091 = vsel %vm836, %v1996, %v2024
      %v2093 = vsel %vm836, %v1997, %v2022
      %v2096 = vsel %vm836, %v1998, %v2024
      %v2098 = vsel %vm836, %v1997, %v2026
      %v2101 = vsel %vm836, %v1998, %v2028
      %v2103 = vsel %vm836, %v1999, %v2026
      %v2106 = vsel %vm836, %v2000, %v2028
      %v2108 = vsel %vm836, %v1999, %v2030
      %v2111 = vsel %vm836, %v2000, %v2032
      %v2113 = vsel %vm836, %v2001, %v2030
      %v2116 = vsel %vm836, %v2002, %v2032
      %v2118 = vsel %vm836, %v2001, %v2034
      %v2121 = vsel %vm836, %v2002, %v2036
      %v2123 = vsel %vm836, %v2003, %v2034
      %v2126 = vsel %vm836, %v2004, %v2036
      %v2127 = vld [vmem:[%s353] sm:$0xf]
      %v2128 = vld [vmem:[%s353 + $0x4] sm:$0xf]
      %v2129 = vld [vmem:[%s353 + $0x8] sm:$0xf]
      %v2130 = vld [vmem:[%s353 + $0xc] sm:$0xf]
      %v2131 = vld [vmem:[%s353 + $0x10] sm:$0xf]
      %v2132 = vld [vmem:[%s353 + $0x14] sm:$0xf]
      %v2133 = vld [vmem:[%s353 + $0x18] sm:$0xf]
      %v2134 = vld [vmem:[%s353 + $0x1c] sm:$0xf]
      %v2135 = vld [vmem:[%s353 + $0x20] sm:$0xf]
      %v2136 = vld [vmem:[%s353 + $0x24] sm:$0xf]
      %v2137 = vld [vmem:[%s353 + $0x28] sm:$0xf]
      %v2138 = vld [vmem:[%s353 + $0x2c] sm:$0xf]
      %v2139 = vld [vmem:[%s353 + $0x30] sm:$0xf]
      %v2140 = vld [vmem:[%s353 + $0x34] sm:$0xf]
      %v2141 = vld [vmem:[%s353 + $0x38] sm:$0xf]
      %v2142 = vld [vmem:[%s353 + $0x3c] sm:$0xf]
      %v2143 = vld [vmem:[%s353 + $0x40] sm:$0xf]
      %v2144 = vld [vmem:[%s353 + $0x44] sm:$0xf]
      %v2145 = vld [vmem:[%s353 + $0x48] sm:$0xf]
      %v2146 = vld [vmem:[%s353 + $0x4c] sm:$0xf]
      %v2147 = vld [vmem:[%s353 + $0x50] sm:$0xf]
      %v2148 = vld [vmem:[%s353 + $0x54] sm:$0xf]
      %v2149 = vld [vmem:[%s353 + $0x58] sm:$0xf]
      %v2150 = vld [vmem:[%s353 + $0x5c] sm:$0xf]
      %v2151 = vshrl.u32 %v2047, 16
      %v2153 = vshll.u32 %v2047, 16
      %v2155 = vrot.slane %v2153, 1
      %v2156 = vor.u32 %v2151, %v2155
      %v2157 = vshll.u32 %v2051, 16
      %v2159 = vrot.slane %v2157, 1
      %v2160 = vsel %vm913, %v2156, %v2159
      %v2161 = vshrl.u32 %v1989, 16
      %v2163 = vshll.u32 %v1989, 16
      %v2165 = vrot.slane %v2163, 1
      %v2166 = vor.u32 %v2161, %v2165
      %v2167 = vshll.u32 %v1990, 16
      %v2169 = vrot.slane %v2167, 1
      %v2170 = vsel %vm913, %v2166, %v2169
      %v2171 = vshrl.u32 %v2053, 16
      %v2173 = vshll.u32 %v2053, 16
      %v2175 = vrot.slane %v2173, 1
      %v2176 = vor.u32 %v2171, %v2175
      %v2177 = vshll.u32 %v2056, 16
      %v2179 = vrot.slane %v2177, 1
      %v2180 = vsel %vm913, %v2176, %v2179
      %v2181 = vshrl.u32 %v1991, 16
      %v2183 = vshll.u32 %v1991, 16
      %v2185 = vrot.slane %v2183, 1
      %v2186 = vor.u32 %v2181, %v2185
      %v2187 = vshll.u32 %v1992, 16
      %v2189 = vrot.slane %v2187, 1
      %v2190 = vsel %vm913, %v2186, %v2189
      %v2191 = vshrl.u32 %v2058, 16
      %v2193 = vshll.u32 %v2058, 16
      %v2195 = vrot.slane %v2193, 1
      %v2196 = vor.u32 %v2191, %v2195
      %v2197 = vshll.u32 %v2061, 16
      %v2199 = vrot.slane %v2197, 1
      %v2200 = vsel %vm913, %v2196, %v2199
      %v2201 = vshrl.u32 %v2063, 16
      %v2203 = vshll.u32 %v2063, 16
      %v2205 = vrot.slane %v2203, 1
      %v2206 = vor.u32 %v2201, %v2205
      %v2207 = vshll.u32 %v2066, 16
      %v2209 = vrot.slane %v2207, 1
      %v2210 = vsel %vm913, %v2206, %v2209
      %v2211 = vshrl.u32 %v1993, 16
      %v2213 = vshll.u32 %v1993, 16
      %v2215 = vrot.slane %v2213, 1
      %v2216 = vor.u32 %v2211, %v2215
      %v2217 = vshll.u32 %v1994, 16
      %v2219 = vrot.slane %v2217, 1
      %v2220 = vsel %vm913, %v2216, %v2219
      %v2221 = vshrl.u32 %v2068, 16
      %v2223 = vshll.u32 %v2068, 16
      %v2225 = vrot.slane %v2223, 1
      %v2226 = vor.u32 %v2221, %v2225
      %v2227 = vshll.u32 %v2071, 16
      %v2229 = vrot.slane %v2227, 1
      %v2230 = vsel %vm913, %v2226, %v2229
      %v2231 = vshrl.u32 %v2073, 16
      %v2233 = vshll.u32 %v2073, 16
      %v2235 = vrot.slane %v2233, 1
      %v2236 = vor.u32 %v2231, %v2235
      %v2237 = vshll.u32 %v2076, 16
      %v2239 = vrot.slane %v2237, 1
      %v2240 = vsel %vm913, %v2236, %v2239
      %v2241 = vshrl.u32 %v1995, 16
      %v2243 = vshll.u32 %v1995, 16
      %v2245 = vrot.slane %v2243, 1
      %v2246 = vor.u32 %v2241, %v2245
      %v2247 = vshll.u32 %v1996, 16
      %v2249 = vrot.slane %v2247, 1
      %v2250 = vsel %vm913, %v2246, %v2249
      %v2251 = vshrl.u32 %v2078, 16
      %v2253 = vshll.u32 %v2078, 16
      %v2255 = vrot.slane %v2253, 1
      %v2256 = vor.u32 %v2251, %v2255
      %v2257 = vshll.u32 %v2081, 16
      %v2259 = vrot.slane %v2257, 1
      %v2260 = vsel %vm913, %v2256, %v2259
      %v2261 = vshrl.u32 %v2083, 16
      %v2263 = vshll.u32 %v2083, 16
      %v2265 = vrot.slane %v2263, 1
      %v2266 = vor.u32 %v2261, %v2265
      %v2267 = vshll.u32 %v2086, 16
      %v2269 = vrot.slane %v2267, 1
      %v2270 = vsel %vm913, %v2266, %v2269
      %v2271 = vshrl.u32 %v1997, 16
      %v2273 = vshll.u32 %v1997, 16
      %v2275 = vrot.slane %v2273, 1
      %v2276 = vor.u32 %v2271, %v2275
      %v2277 = vshll.u32 %v1998, 16
      %v2279 = vrot.slane %v2277, 1
      %v2280 = vsel %vm913, %v2276, %v2279
      %v2281 = vshrl.u32 %v2088, 16
      %v2283 = vshll.u32 %v2088, 16
      %v2285 = vrot.slane %v2283, 1
      %v2286 = vor.u32 %v2281, %v2285
      %v2287 = vshll.u32 %v2091, 16
      %v2289 = vrot.slane %v2287, 1
      %v2290 = vsel %vm913, %v2286, %v2289
      %v2291 = vshrl.u32 %v2093, 16
      %v2293 = vshll.u32 %v2093, 16
      %v2295 = vrot.slane %v2293, 1
      %v2296 = vor.u32 %v2291, %v2295
      %v2297 = vshll.u32 %v2096, 16
      %v2299 = vrot.slane %v2297, 1
      %v2300 = vsel %vm913, %v2296, %v2299
      %v2301 = vshrl.u32 %v1999, 16
      %v2303 = vshll.u32 %v1999, 16
      %v2305 = vrot.slane %v2303, 1
      %v2306 = vor.u32 %v2301, %v2305
      %v2307 = vshll.u32 %v2000, 16
      %v2309 = vrot.slane %v2307, 1
      %v2310 = vsel %vm913, %v2306, %v2309
      %v2311 = vshrl.u32 %v2098, 16
      %v2313 = vshll.u32 %v2098, 16
      %v2315 = vrot.slane %v2313, 1
      %v2316 = vor.u32 %v2311, %v2315
      %v2317 = vshll.u32 %v2101, 16
      %v2319 = vrot.slane %v2317, 1
      %v2320 = vsel %vm913, %v2316, %v2319
      %v2321 = vshrl.u32 %v2103, 16
      %v2323 = vshll.u32 %v2103, 16
      %v2325 = vrot.slane %v2323, 1
      %v2326 = vor.u32 %v2321, %v2325
      %v2327 = vshll.u32 %v2106, 16
      %v2329 = vrot.slane %v2327, 1
      %v2330 = vsel %vm913, %v2326, %v2329
      %v2331 = vshrl.u32 %v2001, 16
      %v2333 = vshll.u32 %v2001, 16
      %v2335 = vrot.slane %v2333, 1
      %v2336 = vor.u32 %v2331, %v2335
      %v2337 = vshll.u32 %v2002, 16
      %v2339 = vrot.slane %v2337, 1
      %v2340 = vsel %vm913, %v2336, %v2339
      %v2341 = vshrl.u32 %v2108, 16
      %v2343 = vshll.u32 %v2108, 16
      %v2345 = vrot.slane %v2343, 1
      %v2346 = vor.u32 %v2341, %v2345
      %v2347 = vshll.u32 %v2111, 16
      %v2349 = vrot.slane %v2347, 1
      %v2350 = vsel %vm913, %v2346, %v2349
      %v2351 = vshrl.u32 %v2113, 16
      %v2353 = vshll.u32 %v2113, 16
      %v2355 = vrot.slane %v2353, 1
      %v2356 = vor.u32 %v2351, %v2355
      %v2357 = vshll.u32 %v2116, 16
      %v2359 = vrot.slane %v2357, 1
      %v2360 = vsel %vm913, %v2356, %v2359
      %v2361 = vshrl.u32 %v2003, 16
      %v2363 = vshll.u32 %v2003, 16
      %v2365 = vrot.slane %v2363, 1
      %v2366 = vor.u32 %v2361, %v2365
      %v2367 = vshll.u32 %v2004, 16
      %v2369 = vrot.slane %v2367, 1
      %v2370 = vsel %vm913, %v2366, %v2369
      %v2371 = vshrl.u32 %v2118, 16
      %v2373 = vshll.u32 %v2118, 16
      %v2375 = vrot.slane %v2373, 1
      %v2376 = vor.u32 %v2371, %v2375
      %v2377 = vshll.u32 %v2121, 16
      %v2379 = vrot.slane %v2377, 1
      %v2380 = vsel %vm913, %v2376, %v2379
      %v2381 = vshrl.u32 %v2123, 16
      %v2383 = vshll.u32 %v2123, 16
      %v2385 = vrot.slane %v2383, 1
      %v2386 = vor.u32 %v2381, %v2385
      %v2387 = vshll.u32 %v2126, 16
      %v2389 = vrot.slane %v2387, 1
      %v2390 = vsel %vm913, %v2386, %v2389
      %v2392 = vshrl.u32 %v2043, 16
      %v2394 = vshll.u32 %v2043, 16
      %v2396 = vrot.slane %v2394, 1
      %v2397 = vor.u32 %v2392, %v2396
      %v2399 = vshll.u32 %v2044, 16
      %v2401 = vrot.slane %v2399, 1
      %v2402 = vsel %vm913, %v2397, %v2401
      %s2419 = scalar_lea.vmem %s353, 96
      %v2420 = vld [vmem:[%s2419] sm:$0xf]
      %v2421 = vld [vmem:[%s2419 + $0x4] sm:$0xf]
      %v2422 = vld [vmem:[%s2419 + $0x8] sm:$0xf]
      %v2423 = vld [vmem:[%s2419 + $0xc] sm:$0xf]
      %v2424 = vld [vmem:[%s2419 + $0x10] sm:$0xf]
      %v2425 = vld [vmem:[%s2419 + $0x14] sm:$0xf]
      %v2426 = vld [vmem:[%s2419 + $0x18] sm:$0xf]
      %v2427 = vld [vmem:[%s2419 + $0x1c] sm:$0xf]
      %v2428 = vld [vmem:[%s2419 + $0x20] sm:$0xf]
      %v2429 = vld [vmem:[%s2419 + $0x24] sm:$0xf]
      %v2430 = vld [vmem:[%s2419 + $0x28] sm:$0xf]
      %v2431 = vld [vmem:[%s2419 + $0x2c] sm:$0xf]
      %v2432 = vld [vmem:[%s2419 + $0x30] sm:$0xf]
      %v2433 = vld [vmem:[%s2419 + $0x34] sm:$0xf]
      %v2434 = vld [vmem:[%s2419 + $0x38] sm:$0xf]
      %v2435 = vld [vmem:[%s2419 + $0x3c] sm:$0xf]
      %v2436 = vld [vmem:[%s2419 + $0x40] sm:$0xf]
      %v2437 = vld [vmem:[%s2419 + $0x44] sm:$0xf]
      %v2438 = vld [vmem:[%s2419 + $0x48] sm:$0xf]
      %v2439 = vld [vmem:[%s2419 + $0x4c] sm:$0xf]
      %v2440 = vld [vmem:[%s2419 + $0x50] sm:$0xf]
      %v2441 = vld [vmem:[%s2419 + $0x54] sm:$0xf]
      %v2442 = vld [vmem:[%s2419 + $0x58] sm:$0xf]
      %v2443 = vld [vmem:[%s2419 + $0x5c] sm:$0xf]
      %v2468 = vunpack.c.l.b16 %v2420
      %v2469 = vunpack.c.l.b16 %v2421
      %v2470 = vunpack.c.l.b16 %v2422
      %v2471 = vunpack.c.l.b16 %v2423
      %v2472 = vunpack.c.l.b16 %v2424
      %v2473 = vunpack.c.l.b16 %v2425
      %v2474 = vunpack.c.l.b16 %v2426
      %v2475 = vunpack.c.l.b16 %v2427
      %v2476 = vunpack.c.l.b16 %v2428
      %v2477 = vunpack.c.l.b16 %v2429
      %v2478 = vunpack.c.l.b16 %v2430
      %v2479 = vunpack.c.l.b16 %v2431
      %v2480 = vunpack.c.l.b16 %v2432
      %v2481 = vunpack.c.l.b16 %v2433
      %v2482 = vunpack.c.l.b16 %v2434
      %v2483 = vunpack.c.l.b16 %v2435
      %v2484 = vunpack.c.l.b16 %v2436
      %v2485 = vunpack.c.l.b16 %v2437
      %v2486 = vunpack.c.l.b16 %v2438
      %v2487 = vunpack.c.l.b16 %v2439
      %v2488 = vunpack.c.l.b16 %v2440
      %v2489 = vunpack.c.l.b16 %v2441
      %v2490 = vunpack.c.l.b16 %v2442
      %v2491 = vunpack.c.l.b16 %v2443
      %v2492 = vpack.c.b16 %v2469, %v2468
      %v2493 = vpack.c.b16 %v2471, %v2470
      %v2494 = vpack.c.b16 %v2473, %v2472
      %v2495 = vpack.c.b16 %v2475, %v2474
      %v2496 = vpack.c.b16 %v2477, %v2476
      %v2497 = vpack.c.b16 %v2479, %v2478
      %v2498 = vpack.c.b16 %v2481, %v2480
      %v2499 = vpack.c.b16 %v2483, %v2482
      %v2500 = vpack.c.b16 %v2485, %v2484
      %v2501 = vpack.c.b16 %v2487, %v2486
      %v2502 = vpack.c.b16 %v2489, %v2488
      %v2503 = vpack.c.b16 %v2491, %v2490
      %v2517 = vsel %vm836, %v2170, 0
      %v2520 = vsel %vm836, %v2190, 0
      %v2523 = vsel %vm836, %v2220, 0
      %v2526 = vsel %vm836, %v2250, 0
      %v2529 = vsel %vm836, %v2280, 0
      %v2532 = vsel %vm836, %v2310, 0
      %v2535 = vsel %vm836, %v2340, 0
      %v2538 = vsel %vm836, %v2370, 0
      %v2541 = vsel %vm836, %v2402, 0
      %2543 = vmatprep.subr.bf16.mxu0 0
      %2544 = vmatpush1.bf16.msra.mxu0 %v2492
      %2545 = vmatprep.subr.bf16.mxu0 0
      %2546 = vmatpush1.bf16.msra.mxu0 %v2493
      %2547 = vmatprep.subr.bf16.mxu0 0
      %2548 = vmatpush1.bf16.msra.mxu0 %v2494
      %2549 = vmatprep.subr.bf16.mxu0 0
      %2550 = vmatpush1.bf16.msra.mxu0 %v2495
      %2551 = vmatprep.subr.bf16.mxu0 0
      %2552 = vmatpush1.bf16.msra.mxu0 %v2496
      %2553 = vmatprep.subr.bf16.mxu0 0
      %2554 = vmatpush1.bf16.msra.mxu0 %v2497
      %2555 = vmatprep.subr.bf16.mxu0 0
      %2556 = vmatpush1.bf16.msra.mxu0 %v2498
      %2557 = vmatprep.subr.bf16.mxu0 0
      %2558 = vmatpush1.bf16.msra.mxu0 %v2499
      %2559 = vmatprep.subr.bf16.mxu0 0
      %2560 = vmatpush1.bf16.msra.mxu0 %v2500
      %2561 = vmatprep.subr.bf16.mxu0 0
      %2562 = vmatpush1.bf16.msra.mxu0 %v2501
      %2563 = vmatprep.subr.bf16.mxu0 0
      %2564 = vmatpush1.bf16.msra.mxu0 %v2502
      %2565 = vmatprep.subr.bf16.mxu0 0
      %2566 = vmatpush1.bf16.msra.mxu0 %v2503
      %2567 = vmatprep.subr.bf16.mxu0 0
      %2568 = vmatpush1.bf16.msra.mxu0 0
      %2569 = vmatprep.subr.bf16.mxu0 0
      %2570 = vmatpush1.bf16.msra.mxu0 0
      %2571 = vmatprep.subr.bf16.mxu0 0
      %2572 = vmatpush1.bf16.msra.mxu0 0
      %2573 = vmatprep.subr.bf16.mxu0 0
      %2574 = vmatpush1.bf16.msra.mxu0 0
      %2575 = vmatprep.mubr.bf16.mxu0 %v2517
      %2576 = vmatmul.mubr.bf16.gmra.mrb[0].mxu0 %v2160
      %v2577 = vpop.f32.mrb[0].mxu0
      %v2578 = vadd.f32 0.0, %v2577
      %v2579 = vpop.f32.mrb[0].mxu0
      %v2580 = vpop.f32.mrb[0].mxu0
      %v2581 = vadd.f32 0.0, %v2580
      %v2582 = vpop.f32.mrb[0].mxu0
      %2583 = vmatprep.mubr.bf16.mxu0 %v2520
      %2584 = vmatmul.mubr.bf16.gmra.mrb[0].mxu0 %v2180
      %v2585 = vpop.f32.mrb[0].mxu0
      %v2586 = vadd.f32 0.0, %v2585
      %v2587 = vpop.f32.mrb[0].mxu0
      %v2588 = vpop.f32.mrb[0].mxu0
      %v2589 = vadd.f32 0.0, %v2588
      %v2590 = vpop.f32.mrb[0].mxu0
      %2591 = vmatprep.mubr.bf16.mxu0 %v2520
      %2592 = vmatmul.mubr.bf16.gmra.mrb[0].mxu0 %v2200
      %v2593 = vpop.f32.mrb[0].mxu0
      %v2594 = vadd.f32 0.0, %v2593
      %v2595 = vpop.f32.mrb[0].mxu0
      %v2596 = vpop.f32.mrb[0].mxu0
      %v2597 = vadd.f32 0.0, %v2596
      %v2598 = vpop.f32.mrb[0].mxu0
      %2599 = vmatprep.mubr.bf16.mxu0 %v2523
      %2600 = vmatmul.mubr.bf16.gmra.mrb[0].mxu0 %v2210
      %v2601 = vpop.f32.mrb[0].mxu0
      %v2602 = vadd.f32 0.0, %v2601
      %v2603 = vpop.f32.mrb[0].mxu0
      %v2604 = vpop.f32.mrb[0].mxu0
      %v2605 = vadd.f32 0.0, %v2604
      %v2606 = vpop.f32.mrb[0].mxu0
      %2607 = vmatprep.mubr.bf16.mxu0 %v2523
      %2608 = vmatmul.mubr.bf16.gmra.mrb[0].mxu0 %v2230
      %v2609 = vpop.f32.mrb[0].mxu0
      %v2610 = vadd.f32 0.0, %v2609
      %v2611 = vpop.f32.mrb[0].mxu0
      %v2612 = vpop.f32.mrb[0].mxu0
      %v2613 = vadd.f32 0.0, %v2612
      %v2614 = vpop.f32.mrb[0].mxu0
      %2615 = vmatprep.mubr.bf16.mxu0 %v2526
      %2616 = vmatmul.mubr.bf16.gmra.mrb[0].mxu0 %v2240
      %v2617 = vpop.f32.mrb[0].mxu0
      %v2618 = vadd.f32 0.0, %v2617
      %v2619 = vpop.f32.mrb[0].mxu0
      %v2620 = vpop.f32.mrb[0].mxu0
      %v2621 = vadd.f32 0.0, %v2620
      %v2622 = vpop.f32.mrb[0].mxu0
      %2623 = vmatprep.mubr.bf16.mxu0 %v2526
      %2624 = vmatmul.mubr.bf16.gmra.mrb[0].mxu0 %v2260
      %v2625 = vpop.f32.mrb[0].mxu0
      %v2626 = vadd.f32 0.0, %v2625
      %v2627 = vpop.f32.mrb[0].mxu0
      %v2628 = vpop.f32.mrb[0].mxu0
      %v2629 = vadd.f32 0.0, %v2628
      %v2630 = vpop.f32.mrb[0].mxu0
      %2631 = vmatprep.mubr.bf16.mxu0 %v2529
      %2632 = vmatmul.mubr.bf16.gmra.mrb[0].mxu0 %v2270
      %v2633 = vpop.f32.mrb[0].mxu0
      %v2634 = vadd.f32 0.0, %v2633
      %v2635 = vpop.f32.mrb[0].mxu0
      %v2636 = vpop.f32.mrb[0].mxu0
      %v2637 = vadd.f32 0.0, %v2636
      %v2638 = vpop.f32.mrb[0].mxu0
      %2639 = vmatprep.mubr.bf16.mxu0 %v2529
      %2640 = vmatmul.mubr.bf16.gmra.mrb[0].mxu0 %v2290
      %v2641 = vpop.f32.mrb[0].mxu0
      %v2642 = vadd.f32 0.0, %v2641
      %v2643 = vpop.f32.mrb[0].mxu0
      %v2644 = vpop.f32.mrb[0].mxu0
      %v2645 = vadd.f32 0.0, %v2644
      %v2646 = vpop.f32.mrb[0].mxu0
      %2647 = vmatprep.mubr.bf16.mxu0 %v2532
      %2648 = vmatmul.mubr.bf16.gmra.mrb[0].mxu0 %v2300
      %v2649 = vpop.f32.mrb[0].mxu0
      %v2650 = vadd.f32 0.0, %v2649
      %v2651 = vpop.f32.mrb[0].mxu0
      %v2652 = vpop.f32.mrb[0].mxu0
      %v2653 = vadd.f32 0.0, %v2652
      %v2654 = vpop.f32.mrb[0].mxu0
      %2655 = vmatprep.mubr.bf16.mxu0 %v2532
      %2656 = vmatmul.mubr.bf16.gmra.mrb[0].mxu0 %v2320
      %v2657 = vpop.f32.mrb[0].mxu0
      %v2658 = vadd.f32 0.0, %v2657
      %v2659 = vpop.f32.mrb[0].mxu0
      %v2660 = vpop.f32.mrb[0].mxu0
      %v2661 = vadd.f32 0.0, %v2660
      %v2662 = vpop.f32.mrb[0].mxu0
      %2663 = vmatprep.mubr.bf16.mxu0 %v2535
      %2664 = vmatmul.mubr.bf16.gmra.mrb[0].mxu0 %v2330
      %v2665 = vpop.f32.mrb[0].mxu0
      %v2666 = vadd.f32 0.0, %v2665
      %v2667 = vpop.f32.mrb[0].mxu0
      %v2668 = vpop.f32.mrb[0].mxu0
      %v2669 = vadd.f32 0.0, %v2668
      %v2670 = vpop.f32.mrb[0].mxu0
      %2671 = vmatprep.mubr.bf16.mxu0 %v2535
      %2672 = vmatmul.mubr.bf16.gmra.mrb[0].mxu0 %v2350
      %v2673 = vpop.f32.mrb[0].mxu0
      %v2674 = vadd.f32 0.0, %v2673
      %v2675 = vpop.f32.mrb[0].mxu0
      %v2676 = vpop.f32.mrb[0].mxu0
      %v2677 = vadd.f32 0.0, %v2676
      %v2678 = vpop.f32.mrb[0].mxu0
      %2679 = vmatprep.mubr.bf16.mxu0 %v2538
      %2680 = vmatmul.mubr.bf16.gmra.mrb[0].mxu0 %v2360
      %v2681 = vpop.f32.mrb[0].mxu0
      %v2682 = vadd.f32 0.0, %v2681
      %v2683 = vpop.f32.mrb[0].mxu0
      %v2684 = vpop.f32.mrb[0].mxu0
      %v2685 = vadd.f32 0.0, %v2684
      %v2686 = vpop.f32.mrb[0].mxu0
      %2687 = vmatprep.mubr.bf16.mxu0 %v2538
      %2688 = vmatmul.mubr.bf16.gmra.mrb[0].mxu0 %v2380
      %v2689 = vpop.f32.mrb[0].mxu0
      %v2690 = vadd.f32 0.0, %v2689
      %v2691 = vpop.f32.mrb[0].mxu0
      %v2692 = vpop.f32.mrb[0].mxu0
      %v2693 = vadd.f32 0.0, %v2692
      %v2694 = vpop.f32.mrb[0].mxu0
      %2695 = vmatprep.mubr.bf16.mxu0 %v2541
      %2696 = vmatmul.mubr.bf16.gmra.mrb[0].mxu0 %v2390
      %v2697 = vpop.f32.mrb[0].mxu0
      %v2698 = vadd.f32 0.0, %v2697
      %v2699 = vpop.f32.mrb[0].mxu0
      %v2700 = vpop.f32.mrb[0].mxu0
      %v2701 = vadd.f32 0.0, %v2700
      %v2702 = vpop.f32.mrb[0].mxu0
      %2703 = vdwg.mxu0
      %v2728 = vunpack.c.l.b16 %v2127
      %v2729 = vunpack.c.l.b16 %v2128
      %v2730 = vunpack.c.l.b16 %v2129
      %v2731 = vunpack.c.l.b16 %v2130
      %v2732 = vunpack.c.l.b16 %v2131
      %v2733 = vunpack.c.l.b16 %v2132
      %v2734 = vunpack.c.l.b16 %v2133
      %v2735 = vunpack.c.l.b16 %v2134
      %v2736 = vunpack.c.l.b16 %v2135
      %v2737 = vunpack.c.l.b16 %v2136
      %v2738 = vunpack.c.l.b16 %v2137
      %v2739 = vunpack.c.l.b16 %v2138
      %v2740 = vunpack.c.l.b16 %v2139
      %v2741 = vunpack.c.l.b16 %v2140
      %v2742 = vunpack.c.l.b16 %v2141
      %v2743 = vunpack.c.l.b16 %v2142
      %v2744 = vunpack.c.l.b16 %v2143
      %v2745 = vunpack.c.l.b16 %v2144
      %v2746 = vunpack.c.l.b16 %v2145
      %v2747 = vunpack.c.l.b16 %v2146
      %v2748 = vunpack.c.l.b16 %v2147
      %v2749 = vunpack.c.l.b16 %v2148
      %v2750 = vunpack.c.l.b16 %v2149
      %v2751 = vunpack.c.l.b16 %v2150
      %v2752 = vpack.c.b16 %v2729, %v2728
      %v2753 = vpack.c.b16 %v2731, %v2730
      %v2754 = vpack.c.b16 %v2733, %v2732
      %v2755 = vpack.c.b16 %v2735, %v2734
      %v2756 = vpack.c.b16 %v2737, %v2736
      %v2757 = vpack.c.b16 %v2739, %v2738
      %v2758 = vpack.c.b16 %v2741, %v2740
      %v2759 = vpack.c.b16 %v2743, %v2742
      %v2760 = vpack.c.b16 %v2745, %v2744
      %v2761 = vpack.c.b16 %v2747, %v2746
      %v2762 = vpack.c.b16 %v2749, %v2748
      %v2763 = vpack.c.b16 %v2751, %v2750
      %v2776 = vsel %vm836, %v1989, 0
      %v2778 = vsel %vm836, %v1991, 0
      %v2780 = vsel %vm836, %v1993, 0
      %v2782 = vsel %vm836, %v1995, 0
      %v2784 = vsel %vm836, %v1997, 0
      %v2786 = vsel %vm836, %v1999, 0
      %v2788 = vsel %vm836, %v2001, 0
      %v2790 = vsel %vm836, %v2003, 0
      %v2792 = vsel %vm836, %v2043, 0
      %2794 = vmatprep.subr.bf16.mxu0 0
      %2795 = vmatpush1.bf16.msra.mxu0 %v2752
      %2796 = vmatprep.subr.bf16.mxu0 0
      %2797 = vmatpush1.bf16.msra.mxu0 %v2753
      %2798 = vmatprep.subr.bf16.mxu0 0
      %2799 = vmatpush1.bf16.msra.mxu0 %v2754
      %2800 = vmatprep.subr.bf16.mxu0 0
      %2801 = vmatpush1.bf16.msra.mxu0 %v2755
      %2802 = vmatprep.subr.bf16.mxu0 0
      %2803 = vmatpush1.bf16.msra.mxu0 %v2756
      %2804 = vmatprep.subr.bf16.mxu0 0
      %2805 = vmatpush1.bf16.msra.mxu0 %v2757
      %2806 = vmatprep.subr.bf16.mxu0 0
      %2807 = vmatpush1.bf16.msra.mxu0 %v2758
      %2808 = vmatprep.subr.bf16.mxu0 0
      %2809 = vmatpush1.bf16.msra.mxu0 %v2759
      %2810 = vmatprep.subr.bf16.mxu0 0
      %2811 = vmatpush1.bf16.msra.mxu0 %v2760
      %2812 = vmatprep.subr.bf16.mxu0 0
      %2813 = vmatpush1.bf16.msra.mxu0 %v2761
      %2814 = vmatprep.subr.bf16.mxu0 0
      %2815 = vmatpush1.bf16.msra.mxu0 %v2762
      %2816 = vmatprep.subr.bf16.mxu0 0
      %2817 = vmatpush1.bf16.msra.mxu0 %v2763
      %2818 = vmatprep.subr.bf16.mxu0 0
      %2819 = vmatpush1.bf16.msra.mxu0 0
      %2820 = vmatprep.subr.bf16.mxu0 0
      %2821 = vmatpush1.bf16.msra.mxu0 0
      %2822 = vmatprep.subr.bf16.mxu0 0
      %2823 = vmatpush1.bf16.msra.mxu0 0
      %2824 = vmatprep.subr.bf16.mxu0 0
      %2825 = vmatpush1.bf16.msra.mxu0 0
      %2826 = vmatprep.mubr.bf16.mxu0 %v2776
      %2827 = vmatmul.mubr.bf16.gmra.mrb[0].mxu0 %v2047
      %v2828 = vpop.f32.mrb[0].mxu0
      %v2829 = vadd.f32 %v2578, %v2828
      %v2830 = vpop.f32.mrb[0].mxu0
      %v2831 = vpop.f32.mrb[0].mxu0
      %v2832 = vadd.f32 %v2581, %v2831
      %v2833 = vpop.f32.mrb[0].mxu0
      %2834 = vmatprep.mubr.bf16.mxu0 %v2778
      %2835 = vmatmul.mubr.bf16.gmra.mrb[0].mxu0 %v2053
      %v2836 = vpop.f32.mrb[0].mxu0
      %v2837 = vadd.f32 %v2586, %v2836
      %v2838 = vpop.f32.mrb[0].mxu0
      %v2839 = vpop.f32.mrb[0].mxu0
      %v2840 = vadd.f32 %v2589, %v2839
      %v2841 = vpop.f32.mrb[0].mxu0
      %2842 = vmatprep.mubr.bf16.mxu0 %v2778
      %2843 = vmatmul.mubr.bf16.gmra.mrb[0].mxu0 %v2058
      %v2844 = vpop.f32.mrb[0].mxu0
      %v2845 = vadd.f32 %v2594, %v2844
      %v2846 = vpop.f32.mrb[0].mxu0
      %v2847 = vpop.f32.mrb[0].mxu0
      %v2848 = vadd.f32 %v2597, %v2847
      %v2849 = vpop.f32.mrb[0].mxu0
      %2850 = vmatprep.mubr.bf16.mxu0 %v2780
      %2851 = vmatmul.mubr.bf16.gmra.mrb[0].mxu0 %v2063
      %v2852 = vpop.f32.mrb[0].mxu0
      %v2853 = vadd.f32 %v2602, %v2852
      %v2854 = vpop.f32.mrb[0].mxu0
      %v2855 = vpop.f32.mrb[0].mxu0
      %v2856 = vadd.f32 %v2605, %v2855
      %v2857 = vpop.f32.mrb[0].mxu0
      %2858 = vmatprep.mubr.bf16.mxu0 %v2780
      %2859 = vmatmul.mubr.bf16.gmra.mrb[0].mxu0 %v2068
      %v2860 = vpop.f32.mrb[0].mxu0
      %v2861 = vadd.f32 %v2610, %v2860
      %v2862 = vpop.f32.mrb[0].mxu0
      %v2863 = vpop.f32.mrb[0].mxu0
      %v2864 = vadd.f32 %v2613, %v2863
      %v2865 = vpop.f32.mrb[0].mxu0
      %2866 = vmatprep.mubr.bf16.mxu0 %v2782
      %2867 = vmatmul.mubr.bf16.gmra.mrb[0].mxu0 %v2073
      %v2868 = vpop.f32.mrb[0].mxu0
      %v2869 = vadd.f32 %v2618, %v2868
      %v2870 = vpop.f32.mrb[0].mxu0
      %v2871 = vpop.f32.mrb[0].mxu0
      %v2872 = vadd.f32 %v2621, %v2871
      %v2873 = vpop.f32.mrb[0].mxu0
      %2874 = vmatprep.mubr.bf16.mxu0 %v2782
      %2875 = vmatmul.mubr.bf16.gmra.mrb[0].mxu0 %v2078
      %v2876 = vpop.f32.mrb[0].mxu0
      %v2877 = vadd.f32 %v2626, %v2876
      %v2878 = vpop.f32.mrb[0].mxu0
      %v2879 = vpop.f32.mrb[0].mxu0
      %v2880 = vadd.f32 %v2629, %v2879
      %v2881 = vpop.f32.mrb[0].mxu0
      %2882 = vmatprep.mubr.bf16.mxu0 %v2784
      %2883 = vmatmul.mubr.bf16.gmra.mrb[0].mxu0 %v2083
      %v2884 = vpop.f32.mrb[0].mxu0
      %v2885 = vadd.f32 %v2634, %v2884
      %v2886 = vpop.f32.mrb[0].mxu0
      %v2887 = vpop.f32.mrb[0].mxu0
      %v2888 = vadd.f32 %v2637, %v2887
      %v2889 = vpop.f32.mrb[0].mxu0
      %2890 = vmatprep.mubr.bf16.mxu0 %v2784
      %2891 = vmatmul.mubr.bf16.gmra.mrb[0].mxu0 %v2088
      %v2892 = vpop.f32.mrb[0].mxu0
      %v2893 = vadd.f32 %v2642, %v2892
      %v2894 = vpop.f32.mrb[0].mxu0
      %v2895 = vpop.f32.mrb[0].mxu0
      %v2896 = vadd.f32 %v2645, %v2895
      %v2897 = vpop.f32.mrb[0].mxu0
      %2898 = vmatprep.mubr.bf16.mxu0 %v2786
      %2899 = vmatmul.mubr.bf16.gmra.mrb[0].mxu0 %v2093
      %v2900 = vpop.f32.mrb[0].mxu0
      %v2901 = vadd.f32 %v2650, %v2900
      %v2902 = vpop.f32.mrb[0].mxu0
      %v2903 = vpop.f32.mrb[0].mxu0
      %v2904 = vadd.f32 %v2653, %v2903
      %v2905 = vpop.f32.mrb[0].mxu0
      %2906 = vmatprep.mubr.bf16.mxu0 %v2786
      %2907 = vmatmul.mubr.bf16.gmra.mrb[0].mxu0 %v2098
      %v2908 = vpop.f32.mrb[0].mxu0
      %v2909 = vadd.f32 %v2658, %v2908
      %v2910 = vpop.f32.mrb[0].mxu0
      %v2911 = vpop.f32.mrb[0].mxu0
      %v2912 = vadd.f32 %v2661, %v2911
      %v2913 = vpop.f32.mrb[0].mxu0
      %2914 = vmatprep.mubr.bf16.mxu0 %v2788
      %2915 = vmatmul.mubr.bf16.gmra.mrb[0].mxu0 %v2103
      %v2916 = vpop.f32.mrb[0].mxu0
      %v2917 = vadd.f32 %v2666, %v2916
      %v2918 = vpop.f32.mrb[0].mxu0
      %v2919 = vpop.f32.mrb[0].mxu0
      %v2920 = vadd.f32 %v2669, %v2919
      %v2921 = vpop.f32.mrb[0].mxu0
      %2922 = vmatprep.mubr.bf16.mxu0 %v2788
      %2923 = vmatmul.mubr.bf16.gmra.mrb[0].mxu0 %v2108
      %v2924 = vpop.f32.mrb[0].mxu0
      %v2925 = vadd.f32 %v2674, %v2924
      %v2926 = vpop.f32.mrb[0].mxu0
      %v2927 = vpop.f32.mrb[0].mxu0
      %v2928 = vadd.f32 %v2677, %v2927
      %v2929 = vpop.f32.mrb[0].mxu0
      %2930 = vmatprep.mubr.bf16.mxu0 %v2790
      %2931 = vmatmul.mubr.bf16.gmra.mrb[0].mxu0 %v2113
      %v2932 = vpop.f32.mrb[0].mxu0
      %v2933 = vadd.f32 %v2682, %v2932
      %v2934 = vpop.f32.mrb[0].mxu0
      %v2935 = vpop.f32.mrb[0].mxu0
      %v2936 = vadd.f32 %v2685, %v2935
      %v2937 = vpop.f32.mrb[0].mxu0
      %2938 = vmatprep.mubr.bf16.mxu0 %v2790
      %2939 = vmatmul.mubr.bf16.gmra.mrb[0].mxu0 %v2118
      %v2940 = vpop.f32.mrb[0].mxu0
      %v2941 = vadd.f32 %v2690, %v2940
      %v2942 = vpop.f32.mrb[0].mxu0
      %v2943 = vpop.f32.mrb[0].mxu0
      %v2944 = vadd.f32 %v2693, %v2943
      %v2945 = vpop.f32.mrb[0].mxu0
      %2946 = vmatprep.mubr.bf16.mxu0 %v2792
      %2947 = vmatmul.mubr.bf16.gmra.mrb[0].mxu0 %v2123
      %v2948 = vpop.f32.mrb[0].mxu0
      %v2949 = vadd.f32 %v2698, %v2948
      %v2950 = vpop.f32.mrb[0].mxu0
      %v2951 = vpop.f32.mrb[0].mxu0
      %v2952 = vadd.f32 %v2701, %v2951
      %v2953 = vpop.f32.mrb[0].mxu0
      %2954 = vdwg.mxu0
      %v2987 = vrot.slane %v2047, 1
      %v2988 = vrot.slane %v2051, 1
      %v2989 = vsel %vm1594, %v2987, %v2988
      %v2990 = vrot.slane %v1989, 1
      %v2991 = vrot.slane %v1990, 1
      %v2992 = vsel %vm1594, %v2990, %v2991
      %v2993 = vrot.slane %v2053, 1
      %v2994 = vrot.slane %v2056, 1
      %v2995 = vsel %vm1594, %v2993, %v2994
      %v2996 = vrot.slane %v1991, 1
      %v2997 = vrot.slane %v1992, 1
      %v2998 = vsel %vm1594, %v2996, %v2997
      %v2999 = vrot.slane %v2058, 1
      %v3000 = vrot.slane %v2061, 1
      %v3001 = vsel %vm1594, %v2999, %v3000
      %v3002 = vrot.slane %v2063, 1
      %v3003 = vrot.slane %v2066, 1
      %v3004 = vsel %vm1594, %v3002, %v3003
      %v3005 = vrot.slane %v1993, 1
      %v3006 = vrot.slane %v1994, 1
      %v3007 = vsel %vm1594, %v3005, %v3006
      %v3008 = vrot.slane %v2068, 1
      %v3009 = vrot.slane %v2071, 1
      %v3010 = vsel %vm1594, %v3008, %v3009
      %v3011 = vrot.slane %v2073, 1
      %v3012 = vrot.slane %v2076, 1
      %v3013 = vsel %vm1594, %v3011, %v3012
      %v3014 = vrot.slane %v1995, 1
      %v3015 = vrot.slane %v1996, 1
      %v3016 = vsel %vm1594, %v3014, %v3015
      %v3017 = vrot.slane %v2078, 1
      %v3018 = vrot.slane %v2081, 1
      %v3019 = vsel %vm1594, %v3017, %v3018
      %v3020 = vrot.slane %v2083, 1
      %v3021 = vrot.slane %v2086, 1
      %v3022 = vsel %vm1594, %v3020, %v3021
      %v3023 = vrot.slane %v1997, 1
      %v3024 = vrot.slane %v1998, 1
      %v3025 = vsel %vm1594, %v3023, %v3024
      %v3026 = vrot.slane %v2088, 1
      %v3027 = vrot.slane %v2091, 1
      %v3028 = vsel %vm1594, %v3026, %v3027
      %v3029 = vrot.slane %v2093, 1
      %v3030 = vrot.slane %v2096, 1
      %v3031 = vsel %vm1594, %v3029, %v3030
      %v3032 = vrot.slane %v1999, 1
      %v3033 = vrot.slane %v2000, 1
      %v3034 = vsel %vm1594, %v3032, %v3033
      %v3035 = vrot.slane %v2098, 1
      %v3036 = vrot.slane %v2101, 1
      %v3037 = vsel %vm1594, %v3035, %v3036
      %v3038 = vrot.slane %v2103, 1
      %v3039 = vrot.slane %v2106, 1
      %v3040 = vsel %vm1594, %v3038, %v3039
      %v3041 = vrot.slane %v2001, 1
      %v3042 = vrot.slane %v2002, 1
      %v3043 = vsel %vm1594, %v3041, %v3042
      %v3044 = vrot.slane %v2108, 1
      %v3045 = vrot.slane %v2111, 1
      %v3046 = vsel %vm1594, %v3044, %v3045
      %v3047 = vrot.slane %v2113, 1
      %v3048 = vrot.slane %v2116, 1
      %v3049 = vsel %vm1594, %v3047, %v3048
      %v3050 = vrot.slane %v2003, 1
      %v3051 = vrot.slane %v2004, 1
      %v3052 = vsel %vm1594, %v3050, %v3051
      %v3053 = vrot.slane %v2118, 1
      %v3054 = vrot.slane %v2121, 1
      %v3055 = vsel %vm1594, %v3053, %v3054
      %v3056 = vrot.slane %v2123, 1
      %v3057 = vrot.slane %v2126, 1
      %v3058 = vsel %vm1594, %v3056, %v3057
      %v3059 = vrot.slane %v2043, 1
      %v3060 = vrot.slane %v2044, 1
      %v3061 = vsel %vm1594, %v3059, %v3060
      %s3078 = scalar_lea.vmem %s353, 192
      %v3079 = vld [vmem:[%s3078] sm:$0xf]
      %v3080 = vld [vmem:[%s3078 + $0x4] sm:$0xf]
      %v3081 = vld [vmem:[%s3078 + $0x8] sm:$0xf]
      %v3082 = vld [vmem:[%s3078 + $0xc] sm:$0xf]
      %v3083 = vld [vmem:[%s3078 + $0x10] sm:$0xf]
      %v3084 = vld [vmem:[%s3078 + $0x14] sm:$0xf]
      %v3085 = vld [vmem:[%s3078 + $0x18] sm:$0xf]
      %v3086 = vld [vmem:[%s3078 + $0x1c] sm:$0xf]
      %v3087 = vld [vmem:[%s3078 + $0x20] sm:$0xf]
      %v3088 = vld [vmem:[%s3078 + $0x24] sm:$0xf]
      %v3089 = vld [vmem:[%s3078 + $0x28] sm:$0xf]
      %v3090 = vld [vmem:[%s3078 + $0x2c] sm:$0xf]
      %v3091 = vld [vmem:[%s3078 + $0x30] sm:$0xf]
      %v3092 = vld [vmem:[%s3078 + $0x34] sm:$0xf]
      %v3093 = vld [vmem:[%s3078 + $0x38] sm:$0xf]
      %v3094 = vld [vmem:[%s3078 + $0x3c] sm:$0xf]
      %v3095 = vld [vmem:[%s3078 + $0x40] sm:$0xf]
      %v3096 = vld [vmem:[%s3078 + $0x44] sm:$0xf]
      %v3097 = vld [vmem:[%s3078 + $0x48] sm:$0xf]
      %v3098 = vld [vmem:[%s3078 + $0x4c] sm:$0xf]
      %v3099 = vld [vmem:[%s3078 + $0x50] sm:$0xf]
      %v3100 = vld [vmem:[%s3078 + $0x54] sm:$0xf]
      %v3101 = vld [vmem:[%s3078 + $0x58] sm:$0xf]
      %v3102 = vld [vmem:[%s3078 + $0x5c] sm:$0xf]
      %v3127 = vunpack.c.l.b16 %v3079
      %v3128 = vunpack.c.l.b16 %v3080
      %v3129 = vunpack.c.l.b16 %v3081
      %v3130 = vunpack.c.l.b16 %v3082
      %v3131 = vunpack.c.l.b16 %v3083
      %v3132 = vunpack.c.l.b16 %v3084
      %v3133 = vunpack.c.l.b16 %v3085
      %v3134 = vunpack.c.l.b16 %v3086
      %v3135 = vunpack.c.l.b16 %v3087
      %v3136 = vunpack.c.l.b16 %v3088
      %v3137 = vunpack.c.l.b16 %v3089
      %v3138 = vunpack.c.l.b16 %v3090
      %v3139 = vunpack.c.l.b16 %v3091
      %v3140 = vunpack.c.l.b16 %v3092
      %v3141 = vunpack.c.l.b16 %v3093
      %v3142 = vunpack.c.l.b16 %v3094
      %v3143 = vunpack.c.l.b16 %v3095
      %v3144 = vunpack.c.l.b16 %v3096
      %v3145 = vunpack.c.l.b16 %v3097
      %v3146 = vunpack.c.l.b16 %v3098
      %v3147 = vunpack.c.l.b16 %v3099
      %v3148 = vunpack.c.l.b16 %v3100
      %v3149 = vunpack.c.l.b16 %v3101
      %v3150 = vunpack.c.l.b16 %v3102
      %v3151 = vpack.c.b16 %v3128, %v3127
      %v3152 = vpack.c.b16 %v3130, %v3129
      %v3153 = vpack.c.b16 %v3132, %v3131
      %v3154 = vpack.c.b16 %v3134, %v3133
      %v3155 = vpack.c.b16 %v3136, %v3135
      %v3156 = vpack.c.b16 %v3138, %v3137
      %v3157 = vpack.c.b16 %v3140, %v3139
      %v3158 = vpack.c.b16 %v3142, %v3141
      %v3159 = vpack.c.b16 %v3144, %v3143
      %v3160 = vpack.c.b16 %v3146, %v3145
      %v3161 = vpack.c.b16 %v3148, %v3147
      %v3162 = vpack.c.b16 %v3150, %v3149
      %v3176 = vsel %vm836, %v2992, 0
      %v3179 = vsel %vm836, %v2998, 0
      %v3182 = vsel %vm836, %v3007, 0
      %v3185 = vsel %vm836, %v3016, 0
      %v3188 = vsel %vm836, %v3025, 0
      %v3191 = vsel %vm836, %v3034, 0
      %v3194 = vsel %vm836, %v3043, 0
      %v3197 = vsel %vm836, %v3052, 0
      %v3200 = vsel %vm836, %v3061, 0
      %3202 = vmatprep.subr.bf16.mxu0 0
      %3203 = vmatpush1.bf16.msra.mxu0 %v3151
      %3204 = vmatprep.subr.bf16.mxu0 0
      %3205 = vmatpush1.bf16.msra.mxu0 %v3152
      %3206 = vmatprep.subr.bf16.mxu0 0
      %3207 = vmatpush1.bf16.msra.mxu0 %v3153
      %3208 = vmatprep.subr.bf16.mxu0 0
      %3209 = vmatpush1.bf16.msra.mxu0 %v3154
      %3210 = vmatprep.subr.bf16.mxu0 0
      %3211 = vmatpush1.bf16.msra.mxu0 %v3155
      %3212 = vmatprep.subr.bf16.mxu0 0
      %3213 = vmatpush1.bf16.msra.mxu0 %v3156
      %3214 = vmatprep.subr.bf16.mxu0 0
      %3215 = vmatpush1.bf16.msra.mxu0 %v3157
      %3216 = vmatprep.subr.bf16.mxu0 0
      %3217 = vmatpush1.bf16.msra.mxu0 %v3158
      %3218 = vmatprep.subr.bf16.mxu0 0
      %3219 = vmatpush1.bf16.msra.mxu0 %v3159
      %3220 = vmatprep.subr.bf16.mxu0 0
      %3221 = vmatpush1.bf16.msra.mxu0 %v3160
      %3222 = vmatprep.subr.bf16.mxu0 0
      %3223 = vmatpush1.bf16.msra.mxu0 %v3161
      %3224 = vmatprep.subr.bf16.mxu0 0
      %3225 = vmatpush1.bf16.msra.mxu0 %v3162
      %3226 = vmatprep.subr.bf16.mxu0 0
      %3227 = vmatpush1.bf16.msra.mxu0 0
      %3228 = vmatprep.subr.bf16.mxu0 0
      %3229 = vmatpush1.bf16.msra.mxu0 0
      %3230 = vmatprep.subr.bf16.mxu0 0
      %3231 = vmatpush1.bf16.msra.mxu0 0
      %3232 = vmatprep.subr.bf16.mxu0 0
      %3233 = vmatpush1.bf16.msra.mxu0 0
      %3234 = vmatprep.mubr.bf16.mxu0 %v3176
      %3235 = vmatmul.mubr.bf16.gmra.mrb[0].mxu0 %v2989
      %v3236 = vpop.f32.mrb[0].mxu0
      %v3237 = vadd.f32 0.0, %v3236
      %v3238 = vpop.f32.mrb[0].mxu0
      %v3239 = vpop.f32.mrb[0].mxu0
      %v3240 = vadd.f32 0.0, %v3239
      %v3241 = vpop.f32.mrb[0].mxu0
      %3242 = vmatprep.mubr.bf16.mxu0 %v3179
      %3243 = vmatmul.mubr.bf16.gmra.mrb[0].mxu0 %v2995
      %v3244 = vpop.f32.mrb[0].mxu0
      %v3245 = vadd.f32 0.0, %v3244
      %v3246 = vpop.f32.mrb[0].mxu0
      %v3247 = vpop.f32.mrb[0].mxu0
      %v3248 = vadd.f32 0.0, %v3247
      %v3249 = vpop.f32.mrb[0].mxu0
      %3250 = vmatprep.mubr.bf16.mxu0 %v3179
      %3251 = vmatmul.mubr.bf16.gmra.mrb[0].mxu0 %v3001
      %v3252 = vpop.f32.mrb[0].mxu0
      %v3253 = vadd.f32 0.0, %v3252
      %v3254 = vpop.f32.mrb[0].mxu0
      %v3255 = vpop.f32.mrb[0].mxu0
      %v3256 = vadd.f32 0.0, %v3255
      %v3257 = vpop.f32.mrb[0].mxu0
      %3258 = vmatprep.mubr.bf16.mxu0 %v3182
      %3259 = vmatmul.mubr.bf16.gmra.mrb[0].mxu0 %v3004
      %v3260 = vpop.f32.mrb[0].mxu0
      %v3261 = vadd.f32 0.0, %v3260
      %v3262 = vpop.f32.mrb[0].mxu0
      %v3263 = vpop.f32.mrb[0].mxu0
      %v3264 = vadd.f32 0.0, %v3263
      %v3265 = vpop.f32.mrb[0].mxu0
      %3266 = vmatprep.mubr.bf16.mxu0 %v3182
      %3267 = vmatmul.mubr.bf16.gmra.mrb[0].mxu0 %v3010
      %v3268 = vpop.f32.mrb[0].mxu0
      %v3269 = vadd.f32 0.0, %v3268
      %v3270 = vpop.f32.mrb[0].mxu0
      %v3271 = vpop.f32.mrb[0].mxu0
      %v3272 = vadd.f32 0.0, %v3271
      %v3273 = vpop.f32.mrb[0].mxu0
      %3274 = vmatprep.mubr.bf16.mxu0 %v3185
      %3275 = vmatmul.mubr.bf16.gmra.mrb[0].mxu0 %v3013
      %v3276 = vpop.f32.mrb[0].mxu0
      %v3277 = vadd.f32 0.0, %v3276
      %v3278 = vpop.f32.mrb[0].mxu0
      %v3279 = vpop.f32.mrb[0].mxu0
      %v3280 = vadd.f32 0.0, %v3279
      %v3281 = vpop.f32.mrb[0].mxu0
      %3282 = vmatprep.mubr.bf16.mxu0 %v3185
      %3283 = vmatmul.mubr.bf16.gmra.mrb[0].mxu0 %v3019
      %v3284 = vpop.f32.mrb[0].mxu0
      %v3285 = vadd.f32 0.0, %v3284
      %v3286 = vpop.f32.mrb[0].mxu0
      %v3287 = vpop.f32.mrb[0].mxu0
      %v3288 = vadd.f32 0.0, %v3287
      %v3289 = vpop.f32.mrb[0].mxu0
      %3290 = vmatprep.mubr.bf16.mxu0 %v3188
      %3291 = vmatmul.mubr.bf16.gmra.mrb[0].mxu0 %v3022
      %v3292 = vpop.f32.mrb[0].mxu0
      %v3293 = vadd.f32 0.0, %v3292
      %v3294 = vpop.f32.mrb[0].mxu0
      %v3295 = vpop.f32.mrb[0].mxu0
      %v3296 = vadd.f32 0.0, %v3295
      %v3297 = vpop.f32.mrb[0].mxu0
      %3298 = vmatprep.mubr.bf16.mxu0 %v3188
      %3299 = vmatmul.mubr.bf16.gmra.mrb[0].mxu0 %v3028
      %v3300 = vpop.f32.mrb[0].mxu0
      %v3301 = vadd.f32 0.0, %v3300
      %v3302 = vpop.f32.mrb[0].mxu0
      %v3303 = vpop.f32.mrb[0].mxu0
      %v3304 = vadd.f32 0.0, %v3303
      %v3305 = vpop.f32.mrb[0].mxu0
      %3306 = vmatprep.mubr.bf16.mxu0 %v3191
      %3307 = vmatmul.mubr.bf16.gmra.mrb[0].mxu0 %v3031
      %v3308 = vpop.f32.mrb[0].mxu0
      %v3309 = vadd.f32 0.0, %v3308
      %v3310 = vpop.f32.mrb[0].mxu0
      %v3311 = vpop.f32.mrb[0].mxu0
      %v3312 = vadd.f32 0.0, %v3311
      %v3313 = vpop.f32.mrb[0].mxu0
      %3314 = vmatprep.mubr.bf16.mxu0 %v3191
      %3315 = vmatmul.mubr.bf16.gmra.mrb[0].mxu0 %v3037
      %v3316 = vpop.f32.mrb[0].mxu0
      %v3317 = vadd.f32 0.0, %v3316
      %v3318 = vpop.f32.mrb[0].mxu0
      %v3319 = vpop.f32.mrb[0].mxu0
      %v3320 = vadd.f32 0.0, %v3319
      %v3321 = vpop.f32.mrb[0].mxu0
      %3322 = vmatprep.mubr.bf16.mxu0 %v3194
      %3323 = vmatmul.mubr.bf16.gmra.mrb[0].mxu0 %v3040
      %v3324 = vpop.f32.mrb[0].mxu0
      %v3325 = vadd.f32 0.0, %v3324
      %v3326 = vpop.f32.mrb[0].mxu0
      %v3327 = vpop.f32.mrb[0].mxu0
      %v3328 = vadd.f32 0.0, %v3327
      %v3329 = vpop.f32.mrb[0].mxu0
      %3330 = vmatprep.mubr.bf16.mxu0 %v3194
      %3331 = vmatmul.mubr.bf16.gmra.mrb[0].mxu0 %v3046
      %v3332 = vpop.f32.mrb[0].mxu0
      %v3333 = vadd.f32 0.0, %v3332
      %v3334 = vpop.f32.mrb[0].mxu0
      %v3335 = vpop.f32.mrb[0].mxu0
      %v3336 = vadd.f32 0.0, %v3335
      %v3337 = vpop.f32.mrb[0].mxu0
      %3338 = vmatprep.mubr.bf16.mxu0 %v3197
      %3339 = vmatmul.mubr.bf16.gmra.mrb[0].mxu0 %v3049
      %v3340 = vpop.f32.mrb[0].mxu0
      %v3341 = vadd.f32 0.0, %v3340
      %v3342 = vpop.f32.mrb[0].mxu0
      %v3343 = vpop.f32.mrb[0].mxu0
      %v3344 = vadd.f32 0.0, %v3343
      %v3345 = vpop.f32.mrb[0].mxu0
      %3346 = vmatprep.mubr.bf16.mxu0 %v3197
      %3347 = vmatmul.mubr.bf16.gmra.mrb[0].mxu0 %v3055
      %v3348 = vpop.f32.mrb[0].mxu0
      %v3349 = vadd.f32 0.0, %v3348
      %v3350 = vpop.f32.mrb[0].mxu0
      %v3351 = vpop.f32.mrb[0].mxu0
      %v3352 = vadd.f32 0.0, %v3351
      %v3353 = vpop.f32.mrb[0].mxu0
      %3354 = vmatprep.mubr.bf16.mxu0 %v3200
      %3355 = vmatmul.mubr.bf16.gmra.mrb[0].mxu0 %v3058
      %v3356 = vpop.f32.mrb[0].mxu0
      %v3357 = vadd.f32 0.0, %v3356
      %v3358 = vpop.f32.mrb[0].mxu0
      %v3359 = vpop.f32.mrb[0].mxu0
      %v3360 = vadd.f32 0.0, %v3359
      %v3361 = vpop.f32.mrb[0].mxu0
      %3362 = vdwg.mxu0
      %v3363 = vadd.f32 %v2829, %v3237
      %v3364 = vadd.f32 %v2832, %v3240
      %v3365 = vadd.f32 %v2837, %v3245
      %v3366 = vadd.f32 %v2840, %v3248
      %v3367 = vadd.f32 %v2845, %v3253
      %v3368 = vadd.f32 %v2848, %v3256
      %v3369 = vadd.f32 %v2853, %v3261
      %v3370 = vadd.f32 %v2856, %v3264
      %v3371 = vadd.f32 %v2861, %v3269
      %v3372 = vadd.f32 %v2864, %v3272
      %v3373 = vadd.f32 %v2869, %v3277
      %v3374 = vadd.f32 %v2872, %v3280
      %v3375 = vadd.f32 %v2877, %v3285
      %v3376 = vadd.f32 %v2880, %v3288
      %v3377 = vadd.f32 %v2885, %v3293
      %v3378 = vadd.f32 %v2888, %v3296
      %v3379 = vadd.f32 %v2893, %v3301
      %v3380 = vadd.f32 %v2896, %v3304
      %v3381 = vadd.f32 %v2901, %v3309
      %v3382 = vadd.f32 %v2904, %v3312
      %v3383 = vadd.f32 %v2909, %v3317
      %v3384 = vadd.f32 %v2912, %v3320
      %v3385 = vadd.f32 %v2917, %v3325
      %v3386 = vadd.f32 %v2920, %v3328
      %v3387 = vadd.f32 %v2925, %v3333
      %v3388 = vadd.f32 %v2928, %v3336
      %v3389 = vadd.f32 %v2933, %v3341
      %v3390 = vadd.f32 %v2936, %v3344
      %v3391 = vadd.f32 %v2941, %v3349
      %v3392 = vadd.f32 %v2944, %v3352
      %v3393 = vadd.f32 %v2949, %v3357
      %v3394 = vadd.f32 %v2952, %v3360
      %v3395 = vadd.f32 %v1901, %v3363
      %v3396 = vadd.f32 %v1902, %v3364
      %v3397 = vadd.f32 %v1903, %v3365
      %v3398 = vadd.f32 %v1904, %v3366
      %v3399 = vadd.f32 %v1905, %v3367
      %v3400 = vadd.f32 %v1906, %v3368
      %v3401 = vadd.f32 %v1907, %v3369
      %v3402 = vadd.f32 %v1908, %v3370
      %v3403 = vadd.f32 %v1909, %v3371
      %v3404 = vadd.f32 %v1910, %v3372
      %v3405 = vadd.f32 %v1911, %v3373
      %v3406 = vadd.f32 %v1912, %v3374
      %v3407 = vadd.f32 %v1913, %v3375
      %v3408 = vadd.f32 %v1914, %v3376
      %v3409 = vadd.f32 %v1915, %v3377
      %v3410 = vadd.f32 %v1916, %v3378
      %v3411 = vadd.f32 %v1917, %v3379
      %v3412 = vadd.f32 %v1918, %v3380
      %v3413 = vadd.f32 %v1919, %v3381
      %v3414 = vadd.f32 %v1920, %v3382
      %v3415 = vadd.f32 %v1921, %v3383
      %v3416 = vadd.f32 %v1922, %v3384
      %v3417 = vadd.f32 %v1923, %v3385
      %v3418 = vadd.f32 %v1924, %v3386
      %v3419 = vadd.f32 %v1925, %v3387
      %v3420 = vadd.f32 %v1926, %v3388
      %v3421 = vadd.f32 %v1927, %v3389
      %v3422 = vadd.f32 %v1928, %v3390
      %v3423 = vadd.f32 %v1929, %v3391
      %v3424 = vadd.f32 %v1930, %v3392
      %v3425 = vadd.f32 %v1931, %v3393
      %v3426 = vadd.f32 %v1932, %v3394
      %v3427 = vld [vmem:[%s356] sm:$0x1]
      %v3429 = vlaneseq
      %v3430 = vshrl.u32 %v3429, 7
      %v3431 = vsub.s32 0, %v3430
      %v3432 = vrot.slane %v3427, %v3431
      %v3434 = vmul.f32 %v3395, %v3432
      %v3435 = vmul.f32 %v3396, %v3432
      %v3436 = vmul.f32 %v3397, %v3432
      %v3437 = vmul.f32 %v3398, %v3432
      %v3438 = vmul.f32 %v3399, %v3432
      %v3439 = vmul.f32 %v3400, %v3432
      %v3440 = vmul.f32 %v3401, %v3432
      %v3441 = vmul.f32 %v3402, %v3432
      %v3442 = vmul.f32 %v3403, %v3432
      %v3443 = vmul.f32 %v3404, %v3432
      %v3444 = vmul.f32 %v3405, %v3432
      %v3445 = vmul.f32 %v3406, %v3432
      %v3446 = vmul.f32 %v3407, %v3432
      %v3447 = vmul.f32 %v3408, %v3432
      %v3448 = vmul.f32 %v3409, %v3432
      %v3449 = vmul.f32 %v3410, %v3432
      %v3450 = vmul.f32 %v3411, %v3432
      %v3451 = vmul.f32 %v3412, %v3432
      %v3452 = vmul.f32 %v3413, %v3432
      %v3453 = vmul.f32 %v3414, %v3432
      %v3454 = vmul.f32 %v3415, %v3432
      %v3455 = vmul.f32 %v3416, %v3432
      %v3456 = vmul.f32 %v3417, %v3432
      %v3457 = vmul.f32 %v3418, %v3432
      %v3458 = vmul.f32 %v3419, %v3432
      %v3459 = vmul.f32 %v3420, %v3432
      %v3460 = vmul.f32 %v3421, %v3432
      %v3461 = vmul.f32 %v3422, %v3432
      %v3462 = vmul.f32 %v3423, %v3432
      %v3463 = vmul.f32 %v3424, %v3432
      %v3464 = vmul.f32 %v3425, %v3432
      %v3465 = vmul.f32 %v3426, %v3432
      %v3466 = vld [vmem:[%s359] sm:$0x1]
      %v3468 = vlaneseq
      %v3469 = vshrl.u32 %v3468, 7
      %v3470 = vsub.s32 0, %v3469
      %v3471 = vrot.slane %v3466, %v3470
      %v3473 = vadd.f32 %v3434, %v3471
      %v3474 = vadd.f32 %v3435, %v3471
      %v3475 = vadd.f32 %v3436, %v3471
      %v3476 = vadd.f32 %v3437, %v3471
      %v3477 = vadd.f32 %v3438, %v3471
      %v3478 = vadd.f32 %v3439, %v3471
      %v3479 = vadd.f32 %v3440, %v3471
      %v3480 = vadd.f32 %v3441, %v3471
      %v3481 = vadd.f32 %v3442, %v3471
      %v3482 = vadd.f32 %v3443, %v3471
      %v3483 = vadd.f32 %v3444, %v3471
      %v3484 = vadd.f32 %v3445, %v3471
      %v3485 = vadd.f32 %v3446, %v3471
      %v3486 = vadd.f32 %v3447, %v3471
      %v3487 = vadd.f32 %v3448, %v3471
      %v3488 = vadd.f32 %v3449, %v3471
      %v3489 = vadd.f32 %v3450, %v3471
      %v3490 = vadd.f32 %v3451, %v3471
      %v3491 = vadd.f32 %v3452, %v3471
      %v3492 = vadd.f32 %v3453, %v3471
      %v3493 = vadd.f32 %v3454, %v3471
      %v3494 = vadd.f32 %v3455, %v3471
      %v3495 = vadd.f32 %v3456, %v3471
      %v3496 = vadd.f32 %v3457, %v3471
      %v3497 = vadd.f32 %v3458, %v3471
      %v3498 = vadd.f32 %v3459, %v3471
      %v3499 = vadd.f32 %v3460, %v3471
      %v3500 = vadd.f32 %v3461, %v3471
      %v3501 = vadd.f32 %v3462, %v3471
      %v3502 = vadd.f32 %v3463, %v3471
      %v3503 = vadd.f32 %v3464, %v3471
      %v3504 = vadd.f32 %v3465, %v3471
      %vm3505 = vcmp.gt.f32.partialorder %v3473, 0.0
      %vm3506 = vcmp.gt.f32.partialorder %v3474, 0.0
      %vm3507 = vcmp.gt.f32.partialorder %v3475, 0.0
      %vm3508 = vcmp.gt.f32.partialorder %v3476, 0.0
      %vm3509 = vcmp.gt.f32.partialorder %v3477, 0.0
      %vm3510 = vcmp.gt.f32.partialorder %v3478, 0.0
      %vm3511 = vcmp.gt.f32.partialorder %v3479, 0.0
      %vm3512 = vcmp.gt.f32.partialorder %v3480, 0.0
      %vm3513 = vcmp.gt.f32.partialorder %v3481, 0.0
      %vm3514 = vcmp.gt.f32.partialorder %v3482, 0.0
      %vm3515 = vcmp.gt.f32.partialorder %v3483, 0.0
      %vm3516 = vcmp.gt.f32.partialorder %v3484, 0.0
      %vm3517 = vcmp.gt.f32.partialorder %v3485, 0.0
      %vm3518 = vcmp.gt.f32.partialorder %v3486, 0.0
      %vm3519 = vcmp.gt.f32.partialorder %v3487, 0.0
      %vm3520 = vcmp.gt.f32.partialorder %v3488, 0.0
      %vm3521 = vcmp.gt.f32.partialorder %v3489, 0.0
      %vm3522 = vcmp.gt.f32.partialorder %v3490, 0.0
      %vm3523 = vcmp.gt.f32.partialorder %v3491, 0.0
      %vm3524 = vcmp.gt.f32.partialorder %v3492, 0.0
      %vm3525 = vcmp.gt.f32.partialorder %v3493, 0.0
      %vm3526 = vcmp.gt.f32.partialorder %v3494, 0.0
      %vm3527 = vcmp.gt.f32.partialorder %v3495, 0.0
      %vm3528 = vcmp.gt.f32.partialorder %v3496, 0.0
      %vm3529 = vcmp.gt.f32.partialorder %v3497, 0.0
      %vm3530 = vcmp.gt.f32.partialorder %v3498, 0.0
      %vm3531 = vcmp.gt.f32.partialorder %v3499, 0.0
      %vm3532 = vcmp.gt.f32.partialorder %v3500, 0.0
      %vm3533 = vcmp.gt.f32.partialorder %v3501, 0.0
      %vm3534 = vcmp.gt.f32.partialorder %v3502, 0.0
      %vm3535 = vcmp.gt.f32.partialorder %v3503, 0.0
      %vm3536 = vcmp.gt.f32.partialorder %v3504, 0.0
      %v3537 = vmul.f32 %v3473, 0.1
      %v3538 = vmul.f32 %v3474, 0.1
      %v3539 = vmul.f32 %v3475, 0.1
      %v3540 = vmul.f32 %v3476, 0.1
      %v3541 = vmul.f32 %v3477, 0.1
      %v3542 = vmul.f32 %v3478, 0.1
      %v3543 = vmul.f32 %v3479, 0.1
      %v3544 = vmul.f32 %v3480, 0.1
      %v3545 = vmul.f32 %v3481, 0.1
      %v3546 = vmul.f32 %v3482, 0.1
      %v3547 = vmul.f32 %v3483, 0.1
      %v3548 = vmul.f32 %v3484, 0.1
      %v3549 = vmul.f32 %v3485, 0.1
      %v3550 = vmul.f32 %v3486, 0.1
      %v3551 = vmul.f32 %v3487, 0.1
      %v3552 = vmul.f32 %v3488, 0.1
      %v3553 = vmul.f32 %v3489, 0.1
      %v3554 = vmul.f32 %v3490, 0.1
      %v3555 = vmul.f32 %v3491, 0.1
      %v3556 = vmul.f32 %v3492, 0.1
      %v3557 = vmul.f32 %v3493, 0.1
      %v3558 = vmul.f32 %v3494, 0.1
      %v3559 = vmul.f32 %v3495, 0.1
      %v3560 = vmul.f32 %v3496, 0.1
      %v3561 = vmul.f32 %v3497, 0.1
      %v3562 = vmul.f32 %v3498, 0.1
      %v3563 = vmul.f32 %v3499, 0.1
      %v3564 = vmul.f32 %v3500, 0.1
      %v3565 = vmul.f32 %v3501, 0.1
      %v3566 = vmul.f32 %v3502, 0.1
      %v3567 = vmul.f32 %v3503, 0.1
      %v3568 = vmul.f32 %v3504, 0.1
      %v3569 = vsel %vm3505, %v3473, %v3537
      %v3570 = vsel %vm3506, %v3474, %v3538
      %v3571 = vsel %vm3507, %v3475, %v3539
      %v3572 = vsel %vm3508, %v3476, %v3540
      %v3573 = vsel %vm3509, %v3477, %v3541
      %v3574 = vsel %vm3510, %v3478, %v3542
      %v3575 = vsel %vm3511, %v3479, %v3543
      %v3576 = vsel %vm3512, %v3480, %v3544
      %v3577 = vsel %vm3513, %v3481, %v3545
      %v3578 = vsel %vm3514, %v3482, %v3546
      %v3579 = vsel %vm3515, %v3483, %v3547
      %v3580 = vsel %vm3516, %v3484, %v3548
      %v3581 = vsel %vm3517, %v3485, %v3549
      %v3582 = vsel %vm3518, %v3486, %v3550
      %v3583 = vsel %vm3519, %v3487, %v3551
      %v3584 = vsel %vm3520, %v3488, %v3552
      %v3585 = vsel %vm3521, %v3489, %v3553
      %v3586 = vsel %vm3522, %v3490, %v3554
      %v3587 = vsel %vm3523, %v3491, %v3555
      %v3588 = vsel %vm3524, %v3492, %v3556
      %v3589 = vsel %vm3525, %v3493, %v3557
      %v3590 = vsel %vm3526, %v3494, %v3558
      %v3591 = vsel %vm3527, %v3495, %v3559
      %v3592 = vsel %vm3528, %v3496, %v3560
      %v3593 = vsel %vm3529, %v3497, %v3561
      %v3594 = vsel %vm3530, %v3498, %v3562
      %v3595 = vsel %vm3531, %v3499, %v3563
      %v3596 = vsel %vm3532, %v3500, %v3564
      %v3597 = vsel %vm3533, %v3501, %v3565
      %v3598 = vsel %vm3534, %v3502, %v3566
      %v3599 = vsel %vm3535, %v3503, %v3567
      %v3600 = vsel %vm3536, %v3504, %v3568
      %v3601 = vpack.c.bf16 %v3570, %v3569
      %v3602 = vpack.c.bf16 %v3572, %v3571
      %v3603 = vpack.c.bf16 %v3574, %v3573
      %v3604 = vpack.c.bf16 %v3576, %v3575
      %v3605 = vpack.c.bf16 %v3578, %v3577
      %v3606 = vpack.c.bf16 %v3580, %v3579
      %v3607 = vpack.c.bf16 %v3582, %v3581
      %v3608 = vpack.c.bf16 %v3584, %v3583
      %v3609 = vpack.c.bf16 %v3586, %v3585
      %v3610 = vpack.c.bf16 %v3588, %v3587
      %v3611 = vpack.c.bf16 %v3590, %v3589
      %v3612 = vpack.c.bf16 %v3592, %v3591
      %v3613 = vpack.c.bf16 %v3594, %v3593
      %v3614 = vpack.c.bf16 %v3596, %v3595
      %v3615 = vpack.c.bf16 %v3598, %v3597
      %v3616 = vpack.c.bf16 %v3600, %v3599
      %v3633 = vunpack.c.l.b16 %v3601
      %v3634 = vunpack.c.h.b16 %v3601
      %v3635 = vunpack.c.l.b16 %v3602
      %v3636 = vunpack.c.h.b16 %v3602
      %v3637 = vunpack.c.l.b16 %v3603
      %v3638 = vunpack.c.h.b16 %v3603
      %v3639 = vunpack.c.l.b16 %v3604
      %v3640 = vunpack.c.h.b16 %v3604
      %v3641 = vunpack.c.l.b16 %v3605
      %v3642 = vunpack.c.h.b16 %v3605
      %v3643 = vunpack.c.l.b16 %v3606
      %v3644 = vunpack.c.h.b16 %v3606
      %v3645 = vunpack.c.l.b16 %v3607
      %v3646 = vunpack.c.h.b16 %v3607
      %v3647 = vunpack.c.l.b16 %v3608
      %v3648 = vunpack.c.h.b16 %v3608
      %v3649 = vunpack.c.l.b16 %v3609
      %v3650 = vunpack.c.h.b16 %v3609
      %v3651 = vunpack.c.l.b16 %v3610
      %v3652 = vunpack.c.h.b16 %v3610
      %v3653 = vunpack.c.l.b16 %v3611
      %v3654 = vunpack.c.h.b16 %v3611
      %v3655 = vunpack.c.l.b16 %v3612
      %v3656 = vunpack.c.h.b16 %v3612
      %v3657 = vunpack.c.l.b16 %v3613
      %v3658 = vunpack.c.h.b16 %v3613
      %v3659 = vunpack.c.l.b16 %v3614
      %v3660 = vunpack.c.h.b16 %v3614
      %v3661 = vunpack.c.l.b16 %v3615
      %v3662 = vunpack.c.h.b16 %v3615
      %v3663 = vunpack.c.l.b16 %v3616
      %v3664 = vunpack.c.h.b16 %v3616
      %v3665 = vpack.c.b16 %v3633, %v3633
      %v3666 = vpack.c.b16 %v3634, %v3634
      %v3667 = vpack.c.b16 %v3635, %v3635
      %v3668 = vpack.c.b16 %v3636, %v3636
      %v3669 = vpack.c.b16 %v3637, %v3637
      %v3670 = vpack.c.b16 %v3638, %v3638
      %v3671 = vpack.c.b16 %v3639, %v3639
      %v3672 = vpack.c.b16 %v3640, %v3640
      %v3673 = vpack.c.b16 %v3641, %v3641
      %v3674 = vpack.c.b16 %v3642, %v3642
      %v3675 = vpack.c.b16 %v3643, %v3643
      %v3676 = vpack.c.b16 %v3644, %v3644
      %v3677 = vpack.c.b16 %v3645, %v3645
      %v3678 = vpack.c.b16 %v3646, %v3646
      %v3679 = vpack.c.b16 %v3647, %v3647
      %v3680 = vpack.c.b16 %v3648, %v3648
      %v3681 = vpack.c.b16 %v3649, %v3649
      %v3682 = vpack.c.b16 %v3650, %v3650
      %v3683 = vpack.c.b16 %v3651, %v3651
      %v3684 = vpack.c.b16 %v3652, %v3652
      %v3685 = vpack.c.b16 %v3653, %v3653
      %v3686 = vpack.c.b16 %v3654, %v3654
      %v3687 = vpack.c.b16 %v3655, %v3655
      %v3688 = vpack.c.b16 %v3656, %v3656
      %v3689 = vpack.c.b16 %v3657, %v3657
      %v3690 = vpack.c.b16 %v3658, %v3658
      %v3691 = vpack.c.b16 %v3659, %v3659
      %v3692 = vpack.c.b16 %v3660, %v3660
      %v3693 = vpack.c.b16 %v3661, %v3661
      %v3694 = vpack.c.b16 %v3662, %v3662
      %v3695 = vpack.c.b16 %v3663, %v3663
      %v3696 = vpack.c.b16 %v3664, %v3664
      %3729 = vst [vmem:[%s372] sm:$0xf] %v3665
      %3730 = vst [vmem:[%s372 + $0x4] sm:$0xf] %v3666
      %3731 = vst [vmem:[%s372 + $0x8] sm:$0xf] %v3667
      %3732 = vst [vmem:[%s372 + $0xc] sm:$0xf] %v3668
      %3733 = vst [vmem:[%s372 + $0x10] sm:$0xf] %v3669
      %3734 = vst [vmem:[%s372 + $0x14] sm:$0xf] %v3670
      %3735 = vst [vmem:[%s372 + $0x18] sm:$0xf] %v3671
      %3736 = vst [vmem:[%s372 + $0x1c] sm:$0xf] %v3672
      %3737 = vst [vmem:[%s372 + $0x20] sm:$0xf] %v3673
      %3738 = vst [vmem:[%s372 + $0x24] sm:$0xf] %v3674
      %3739 = vst [vmem:[%s372 + $0x28] sm:$0xf] %v3675
      %3740 = vst [vmem:[%s372 + $0x2c] sm:$0xf] %v3676
      %3741 = vst [vmem:[%s372 + $0x30] sm:$0xf] %v3677
      %3742 = vst [vmem:[%s372 + $0x34] sm:$0xf] %v3678
      %3743 = vst [vmem:[%s372 + $0x38] sm:$0xf] %v3679
      %3744 = vst [vmem:[%s372 + $0x3c] sm:$0xf] %v3680
      %3745 = vst [vmem:[%s372 + $0x40] sm:$0xf] %v3681
      %3746 = vst [vmem:[%s372 + $0x44] sm:$0xf] %v3682
      %3747 = vst [vmem:[%s372 + $0x48] sm:$0xf] %v3683
      %3748 = vst [vmem:[%s372 + $0x4c] sm:$0xf] %v3684
      %3749 = vst [vmem:[%s372 + $0x50] sm:$0xf] %v3685
      %3750 = vst [vmem:[%s372 + $0x54] sm:$0xf] %v3686
      %3751 = vst [vmem:[%s372 + $0x58] sm:$0xf] %v3687
      %3752 = vst [vmem:[%s372 + $0x5c] sm:$0xf] %v3688
      %3753 = vst [vmem:[%s372 + $0x60] sm:$0xf] %v3689
      %3754 = vst [vmem:[%s372 + $0x64] sm:$0xf] %v3690
      %3755 = vst [vmem:[%s372 + $0x68] sm:$0xf] %v3691
      %3756 = vst [vmem:[%s372 + $0x6c] sm:$0xf] %v3692
      %3757 = vst [vmem:[%s372 + $0x70] sm:$0xf] %v3693
      %3758 = vst [vmem:[%s372 + $0x74] sm:$0xf] %v3694
      %3759 = vst [vmem:[%s372 + $0x78] sm:$0xf] %v3695
      %3760 = vst [vmem:[%s372 + $0x7c] sm:$0xf] %v3696
      %s3761 = smul.u32 16, %s24
      %p3762 = scmp.lt.s32.totalorder %s22, 1
      %s3763 = scalar_select %p3762, %s22, 1
      %p3764 = scmp.lt.s32.totalorder %s3761, 15
      %s3765 = scalar_select %p3764, %s3761, 15
      %p3766 = scmp.lt.s32.totalorder %s23, 0
      %s3767 = scalar_select %p3766, %s23, 0
      %s3768 = smul.addr %s3765, 2
      %s3769 = sadd.s32 %s3767, %s3768
      %s3770 = smul.addr %s3763, 32
      %s3771 = sadd.s32 %s3769, %s3770
      %s3772 = smul.addr %s3771, 4
      %s3773 = scalar_lea.vmem %s6, %s3772
      // Predicated region
      $region45: #{upsample_layer_forward.3} parent=43 // pred_check
        %p3774 = pneg %p214
      $region46: #{upsample_layer_forward.3} parent=43 // pred_check_branch
        %3776 = sbr.rel (%p3774) target = $region48
      $region47: #{upsample_layer_forward.3} parent=43 // pred_region
        %s3777 = smul.u32 16, %s24
      $region48: #{upsample_layer_forward.3} parent=43 // pred_fallthru
        _
    $region44: #{upsample_layer_forward.3} parent=5 // pred_fallthru
      _
    %p3778 = scmp.le.s32.totalorder 2, %s12
    // Predicated region
    $region49: #{upsample_layer_forward.3} parent=5 // pred_check
      %p3779 = pneg %p3778
    $region50: #{upsample_layer_forward.3} parent=5 // pred_check_branch
      %3781 = sbr.rel (%p3779) target = $region52
    $region51: #{upsample_layer_forward.3} parent=5 // pred_region
      %s3782 = ssub.s32 %s12, 2
      // Predicated region
      $region53: #{upsample_layer_forward.3} parent=51 // pred_check
        %p3783 = pneg %p220
      $region54: #{upsample_layer_forward.3} parent=51 // pred_check_branch
        %3785 = sbr.rel (%p3783) target = $region56
      $region55: #{upsample_layer_forward.3} parent=51 // pred_region
        %s3786 = smul.u32 16, %s27
        %p3787 = scmp.lt.s32.totalorder %s25, 1
        %s3788 = scalar_select %p3787, %s25, 1
        %p3789 = scmp.lt.s32.totalorder %s3786, 15
        %s3790 = scalar_select %p3789, %s3786, 15
        %p3791 = scmp.lt.s32.totalorder %s26, 0
        %s3792 = scalar_select %p3791, %s26, 0
        %s3793 = smul.addr %s3790, 2
        %s3794 = sadd.s32 %s3792, %s3793
        %s3795 = smul.addr %s3788, 32
        %s3796 = sadd.s32 %s3794, %s3795
        %s3797 = smul.addr %s3796, 4
        %s3798 = scalar_lea.vmem %s6, %s3797
      $region56: #{upsample_layer_forward.3} parent=51 // pred_fallthru
        _
    $region52: #{upsample_layer_forward.3} parent=5 // pred_fallthru
      _
  $region6: #{upsample_layer_forward.3} parent=0 // loop_footer
    %s16 = sadd.s32 1, %s12
  $region7: #{upsample_layer_forward.3} parent=0 // loop_footer_branch
    %11 = sbr.rel target = $region3
  $region8: #{upsample_layer_forward.3} parent=0 // loop_exit
    _

</llo_original>
